<compile_context>
chip_gen: v6e
topology: v6e:2x2x1
jax: 0.10.0
libtpu: 0.0.40
codegen_flags: <defaults>
</compile_context>

<pallas_src>
import functools

import jax
import jax.numpy as jnp
from jax.experimental import pallas as pl
from jax.experimental.pallas import tpu as pltpu

BN_EPS = 1e-3


# ---------------------------------------------------------------------------
# Pallas kernels
# ---------------------------------------------------------------------------
def _fused_matmul_kernel(*refs, epilogue, relu, has_res, eps):
    """(M,K)@(K,N) on the MXU with the conv epilogue fused in.

    refs = (a, w, [bias] | [gamma, beta], [residual], out)
      epilogue == "bias": y += bias
      epilogue == "bn"  : train-mode BatchNorm (batch stats computed in-kernel)
      epilogue == "none": raw matmul
    then optional residual add and optional ReLU.
    """
    a_ref, w_ref = refs[0], refs[1]
    o_ref = refs[-1]
    idx = 2

    y = jnp.dot(a_ref[...], w_ref[...], preferred_element_type=jnp.float32)

    if epilogue == "bias":
        y = y + refs[idx][...]
        idx += 1
    elif epilogue == "bn":
        gamma = refs[idx][...]
        beta = refs[idx + 1][...]
        idx += 2
        mean = jnp.mean(y, axis=0, keepdims=True)
        var = jnp.maximum(jnp.mean(y * y, axis=0, keepdims=True) - mean * mean, 0.0)
        scale = gamma * jax.lax.rsqrt(var + eps)
        y = y * scale + (beta - mean * scale)

    if has_res:
        y = y + refs[idx][...]
        idx += 1
    if relu:
        y = jnp.maximum(y, 0.0)
    o_ref[...] = y


def _bn_act_kernel(x_ref, gamma_ref, beta_ref, o_ref, *, relu, eps):
    """Train-mode BatchNorm (batch stats in-kernel) + optional ReLU, elementwise."""
    x = x_ref[...]
    mean = jnp.mean(x, axis=0, keepdims=True)
    var = jnp.maximum(jnp.mean(x * x, axis=0, keepdims=True) - mean * mean, 0.0)
    scale = gamma_ref[...] * jax.lax.rsqrt(var + eps)
    y = x * scale + (beta_ref[...] - mean * scale)
    if relu:
        y = jnp.maximum(y, 0.0)
    o_ref[...] = y


_VMEM = pl.BlockSpec(memory_space=pltpu.MemorySpace.VMEM)


def fused_matmul(a_bf16, w_bf16, *, bias=None, bn=None, residual=None, relu=False):
    """One pallas_call: (M,K)@(K,N) + fused epilogue.  Whole arrays in VMEM."""
    M, K = a_bf16.shape
    K2, N = w_bf16.shape
    assert K == K2, (K, K2)

    inputs = [a_bf16, w_bf16]
    if bias is not None:
        epilogue = "bias"
        inputs.append(bias.reshape(1, N).astype(jnp.float32))
    elif bn is not None:
        epilogue = "bn"
        gamma, beta = bn
        inputs.append(gamma.reshape(1, N).astype(jnp.float32))
        inputs.append(beta.reshape(1, N).astype(jnp.float32))
    else:
        epilogue = "none"
    has_res = residual is not None
    if has_res:
        inputs.append(residual.astype(jnp.float32))

    kernel = functools.partial(_fused_matmul_kernel, epilogue=epilogue,
                               relu=relu, has_res=has_res, eps=BN_EPS)
    return pl.pallas_call(
        kernel,
        out_shape=jax.ShapeDtypeStruct((M, N), jnp.float32),
        in_specs=[_VMEM] * len(inputs),
        out_specs=_VMEM,
    )(*inputs)


def bn_act(x2d, gamma, beta, relu=True):
    """Fused batch-stat BatchNorm + ReLU over a (M, C) activation (one call)."""
    M, C = x2d.shape
    return pl.pallas_call(
        functools.partial(_bn_act_kernel, relu=relu, eps=BN_EPS),
        out_shape=jax.ShapeDtypeStruct((M, C), jnp.float32),
        in_specs=[_VMEM, _VMEM, _VMEM],
        out_specs=_VMEM,
    )(x2d.astype(jnp.float32), gamma.reshape(1, C), beta.reshape(1, C))


# ---------------------------------------------------------------------------
# XLA glue: im2col, zero-upsampling, maxpool
# ---------------------------------------------------------------------------
def _im2col(x_nhwc, kh, kw, stride, pad, dil):
    """pad = ((ph0, ph1), (pw0, pw1)); dil = (dh, dw). Returns bf16 (M, kh*kw*C)."""
    N, H, W, C = x_nhwc.shape
    (ph0, ph1), (pw0, pw1) = pad
    dh, dw = dil
    xp = jnp.pad(x_nhwc, ((0, 0), (ph0, ph1), (pw0, pw1), (0, 0))).astype(jnp.bfloat16)
    Hp, Wp = H + ph0 + ph1, W + pw0 + pw1
    Ho = (Hp - (dh * (kh - 1) + 1)) // stride + 1
    Wo = (Wp - (dw * (kw - 1) + 1)) // stride + 1
    cols = []
    for i in range(kh):
        for j in range(kw):
            hi, wj = i * dh, j * dw
            cols.append(xp[:, hi:hi + stride * (Ho - 1) + 1:stride,
                           wj:wj + stride * (Wo - 1) + 1:stride, :])
    patches = jnp.concatenate(cols, axis=-1).reshape(N * Ho * Wo, kh * kw * C)
    return patches, Ho, Wo


def conv2d(x, w_mat, kh, kw, *, stride=1, pad=((0, 0), (0, 0)), dil=(1, 1),
           bias=None, bn=None, residual=None, relu=False):
    """Conv via im2col + fused Pallas matmul. w_mat: (kh*kw*Cin, Cout), bf16."""
    N = x.shape[0]
    patches, Ho, Wo = _im2col(x, kh, kw, stride, pad, dil)
    res2d = None if residual is None else residual.reshape(N * Ho * Wo, -1)
    out = fused_matmul(patches, w_mat, bias=bias, bn=bn, residual=res2d, relu=relu)
    return out.reshape(N, Ho, Wo, -1)


def _zero_upsample2(x, lo, hi):
    """Insert one zero between spatial elements and pad (lo, hi) on each side."""
    zero = jnp.zeros((), x.dtype)
    return jax.lax.pad(x, zero, ((0, 0, 0), (lo, hi, 1), (lo, hi, 1), (0, 0, 0)))


# ---------------------------------------------------------------------------
# ERFNet building blocks
# ---------------------------------------------------------------------------
def downsampler_block(x, p):
    N, H, W, C = x.shape
    patches, Ho, Wo = _im2col(x, 3, 3, 2, ((1, 1), (1, 1)), (1, 1))
    conv = fused_matmul(patches, p["w"])                       # raw (M, Cout - Cin)
    pooled = x[:, :Ho * 2, :Wo * 2, :].reshape(N, Ho, 2, Wo, 2, C).max(axis=(2, 4))
    cat = jnp.concatenate([conv.reshape(N, Ho, Wo, -1), pooled], axis=-1)
    Ccat = cat.shape[-1]
    out = bn_act(cat.reshape(N * Ho * Wo, Ccat), p["gamma"], p["beta"], relu=True)
    return out.reshape(N, Ho, Wo, Ccat)


def non_bottleneck_1d(x, p, dil):
    y = conv2d(x, p["w1"], 3, 1, pad=((1, 1), (0, 0)), bias=p["b1"], relu=True)
    y = conv2d(y, p["w2"], 1, 3, pad=((0, 0), (1, 1)),
               bn=(p["g1"], p["be1"]), relu=True)
    y = conv2d(y, p["w3"], 3, 1, pad=((dil, dil), (0, 0)), dil=(dil, 1),
               bias=p["b3"], relu=True)
    # TODO(synk): Dropout2d(p) runs as identity (eval semantics).
    y = conv2d(y, p["w4"], 1, 3, pad=((0, 0), (dil, dil)), dil=(1, dil),
               bn=(p["g2"], p["be2"]), residual=x, relu=True)
    return y


def upsampler_block(x, p):
    # ConvTranspose2d(cin, cout, 3, stride=2, padding=1, output_padding=1) + BN + ReLU.
    xu = _zero_upsample2(x, lo=1, hi=2)
    return conv2d(xu, p["w"], 3, 3, bn=(p["gamma"], p["beta"]), relu=True)


ENC_DILATIONS = (2, 4, 8, 16, 2, 4, 8, 16)


def encoder_forward(p, x):
    out = downsampler_block(x, p["init"])
    out = downsampler_block(out, p["down1"])
    for lp in p["nb64"]:
        out = non_bottleneck_1d(out, lp, 1)
    out = downsampler_block(out, p["down2"])
    for lp, d in zip(p["nb128"], ENC_DILATIONS):
        out = non_bottleneck_1d(out, lp, d)
    return out


def decoder_forward(p, x):
    out = upsampler_block(x, p["up1"])
    for lp in p["nb64"]:
        out = non_bottleneck_1d(out, lp, 1)
    out = upsampler_block(out, p["up2"])
    for lp in p["nb16"]:
        out = non_bottleneck_1d(out, lp, 1)
    # output ConvTranspose2d(16, num_classes, 2, stride=2, padding=0) + bias.
    xu = _zero_upsample2(out, lo=1, hi=1)
    return conv2d(xu, p["out_w"], 2, 2, bias=p["out_b"])


def net_forward(params, x_nchw, only_encode=False):
    x = jnp.transpose(x_nchw, (0, 2, 3, 1))                    # NCHW -> NHWC
    enc = encoder_forward(params["enc"], x)
    if only_encode:
        out = conv2d(enc, params["enc"]["out_w"], 1, 1,
                     bias=params["enc"]["out_b"])
    else:
        out = decoder_forward(params["dec"], enc)
    return jnp.transpose(out, (0, 3, 1, 2))                    # NHWC -> NCHW


# ---------------------------------------------------------------------------
# Parameter construction (weights stored pre-flattened as (kh*kw*Cin, Cout) bf16)
# ---------------------------------------------------------------------------
def _conv_w(key, kh, kw, cin, cout):
    fan_in = kh * kw * cin
    w = jax.random.normal(key, (fan_in, cout), jnp.float32) / (fan_in ** 0.5)
    return w.astype(jnp.bfloat16)


def _nb1d_params(keys, c):
    return {
        "w1": _conv_w(next(keys), 3, 1, c, c),
        "b1": 0.01 * jax.random.normal(next(keys), (c,), jnp.float32),
        "w2": _conv_w(next(keys), 1, 3, c, c),      # bias cancelled by batch-stat BN
        "g1": jnp.ones((c,), jnp.float32),
        "be1": jnp.zeros((c,), jnp.float32),
        "w3": _conv_w(next(keys), 3, 1, c, c),
        "b3": 0.01 * jax.random.normal(next(keys), (c,), jnp.float32),
        "w4": _conv_w(next(keys), 1, 3, c, c),      # bias cancelled by batch-stat BN
        "g2": jnp.ones((c,), jnp.float32),
        "be2": jnp.zeros((c,), jnp.float32),
    }


def _downsampler_params(keys, cin, cout):
    return {
        # conv bias omitted: exactly cancelled by the batch-stat BN that follows.
        "w": _conv_w(next(keys), 3, 3, cin, cout - cin),
        "gamma": jnp.ones((cout,), jnp.float32),
        "beta": jnp.zeros((cout,), jnp.float32),
    }


def _upsampler_params(keys, cin, cout):
    return {
        # direct-conv equivalent of the ConvTranspose2d weight (bias cancelled by BN).
        "w": _conv_w(next(keys), 3, 3, cin, cout),
        "gamma": jnp.ones((cout,), jnp.float32),
        "beta": jnp.zeros((cout,), jnp.float32),
    }


def init_params(key, num_classes):
    keys = iter(jax.random.split(key, 256))
    enc = {
        "init": _downsampler_params(keys, 3, 16),
        "down1": _downsampler_params(keys, 16, 64),
        "nb64": [_nb1d_params(keys, 64) for _ in range(5)],
        "down2": _downsampler_params(keys, 64, 128),
        "nb128": [_nb1d_params(keys, 128) for _ in range(8)],
        # Encoder's predict-path 1x1 output conv (unused when only_encode=False).
        "out_w": _conv_w(next(keys), 1, 1, 128, num_classes),
        "out_b": jnp.zeros((num_classes,), jnp.float32),
    }
    dec = {
        "up1": _upsampler_params(keys, 128, 64),
        "nb64": [_nb1d_params(keys, 64) for _ in range(2)],
        "up2": _upsampler_params(keys, 64, 16),
        "nb16": [_nb1d_params(keys, 16) for _ in range(2)],
        "out_w": _conv_w(next(keys), 2, 2, 16, num_classes),
        "out_b": 0.01 * jax.random.normal(next(keys), (num_classes,), jnp.float32),
    }
    return {"enc": enc, "dec": dec}


if __name__ == "__main__":
    key = jax.random.PRNGKey(0)
    pkey, xkey = jax.random.split(key)

    num_classes = 5
    params = init_params(pkey, num_classes)
    x = jax.random.normal(xkey, (2, 3, 16, 16), jnp.float32)   # NCHW, like PyTorch

    fwd = jax.jit(functools.partial(net_forward, only_encode=False))
    out = jax.block_until_ready(fwd(params, x))

    # 16x16 -> encoder 2x2 (x128) -> decoder upsamples back to 16x16 (x num_classes).
    assert out.shape == (2, num_classes, 16, 16), out.shape
    assert bool(jnp.all(jnp.isfinite(out)))
    print("KERNEL_OK")
</pallas_src>

<mosaic_0001>
module attributes {stable_mosaic.version = 11 : i64} {
  func.func @_fused_matmul_kernel(%arg0: memref<128x27xbf16, #tpu.memory_space<vmem>>, %arg1: memref<27x13xbf16, #tpu.memory_space<vmem>>, %arg2: memref<128x13xf32, #tpu.memory_space<vmem>>) attributes {dimension_semantics = [], scalar_prefetch = 0 : i64, scratch_operands = 0 : i64, tpu.core_type = #tpu.core_type<tc>} {
    %c0 = arith.constant 0 : index
    %c0_0 = arith.constant 0 : index
    %0 = vector.load %arg0[%c0, %c0_0] : memref<128x27xbf16, #tpu.memory_space<vmem>>, vector<128x27xbf16>
    %c0_1 = arith.constant 0 : index
    %c0_2 = arith.constant 0 : index
    %1 = vector.load %arg1[%c0_1, %c0_2] : memref<27x13xbf16, #tpu.memory_space<vmem>>, vector<27x13xbf16>
    %cst = arith.constant dense<0.000000e+00> : vector<128x13xf32>
    %2 = tpu.matmul %0, %1, %cst {dimension_numbers = #tpu.dot_dimension_numbers<[1], [0], [0], [1], [0, 0, 1, 1], [], []>} : vector<128x27xbf16>, vector<27x13xbf16>, vector<128x13xf32> -> vector<128x13xf32>
    %c0_3 = arith.constant 0 : index
    %c0_4 = arith.constant 0 : index
    %3 = vector.load %arg2[%c0_3, %c0_4] : memref<128x13xf32, #tpu.memory_space<vmem>>, vector<128x13xf32>
    tpu.vector_store %arg2[%c0_3, %c0_4], %2 {strides = array<i32>} : memref<128x13xf32, #tpu.memory_space<vmem>>, vector<128x13xf32>,
    return
  }
}

module attributes {stable_mosaic.version = 11 : i64} {
  func.func @_bn_act_kernel(%arg0: memref<128x16xf32, #tpu.memory_space<vmem>>, %arg1: memref<1x16xf32, #tpu.memory_space<vmem>>, %arg2: memref<1x16xf32, #tpu.memory_space<vmem>>, %arg3: memref<128x16xf32, #tpu.memory_space<vmem>>) attributes {dimension_semantics = [], scalar_prefetch = 0 : i64, scratch_operands = 0 : i64, tpu.core_type = #tpu.core_type<tc>} {
    %c0 = arith.constant 0 : index
    %c0_0 = arith.constant 0 : index
    %0 = vector.load %arg0[%c0, %c0_0] : memref<128x16xf32, #tpu.memory_space<vmem>>, vector<128x16xf32>
    %cst = arith.constant dense<0.000000e+00> : vector<16xf32>
    %1 = vector.multi_reduction <add>, %0, %cst [0] : vector<128x16xf32> to vector<16xf32>
    %2 = vector.shape_cast %1 : vector<16xf32> to vector<1x16xf32>
    %cst_1 = arith.constant 1.280000e+02 : f32
    %3 = vector.broadcast %cst_1 : f32 to vector<1x16xf32>
    %4 = arith.divf %2, %3 : vector<1x16xf32>
    %5 = arith.mulf %0, %0 : vector<128x16xf32>
    %cst_2 = arith.constant dense<0.000000e+00> : vector<16xf32>
    %6 = vector.multi_reduction <add>, %5, %cst_2 [0] : vector<128x16xf32> to vector<16xf32>
    %7 = vector.shape_cast %6 : vector<16xf32> to vector<1x16xf32>
    %cst_3 = arith.constant 1.280000e+02 : f32
    %8 = vector.broadcast %cst_3 : f32 to vector<1x16xf32>
    %9 = arith.divf %7, %8 : vector<1x16xf32>
    %10 = arith.mulf %4, %4 : vector<1x16xf32>
    %11 = arith.subf %9, %10 : vector<1x16xf32>
    %cst_4 = arith.constant 0.000000e+00 : f32
    %12 = vector.broadcast %cst_4 : f32 to vector<1x16xf32>
    %13 = arith.maximumf %11, %12 : vector<1x16xf32>
    %c0_5 = arith.constant 0 : index
    %c0_6 = arith.constant 0 : index
    %14 = vector.load %arg1[%c0_5, %c0_6] : memref<1x16xf32, #tpu.memory_space<vmem>>, vector<1x16xf32>
    %cst_7 = arith.constant 1.000000e-03 : f32
    %15 = vector.broadcast %cst_7 : f32 to vector<1x16xf32>
    %16 = arith.addf %13, %15 : vector<1x16xf32>
    %17 = math.rsqrt %16 : vector<1x16xf32>
    %18 = arith.mulf %14, %17 : vector<1x16xf32>
    %19 = vector.broadcast %18 : vector<1x16xf32> to vector<128x16xf32>
    %20 = arith.mulf %0, %19 : vector<128x16xf32>
    %c0_8 = arith.constant 0 : index
    %c0_9 = arith.constant 0 : index
    %21 = vector.load %arg2[%c0_8, %c0_9] : memref<1x16xf32, #tpu.memory_space<vmem>>, vector<1x16xf32>
    %22 = arith.mulf %4, %18 : vector<1x16xf32>
    %23 = arith.subf %21, %22 : vector<1x16xf32>
    %24 = vector.broadcast %23 : vector<1x16xf32> to vector<128x16xf32>
    %25 = arith.addf %20, %24 : vector<128x16xf32>
    %cst_10 = arith.constant 0.000000e+00 : f32
    %26 = vector.broadcast %cst_10 : f32 to vector<128x16xf32>
    %27 = arith.maximumf %25, %26 : vector<128x16xf32>
    %c0_11 = arith.constant 0 : index
    %c0_12 = arith.constant 0 : index
    %28 = vector.load %arg3[%c0_11, %c0_12] : memref<128x16xf32, #tpu.memory_space<vmem>>, vector<128x16xf32>
    tpu.vector_store %arg3[%c0_11, %c0_12], %27 {strides = array<i32>} : memref<128x16xf32, #tpu.memory_space<vmem>>, vector<128x16xf32>,
    return
  }
}

module attributes {stable_mosaic.version = 11 : i64} {
  func.func @_fused_matmul_kernel(%arg0: memref<32x144xbf16, #tpu.memory_space<vmem>>, %arg1: memref<144x48xbf16, #tpu.memory_space<vmem>>, %arg2: memref<32x48xf32, #tpu.memory_space<vmem>>) attributes {dimension_semantics = [], scalar_prefetch = 0 : i64, scratch_operands = 0 : i64, tpu.core_type = #tpu.core_type<tc>} {
    %c0 = arith.constant 0 : index
    %c0_0 = arith.constant 0 : index
    %0 = vector.load %arg0[%c0, %c0_0] : memref<32x144xbf16, #tpu.memory_space<vmem>>, vector<32x144xbf16>
    %c0_1 = arith.constant 0 : index
    %c0_2 = arith.constant 0 : index
    %1 = vector.load %arg1[%c0_1, %c0_2] : memref<144x48xbf16, #tpu.memory_space<vmem>>, vector<144x48xbf16>
    %cst = arith.constant dense<0.000000e+00> : vector<32x48xf32>
    %2 = tpu.matmul %0, %1, %cst {dimension_numbers = #tpu.dot_dimension_numbers<[1], [0], [0], [1], [0, 0, 1, 1], [], []>} : vector<32x144xbf16>, vector<144x48xbf16>, vector<32x48xf32> -> vector<32x48xf32>
    %c0_3 = arith.constant 0 : index
    %c0_4 = arith.constant 0 : index
    %3 = vector.load %arg2[%c0_3, %c0_4] : memref<32x48xf32, #tpu.memory_space<vmem>>, vector<32x48xf32>
    tpu.vector_store %arg2[%c0_3, %c0_4], %2 {strides = array<i32>} : memref<32x48xf32, #tpu.memory_space<vmem>>, vector<32x48xf32>,
    return
  }
}

module attributes {stable_mosaic.version = 11 : i64} {
  func.func @_bn_act_kernel(%arg0: memref<32x64xf32, #tpu.memory_space<vmem>>, %arg1: memref<1x64xf32, #tpu.memory_space<vmem>>, %arg2: memref<1x64xf32, #tpu.memory_space<vmem>>, %arg3: memref<32x64xf32, #tpu.memory_space<vmem>>) attributes {dimension_semantics = [], scalar_prefetch = 0 : i64, scratch_operands = 0 : i64, tpu.core_type = #tpu.core_type<tc>} {
    %c0 = arith.constant 0 : index
    %c0_0 = arith.constant 0 : index
    %0 = vector.load %arg0[%c0, %c0_0] : memref<32x64xf32, #tpu.memory_space<vmem>>, vector<32x64xf32>
    %cst = arith.constant dense<0.000000e+00> : vector<64xf32>
    %1 = vector.multi_reduction <add>, %0, %cst [0] : vector<32x64xf32> to vector<64xf32>
    %2 = vector.shape_cast %1 : vector<64xf32> to vector<1x64xf32>
    %cst_1 = arith.constant 3.200000e+01 : f32
    %3 = vector.broadcast %cst_1 : f32 to vector<1x64xf32>
    %4 = arith.divf %2, %3 : vector<1x64xf32>
    %5 = arith.mulf %0, %0 : vector<32x64xf32>
    %cst_2 = arith.constant dense<0.000000e+00> : vector<64xf32>
    %6 = vector.multi_reduction <add>, %5, %cst_2 [0] : vector<32x64xf32> to vector<64xf32>
    %7 = vector.shape_cast %6 : vector<64xf32> to vector<1x64xf32>
    %cst_3 = arith.constant 3.200000e+01 : f32
    %8 = vector.broadcast %cst_3 : f32 to vector<1x64xf32>
    %9 = arith.divf %7, %8 : vector<1x64xf32>
    %10 = arith.mulf %4, %4 : vector<1x64xf32>
    %11 = arith.subf %9, %10 : vector<1x64xf32>
    %cst_4 = arith.constant 0.000000e+00 : f32
    %12 = vector.broadcast %cst_4 : f32 to vector<1x64xf32>
    %13 = arith.maximumf %11, %12 : vector<1x64xf32>
    %c0_5 = arith.constant 0 : index
    %c0_6 = arith.constant 0 : index
    %14 = vector.load %arg1[%c0_5, %c0_6] : memref<1x64xf32, #tpu.memory_space<vmem>>, vector<1x64xf32>
    %cst_7 = arith.constant 1.000000e-03 : f32
    %15 = vector.broadcast %cst_7 : f32 to vector<1x64xf32>
    %16 = arith.addf %13, %15 : vector<1x64xf32>
    %17 = math.rsqrt %16 : vector<1x64xf32>
    %18 = arith.mulf %14, %17 : vector<1x64xf32>
    %19 = vector.broadcast %18 : vector<1x64xf32> to vector<32x64xf32>
    %20 = arith.mulf %0, %19 : vector<32x64xf32>
    %c0_8 = arith.constant 0 : index
    %c0_9 = arith.constant 0 : index
    %21 = vector.load %arg2[%c0_8, %c0_9] : memref<1x64xf32, #tpu.memory_space<vmem>>, vector<1x64xf32>
    %22 = arith.mulf %4, %18 : vector<1x64xf32>
    %23 = arith.subf %21, %22 : vector<1x64xf32>
    %24 = vector.broadcast %23 : vector<1x64xf32> to vector<32x64xf32>
    %25 = arith.addf %20, %24 : vector<32x64xf32>
    %cst_10 = arith.constant 0.000000e+00 : f32
    %26 = vector.broadcast %cst_10 : f32 to vector<32x64xf32>
    %27 = arith.maximumf %25, %26 : vector<32x64xf32>
    %c0_11 = arith.constant 0 : index
    %c0_12 = arith.constant 0 : index
    %28 = vector.load %arg3[%c0_11, %c0_12] : memref<32x64xf32, #tpu.memory_space<vmem>>, vector<32x64xf32>
    tpu.vector_store %arg3[%c0_11, %c0_12], %27 {strides = array<i32>} : memref<32x64xf32, #tpu.memory_space<vmem>>, vector<32x64xf32>,
    return
  }
}

module attributes {stable_mosaic.version = 11 : i64} {
  func.func @_fused_matmul_kernel(%arg0: memref<32x192xbf16, #tpu.memory_space<vmem>>, %arg1: memref<192x64xbf16, #tpu.memory_space<vmem>>, %arg2: memref<1x64xf32, #tpu.memory_space<vmem>>, %arg3: memref<32x64xf32, #tpu.memory_space<vmem>>) attributes {dimension_semantics = [], scalar_prefetch = 0 : i64, scratch_operands = 0 : i64, tpu.core_type = #tpu.core_type<tc>} {
    %c0 = arith.constant 0 : index
    %c0_0 = arith.constant 0 : index
    %0 = vector.load %arg0[%c0, %c0_0] : memref<32x192xbf16, #tpu.memory_space<vmem>>, vector<32x192xbf16>
    %c0_1 = arith.constant 0 : index
    %c0_2 = arith.constant 0 : index
    %1 = vector.load %arg1[%c0_1, %c0_2] : memref<192x64xbf16, #tpu.memory_space<vmem>>, vector<192x64xbf16>
    %cst = arith.constant dense<0.000000e+00> : vector<32x64xf32>
    %2 = tpu.matmul %0, %1, %cst {dimension_numbers = #tpu.dot_dimension_numbers<[1], [0], [0], [1], [0, 0, 1, 1], [], []>} : vector<32x192xbf16>, vector<192x64xbf16>, vector<32x64xf32> -> vector<32x64xf32>
    %c0_3 = arith.constant 0 : index
    %c0_4 = arith.constant 0 : index
    %3 = vector.load %arg2[%c0_3, %c0_4] : memref<1x64xf32, #tpu.memory_space<vmem>>, vector<1x64xf32>
    %4 = vector.broadcast %3 : vector<1x64xf32> to vector<32x64xf32>
    %5 = arith.addf %2, %4 : vector<32x64xf32>
    %cst_5 = arith.constant 0.000000e+00 : f32
    %6 = vector.broadcast %cst_5 : f32 to vector<32x64xf32>
    %7 = arith.maximumf %5, %6 : vector<32x64xf32>
    %c0_6 = arith.constant 0 : index
    %c0_7 = arith.constant 0 : index
    %8 = vector.load %arg3[%c0_6, %c0_7] : memref<32x64xf32, #tpu.memory_space<vmem>>, vector<32x64xf32>
    tpu.vector_store %arg3[%c0_6, %c0_7], %7 {strides = array<i32>} : memref<32x64xf32, #tpu.memory_space<vmem>>, vector<32x64xf32>,
    return
  }
}

module attributes {stable_mosaic.version = 11 : i64} {
  func.func @_fused_matmul_kernel(%arg0: memref<32x192xbf16, #tpu.memory_space<vmem>>, %arg1: memref<192x64xbf16, #tpu.memory_space<vmem>>, %arg2: memref<1x64xf32, #tpu.memory_space<vmem>>, %arg3: memref<1x64xf32, #tpu.memory_space<vmem>>, %arg4: memref<32x64xf32, #tpu.memory_space<vmem>>) attributes {dimension_semantics = [], scalar_prefetch = 0 : i64, scratch_operands = 0 : i64, tpu.core_type = #tpu.core_type<tc>} {
    %c0 = arith.constant 0 : index
    %c0_0 = arith.constant 0 : index
    %0 = vector.load %arg0[%c0, %c0_0] : memref<32x192xbf16, #tpu.memory_space<vmem>>, vector<32x192xbf16>
    %c0_1 = arith.constant 0 : index
    %c0_2 = arith.constant 0 : index
    %1 = vector.load %arg1[%c0_1, %c0_2] : memref<192x64xbf16, #tpu.memory_space<vmem>>, vector<192x64xbf16>
    %cst = arith.constant dense<0.000000e+00> : vector<32x64xf32>
    %2 = tpu.matmul %0, %1, %cst {dimension_numbers = #tpu.dot_dimension_numbers<[1], [0], [0], [1], [0, 0, 1, 1], [], []>} : vector<32x192xbf16>, vector<192x64xbf16>, vector<32x64xf32> -> vector<32x64xf32>
    %c0_3 = arith.constant 0 : index
    %c0_4 = arith.constant 0 : index
    %3 = vector.load %arg2[%c0_3, %c0_4] : memref<1x64xf32, #tpu.memory_space<vmem>>, vector<1x64xf32>
    %c0_5 = arith.constant 0 : index
    %c0_6 = arith.constant 0 : index
    %4 = vector.load %arg3[%c0_5, %c0_6] : memref<1x64xf32, #tpu.memory_space<vmem>>, vector<1x64xf32>
    %cst_7 = arith.constant dense<0.000000e+00> : vector<64xf32>
    %5 = vector.multi_reduction <add>, %2, %cst_7 [0] : vector<32x64xf32> to vector<64xf32>
    %6 = vector.shape_cast %5 : vector<64xf32> to vector<1x64xf32>
    %cst_8 = arith.constant 3.200000e+01 : f32
    %7 = vector.broadcast %cst_8 : f32 to vector<1x64xf32>
    %8 = arith.divf %6, %7 : vector<1x64xf32>
    %9 = arith.mulf %2, %2 : vector<32x64xf32>
    %cst_9 = arith.constant dense<0.000000e+00> : vector<64xf32>
    %10 = vector.multi_reduction <add>, %9, %cst_9 [0] : vector<32x64xf32> to vector<64xf32>
    %11 = vector.shape_cast %10 : vector<64xf32> to vector<1x64xf32>
    %cst_10 = arith.constant 3.200000e+01 : f32
    %12 = vector.broadcast %cst_10 : f32 to vector<1x64xf32>
    %13 = arith.divf %11, %12 : vector<1x64xf32>
    %14 = arith.mulf %8, %8 : vector<1x64xf32>
    %15 = arith.subf %13, %14 : vector<1x64xf32>
    %cst_11 = arith.constant 0.000000e+00 : f32
    %16 = vector.broadcast %cst_11 : f32 to vector<1x64xf32>
    %17 = arith.maximumf %15, %16 : vector<1x64xf32>
    %cst_12 = arith.constant 1.000000e-03 : f32
    %18 = vector.broadcast %cst_12 : f32 to vector<1x64xf32>
    %19 = arith.addf %17, %18 : vector<1x64xf32>
    %20 = math.rsqrt %19 : vector<1x64xf32>
    %21 = arith.mulf %3, %20 : vector<1x64xf32>
    %22 = vector.broadcast %21 : vector<1x64xf32> to vector<32x64xf32>
    %23 = arith.mulf %2, %22 : vector<32x64xf32>
    %24 = arith.mulf %8, %21 : vector<1x64xf32>
    %25 = arith.subf %4, %24 : vector<1x64xf32>
    %26 = vector.broadcast %25 : vector<1x64xf32> to vector<32x64xf32>
    %27 = arith.addf %23, %26 : vector<32x64xf32>
    %cst_13 = arith.constant 0.000000e+00 : f32
    %28 = vector.broadcast %cst_13 : f32 to vector<32x64xf32>
    %29 = arith.maximumf %27, %28 : vector<32x64xf32>
    %c0_14 = arith.constant 0 : index
    %c0_15 = arith.constant 0 : index
    %30 = vector.load %arg4[%c0_14, %c0_15] : memref<32x64xf32, #tpu.memory_space<vmem>>, vector<32x64xf32>
    tpu.vector_store %arg4[%c0_14, %c0_15], %29 {strides = array<i32>} : memref<32x64xf32, #tpu.memory_space<vmem>>, vector<32x64xf32>,
    return
  }
}

module attributes {stable_mosaic.version = 11 : i64} {
  func.func @_fused_matmul_kernel(%arg0: memref<32x192xbf16, #tpu.memory_space<vmem>>, %arg1: memref<192x64xbf16, #tpu.memory_space<vmem>>, %arg2: memref<1x64xf32, #tpu.memory_space<vmem>>, %arg3: memref<1x64xf32, #tpu.memory_space<vmem>>, %arg4: memref<32x64xf32, #tpu.memory_space<vmem>>, %arg5: memref<32x64xf32, #tpu.memory_space<vmem>>) attributes {dimension_semantics = [], scalar_prefetch = 0 : i64, scratch_operands = 0 : i64, tpu.core_type = #tpu.core_type<tc>} {
    %c0 = arith.constant 0 : index
    %c0_0 = arith.constant 0 : index
    %0 = vector.load %arg0[%c0, %c0_0] : memref<32x192xbf16, #tpu.memory_space<vmem>>, vector<32x192xbf16>
    %c0_1 = arith.constant 0 : index
    %c0_2 = arith.constant 0 : index
    %1 = vector.load %arg1[%c0_1, %c0_2] : memref<192x64xbf16, #tpu.memory_space<vmem>>, vector<192x64xbf16>
    %cst = arith.constant dense<0.000000e+00> : vector<32x64xf32>
    %2 = tpu.matmul %0, %1, %cst {dimension_numbers = #tpu.dot_dimension_numbers<[1], [0], [0], [1], [0, 0, 1, 1], [], []>} : vector<32x192xbf16>, vector<192x64xbf16>, vector<32x64xf32> -> vector<32x64xf32>
    %c0_3 = arith.constant 0 : index
    %c0_4 = arith.constant 0 : index
    %3 = vector.load %arg2[%c0_3, %c0_4] : memref<1x64xf32, #tpu.memory_space<vmem>>, vector<1x64xf32>
    %c0_5 = arith.constant 0 : index
    %c0_6 = arith.constant 0 : index
    %4 = vector.load %arg3[%c0_5, %c0_6] : memref<1x64xf32, #tpu.memory_space<vmem>>, vector<1x64xf32>
    %cst_7 = arith.constant dense<0.000000e+00> : vector<64xf32>
    %5 = vector.multi_reduction <add>, %2, %cst_7 [0] : vector<32x64xf32> to vector<64xf32>
    %6 = vector.shape_cast %5 : vector<64xf32> to vector<1x64xf32>
    %cst_8 = arith.constant 3.200000e+01 : f32
    %7 = vector.broadcast %cst_8 : f32 to vector<1x64xf32>
    %8 = arith.divf %6, %7 : vector<1x64xf32>
    %9 = arith.mulf %2, %2 : vector<32x64xf32>
    %cst_9 = arith.constant dense<0.000000e+00> : vector<64xf32>
    %10 = vector.multi_reduction <add>, %9, %cst_9 [0] : vector<32x64xf32> to vector<64xf32>
    %11 = vector.shape_cast %10 : vector<64xf32> to vector<1x64xf32>
    %cst_10 = arith.constant 3.200000e+01 : f32
    %12 = vector.broadcast %cst_10 : f32 to vector<1x64xf32>
    %13 = arith.divf %11, %12 : vector<1x64xf32>
    %14 = arith.mulf %8, %8 : vector<1x64xf32>
    %15 = arith.subf %13, %14 : vector<1x64xf32>
    %cst_11 = arith.constant 0.000000e+00 : f32
    %16 = vector.broadcast %cst_11 : f32 to vector<1x64xf32>
    %17 = arith.maximumf %15, %16 : vector<1x64xf32>
    %cst_12 = arith.constant 1.000000e-03 : f32
    %18 = vector.broadcast %cst_12 : f32 to vector<1x64xf32>
    %19 = arith.addf %17, %18 : vector<1x64xf32>
    %20 = math.rsqrt %19 : vector<1x64xf32>
    %21 = arith.mulf %3, %20 : vector<1x64xf32>
    %22 = vector.broadcast %21 : vector<1x64xf32> to vector<32x64xf32>
    %23 = arith.mulf %2, %22 : vector<32x64xf32>
    %24 = arith.mulf %8, %21 : vector<1x64xf32>
    %25 = arith.subf %4, %24 : vector<1x64xf32>
    %26 = vector.broadcast %25 : vector<1x64xf32> to vector<32x64xf32>
    %27 = arith.addf %23, %26 : vector<32x64xf32>
    %c0_13 = arith.constant 0 : index
    %c0_14 = arith.constant 0 : index
    %28 = vector.load %arg4[%c0_13, %c0_14] : memref<32x64xf32, #tpu.memory_space<vmem>>, vector<32x64xf32>
    %29 = arith.addf %27, %28 : vector<32x64xf32>
    %cst_15 = arith.constant 0.000000e+00 : f32
    %30 = vector.broadcast %cst_15 : f32 to vector<32x64xf32>
    %31 = arith.maximumf %29, %30 : vector<32x64xf32>
    %c0_16 = arith.constant 0 : index
    %c0_17 = arith.constant 0 : index
    %32 = vector.load %arg5[%c0_16, %c0_17] : memref<32x64xf32, #tpu.memory_space<vmem>>, vector<32x64xf32>
    tpu.vector_store %arg5[%c0_16, %c0_17], %31 {strides = array<i32>} : memref<32x64xf32, #tpu.memory_space<vmem>>, vector<32x64xf32>,
    return
  }
}

module attributes {stable_mosaic.version = 11 : i64} {
  func.func @_fused_matmul_kernel(%arg0: memref<8x576xbf16, #tpu.memory_space<vmem>>, %arg1: memref<576x64xbf16, #tpu.memory_space<vmem>>, %arg2: memref<8x64xf32, #tpu.memory_space<vmem>>) attributes {dimension_semantics = [], scalar_prefetch = 0 : i64, scratch_operands = 0 : i64, tpu.core_type = #tpu.core_type<tc>} {
    %c0 = arith.constant 0 : index
    %c0_0 = arith.constant 0 : index
    %0 = vector.load %arg0[%c0, %c0_0] : memref<8x576xbf16, #tpu.memory_space<vmem>>, vector<8x576xbf16>
    %c0_1 = arith.constant 0 : index
    %c0_2 = arith.constant 0 : index
    %1 = vector.load %arg1[%c0_1, %c0_2] : memref<576x64xbf16, #tpu.memory_space<vmem>>, vector<576x64xbf16>
    %cst = arith.constant dense<0.000000e+00> : vector<8x64xf32>
    %2 = tpu.matmul %0, %1, %cst {dimension_numbers = #tpu.dot_dimension_numbers<[1], [0], [0], [1], [0, 0, 1, 1], [], []>} : vector<8x576xbf16>, vector<576x64xbf16>, vector<8x64xf32> -> vector<8x64xf32>
    %c0_3 = arith.constant 0 : index
    %c0_4 = arith.constant 0 : index
    %3 = vector.load %arg2[%c0_3, %c0_4] : memref<8x64xf32, #tpu.memory_space<vmem>>, vector<8x64xf32>
    tpu.vector_store %arg2[%c0_3, %c0_4], %2 {strides = array<i32>} : memref<8x64xf32, #tpu.memory_space<vmem>>, vector<8x64xf32>,
    return
  }
}

module attributes {stable_mosaic.version = 11 : i64} {
  func.func @_bn_act_kernel(%arg0: memref<8x128xf32, #tpu.memory_space<vmem>>, %arg1: memref<1x128xf32, #tpu.memory_space<vmem>>, %arg2: memref<1x128xf32, #tpu.memory_space<vmem>>, %arg3: memref<8x128xf32, #tpu.memory_space<vmem>>) attributes {dimension_semantics = [], scalar_prefetch = 0 : i64, scratch_operands = 0 : i64, tpu.core_type = #tpu.core_type<tc>} {
    %c0 = arith.constant 0 : index
    %c0_0 = arith.constant 0 : index
    %0 = vector.load %arg0[%c0, %c0_0] : memref<8x128xf32, #tpu.memory_space<vmem>>, vector<8x128xf32>
    %cst = arith.constant dense<0.000000e+00> : vector<128xf32>
    %1 = vector.multi_reduction <add>, %0, %cst [0] : vector<8x128xf32> to vector<128xf32>
    %2 = vector.shape_cast %1 : vector<128xf32> to vector<1x128xf32>
    %cst_1 = arith.constant 8.000000e+00 : f32
    %3 = vector.broadcast %cst_1 : f32 to vector<1x128xf32>
    %4 = arith.divf %2, %3 : vector<1x128xf32>
    %5 = arith.mulf %0, %0 : vector<8x128xf32>
    %cst_2 = arith.constant dense<0.000000e+00> : vector<128xf32>
    %6 = vector.multi_reduction <add>, %5, %cst_2 [0] : vector<8x128xf32> to vector<128xf32>
    %7 = vector.shape_cast %6 : vector<128xf32> to vector<1x128xf32>
    %cst_3 = arith.constant 8.000000e+00 : f32
    %8 = vector.broadcast %cst_3 : f32 to vector<1x128xf32>
    %9 = arith.divf %7, %8 : vector<1x128xf32>
    %10 = arith.mulf %4, %4 : vector<1x128xf32>
    %11 = arith.subf %9, %10 : vector<1x128xf32>
    %cst_4 = arith.constant 0.000000e+00 : f32
    %12 = vector.broadcast %cst_4 : f32 to vector<1x128xf32>
    %13 = arith.maximumf %11, %12 : vector<1x128xf32>
    %c0_5 = arith.constant 0 : index
    %c0_6 = arith.constant 0 : index
    %14 = vector.load %arg1[%c0_5, %c0_6] : memref<1x128xf32, #tpu.memory_space<vmem>>, vector<1x128xf32>
    %cst_7 = arith.constant 1.000000e-03 : f32
    %15 = vector.broadcast %cst_7 : f32 to vector<1x128xf32>
    %16 = arith.addf %13, %15 : vector<1x128xf32>
    %17 = math.rsqrt %16 : vector<1x128xf32>
    %18 = arith.mulf %14, %17 : vector<1x128xf32>
    %19 = vector.broadcast %18 : vector<1x128xf32> to vector<8x128xf32>
    %20 = arith.mulf %0, %19 : vector<8x128xf32>
    %c0_8 = arith.constant 0 : index
    %c0_9 = arith.constant 0 : index
    %21 = vector.load %arg2[%c0_8, %c0_9] : memref<1x128xf32, #tpu.memory_space<vmem>>, vector<1x128xf32>
    %22 = arith.mulf %4, %18 : vector<1x128xf32>
    %23 = arith.subf %21, %22 : vector<1x128xf32>
    %24 = vector.broadcast %23 : vector<1x128xf32> to vector<8x128xf32>
    %25 = arith.addf %20, %24 : vector<8x128xf32>
    %cst_10 = arith.constant 0.000000e+00 : f32
    %26 = vector.broadcast %cst_10 : f32 to vector<8x128xf32>
    %27 = arith.maximumf %25, %26 : vector<8x128xf32>
    %c0_11 = arith.constant 0 : index
    %c0_12 = arith.constant 0 : index
    %28 = vector.load %arg3[%c0_11, %c0_12] : memref<8x128xf32, #tpu.memory_space<vmem>>, vector<8x128xf32>
    tpu.vector_store %arg3[%c0_11, %c0_12], %27 {strides = array<i32>} : memref<8x128xf32, #tpu.memory_space<vmem>>, vector<8x128xf32>,
    return
  }
}

module attributes {stable_mosaic.version = 11 : i64} {
  func.func @_fused_matmul_kernel(%arg0: memref<8x384xbf16, #tpu.memory_space<vmem>>, %arg1: memref<384x128xbf16, #tpu.memory_space<vmem>>, %arg2: memref<1x128xf32, #tpu.memory_space<vmem>>, %arg3: memref<8x128xf32, #tpu.memory_space<vmem>>) attributes {dimension_semantics = [], scalar_prefetch = 0 : i64, scratch_operands = 0 : i64, tpu.core_type = #tpu.core_type<tc>} {
    %c0 = arith.constant 0 : index
    %c0_0 = arith.constant 0 : index
    %0 = vector.load %arg0[%c0, %c0_0] : memref<8x384xbf16, #tpu.memory_space<vmem>>, vector<8x384xbf16>
    %c0_1 = arith.constant 0 : index
    %c0_2 = arith.constant 0 : index
    %1 = vector.load %arg1[%c0_1, %c0_2] : memref<384x128xbf16, #tpu.memory_space<vmem>>, vector<384x128xbf16>
    %cst = arith.constant dense<0.000000e+00> : vector<8x128xf32>
    %2 = tpu.matmul %0, %1, %cst {dimension_numbers = #tpu.dot_dimension_numbers<[1], [0], [0], [1], [0, 0, 1, 1], [], []>} : vector<8x384xbf16>, vector<384x128xbf16>, vector<8x128xf32> -> vector<8x128xf32>
    %c0_3 = arith.constant 0 : index
    %c0_4 = arith.constant 0 : index
    %3 = vector.load %arg2[%c0_3, %c0_4] : memref<1x128xf32, #tpu.memory_space<vmem>>, vector<1x128xf32>
    %4 = vector.broadcast %3 : vector<1x128xf32> to vector<8x128xf32>
    %5 = arith.addf %2, %4 : vector<8x128xf32>
    %cst_5 = arith.constant 0.000000e+00 : f32
    %6 = vector.broadcast %cst_5 : f32 to vector<8x128xf32>
    %7 = arith.maximumf %5, %6 : vector<8x128xf32>
    %c0_6 = arith.constant 0 : index
    %c0_7 = arith.constant 0 : index
    %8 = vector.load %arg3[%c0_6, %c0_7] : memref<8x128xf32, #tpu.memory_space<vmem>>, vector<8x128xf32>
    tpu.vector_store %arg3[%c0_6, %c0_7], %7 {strides = array<i32>} : memref<8x128xf32, #tpu.memory_space<vmem>>, vector<8x128xf32>,
    return
  }
}

module attributes {stable_mosaic.version = 11 : i64} {
  func.func @_fused_matmul_kernel(%arg0: memref<8x384xbf16, #tpu.memory_space<vmem>>, %arg1: memref<384x128xbf16, #tpu.memory_space<vmem>>, %arg2: memref<1x128xf32, #tpu.memory_space<vmem>>, %arg3: memref<1x128xf32, #tpu.memory_space<vmem>>, %arg4: memref<8x128xf32, #tpu.memory_space<vmem>>, %arg5: memref<8x128xf32, #tpu.memory_space<vmem>>) attributes {dimension_semantics = [], scalar_prefetch = 0 : i64, scratch_operands = 0 : i64, tpu.core_type = #tpu.core_type<tc>} {
    %c0 = arith.constant 0 : index
    %c0_0 = arith.constant 0 : index
    %0 = vector.load %arg0[%c0, %c0_0] : memref<8x384xbf16, #tpu.memory_space<vmem>>, vector<8x384xbf16>
    %c0_1 = arith.constant 0 : index
    %c0_2 = arith.constant 0 : index
    %1 = vector.load %arg1[%c0_1, %c0_2] : memref<384x128xbf16, #tpu.memory_space<vmem>>, vector<384x128xbf16>
    %cst = arith.constant dense<0.000000e+00> : vector<8x128xf32>
    %2 = tpu.matmul %0, %1, %cst {dimension_numbers = #tpu.dot_dimension_numbers<[1], [0], [0], [1], [0, 0, 1, 1], [], []>} : vector<8x384xbf16>, vector<384x128xbf16>, vector<8x128xf32> -> vector<8x128xf32>
    %c0_3 = arith.constant 0 : index
    %c0_4 = arith.constant 0 : index
    %3 = vector.load %arg2[%c0_3, %c0_4] : memref<1x128xf32, #tpu.memory_space<vmem>>, vector<1x128xf32>
    %c0_5 = arith.constant 0 : index
    %c0_6 = arith.constant 0 : index
    %4 = vector.load %arg3[%c0_5, %c0_6] : memref<1x128xf32, #tpu.memory_space<vmem>>, vector<1x128xf32>
    %cst_7 = arith.constant dense<0.000000e+00> : vector<128xf32>
    %5 = vector.multi_reduction <add>, %2, %cst_7 [0] : vector<8x128xf32> to vector<128xf32>
    %6 = vector.shape_cast %5 : vector<128xf32> to vector<1x128xf32>
    %cst_8 = arith.constant 8.000000e+00 : f32
    %7 = vector.broadcast %cst_8 : f32 to vector<1x128xf32>
    %8 = arith.divf %6, %7 : vector<1x128xf32>
    %9 = arith.mulf %2, %2 : vector<8x128xf32>
    %cst_9 = arith.constant dense<0.000000e+00> : vector<128xf32>
    %10 = vector.multi_reduction <add>, %9, %cst_9 [0] : vector<8x128xf32> to vector<128xf32>
    %11 = vector.shape_cast %10 : vector<128xf32> to vector<1x128xf32>
    %cst_10 = arith.constant 8.000000e+00 : f32
    %12 = vector.broadcast %cst_10 : f32 to vector<1x128xf32>
    %13 = arith.divf %11, %12 : vector<1x128xf32>
    %14 = arith.mulf %8, %8 : vector<1x128xf32>
    %15 = arith.subf %13, %14 : vector<1x128xf32>
    %cst_11 = arith.constant 0.000000e+00 : f32
    %16 = vector.broadcast %cst_11 : f32 to vector<1x128xf32>
    %17 = arith.maximumf %15, %16 : vector<1x128xf32>
    %cst_12 = arith.constant 1.000000e-03 : f32
    %18 = vector.broadcast %cst_12 : f32 to vector<1x128xf32>
    %19 = arith.addf %17, %18 : vector<1x128xf32>
    %20 = math.rsqrt %19 : vector<1x128xf32>
    %21 = arith.mulf %3, %20 : vector<1x128xf32>
    %22 = vector.broadcast %21 : vector<1x128xf32> to vector<8x128xf32>
    %23 = arith.mulf %2, %22 : vector<8x128xf32>
    %24 = arith.mulf %8, %21 : vector<1x128xf32>
    %25 = arith.subf %4, %24 : vector<1x128xf32>
    %26 = vector.broadcast %25 : vector<1x128xf32> to vector<8x128xf32>
    %27 = arith.addf %23, %26 : vector<8x128xf32>
    %c0_13 = arith.constant 0 : index
    %c0_14 = arith.constant 0 : index
    %28 = vector.load %arg4[%c0_13, %c0_14] : memref<8x128xf32, #tpu.memory_space<vmem>>, vector<8x128xf32>
    %29 = arith.addf %27, %28 : vector<8x128xf32>
    %cst_15 = arith.constant 0.000000e+00 : f32
    %30 = vector.broadcast %cst_15 : f32 to vector<8x128xf32>
    %31 = arith.maximumf %29, %30 : vector<8x128xf32>
    %c0_16 = arith.constant 0 : index
    %c0_17 = arith.constant 0 : index
    %32 = vector.load %arg5[%c0_16, %c0_17] : memref<8x128xf32, #tpu.memory_space<vmem>>, vector<8x128xf32>
    tpu.vector_store %arg5[%c0_16, %c0_17], %31 {strides = array<i32>} : memref<8x128xf32, #tpu.memory_space<vmem>>, vector<8x128xf32>,
    return
  }
}

module attributes {stable_mosaic.version = 11 : i64} {
  func.func @_fused_matmul_kernel(%arg0: memref<8x384xbf16, #tpu.memory_space<vmem>>, %arg1: memref<384x128xbf16, #tpu.memory_space<vmem>>, %arg2: memref<1x128xf32, #tpu.memory_space<vmem>>, %arg3: memref<1x128xf32, #tpu.memory_space<vmem>>, %arg4: memref<8x128xf32, #tpu.memory_space<vmem>>) attributes {dimension_semantics = [], scalar_prefetch = 0 : i64, scratch_operands = 0 : i64, tpu.core_type = #tpu.core_type<tc>} {
    %c0 = arith.constant 0 : index
    %c0_0 = arith.constant 0 : index
    %0 = vector.load %arg0[%c0, %c0_0] : memref<8x384xbf16, #tpu.memory_space<vmem>>, vector<8x384xbf16>
    %c0_1 = arith.constant 0 : index
    %c0_2 = arith.constant 0 : index
    %1 = vector.load %arg1[%c0_1, %c0_2] : memref<384x128xbf16, #tpu.memory_space<vmem>>, vector<384x128xbf16>
    %cst = arith.constant dense<0.000000e+00> : vector<8x128xf32>
    %2 = tpu.matmul %0, %1, %cst {dimension_numbers = #tpu.dot_dimension_numbers<[1], [0], [0], [1], [0, 0, 1, 1], [], []>} : vector<8x384xbf16>, vector<384x128xbf16>, vector<8x128xf32> -> vector<8x128xf32>
    %c0_3 = arith.constant 0 : index
    %c0_4 = arith.constant 0 : index
    %3 = vector.load %arg2[%c0_3, %c0_4] : memref<1x128xf32, #tpu.memory_space<vmem>>, vector<1x128xf32>
    %c0_5 = arith.constant 0 : index
    %c0_6 = arith.constant 0 : index
    %4 = vector.load %arg3[%c0_5, %c0_6] : memref<1x128xf32, #tpu.memory_space<vmem>>, vector<1x128xf32>
    %cst_7 = arith.constant dense<0.000000e+00> : vector<128xf32>
    %5 = vector.multi_reduction <add>, %2, %cst_7 [0] : vector<8x128xf32> to vector<128xf32>
    %6 = vector.shape_cast %5 : vector<128xf32> to vector<1x128xf32>
    %cst_8 = arith.constant 8.000000e+00 : f32
    %7 = vector.broadcast %cst_8 : f32 to vector<1x128xf32>
    %8 = arith.divf %6, %7 : vector<1x128xf32>
    %9 = arith.mulf %2, %2 : vector<8x128xf32>
    %cst_9 = arith.constant dense<0.000000e+00> : vector<128xf32>
    %10 = vector.multi_reduction <add>, %9, %cst_9 [0] : vector<8x128xf32> to vector<128xf32>
    %11 = vector.shape_cast %10 : vector<128xf32> to vector<1x128xf32>
    %cst_10 = arith.constant 8.000000e+00 : f32
    %12 = vector.broadcast %cst_10 : f32 to vector<1x128xf32>
    %13 = arith.divf %11, %12 : vector<1x128xf32>
    %14 = arith.mulf %8, %8 : vector<1x128xf32>
    %15 = arith.subf %13, %14 : vector<1x128xf32>
    %cst_11 = arith.constant 0.000000e+00 : f32
    %16 = vector.broadcast %cst_11 : f32 to vector<1x128xf32>
    %17 = arith.maximumf %15, %16 : vector<1x128xf32>
    %cst_12 = arith.constant 1.000000e-03 : f32
    %18 = vector.broadcast %cst_12 : f32 to vector<1x128xf32>
    %19 = arith.addf %17, %18 : vector<1x128xf32>
    %20 = math.rsqrt %19 : vector<1x128xf32>
    %21 = arith.mulf %3, %20 : vector<1x128xf32>
    %22 = vector.broadcast %21 : vector<1x128xf32> to vector<8x128xf32>
    %23 = arith.mulf %2, %22 : vector<8x128xf32>
    %24 = arith.mulf %8, %21 : vector<1x128xf32>
    %25 = arith.subf %4, %24 : vector<1x128xf32>
    %26 = vector.broadcast %25 : vector<1x128xf32> to vector<8x128xf32>
    %27 = arith.addf %23, %26 : vector<8x128xf32>
    %cst_13 = arith.constant 0.000000e+00 : f32
    %28 = vector.broadcast %cst_13 : f32 to vector<8x128xf32>
    %29 = arith.maximumf %27, %28 : vector<8x128xf32>
    %c0_14 = arith.constant 0 : index
    %c0_15 = arith.constant 0 : index
    %30 = vector.load %arg4[%c0_14, %c0_15] : memref<8x128xf32, #tpu.memory_space<vmem>>, vector<8x128xf32>
    tpu.vector_store %arg4[%c0_14, %c0_15], %29 {strides = array<i32>} : memref<8x128xf32, #tpu.memory_space<vmem>>, vector<8x128xf32>,
    return
  }
}

module attributes {stable_mosaic.version = 11 : i64} {
  func.func @_fused_matmul_kernel(%arg0: memref<32x1152xbf16, #tpu.memory_space<vmem>>, %arg1: memref<1152x64xbf16, #tpu.memory_space<vmem>>, %arg2: memref<1x64xf32, #tpu.memory_space<vmem>>, %arg3: memref<1x64xf32, #tpu.memory_space<vmem>>, %arg4: memref<32x64xf32, #tpu.memory_space<vmem>>) attributes {dimension_semantics = [], scalar_prefetch = 0 : i64, scratch_operands = 0 : i64, tpu.core_type = #tpu.core_type<tc>} {
    %c0 = arith.constant 0 : index
    %c0_0 = arith.constant 0 : index
    %0 = vector.load %arg0[%c0, %c0_0] : memref<32x1152xbf16, #tpu.memory_space<vmem>>, vector<32x1152xbf16>
    %c0_1 = arith.constant 0 : index
    %c0_2 = arith.constant 0 : index
    %1 = vector.load %arg1[%c0_1, %c0_2] : memref<1152x64xbf16, #tpu.memory_space<vmem>>, vector<1152x64xbf16>
    %cst = arith.constant dense<0.000000e+00> : vector<32x64xf32>
    %2 = tpu.matmul %0, %1, %cst {dimension_numbers = #tpu.dot_dimension_numbers<[1], [0], [0], [1], [0, 0, 1, 1], [], []>} : vector<32x1152xbf16>, vector<1152x64xbf16>, vector<32x64xf32> -> vector<32x64xf32>
    %c0_3 = arith.constant 0 : index
    %c0_4 = arith.constant 0 : index
    %3 = vector.load %arg2[%c0_3, %c0_4] : memref<1x64xf32, #tpu.memory_space<vmem>>, vector<1x64xf32>
    %c0_5 = arith.constant 0 : index
    %c0_6 = arith.constant 0 : index
    %4 = vector.load %arg3[%c0_5, %c0_6] : memref<1x64xf32, #tpu.memory_space<vmem>>, vector<1x64xf32>
    %cst_7 = arith.constant dense<0.000000e+00> : vector<64xf32>
    %5 = vector.multi_reduction <add>, %2, %cst_7 [0] : vector<32x64xf32> to vector<64xf32>
    %6 = vector.shape_cast %5 : vector<64xf32> to vector<1x64xf32>
    %cst_8 = arith.constant 3.200000e+01 : f32
    %7 = vector.broadcast %cst_8 : f32 to vector<1x64xf32>
    %8 = arith.divf %6, %7 : vector<1x64xf32>
    %9 = arith.mulf %2, %2 : vector<32x64xf32>
    %cst_9 = arith.constant dense<0.000000e+00> : vector<64xf32>
    %10 = vector.multi_reduction <add>, %9, %cst_9 [0] : vector<32x64xf32> to vector<64xf32>
    %11 = vector.shape_cast %10 : vector<64xf32> to vector<1x64xf32>
    %cst_10 = arith.constant 3.200000e+01 : f32
    %12 = vector.broadcast %cst_10 : f32 to vector<1x64xf32>
    %13 = arith.divf %11, %12 : vector<1x64xf32>
    %14 = arith.mulf %8, %8 : vector<1x64xf32>
    %15 = arith.subf %13, %14 : vector<1x64xf32>
    %cst_11 = arith.constant 0.000000e+00 : f32
    %16 = vector.broadcast %cst_11 : f32 to vector<1x64xf32>
    %17 = arith.maximumf %15, %16 : vector<1x64xf32>
    %cst_12 = arith.constant 1.000000e-03 : f32
    %18 = vector.broadcast %cst_12 : f32 to vector<1x64xf32>
    %19 = arith.addf %17, %18 : vector<1x64xf32>
    %20 = math.rsqrt %19 : vector<1x64xf32>
    %21 = arith.mulf %3, %20 : vector<1x64xf32>
    %22 = vector.broadcast %21 : vector<1x64xf32> to vector<32x64xf32>
    %23 = arith.mulf %2, %22 : vector<32x64xf32>
    %24 = arith.mulf %8, %21 : vector<1x64xf32>
    %25 = arith.subf %4, %24 : vector<1x64xf32>
    %26 = vector.broadcast %25 : vector<1x64xf32> to vector<32x64xf32>
    %27 = arith.addf %23, %26 : vector<32x64xf32>
    %cst_13 = arith.constant 0.000000e+00 : f32
    %28 = vector.broadcast %cst_13 : f32 to vector<32x64xf32>
    %29 = arith.maximumf %27, %28 : vector<32x64xf32>
    %c0_14 = arith.constant 0 : index
    %c0_15 = arith.constant 0 : index
    %30 = vector.load %arg4[%c0_14, %c0_15] : memref<32x64xf32, #tpu.memory_space<vmem>>, vector<32x64xf32>
    tpu.vector_store %arg4[%c0_14, %c0_15], %29 {strides = array<i32>} : memref<32x64xf32, #tpu.memory_space<vmem>>, vector<32x64xf32>,
    return
  }
}

module attributes {stable_mosaic.version = 11 : i64} {
  func.func @_fused_matmul_kernel(%arg0: memref<128x576xbf16, #tpu.memory_space<vmem>>, %arg1: memref<576x16xbf16, #tpu.memory_space<vmem>>, %arg2: memref<1x16xf32, #tpu.memory_space<vmem>>, %arg3: memref<1x16xf32, #tpu.memory_space<vmem>>, %arg4: memref<128x16xf32, #tpu.memory_space<vmem>>) attributes {dimension_semantics = [], scalar_prefetch = 0 : i64, scratch_operands = 0 : i64, tpu.core_type = #tpu.core_type<tc>} {
    %c0 = arith.constant 0 : index
    %c0_0 = arith.constant 0 : index
    %0 = vector.load %arg0[%c0, %c0_0] : memref<128x576xbf16, #tpu.memory_space<vmem>>, vector<128x576xbf16>
    %c0_1 = arith.constant 0 : index
    %c0_2 = arith.constant 0 : index
    %1 = vector.load %arg1[%c0_1, %c0_2] : memref<576x16xbf16, #tpu.memory_space<vmem>>, vector<576x16xbf16>
    %cst = arith.constant dense<0.000000e+00> : vector<128x16xf32>
    %2 = tpu.matmul %0, %1, %cst {dimension_numbers = #tpu.dot_dimension_numbers<[1], [0], [0], [1], [0, 0, 1, 1], [], []>} : vector<128x576xbf16>, vector<576x16xbf16>, vector<128x16xf32> -> vector<128x16xf32>
    %c0_3 = arith.constant 0 : index
    %c0_4 = arith.constant 0 : index
    %3 = vector.load %arg2[%c0_3, %c0_4] : memref<1x16xf32, #tpu.memory_space<vmem>>, vector<1x16xf32>
    %c0_5 = arith.constant 0 : index
    %c0_6 = arith.constant 0 : index
    %4 = vector.load %arg3[%c0_5, %c0_6] : memref<1x16xf32, #tpu.memory_space<vmem>>, vector<1x16xf32>
    %cst_7 = arith.constant dense<0.000000e+00> : vector<16xf32>
    %5 = vector.multi_reduction <add>, %2, %cst_7 [0] : vector<128x16xf32> to vector<16xf32>
    %6 = vector.shape_cast %5 : vector<16xf32> to vector<1x16xf32>
    %cst_8 = arith.constant 1.280000e+02 : f32
    %7 = vector.broadcast %cst_8 : f32 to vector<1x16xf32>
    %8 = arith.divf %6, %7 : vector<1x16xf32>
    %9 = arith.mulf %2, %2 : vector<128x16xf32>
    %cst_9 = arith.constant dense<0.000000e+00> : vector<16xf32>
    %10 = vector.multi_reduction <add>, %9, %cst_9 [0] : vector<128x16xf32> to vector<16xf32>
    %11 = vector.shape_cast %10 : vector<16xf32> to vector<1x16xf32>
    %cst_10 = arith.constant 1.280000e+02 : f32
    %12 = vector.broadcast %cst_10 : f32 to vector<1x16xf32>
    %13 = arith.divf %11, %12 : vector<1x16xf32>
    %14 = arith.mulf %8, %8 : vector<1x16xf32>
    %15 = arith.subf %13, %14 : vector<1x16xf32>
    %cst_11 = arith.constant 0.000000e+00 : f32
    %16 = vector.broadcast %cst_11 : f32 to vector<1x16xf32>
    %17 = arith.maximumf %15, %16 : vector<1x16xf32>
    %cst_12 = arith.constant 1.000000e-03 : f32
    %18 = vector.broadcast %cst_12 : f32 to vector<1x16xf32>
    %19 = arith.addf %17, %18 : vector<1x16xf32>
    %20 = math.rsqrt %19 : vector<1x16xf32>
    %21 = arith.mulf %3, %20 : vector<1x16xf32>
    %22 = vector.broadcast %21 : vector<1x16xf32> to vector<128x16xf32>
    %23 = arith.mulf %2, %22 : vector<128x16xf32>
    %24 = arith.mulf %8, %21 : vector<1x16xf32>
    %25 = arith.subf %4, %24 : vector<1x16xf32>
    %26 = vector.broadcast %25 : vector<1x16xf32> to vector<128x16xf32>
    %27 = arith.addf %23, %26 : vector<128x16xf32>
    %cst_13 = arith.constant 0.000000e+00 : f32
    %28 = vector.broadcast %cst_13 : f32 to vector<128x16xf32>
    %29 = arith.maximumf %27, %28 : vector<128x16xf32>
    %c0_14 = arith.constant 0 : index
    %c0_15 = arith.constant 0 : index
    %30 = vector.load %arg4[%c0_14, %c0_15] : memref<128x16xf32, #tpu.memory_space<vmem>>, vector<128x16xf32>
    tpu.vector_store %arg4[%c0_14, %c0_15], %29 {strides = array<i32>} : memref<128x16xf32, #tpu.memory_space<vmem>>, vector<128x16xf32>,
    return
  }
}

module attributes {stable_mosaic.version = 11 : i64} {
  func.func @_fused_matmul_kernel(%arg0: memref<128x48xbf16, #tpu.memory_space<vmem>>, %arg1: memref<48x16xbf16, #tpu.memory_space<vmem>>, %arg2: memref<1x16xf32, #tpu.memory_space<vmem>>, %arg3: memref<128x16xf32, #tpu.memory_space<vmem>>) attributes {dimension_semantics = [], scalar_prefetch = 0 : i64, scratch_operands = 0 : i64, tpu.core_type = #tpu.core_type<tc>} {
    %c0 = arith.constant 0 : index
    %c0_0 = arith.constant 0 : index
    %0 = vector.load %arg0[%c0, %c0_0] : memref<128x48xbf16, #tpu.memory_space<vmem>>, vector<128x48xbf16>
    %c0_1 = arith.constant 0 : index
    %c0_2 = arith.constant 0 : index
    %1 = vector.load %arg1[%c0_1, %c0_2] : memref<48x16xbf16, #tpu.memory_space<vmem>>, vector<48x16xbf16>
    %cst = arith.constant dense<0.000000e+00> : vector<128x16xf32>
    %2 = tpu.matmul %0, %1, %cst {dimension_numbers = #tpu.dot_dimension_numbers<[1], [0], [0], [1], [0, 0, 1, 1], [], []>} : vector<128x48xbf16>, vector<48x16xbf16>, vector<128x16xf32> -> vector<128x16xf32>
    %c0_3 = arith.constant 0 : index
    %c0_4 = arith.constant 0 : index
    %3 = vector.load %arg2[%c0_3, %c0_4] : memref<1x16xf32, #tpu.memory_space<vmem>>, vector<1x16xf32>
    %4 = vector.broadcast %3 : vector<1x16xf32> to vector<128x16xf32>
    %5 = arith.addf %2, %4 : vector<128x16xf32>
    %cst_5 = arith.constant 0.000000e+00 : f32
    %6 = vector.broadcast %cst_5 : f32 to vector<128x16xf32>
    %7 = arith.maximumf %5, %6 : vector<128x16xf32>
    %c0_6 = arith.constant 0 : index
    %c0_7 = arith.constant 0 : index
    %8 = vector.load %arg3[%c0_6, %c0_7] : memref<128x16xf32, #tpu.memory_space<vmem>>, vector<128x16xf32>
    tpu.vector_store %arg3[%c0_6, %c0_7], %7 {strides = array<i32>} : memref<128x16xf32, #tpu.memory_space<vmem>>, vector<128x16xf32>,
    return
  }
}

module attributes {stable_mosaic.version = 11 : i64} {
  func.func @_fused_matmul_kernel(%arg0: memref<128x48xbf16, #tpu.memory_space<vmem>>, %arg1: memref<48x16xbf16, #tpu.memory_space<vmem>>, %arg2: memref<1x16xf32, #tpu.memory_space<vmem>>, %arg3: memref<1x16xf32, #tpu.memory_space<vmem>>, %arg4: memref<128x16xf32, #tpu.memory_space<vmem>>) attributes {dimension_semantics = [], scalar_prefetch = 0 : i64, scratch_operands = 0 : i64, tpu.core_type = #tpu.core_type<tc>} {
    %c0 = arith.constant 0 : index
    %c0_0 = arith.constant 0 : index
    %0 = vector.load %arg0[%c0, %c0_0] : memref<128x48xbf16, #tpu.memory_space<vmem>>, vector<128x48xbf16>
    %c0_1 = arith.constant 0 : index
    %c0_2 = arith.constant 0 : index
    %1 = vector.load %arg1[%c0_1, %c0_2] : memref<48x16xbf16, #tpu.memory_space<vmem>>, vector<48x16xbf16>
    %cst = arith.constant dense<0.000000e+00> : vector<128x16xf32>
    %2 = tpu.matmul %0, %1, %cst {dimension_numbers = #tpu.dot_dimension_numbers<[1], [0], [0], [1], [0, 0, 1, 1], [], []>} : vector<128x48xbf16>, vector<48x16xbf16>, vector<128x16xf32> -> vector<128x16xf32>
    %c0_3 = arith.constant 0 : index
    %c0_4 = arith.constant 0 : index
    %3 = vector.load %arg2[%c0_3, %c0_4] : memref<1x16xf32, #tpu.memory_space<vmem>>, vector<1x16xf32>
    %c0_5 = arith.constant 0 : index
    %c0_6 = arith.constant 0 : index
    %4 = vector.load %arg3[%c0_5, %c0_6] : memref<1x16xf32, #tpu.memory_space<vmem>>, vector<1x16xf32>
    %cst_7 = arith.constant dense<0.000000e+00> : vector<16xf32>
    %5 = vector.multi_reduction <add>, %2, %cst_7 [0] : vector<128x16xf32> to vector<16xf32>
    %6 = vector.shape_cast %5 : vector<16xf32> to vector<1x16xf32>
    %cst_8 = arith.constant 1.280000e+02 : f32
    %7 = vector.broadcast %cst_8 : f32 to vector<1x16xf32>
    %8 = arith.divf %6, %7 : vector<1x16xf32>
    %9 = arith.mulf %2, %2 : vector<128x16xf32>
    %cst_9 = arith.constant dense<0.000000e+00> : vector<16xf32>
    %10 = vector.multi_reduction <add>, %9, %cst_9 [0] : vector<128x16xf32> to vector<16xf32>
    %11 = vector.shape_cast %10 : vector<16xf32> to vector<1x16xf32>
    %cst_10 = arith.constant 1.280000e+02 : f32
    %12 = vector.broadcast %cst_10 : f32 to vector<1x16xf32>
    %13 = arith.divf %11, %12 : vector<1x16xf32>
    %14 = arith.mulf %8, %8 : vector<1x16xf32>
    %15 = arith.subf %13, %14 : vector<1x16xf32>
    %cst_11 = arith.constant 0.000000e+00 : f32
    %16 = vector.broadcast %cst_11 : f32 to vector<1x16xf32>
    %17 = arith.maximumf %15, %16 : vector<1x16xf32>
    %cst_12 = arith.constant 1.000000e-03 : f32
    %18 = vector.broadcast %cst_12 : f32 to vector<1x16xf32>
    %19 = arith.addf %17, %18 : vector<1x16xf32>
    %20 = math.rsqrt %19 : vector<1x16xf32>
    %21 = arith.mulf %3, %20 : vector<1x16xf32>
    %22 = vector.broadcast %21 : vector<1x16xf32> to vector<128x16xf32>
    %23 = arith.mulf %2, %22 : vector<128x16xf32>
    %24 = arith.mulf %8, %21 : vector<1x16xf32>
    %25 = arith.subf %4, %24 : vector<1x16xf32>
    %26 = vector.broadcast %25 : vector<1x16xf32> to vector<128x16xf32>
    %27 = arith.addf %23, %26 : vector<128x16xf32>
    %cst_13 = arith.constant 0.000000e+00 : f32
    %28 = vector.broadcast %cst_13 : f32 to vector<128x16xf32>
    %29 = arith.maximumf %27, %28 : vector<128x16xf32>
    %c0_14 = arith.constant 0 : index
    %c0_15 = arith.constant 0 : index
    %30 = vector.load %arg4[%c0_14, %c0_15] : memref<128x16xf32, #tpu.memory_space<vmem>>, vector<128x16xf32>
    tpu.vector_store %arg4[%c0_14, %c0_15], %29 {strides = array<i32>} : memref<128x16xf32, #tpu.memory_space<vmem>>, vector<128x16xf32>,
    return
  }
}

module attributes {stable_mosaic.version = 11 : i64} {
  func.func @_fused_matmul_kernel(%arg0: memref<128x48xbf16, #tpu.memory_space<vmem>>, %arg1: memref<48x16xbf16, #tpu.memory_space<vmem>>, %arg2: memref<1x16xf32, #tpu.memory_space<vmem>>, %arg3: memref<1x16xf32, #tpu.memory_space<vmem>>, %arg4: memref<128x16xf32, #tpu.memory_space<vmem>>, %arg5: memref<128x16xf32, #tpu.memory_space<vmem>>) attributes {dimension_semantics = [], scalar_prefetch = 0 : i64, scratch_operands = 0 : i64, tpu.core_type = #tpu.core_type<tc>} {
    %c0 = arith.constant 0 : index
    %c0_0 = arith.constant 0 : index
    %0 = vector.load %arg0[%c0, %c0_0] : memref<128x48xbf16, #tpu.memory_space<vmem>>, vector<128x48xbf16>
    %c0_1 = arith.constant 0 : index
    %c0_2 = arith.constant 0 : index
    %1 = vector.load %arg1[%c0_1, %c0_2] : memref<48x16xbf16, #tpu.memory_space<vmem>>, vector<48x16xbf16>
    %cst = arith.constant dense<0.000000e+00> : vector<128x16xf32>
    %2 = tpu.matmul %0, %1, %cst {dimension_numbers = #tpu.dot_dimension_numbers<[1], [0], [0], [1], [0, 0, 1, 1], [], []>} : vector<128x48xbf16>, vector<48x16xbf16>, vector<128x16xf32> -> vector<128x16xf32>
    %c0_3 = arith.constant 0 : index
    %c0_4 = arith.constant 0 : index
    %3 = vector.load %arg2[%c0_3, %c0_4] : memref<1x16xf32, #tpu.memory_space<vmem>>, vector<1x16xf32>
    %c0_5 = arith.constant 0 : index
    %c0_6 = arith.constant 0 : index
    %4 = vector.load %arg3[%c0_5, %c0_6] : memref<1x16xf32, #tpu.memory_space<vmem>>, vector<1x16xf32>
    %cst_7 = arith.constant dense<0.000000e+00> : vector<16xf32>
    %5 = vector.multi_reduction <add>, %2, %cst_7 [0] : vector<128x16xf32> to vector<16xf32>
    %6 = vector.shape_cast %5 : vector<16xf32> to vector<1x16xf32>
    %cst_8 = arith.constant 1.280000e+02 : f32
    %7 = vector.broadcast %cst_8 : f32 to vector<1x16xf32>
    %8 = arith.divf %6, %7 : vector<1x16xf32>
    %9 = arith.mulf %2, %2 : vector<128x16xf32>
    %cst_9 = arith.constant dense<0.000000e+00> : vector<16xf32>
    %10 = vector.multi_reduction <add>, %9, %cst_9 [0] : vector<128x16xf32> to vector<16xf32>
    %11 = vector.shape_cast %10 : vector<16xf32> to vector<1x16xf32>
    %cst_10 = arith.constant 1.280000e+02 : f32
    %12 = vector.broadcast %cst_10 : f32 to vector<1x16xf32>
    %13 = arith.divf %11, %12 : vector<1x16xf32>
    %14 = arith.mulf %8, %8 : vector<1x16xf32>
    %15 = arith.subf %13, %14 : vector<1x16xf32>
    %cst_11 = arith.constant 0.000000e+00 : f32
    %16 = vector.broadcast %cst_11 : f32 to vector<1x16xf32>
    %17 = arith.maximumf %15, %16 : vector<1x16xf32>
    %cst_12 = arith.constant 1.000000e-03 : f32
    %18 = vector.broadcast %cst_12 : f32 to vector<1x16xf32>
    %19 = arith.addf %17, %18 : vector<1x16xf32>
    %20 = math.rsqrt %19 : vector<1x16xf32>
    %21 = arith.mulf %3, %20 : vector<1x16xf32>
    %22 = vector.broadcast %21 : vector<1x16xf32> to vector<128x16xf32>
    %23 = arith.mulf %2, %22 : vector<128x16xf32>
    %24 = arith.mulf %8, %21 : vector<1x16xf32>
    %25 = arith.subf %4, %24 : vector<1x16xf32>
    %26 = vector.broadcast %25 : vector<1x16xf32> to vector<128x16xf32>
    %27 = arith.addf %23, %26 : vector<128x16xf32>
    %c0_13 = arith.constant 0 : index
    %c0_14 = arith.constant 0 : index
    %28 = vector.load %arg4[%c0_13, %c0_14] : memref<128x16xf32, #tpu.memory_space<vmem>>, vector<128x16xf32>
    %29 = arith.addf %27, %28 : vector<128x16xf32>
    %cst_15 = arith.constant 0.000000e+00 : f32
    %30 = vector.broadcast %cst_15 : f32 to vector<128x16xf32>
    %31 = arith.maximumf %29, %30 : vector<128x16xf32>
    %c0_16 = arith.constant 0 : index
    %c0_17 = arith.constant 0 : index
    %32 = vector.load %arg5[%c0_16, %c0_17] : memref<128x16xf32, #tpu.memory_space<vmem>>, vector<128x16xf32>
    tpu.vector_store %arg5[%c0_16, %c0_17], %31 {strides = array<i32>} : memref<128x16xf32, #tpu.memory_space<vmem>>, vector<128x16xf32>,
    return
  }
}

module attributes {stable_mosaic.version = 11 : i64} {
  func.func @_fused_matmul_kernel(%arg0: memref<512x64xbf16, #tpu.memory_space<vmem>>, %arg1: memref<64x5xbf16, #tpu.memory_space<vmem>>, %arg2: memref<1x5xf32, #tpu.memory_space<vmem>>, %arg3: memref<512x5xf32, #tpu.memory_space<vmem>>) attributes {dimension_semantics = [], scalar_prefetch = 0 : i64, scratch_operands = 0 : i64, tpu.core_type = #tpu.core_type<tc>} {
    %c0 = arith.constant 0 : index
    %c0_0 = arith.constant 0 : index
    %0 = vector.load %arg0[%c0, %c0_0] : memref<512x64xbf16, #tpu.memory_space<vmem>>, vector<512x64xbf16>
    %c0_1 = arith.constant 0 : index
    %c0_2 = arith.constant 0 : index
    %1 = vector.load %arg1[%c0_1, %c0_2] : memref<64x5xbf16, #tpu.memory_space<vmem>>, vector<64x5xbf16>
    %cst = arith.constant dense<0.000000e+00> : vector<512x5xf32>
    %2 = tpu.matmul %0, %1, %cst {dimension_numbers = #tpu.dot_dimension_numbers<[1], [0], [0], [1], [0, 0, 1, 1], [], []>} : vector<512x64xbf16>, vector<64x5xbf16>, vector<512x5xf32> -> vector<512x5xf32>
    %c0_3 = arith.constant 0 : index
    %c0_4 = arith.constant 0 : index
    %3 = vector.load %arg2[%c0_3, %c0_4] : memref<1x5xf32, #tpu.memory_space<vmem>>, vector<1x5xf32>
    %4 = vector.broadcast %3 : vector<1x5xf32> to vector<512x5xf32>
    %5 = arith.addf %2, %4 : vector<512x5xf32>
    %c0_5 = arith.constant 0 : index
    %c0_6 = arith.constant 0 : index
    %6 = vector.load %arg3[%c0_5, %c0_6] : memref<512x5xf32, #tpu.memory_space<vmem>>, vector<512x5xf32>
    tpu.vector_store %arg3[%c0_5, %c0_6], %5 {strides = array<i32>} : memref<512x5xf32, #tpu.memory_space<vmem>>, vector<512x5xf32>,
    return
  }
}

</mosaic_0001>

<llo_original>
// kernel: net_forward.78
$region0: #{net_forward.78}
  #allocation0 [shape = 'u32[]', space=smem, size = 0x4, offset = 0x4, fixed_abs, tag = 'smem constant byte address 0x4 - core index']
  #allocation1 [shape = 'u32[144,128]{1,0:T(1,128)}', space=vmem, size = 0x12000, scoped, tag = 'internal scratch']
  %s0 = inlined_call_operand.vmem [shape: f32[128,16], index: 0, kind: input, shape index: {}]
  %s1 = inlined_call_operand.vmem [shape: f32[1,16], index: 1, kind: input, shape index: {}]
  %s2 = inlined_call_operand.vmem [shape: f32[1,16], index: 2, kind: input, shape index: {}]
  %s3 = inlined_call_operand.vmem [shape: f32[128,16], index: 3, kind: output, shape index: {}]
  %s4 = sld [smem:[#allocation0]]
  $region22: #{net_forward.78} parent=0
    _
  %s6 = ssub.s32 1, %s4
  %s7 = scalar_select 0, %s6, %s4
  // Predicated region
  $region2: #{net_forward.78} parent=0 // pred_check
    _
  $region3: #{net_forward.78} parent=0 // pred_check_branch
    %9 = sbr.rel (0) target = $region5
  $region4: #{net_forward.78} parent=0 // pred_region
    _
  $region5: #{net_forward.78} parent=0 // pred_fallthru
    _
  // Predicated region
  $region6: #{net_forward.78} parent=0 // pred_check
    _
  $region7: #{net_forward.78} parent=0 // pred_check_branch
    %11 = sbr.rel (0) target = $region9
  $region8: #{net_forward.78} parent=0 // pred_region
    _
  $region9: #{net_forward.78} parent=0 // pred_fallthru
    _
  // Predicated region
  $region10: #{net_forward.78} parent=0 // pred_check
    _
  $region11: #{net_forward.78} parent=0 // pred_check_branch
    %13 = sbr.rel (0) target = $region13
  $region12: #{net_forward.78} parent=0 // pred_region
    _
  $region13: #{net_forward.78} parent=0 // pred_fallthru
    _
  %v14 = vld [vmem:[%s0] sm:$0xff]
  %v15 = vld [vmem:[%s0 + $0x8] sm:$0xff]
  %v16 = vld [vmem:[%s0 + $0x10] sm:$0xff]
  %v17 = vld [vmem:[%s0 + $0x18] sm:$0xff]
  %v18 = vld [vmem:[%s0 + $0x20] sm:$0xff]
  %v19 = vld [vmem:[%s0 + $0x28] sm:$0xff]
  %v20 = vld [vmem:[%s0 + $0x30] sm:$0xff]
  %v21 = vld [vmem:[%s0 + $0x38] sm:$0xff]
  %v22 = vld [vmem:[%s0 + $0x40] sm:$0xff]
  %v23 = vld [vmem:[%s0 + $0x48] sm:$0xff]
  %v24 = vld [vmem:[%s0 + $0x50] sm:$0xff]
  %v25 = vld [vmem:[%s0 + $0x58] sm:$0xff]
  %v26 = vld [vmem:[%s0 + $0x60] sm:$0xff]
  %v27 = vld [vmem:[%s0 + $0x68] sm:$0xff]
  %v28 = vld [vmem:[%s0 + $0x70] sm:$0xff]
  %v29 = vld [vmem:[%s0 + $0x78] sm:$0xff]
  %vm30 = vcmask 130048
  %v31 = vsel %vm30, %v14, 0.0
  %v32 = vsel %vm30, %v15, 0.0
  %v33 = vadd.f32 %v31, %v32
  %v34 = vsel %vm30, %v16, 0.0
  %v35 = vadd.f32 %v33, %v34
  %v36 = vsel %vm30, %v17, 0.0
  %v37 = vadd.f32 %v35, %v36
  %v38 = vsel %vm30, %v18, 0.0
  %v39 = vadd.f32 %v37, %v38
  %v40 = vsel %vm30, %v19, 0.0
  %v41 = vadd.f32 %v39, %v40
  %v42 = vsel %vm30, %v20, 0.0
  %v43 = vadd.f32 %v41, %v42
  %v44 = vsel %vm30, %v21, 0.0
  %v45 = vadd.f32 %v43, %v44
  %v46 = vsel %vm30, %v22, 0.0
  %v47 = vadd.f32 %v45, %v46
  %v48 = vsel %vm30, %v23, 0.0
  %v49 = vadd.f32 %v47, %v48
  %v50 = vsel %vm30, %v24, 0.0
  %v51 = vadd.f32 %v49, %v50
  %v52 = vsel %vm30, %v25, 0.0
  %v53 = vadd.f32 %v51, %v52
  %v54 = vsel %vm30, %v26, 0.0
  %v55 = vadd.f32 %v53, %v54
  %v56 = vsel %vm30, %v27, 0.0
  %v57 = vadd.f32 %v55, %v56
  %v58 = vsel %vm30, %v28, 0.0
  %v59 = vadd.f32 %v57, %v58
  %v60 = vsel %vm30, %v29, 0.0
  %v61 = vadd.f32 %v59, %v60
  %v62 = vrot.slane %v61, 4
  %v63 = vadd.f32 %v61, %v62
  %v64 = vrot.slane %v63, 2
  %v65 = vadd.f32 %v63, %v64
  %v66 = vrot.slane %v65, 1
  %v67 = vadd.f32 %v65, %v66
  %v68 = vrcp.pop 128.0
  %v69 = vmul.f32 %v67, %v68
  %v70 = vmul.f32 %v14, %v14
  %v71 = vmul.f32 %v15, %v15
  %v72 = vmul.f32 %v16, %v16
  %v73 = vmul.f32 %v17, %v17
  %v74 = vmul.f32 %v18, %v18
  %v75 = vmul.f32 %v19, %v19
  %v76 = vmul.f32 %v20, %v20
  %v77 = vmul.f32 %v21, %v21
  %v78 = vmul.f32 %v22, %v22
  %v79 = vmul.f32 %v23, %v23
  %v80 = vmul.f32 %v24, %v24
  %v81 = vmul.f32 %v25, %v25
  %v82 = vmul.f32 %v26, %v26
  %v83 = vmul.f32 %v27, %v27
  %v84 = vmul.f32 %v28, %v28
  %v85 = vmul.f32 %v29, %v29
  %v86 = vsel %vm30, %v70, 0.0
  %v87 = vsel %vm30, %v71, 0.0
  %v88 = vadd.f32 %v86, %v87
  %v89 = vsel %vm30, %v72, 0.0
  %v90 = vadd.f32 %v88, %v89
  %v91 = vsel %vm30, %v73, 0.0
  %v92 = vadd.f32 %v90, %v91
  %v93 = vsel %vm30, %v74, 0.0
  %v94 = vadd.f32 %v92, %v93
  %v95 = vsel %vm30, %v75, 0.0
  %v96 = vadd.f32 %v94, %v95
  %v97 = vsel %vm30, %v76, 0.0
  %v98 = vadd.f32 %v96, %v97
  %v99 = vsel %vm30, %v77, 0.0
  %v100 = vadd.f32 %v98, %v99
  %v101 = vsel %vm30, %v78, 0.0
  %v102 = vadd.f32 %v100, %v101
  %v103 = vsel %vm30, %v79, 0.0
  %v104 = vadd.f32 %v102, %v103
  %v105 = vsel %vm30, %v80, 0.0
  %v106 = vadd.f32 %v104, %v105
  %v107 = vsel %vm30, %v81, 0.0
  %v108 = vadd.f32 %v106, %v107
  %v109 = vsel %vm30, %v82, 0.0
  %v110 = vadd.f32 %v108, %v109
  %v111 = vsel %vm30, %v83, 0.0
  %v112 = vadd.f32 %v110, %v111
  %v113 = vsel %vm30, %v84, 0.0
  %v114 = vadd.f32 %v112, %v113
  %v115 = vsel %vm30, %v85, 0.0
  %v116 = vadd.f32 %v114, %v115
  %v117 = vrot.slane %v116, 4
  %v118 = vadd.f32 %v116, %v117
  %v119 = vrot.slane %v118, 2
  %v120 = vadd.f32 %v118, %v119
  %v121 = vrot.slane %v120, 1
  %v122 = vadd.f32 %v120, %v121
  %v123 = vmul.f32 %v122, %v68
  %v124 = vmul.f32 %v69, %v69
  %v125 = vsub.f32 %v123, %v124
  %v126 = vmax.f32 %v125, 0.0
  %v127 = vld [vmem:[%s1] sm:$0x1]
  %v128 = vadd.f32 %v126, 0.001
  %v129 = vrsqrt.pop %v128
  %v130 = vmul.f32 %v127, %v129
  %v132 = vlaneseq
  %v133 = vshrl.u32 %v132, 7
  %v134 = vsub.s32 0, %v133
  %v135 = vrot.slane %v130, %v134
  %v137 = vmul.f32 %v14, %v135
  %v138 = vmul.f32 %v15, %v135
  %v139 = vmul.f32 %v16, %v135
  %v140 = vmul.f32 %v17, %v135
  %v141 = vmul.f32 %v18, %v135
  %v142 = vmul.f32 %v19, %v135
  %v143 = vmul.f32 %v20, %v135
  %v144 = vmul.f32 %v21, %v135
  %v145 = vmul.f32 %v22, %v135
  %v146 = vmul.f32 %v23, %v135
  %v147 = vmul.f32 %v24, %v135
  %v148 = vmul.f32 %v25, %v135
  %v149 = vmul.f32 %v26, %v135
  %v150 = vmul.f32 %v27, %v135
  %v151 = vmul.f32 %v28, %v135
  %v152 = vmul.f32 %v29, %v135
  %v153 = vld [vmem:[%s2] sm:$0x1]
  %v154 = vmul.f32 %v69, %v130
  %v155 = vsub.f32 %v153, %v154
  %v157 = vlaneseq
  %v158 = vshrl.u32 %v157, 7
  %v159 = vsub.s32 0, %v158
  %v160 = vrot.slane %v155, %v159
  %v162 = vadd.f32 %v137, %v160
  %v163 = vadd.f32 %v138, %v160
  %v164 = vadd.f32 %v139, %v160
  %v165 = vadd.f32 %v140, %v160
  %v166 = vadd.f32 %v141, %v160
  %v167 = vadd.f32 %v142, %v160
  %v168 = vadd.f32 %v143, %v160
  %v169 = vadd.f32 %v144, %v160
  %v170 = vadd.f32 %v145, %v160
  %v171 = vadd.f32 %v146, %v160
  %v172 = vadd.f32 %v147, %v160
  %v173 = vadd.f32 %v148, %v160
  %v174 = vadd.f32 %v149, %v160
  %v175 = vadd.f32 %v150, %v160
  %v176 = vadd.f32 %v151, %v160
  %v177 = vadd.f32 %v152, %v160
  %v178 = vmax.f32 %v162, 0.0
  %v179 = vmax.f32 %v163, 0.0
  %v180 = vmax.f32 %v164, 0.0
  %v181 = vmax.f32 %v165, 0.0
  %v182 = vmax.f32 %v166, 0.0
  %v183 = vmax.f32 %v167, 0.0
  %v184 = vmax.f32 %v168, 0.0
  %v185 = vmax.f32 %v169, 0.0
  %v186 = vmax.f32 %v170, 0.0
  %v187 = vmax.f32 %v171, 0.0
  %v188 = vmax.f32 %v172, 0.0
  %v189 = vmax.f32 %v173, 0.0
  %v190 = vmax.f32 %v174, 0.0
  %v191 = vmax.f32 %v175, 0.0
  %v192 = vmax.f32 %v176, 0.0
  %v193 = vmax.f32 %v177, 0.0
  %194 = vst.msk [vmem:[%s3] sm:$0xff] %vm30, %v178
  %195 = vst.msk [vmem:[%s3 + $0x8] sm:$0xff] %vm30, %v179
  %196 = vst.msk [vmem:[%s3 + $0x10] sm:$0xff] %vm30, %v180
  %197 = vst.msk [vmem:[%s3 + $0x18] sm:$0xff] %vm30, %v181
  %198 = vst.msk [vmem:[%s3 + $0x20] sm:$0xff] %vm30, %v182
  %199 = vst.msk [vmem:[%s3 + $0x28] sm:$0xff] %vm30, %v183
  %200 = vst.msk [vmem:[%s3 + $0x30] sm:$0xff] %vm30, %v184
  %201 = vst.msk [vmem:[%s3 + $0x38] sm:$0xff] %vm30, %v185
  %202 = vst.msk [vmem:[%s3 + $0x40] sm:$0xff] %vm30, %v186
  %203 = vst.msk [vmem:[%s3 + $0x48] sm:$0xff] %vm30, %v187
  %204 = vst.msk [vmem:[%s3 + $0x50] sm:$0xff] %vm30, %v188
  %205 = vst.msk [vmem:[%s3 + $0x58] sm:$0xff] %vm30, %v189
  %206 = vst.msk [vmem:[%s3 + $0x60] sm:$0xff] %vm30, %v190
  %207 = vst.msk [vmem:[%s3 + $0x68] sm:$0xff] %vm30, %v191
  %208 = vst.msk [vmem:[%s3 + $0x70] sm:$0xff] %vm30, %v192
  %209 = vst.msk [vmem:[%s3 + $0x78] sm:$0xff] %vm30, %v193
  // Predicated region
  $region14: #{net_forward.78} parent=0 // pred_check
    _
  $region15: #{net_forward.78} parent=0 // pred_check_branch
    %211 = sbr.rel (0) target = $region17
  $region16: #{net_forward.78} parent=0 // pred_region
    _
  $region17: #{net_forward.78} parent=0 // pred_fallthru
    _
  // Predicated region
  $region18: #{net_forward.78} parent=0 // pred_check
    _
  $region19: #{net_forward.78} parent=0 // pred_check_branch
    %213 = sbr.rel (0) target = $region21
  $region20: #{net_forward.78} parent=0 // pred_region
    _
  $region21: #{net_forward.78} parent=0 // pred_fallthru
    _

// kernel: net_forward.77
$region0: #{net_forward.77}
  #allocation0 [shape = 'u32[]', space=smem, size = 0x4, offset = 0x4, fixed_abs, tag = 'smem constant byte address 0x4 - core index']
  #allocation1 [shape = 'u32[144,128]{1,0:T(1,128)}', space=vmem, size = 0x12000, scoped, tag = 'internal scratch']
  %s0 = inlined_call_operand.vmem [shape: bf16[128,27], index: 0, kind: input, shape index: {}]
  %s1 = inlined_call_operand.vmem [shape: bf16[27,13], index: 1, kind: input, shape index: {}]
  %s2 = inlined_call_operand.vmem [shape: f32[128,13], index: 2, kind: output, shape index: {}]
  %s3 = sld [smem:[#allocation0]]
  $region18: #{net_forward.77} parent=0
    _
  %s5 = ssub.s32 1, %s3
  %s6 = scalar_select 0, %s5, %s3
  // Predicated region
  $region2: #{net_forward.77} parent=0 // pred_check
    _
  $region3: #{net_forward.77} parent=0 // pred_check_branch
    %8 = sbr.rel (0) target = $region5
  $region4: #{net_forward.77} parent=0 // pred_region
    _
  $region5: #{net_forward.77} parent=0 // pred_fallthru
    _
  // Predicated region
  $region6: #{net_forward.77} parent=0 // pred_check
    _
  $region7: #{net_forward.77} parent=0 // pred_check_branch
    %10 = sbr.rel (0) target = $region9
  $region8: #{net_forward.77} parent=0 // pred_region
    _
  $region9: #{net_forward.77} parent=0 // pred_fallthru
    _
  %v12 = vld [vmem:[%s0] sm:$0xf]
  %v13 = vld [vmem:[%s0 + $0x4] sm:$0xf]
  %v14 = vld [vmem:[%s0 + $0x8] sm:$0xf]
  %v15 = vld [vmem:[%s0 + $0xc] sm:$0xf]
  %v16 = vld [vmem:[%s0 + $0x10] sm:$0xf]
  %v17 = vld [vmem:[%s0 + $0x14] sm:$0xf]
  %v18 = vld [vmem:[%s0 + $0x18] sm:$0xf]
  %v19 = vld [vmem:[%s0 + $0x1c] sm:$0xf]
  %v20 = vld [vmem:[%s0 + $0x20] sm:$0xf]
  %v21 = vld [vmem:[%s0 + $0x24] sm:$0xf]
  %v22 = vld [vmem:[%s0 + $0x28] sm:$0xf]
  %v23 = vld [vmem:[%s0 + $0x2c] sm:$0xf]
  %v24 = vld [vmem:[%s0 + $0x30] sm:$0xf]
  %v25 = vld [vmem:[%s0 + $0x34] sm:$0xf]
  %v26 = vld [vmem:[%s0 + $0x38] sm:$0xf]
  %v27 = vld [vmem:[%s0 + $0x3c] sm:$0xf]
  %v28 = vld [vmem:[%s1] sm:$0xf]
  %v29 = vld [vmem:[%s1 + $0x4] sm:$0xf]
  %v30 = vld [vmem:[%s1 + $0x8] sm:$0xf]
  %v31 = vld [vmem:[%s1 + $0xc] sm:$0x3]
  %v48 = vunpack.c.l.b16 %v12
  %v49 = vunpack.c.l.b16 %v13
  %v50 = vunpack.c.l.b16 %v14
  %v51 = vunpack.c.l.b16 %v15
  %v52 = vunpack.c.l.b16 %v16
  %v53 = vunpack.c.l.b16 %v17
  %v54 = vunpack.c.l.b16 %v18
  %v55 = vunpack.c.l.b16 %v19
  %v56 = vunpack.c.l.b16 %v20
  %v57 = vunpack.c.l.b16 %v21
  %v58 = vunpack.c.l.b16 %v22
  %v59 = vunpack.c.l.b16 %v23
  %v60 = vunpack.c.l.b16 %v24
  %v61 = vunpack.c.l.b16 %v25
  %v62 = vunpack.c.l.b16 %v26
  %v63 = vunpack.c.l.b16 %v27
  %v64 = vpack.c.b16 %v49, %v48
  %v65 = vpack.c.b16 %v51, %v50
  %v66 = vpack.c.b16 %v53, %v52
  %v67 = vpack.c.b16 %v55, %v54
  %v68 = vpack.c.b16 %v57, %v56
  %v69 = vpack.c.b16 %v59, %v58
  %v70 = vpack.c.b16 %v61, %v60
  %v71 = vpack.c.b16 %v63, %v62
  %v76 = vunpack.c.l.b16 %v28
  %v77 = vunpack.c.l.b16 %v29
  %v78 = vunpack.c.l.b16 %v30
  %v79 = vunpack.c.l.b16 %v31
  %v80 = vpack.c.b16 %v77, %v76
  %v81 = vpack.c.b16 %v79, %v78
  %vm83 = vcmask 220160
  %v85 = vsel %vm83, %v64, 0
  %v88 = vsel %vm83, %v65, 0
  %v91 = vsel %vm83, %v66, 0
  %v94 = vsel %vm83, %v67, 0
  %v97 = vsel %vm83, %v68, 0
  %v100 = vsel %vm83, %v69, 0
  %v103 = vsel %vm83, %v70, 0
  %v106 = vsel %vm83, %v71, 0
  %vm108 = vcmask 1044480
  %vm109 = vcmask 1045504
  %v110 = vsel %vm108, 4294967295, 65535
  %v111 = vsel %vm109, %v110, 0
  %v113 = vand.u32 %v81, %v111
  %115 = vmatprep.subr.bf16.mxu0 0
  %116 = vmatpush1.bf16.msra.mxu0 0
  %117 = vmatprep.subr.bf16.mxu0 0
  %118 = vmatpush1.bf16.msra.mxu0 0
  %119 = vmatprep.subr.bf16.mxu0 0
  %120 = vmatpush1.bf16.msra.mxu0 0
  %121 = vmatprep.subr.bf16.mxu0 0
  %122 = vmatpush1.bf16.msra.mxu0 0
  %123 = vmatprep.subr.bf16.mxu0 0
  %124 = vmatpush1.bf16.msra.mxu0 0
  %125 = vmatprep.subr.bf16.mxu0 0
  %126 = vmatpush1.bf16.msra.mxu0 0
  %127 = vmatprep.subr.bf16.mxu0 0
  %128 = vmatpush1.bf16.msra.mxu0 %v113
  %129 = vmatprep.subr.bf16.mxu0 0
  %130 = vmatpush1.bf16.msra.mxu0 %v80
  %131 = vmatprep.subr.bf16.mxu0 0
  %132 = vmatpush2.bf16.msra.mxu0 0
  %133 = vmatprep.subr.bf16.mxu0 0
  %134 = vmatpush2.bf16.msra.mxu0 0
  %135 = vmatprep.subr.bf16.mxu0 0
  %136 = vmatpush2.bf16.msra.mxu0 0
  %137 = vmatprep.subr.bf16.mxu0 0
  %138 = vmatpush2.bf16.msra.mxu0 0
  %139 = vmatprep.subr.bf16.mxu0 0
  %140 = vmatpush2.bf16.msra.mxu0 0
  %141 = vmatprep.subr.bf16.mxu0 0
  %142 = vmatpush2.bf16.msra.mxu0 0
  %143 = vmatprep.subr.bf16.mxu0 0
  %144 = vmatpush2.bf16.msra.mxu0 0
  %145 = vmatprep.subr.bf16.mxu0 0
  %146 = vmatpush2.bf16.msra.mxu0 0
  %147 = vmatprep.mubr.bf16.mxu0 0
  %148 = vmatmul.mubr.bf16.gmra.mxu0 %v85
  %v149 = vpop.f32.mrf.mxu0
  %v150 = vadd.f32 0.0, %v149
  %v151 = vpop.f32.mrf.mxu0
  %v152 = vpop.f32.mrf.mxu0
  %v153 = vadd.f32 0.0, %v152
  %v154 = vpop.f32.mrf.mxu0
  %155 = vmatprep.mubr.bf16.mxu0 0
  %156 = vmatmul.mubr.bf16.gmra.mxu0 %v88
  %v157 = vpop.f32.mrf.mxu0
  %v158 = vadd.f32 0.0, %v157
  %v159 = vpop.f32.mrf.mxu0
  %v160 = vpop.f32.mrf.mxu0
  %v161 = vadd.f32 0.0, %v160
  %v162 = vpop.f32.mrf.mxu0
  %163 = vmatprep.mubr.bf16.mxu0 0
  %164 = vmatmul.mubr.bf16.gmra.mxu0 %v91
  %v165 = vpop.f32.mrf.mxu0
  %v166 = vadd.f32 0.0, %v165
  %v167 = vpop.f32.mrf.mxu0
  %v168 = vpop.f32.mrf.mxu0
  %v169 = vadd.f32 0.0, %v168
  %v170 = vpop.f32.mrf.mxu0
  %171 = vmatprep.mubr.bf16.mxu0 0
  %172 = vmatmul.mubr.bf16.gmra.mxu0 %v94
  %v173 = vpop.f32.mrf.mxu0
  %v174 = vadd.f32 0.0, %v173
  %v175 = vpop.f32.mrf.mxu0
  %v176 = vpop.f32.mrf.mxu0
  %v177 = vadd.f32 0.0, %v176
  %v178 = vpop.f32.mrf.mxu0
  %179 = vmatprep.mubr.bf16.mxu0 0
  %180 = vmatmul.mubr.bf16.gmra.mxu0 %v97
  %v181 = vpop.f32.mrf.mxu0
  %v182 = vadd.f32 0.0, %v181
  %v183 = vpop.f32.mrf.mxu0
  %v184 = vpop.f32.mrf.mxu0
  %v185 = vadd.f32 0.0, %v184
  %v186 = vpop.f32.mrf.mxu0
  %187 = vmatprep.mubr.bf16.mxu0 0
  %188 = vmatmul.mubr.bf16.gmra.mxu0 %v100
  %v189 = vpop.f32.mrf.mxu0
  %v190 = vadd.f32 0.0, %v189
  %v191 = vpop.f32.mrf.mxu0
  %v192 = vpop.f32.mrf.mxu0
  %v193 = vadd.f32 0.0, %v192
  %v194 = vpop.f32.mrf.mxu0
  %195 = vmatprep.mubr.bf16.mxu0 0
  %196 = vmatmul.mubr.bf16.gmra.mxu0 %v103
  %v197 = vpop.f32.mrf.mxu0
  %v198 = vadd.f32 0.0, %v197
  %v199 = vpop.f32.mrf.mxu0
  %v200 = vpop.f32.mrf.mxu0
  %v201 = vadd.f32 0.0, %v200
  %v202 = vpop.f32.mrf.mxu0
  %203 = vmatprep.mubr.bf16.mxu0 0
  %204 = vmatmul.mubr.bf16.gmra.mxu0 %v106
  %v205 = vpop.f32.mrf.mxu0
  %v206 = vadd.f32 0.0, %v205
  %v207 = vpop.f32.mrf.mxu0
  %v208 = vpop.f32.mrf.mxu0
  %v209 = vadd.f32 0.0, %v208
  %v210 = vpop.f32.mrf.mxu0
  %211 = vdwg.mxu0
  %vm212 = vcmask 105472
  %213 = vst.msk [vmem:[%s2] sm:$0xff] %vm212, %v150
  %214 = vst.msk [vmem:[%s2 + $0x8] sm:$0xff] %vm212, %v153
  %215 = vst.msk [vmem:[%s2 + $0x10] sm:$0xff] %vm212, %v158
  %216 = vst.msk [vmem:[%s2 + $0x18] sm:$0xff] %vm212, %v161
  %217 = vst.msk [vmem:[%s2 + $0x20] sm:$0xff] %vm212, %v166
  %218 = vst.msk [vmem:[%s2 + $0x28] sm:$0xff] %vm212, %v169
  %219 = vst.msk [vmem:[%s2 + $0x30] sm:$0xff] %vm212, %v174
  %220 = vst.msk [vmem:[%s2 + $0x38] sm:$0xff] %vm212, %v177
  %221 = vst.msk [vmem:[%s2 + $0x40] sm:$0xff] %vm212, %v182
  %222 = vst.msk [vmem:[%s2 + $0x48] sm:$0xff] %vm212, %v185
  %223 = vst.msk [vmem:[%s2 + $0x50] sm:$0xff] %vm212, %v190
  %224 = vst.msk [vmem:[%s2 + $0x58] sm:$0xff] %vm212, %v193
  %225 = vst.msk [vmem:[%s2 + $0x60] sm:$0xff] %vm212, %v198
  %226 = vst.msk [vmem:[%s2 + $0x68] sm:$0xff] %vm212, %v201
  %227 = vst.msk [vmem:[%s2 + $0x70] sm:$0xff] %vm212, %v206
  %228 = vst.msk [vmem:[%s2 + $0x78] sm:$0xff] %vm212, %v209
  // Predicated region
  $region10: #{net_forward.77} parent=0 // pred_check
    _
  $region11: #{net_forward.77} parent=0 // pred_check_branch
    %230 = sbr.rel (0) target = $region13
  $region12: #{net_forward.77} parent=0 // pred_region
    _
  $region13: #{net_forward.77} parent=0 // pred_fallthru
    _
  // Predicated region
  $region14: #{net_forward.77} parent=0 // pred_check
    _
  $region15: #{net_forward.77} parent=0 // pred_check_branch
    %232 = sbr.rel (0) target = $region17
  $region16: #{net_forward.77} parent=0 // pred_region
    _
  $region17: #{net_forward.77} parent=0 // pred_fallthru
    _

// kernel: net_forward.79
$region0: #{net_forward.79}
  #allocation0 [shape = 'u32[]', space=smem, size = 0x4, offset = 0x4, fixed_abs, tag = 'smem constant byte address 0x4 - core index']
  #allocation1 [shape = 'u32[144,128]{1,0:T(1,128)}', space=vmem, size = 0x12000, scoped, tag = 'internal scratch']
  %s0 = inlined_call_operand.vmem [shape: bf16[32,144], index: 0, kind: input, shape index: {}]
  %s1 = inlined_call_operand.vmem [shape: bf16[144,48], index: 1, kind: input, shape index: {}]
  %s2 = inlined_call_operand.vmem [shape: f32[32,48], index: 2, kind: output, shape index: {}]
  %s3 = sld [smem:[#allocation0]]
  $region18: #{net_forward.79} parent=0
    _
  %s5 = ssub.s32 1, %s3
  %s6 = scalar_select 0, %s5, %s3
  // Predicated region
  $region2: #{net_forward.79} parent=0 // pred_check
    _
  $region3: #{net_forward.79} parent=0 // pred_check_branch
    %8 = sbr.rel (0) target = $region5
  $region4: #{net_forward.79} parent=0 // pred_region
    _
  $region5: #{net_forward.79} parent=0 // pred_fallthru
    _
  // Predicated region
  $region6: #{net_forward.79} parent=0 // pred_check
    _
  $region7: #{net_forward.79} parent=0 // pred_check_branch
    %10 = sbr.rel (0) target = $region9
  $region8: #{net_forward.79} parent=0 // pred_region
    _
  $region9: #{net_forward.79} parent=0 // pred_fallthru
    _
  %v12 = vld [vmem:[%s0] sm:$0xff]
  %v13 = vld [vmem:[%s0 + $0x8] sm:$0xff]
  %v14 = vld [vmem:[%s0 + $0x10] sm:$0xff]
  %v15 = vld [vmem:[%s0 + $0x18] sm:$0xff]
  %v16 = vld [vmem:[%s1] sm:$0xf]
  %v17 = vld [vmem:[%s1 + $0x4] sm:$0xf]
  %v18 = vld [vmem:[%s1 + $0x8] sm:$0xf]
  %v19 = vld [vmem:[%s1 + $0xc] sm:$0xf]
  %v20 = vld [vmem:[%s1 + $0x10] sm:$0xf]
  %v21 = vld [vmem:[%s1 + $0x14] sm:$0xf]
  %v22 = vld [vmem:[%s1 + $0x18] sm:$0xf]
  %v23 = vld [vmem:[%s1 + $0x1c] sm:$0xf]
  %v24 = vld [vmem:[%s1 + $0x20] sm:$0xf]
  %v25 = vld [vmem:[%s1 + $0x24] sm:$0xf]
  %v26 = vld [vmem:[%s1 + $0x28] sm:$0xf]
  %v27 = vld [vmem:[%s1 + $0x2c] sm:$0xf]
  %v28 = vld [vmem:[%s1 + $0x30] sm:$0xf]
  %v29 = vld [vmem:[%s1 + $0x34] sm:$0xf]
  %v30 = vld [vmem:[%s1 + $0x38] sm:$0xf]
  %v31 = vld [vmem:[%s1 + $0x3c] sm:$0xf]
  %v32 = vld [vmem:[%s1 + $0x40] sm:$0xf]
  %v33 = vld [vmem:[%s1 + $0x44] sm:$0xf]
  %v38 = vunpack.c.l.b16 %v12
  %v39 = vunpack.c.h.b16 %v12
  %v40 = vunpack.c.l.b16 %v13
  %v41 = vunpack.c.h.b16 %v13
  %v42 = vunpack.c.l.b16 %v14
  %v43 = vunpack.c.h.b16 %v14
  %v44 = vunpack.c.l.b16 %v15
  %v45 = vunpack.c.h.b16 %v15
  %v46 = vpack.c.b16 %v40, %v38
  %v47 = vpack.c.b16 %v41, %v39
  %v48 = vpack.c.b16 %v44, %v42
  %v49 = vpack.c.b16 %v45, %v43
  %v70 = vunpack.c.l.b16 %v16
  %v71 = vunpack.c.l.b16 %v17
  %v72 = vunpack.c.l.b16 %v18
  %v73 = vunpack.c.l.b16 %v19
  %v74 = vunpack.c.l.b16 %v20
  %v75 = vunpack.c.l.b16 %v21
  %v76 = vunpack.c.l.b16 %v22
  %v77 = vunpack.c.l.b16 %v23
  %v78 = vunpack.c.l.b16 %v24
  %v79 = vunpack.c.l.b16 %v25
  %v80 = vunpack.c.l.b16 %v26
  %v81 = vunpack.c.l.b16 %v27
  %v82 = vunpack.c.l.b16 %v28
  %v83 = vunpack.c.l.b16 %v29
  %v84 = vunpack.c.l.b16 %v30
  %v85 = vunpack.c.l.b16 %v31
  %v86 = vunpack.c.l.b16 %v32
  %v87 = vunpack.c.l.b16 %v33
  %v88 = vpack.c.b16 %v71, %v70
  %v89 = vpack.c.b16 %v73, %v72
  %v90 = vpack.c.b16 %v75, %v74
  %v91 = vpack.c.b16 %v77, %v76
  %v92 = vpack.c.b16 %v79, %v78
  %v93 = vpack.c.b16 %v81, %v80
  %v94 = vpack.c.b16 %v83, %v82
  %v95 = vpack.c.b16 %v85, %v84
  %v96 = vpack.c.b16 %v87, %v86
  %vm106 = vcmask 130048
  %v108 = vsel %vm106, %v47, 0
  %v111 = vsel %vm106, %v49, 0
  %113 = vmatprep.subr.bf16.mxu0 0
  %114 = vmatpush1.bf16.msra.mxu0 %v95
  %115 = vmatprep.subr.bf16.mxu0 0
  %116 = vmatpush1.bf16.msra.mxu0 %v94
  %117 = vmatprep.subr.bf16.mxu0 0
  %118 = vmatpush1.bf16.msra.mxu0 %v93
  %119 = vmatprep.subr.bf16.mxu0 0
  %120 = vmatpush1.bf16.msra.mxu0 %v92
  %121 = vmatprep.subr.bf16.mxu0 0
  %122 = vmatpush1.bf16.msra.mxu0 %v91
  %123 = vmatprep.subr.bf16.mxu0 0
  %124 = vmatpush1.bf16.msra.mxu0 %v90
  %125 = vmatprep.subr.bf16.mxu0 0
  %126 = vmatpush1.bf16.msra.mxu0 %v89
  %127 = vmatprep.subr.bf16.mxu0 0
  %128 = vmatpush1.bf16.msra.mxu0 %v88
  %129 = vmatprep.subr.bf16.mxu0 0
  %130 = vmatpush2.bf16.msra.mxu0 0
  %131 = vmatprep.subr.bf16.mxu0 0
  %132 = vmatpush2.bf16.msra.mxu0 0
  %133 = vmatprep.subr.bf16.mxu0 0
  %134 = vmatpush2.bf16.msra.mxu0 0
  %135 = vmatprep.subr.bf16.mxu0 0
  %136 = vmatpush2.bf16.msra.mxu0 0
  %137 = vmatprep.subr.bf16.mxu0 0
  %138 = vmatpush2.bf16.msra.mxu0 0
  %139 = vmatprep.subr.bf16.mxu0 0
  %140 = vmatpush2.bf16.msra.mxu0 0
  %141 = vmatprep.subr.bf16.mxu0 0
  %142 = vmatpush2.bf16.msra.mxu0 0
  %143 = vmatprep.subr.bf16.mxu0 0
  %144 = vmatpush2.bf16.msra.mxu0 %v96
  %145 = vmatprep.mubr.bf16.mxu0 %v108
  %146 = vmatmul.mubr.bf16.gmra.mxu0 %v46
  %v147 = vpop.f32.mrf.mxu0
  %v148 = vadd.f32 0.0, %v147
  %v149 = vpop.f32.mrf.mxu0
  %v150 = vpop.f32.mrf.mxu0
  %v151 = vadd.f32 0.0, %v150
  %v152 = vpop.f32.mrf.mxu0
  %153 = vmatprep.mubr.bf16.mxu0 %v111
  %154 = vmatmul.mubr.bf16.gmra.mxu0 %v48
  %v155 = vpop.f32.mrf.mxu0
  %v156 = vadd.f32 0.0, %v155
  %v157 = vpop.f32.mrf.mxu0
  %v158 = vpop.f32.mrf.mxu0
  %v159 = vadd.f32 0.0, %v158
  %v160 = vpop.f32.mrf.mxu0
  %161 = vdwg.mxu0
  %vm162 = vcmask 392192
  %163 = vst.msk [vmem:[%s2] sm:$0xff] %vm162, %v148
  %164 = vst.msk [vmem:[%s2 + $0x8] sm:$0xff] %vm162, %v151
  %165 = vst.msk [vmem:[%s2 + $0x10] sm:$0xff] %vm162, %v156
  %166 = vst.msk [vmem:[%s2 + $0x18] sm:$0xff] %vm162, %v159
  // Predicated region
  $region10: #{net_forward.79} parent=0 // pred_check
    _
  $region11: #{net_forward.79} parent=0 // pred_check_branch
    %168 = sbr.rel (0) target = $region13
  $region12: #{net_forward.79} parent=0 // pred_region
    _
  $region13: #{net_forward.79} parent=0 // pred_fallthru
    _
  // Predicated region
  $region14: #{net_forward.79} parent=0 // pred_check
    _
  $region15: #{net_forward.79} parent=0 // pred_check_branch
    %170 = sbr.rel (0) target = $region17
  $region16: #{net_forward.79} parent=0 // pred_region
    _
  $region17: #{net_forward.79} parent=0 // pred_fallthru
    _

// kernel: net_forward.80
$region0: #{net_forward.80}
  #allocation0 [shape = 'u32[]', space=smem, size = 0x4, offset = 0x4, fixed_abs, tag = 'smem constant byte address 0x4 - core index']
  #allocation1 [shape = 'u32[144,128]{1,0:T(1,128)}', space=vmem, size = 0x12000, scoped, tag = 'internal scratch']
  %s0 = inlined_call_operand.vmem [shape: f32[32,64], index: 0, kind: input, shape index: {}]
  %s1 = inlined_call_operand.vmem [shape: f32[1,64], index: 1, kind: input, shape index: {}]
  %s2 = inlined_call_operand.vmem [shape: f32[1,64], index: 2, kind: input, shape index: {}]
  %s3 = inlined_call_operand.vmem [shape: f32[32,64], index: 3, kind: output, shape index: {}]
  %s4 = sld [smem:[#allocation0]]
  $region22: #{net_forward.80} parent=0
    _
  %s6 = ssub.s32 1, %s4
  %s7 = scalar_select 0, %s6, %s4
  // Predicated region
  $region2: #{net_forward.80} parent=0 // pred_check
    _
  $region3: #{net_forward.80} parent=0 // pred_check_branch
    %9 = sbr.rel (0) target = $region5
  $region4: #{net_forward.80} parent=0 // pred_region
    _
  $region5: #{net_forward.80} parent=0 // pred_fallthru
    _
  // Predicated region
  $region6: #{net_forward.80} parent=0 // pred_check
    _
  $region7: #{net_forward.80} parent=0 // pred_check_branch
    %11 = sbr.rel (0) target = $region9
  $region8: #{net_forward.80} parent=0 // pred_region
    _
  $region9: #{net_forward.80} parent=0 // pred_fallthru
    _
  // Predicated region
  $region10: #{net_forward.80} parent=0 // pred_check
    _
  $region11: #{net_forward.80} parent=0 // pred_check_branch
    %13 = sbr.rel (0) target = $region13
  $region12: #{net_forward.80} parent=0 // pred_region
    _
  $region13: #{net_forward.80} parent=0 // pred_fallthru
    _
  %v14 = vld [vmem:[%s0] sm:$0xff]
  %v15 = vld [vmem:[%s0 + $0x8] sm:$0xff]
  %v16 = vld [vmem:[%s0 + $0x10] sm:$0xff]
  %v17 = vld [vmem:[%s0 + $0x18] sm:$0xff]
  %vm18 = vcmask 523264
  %v19 = vsel %vm18, %v14, 0.0
  %v20 = vsel %vm18, %v15, 0.0
  %v21 = vadd.f32 %v19, %v20
  %v22 = vsel %vm18, %v16, 0.0
  %v23 = vadd.f32 %v21, %v22
  %v24 = vsel %vm18, %v17, 0.0
  %v25 = vadd.f32 %v23, %v24
  %v26 = vrot.slane %v25, 4
  %v27 = vadd.f32 %v25, %v26
  %v28 = vrot.slane %v27, 2
  %v29 = vadd.f32 %v27, %v28
  %v30 = vrot.slane %v29, 1
  %v31 = vadd.f32 %v29, %v30
  %v32 = vrcp.pop 32.0
  %v33 = vmul.f32 %v31, %v32
  %v34 = vmul.f32 %v14, %v14
  %v35 = vmul.f32 %v15, %v15
  %v36 = vmul.f32 %v16, %v16
  %v37 = vmul.f32 %v17, %v17
  %v38 = vsel %vm18, %v34, 0.0
  %v39 = vsel %vm18, %v35, 0.0
  %v40 = vadd.f32 %v38, %v39
  %v41 = vsel %vm18, %v36, 0.0
  %v42 = vadd.f32 %v40, %v41
  %v43 = vsel %vm18, %v37, 0.0
  %v44 = vadd.f32 %v42, %v43
  %v45 = vrot.slane %v44, 4
  %v46 = vadd.f32 %v44, %v45
  %v47 = vrot.slane %v46, 2
  %v48 = vadd.f32 %v46, %v47
  %v49 = vrot.slane %v48, 1
  %v50 = vadd.f32 %v48, %v49
  %v51 = vmul.f32 %v50, %v32
  %v52 = vmul.f32 %v33, %v33
  %v53 = vsub.f32 %v51, %v52
  %v54 = vmax.f32 %v53, 0.0
  %v55 = vld [vmem:[%s1] sm:$0x1]
  %v56 = vadd.f32 %v54, 0.001
  %v57 = vrsqrt.pop %v56
  %v58 = vmul.f32 %v55, %v57
  %v60 = vlaneseq
  %v61 = vshrl.u32 %v60, 7
  %v62 = vsub.s32 0, %v61
  %v63 = vrot.slane %v58, %v62
  %v65 = vmul.f32 %v14, %v63
  %v66 = vmul.f32 %v15, %v63
  %v67 = vmul.f32 %v16, %v63
  %v68 = vmul.f32 %v17, %v63
  %v69 = vld [vmem:[%s2] sm:$0x1]
  %v70 = vmul.f32 %v33, %v58
  %v71 = vsub.f32 %v69, %v70
  %v73 = vlaneseq
  %v74 = vshrl.u32 %v73, 7
  %v75 = vsub.s32 0, %v74
  %v76 = vrot.slane %v71, %v75
  %v78 = vadd.f32 %v65, %v76
  %v79 = vadd.f32 %v66, %v76
  %v80 = vadd.f32 %v67, %v76
  %v81 = vadd.f32 %v68, %v76
  %v82 = vmax.f32 %v78, 0.0
  %v83 = vmax.f32 %v79, 0.0
  %v84 = vmax.f32 %v80, 0.0
  %v85 = vmax.f32 %v81, 0.0
  %86 = vst.msk [vmem:[%s3] sm:$0xff] %vm18, %v82
  %87 = vst.msk [vmem:[%s3 + $0x8] sm:$0xff] %vm18, %v83
  %88 = vst.msk [vmem:[%s3 + $0x10] sm:$0xff] %vm18, %v84
  %89 = vst.msk [vmem:[%s3 + $0x18] sm:$0xff] %vm18, %v85
  // Predicated region
  $region14: #{net_forward.80} parent=0 // pred_check
    _
  $region15: #{net_forward.80} parent=0 // pred_check_branch
    %91 = sbr.rel (0) target = $region17
  $region16: #{net_forward.80} parent=0 // pred_region
    _
  $region17: #{net_forward.80} parent=0 // pred_fallthru
    _
  // Predicated region
  $region18: #{net_forward.80} parent=0 // pred_check
    _
  $region19: #{net_forward.80} parent=0 // pred_check_branch
    %93 = sbr.rel (0) target = $region21
  $region20: #{net_forward.80} parent=0 // pred_region
    _
  $region21: #{net_forward.80} parent=0 // pred_fallthru
    _

// kernel: net_forward.81
$region0: #{net_forward.81}
  #allocation0 [shape = 'u32[]', space=smem, size = 0x4, offset = 0x4, fixed_abs, tag = 'smem constant byte address 0x4 - core index']
  #allocation1 [shape = 'u32[144,128]{1,0:T(1,128)}', space=vmem, size = 0x12000, scoped, tag = 'internal scratch']
  %s0 = inlined_call_operand.vmem [shape: bf16[32,192], index: 0, kind: input, shape index: {}]
  %s1 = inlined_call_operand.vmem [shape: bf16[192,64], index: 1, kind: input, shape index: {}]
  %s2 = inlined_call_operand.vmem [shape: f32[1,64], index: 2, kind: input, shape index: {}]
  %s3 = inlined_call_operand.vmem [shape: f32[32,64], index: 3, kind: output, shape index: {}]
  %s4 = sld [smem:[#allocation0]]
  $region22: #{net_forward.81} parent=0
    _
  %s6 = ssub.s32 1, %s4
  %s7 = scalar_select 0, %s6, %s4
  // Predicated region
  $region2: #{net_forward.81} parent=0 // pred_check
    _
  $region3: #{net_forward.81} parent=0 // pred_check_branch
    %9 = sbr.rel (0) target = $region5
  $region4: #{net_forward.81} parent=0 // pred_region
    _
  $region5: #{net_forward.81} parent=0 // pred_fallthru
    _
  // Predicated region
  $region6: #{net_forward.81} parent=0 // pred_check
    _
  $region7: #{net_forward.81} parent=0 // pred_check_branch
    %11 = sbr.rel (0) target = $region9
  $region8: #{net_forward.81} parent=0 // pred_region
    _
  $region9: #{net_forward.81} parent=0 // pred_fallthru
    _
  // Predicated region
  $region10: #{net_forward.81} parent=0 // pred_check
    _
  $region11: #{net_forward.81} parent=0 // pred_check_branch
    %13 = sbr.rel (0) target = $region13
  $region12: #{net_forward.81} parent=0 // pred_region
    _
  $region13: #{net_forward.81} parent=0 // pred_fallthru
    _
  %v15 = vld [vmem:[%s0] sm:$0xff]
  %v16 = vld [vmem:[%s0 + $0x8] sm:$0xff]
  %v17 = vld [vmem:[%s0 + $0x10] sm:$0xff]
  %v18 = vld [vmem:[%s0 + $0x18] sm:$0xff]
  %v19 = vld [vmem:[%s1] sm:$0xf]
  %v20 = vld [vmem:[%s1 + $0x4] sm:$0xf]
  %v21 = vld [vmem:[%s1 + $0x8] sm:$0xf]
  %v22 = vld [vmem:[%s1 + $0xc] sm:$0xf]
  %v23 = vld [vmem:[%s1 + $0x10] sm:$0xf]
  %v24 = vld [vmem:[%s1 + $0x14] sm:$0xf]
  %v25 = vld [vmem:[%s1 + $0x18] sm:$0xf]
  %v26 = vld [vmem:[%s1 + $0x1c] sm:$0xf]
  %v27 = vld [vmem:[%s1 + $0x20] sm:$0xf]
  %v28 = vld [vmem:[%s1 + $0x24] sm:$0xf]
  %v29 = vld [vmem:[%s1 + $0x28] sm:$0xf]
  %v30 = vld [vmem:[%s1 + $0x2c] sm:$0xf]
  %v31 = vld [vmem:[%s1 + $0x30] sm:$0xf]
  %v32 = vld [vmem:[%s1 + $0x34] sm:$0xf]
  %v33 = vld [vmem:[%s1 + $0x38] sm:$0xf]
  %v34 = vld [vmem:[%s1 + $0x3c] sm:$0xf]
  %v35 = vld [vmem:[%s1 + $0x40] sm:$0xf]
  %v36 = vld [vmem:[%s1 + $0x44] sm:$0xf]
  %v37 = vld [vmem:[%s1 + $0x48] sm:$0xf]
  %v38 = vld [vmem:[%s1 + $0x4c] sm:$0xf]
  %v39 = vld [vmem:[%s1 + $0x50] sm:$0xf]
  %v40 = vld [vmem:[%s1 + $0x54] sm:$0xf]
  %v41 = vld [vmem:[%s1 + $0x58] sm:$0xf]
  %v42 = vld [vmem:[%s1 + $0x5c] sm:$0xf]
  %v43 = vld [vmem:[%s2] sm:$0x1]
  %v45 = vlaneseq
  %v46 = vshrl.u32 %v45, 7
  %v47 = vsub.s32 0, %v46
  %v48 = vrot.slane %v43, %v47
  %v54 = vunpack.c.l.b16 %v15
  %v55 = vunpack.c.h.b16 %v15
  %v56 = vunpack.c.l.b16 %v16
  %v57 = vunpack.c.h.b16 %v16
  %v58 = vunpack.c.l.b16 %v17
  %v59 = vunpack.c.h.b16 %v17
  %v60 = vunpack.c.l.b16 %v18
  %v61 = vunpack.c.h.b16 %v18
  %v62 = vpack.c.b16 %v56, %v54
  %v63 = vpack.c.b16 %v57, %v55
  %v64 = vpack.c.b16 %v60, %v58
  %v65 = vpack.c.b16 %v61, %v59
  %v92 = vunpack.c.l.b16 %v19
  %v93 = vunpack.c.l.b16 %v20
  %v94 = vunpack.c.l.b16 %v21
  %v95 = vunpack.c.l.b16 %v22
  %v96 = vunpack.c.l.b16 %v23
  %v97 = vunpack.c.l.b16 %v24
  %v98 = vunpack.c.l.b16 %v25
  %v99 = vunpack.c.l.b16 %v26
  %v100 = vunpack.c.l.b16 %v27
  %v101 = vunpack.c.l.b16 %v28
  %v102 = vunpack.c.l.b16 %v29
  %v103 = vunpack.c.l.b16 %v30
  %v104 = vunpack.c.l.b16 %v31
  %v105 = vunpack.c.l.b16 %v32
  %v106 = vunpack.c.l.b16 %v33
  %v107 = vunpack.c.l.b16 %v34
  %v108 = vunpack.c.l.b16 %v35
  %v109 = vunpack.c.l.b16 %v36
  %v110 = vunpack.c.l.b16 %v37
  %v111 = vunpack.c.l.b16 %v38
  %v112 = vunpack.c.l.b16 %v39
  %v113 = vunpack.c.l.b16 %v40
  %v114 = vunpack.c.l.b16 %v41
  %v115 = vunpack.c.l.b16 %v42
  %v116 = vpack.c.b16 %v93, %v92
  %v117 = vpack.c.b16 %v95, %v94
  %v118 = vpack.c.b16 %v97, %v96
  %v119 = vpack.c.b16 %v99, %v98
  %v120 = vpack.c.b16 %v101, %v100
  %v121 = vpack.c.b16 %v103, %v102
  %v122 = vpack.c.b16 %v105, %v104
  %v123 = vpack.c.b16 %v107, %v106
  %v124 = vpack.c.b16 %v109, %v108
  %v125 = vpack.c.b16 %v111, %v110
  %v126 = vpack.c.b16 %v113, %v112
  %v127 = vpack.c.b16 %v115, %v114
  %vm140 = vcmask 523264
  %v142 = vsel %vm140, %v63, 0
  %v145 = vsel %vm140, %v65, 0
  %147 = vmatprep.subr.bf16.mxu0 0
  %148 = vmatpush1.bf16.msra.mxu0 %v123
  %149 = vmatprep.subr.bf16.mxu0 0
  %150 = vmatpush1.bf16.msra.mxu0 %v122
  %151 = vmatprep.subr.bf16.mxu0 0
  %152 = vmatpush1.bf16.msra.mxu0 %v121
  %153 = vmatprep.subr.bf16.mxu0 0
  %154 = vmatpush1.bf16.msra.mxu0 %v120
  %155 = vmatprep.subr.bf16.mxu0 0
  %156 = vmatpush1.bf16.msra.mxu0 %v119
  %157 = vmatprep.subr.bf16.mxu0 0
  %158 = vmatpush1.bf16.msra.mxu0 %v118
  %159 = vmatprep.subr.bf16.mxu0 0
  %160 = vmatpush1.bf16.msra.mxu0 %v117
  %161 = vmatprep.subr.bf16.mxu0 0
  %162 = vmatpush1.bf16.msra.mxu0 %v116
  %163 = vmatprep.subr.bf16.mxu0 0
  %164 = vmatpush2.bf16.msra.mxu0 0
  %165 = vmatprep.subr.bf16.mxu0 0
  %166 = vmatpush2.bf16.msra.mxu0 0
  %167 = vmatprep.subr.bf16.mxu0 0
  %168 = vmatpush2.bf16.msra.mxu0 0
  %169 = vmatprep.subr.bf16.mxu0 0
  %170 = vmatpush2.bf16.msra.mxu0 0
  %171 = vmatprep.subr.bf16.mxu0 0
  %172 = vmatpush2.bf16.msra.mxu0 %v127
  %173 = vmatprep.subr.bf16.mxu0 0
  %174 = vmatpush2.bf16.msra.mxu0 %v126
  %175 = vmatprep.subr.bf16.mxu0 0
  %176 = vmatpush2.bf16.msra.mxu0 %v125
  %177 = vmatprep.subr.bf16.mxu0 0
  %178 = vmatpush2.bf16.msra.mxu0 %v124
  %179 = vmatprep.mubr.bf16.mxu0 %v142
  %180 = vmatmul.mubr.bf16.gmra.mxu0 %v62
  %v181 = vpop.f32.mrf.mxu0
  %v182 = vadd.f32 %v48, %v181
  %v183 = vpop.f32.mrf.mxu0
  %v184 = vpop.f32.mrf.mxu0
  %v185 = vadd.f32 %v48, %v184
  %v186 = vpop.f32.mrf.mxu0
  %187 = vmatprep.mubr.bf16.mxu0 %v145
  %188 = vmatmul.mubr.bf16.gmra.mxu0 %v64
  %v189 = vpop.f32.mrf.mxu0
  %v190 = vadd.f32 %v48, %v189
  %v191 = vpop.f32.mrf.mxu0
  %v192 = vpop.f32.mrf.mxu0
  %v193 = vadd.f32 %v48, %v192
  %v194 = vpop.f32.mrf.mxu0
  %195 = vdwg.mxu0
  %v196 = vmax.f32 %v182, 0.0
  %v197 = vmax.f32 %v185, 0.0
  %v198 = vmax.f32 %v190, 0.0
  %v199 = vmax.f32 %v193, 0.0
  %200 = vst.msk [vmem:[%s3] sm:$0xff] %vm140, %v196
  %201 = vst.msk [vmem:[%s3 + $0x8] sm:$0xff] %vm140, %v197
  %202 = vst.msk [vmem:[%s3 + $0x10] sm:$0xff] %vm140, %v198
  %203 = vst.msk [vmem:[%s3 + $0x18] sm:$0xff] %vm140, %v199
  // Predicated region
  $region14: #{net_forward.81} parent=0 // pred_check
    _
  $region15: #{net_forward.81} parent=0 // pred_check_branch
    %205 = sbr.rel (0) target = $region17
  $region16: #{net_forward.81} parent=0 // pred_region
    _
  $region17: #{net_forward.81} parent=0 // pred_fallthru
    _
  // Predicated region
  $region18: #{net_forward.81} parent=0 // pred_check
    _
  $region19: #{net_forward.81} parent=0 // pred_check_branch
    %207 = sbr.rel (0) target = $region21
  $region20: #{net_forward.81} parent=0 // pred_region
    _
  $region21: #{net_forward.81} parent=0 // pred_fallthru
    _

// kernel: net_forward.84
$region0: #{net_forward.84}
  #allocation0 [shape = 'u32[]', space=smem, size = 0x4, offset = 0x4, fixed_abs, tag = 'smem constant byte address 0x4 - core index']
  #allocation1 [shape = 'u32[144,128]{1,0:T(1,128)}', space=vmem, size = 0x12000, scoped, tag = 'internal scratch']
  %s0 = inlined_call_operand.vmem [shape: bf16[32,192], index: 0, kind: input, shape index: {}]
  %s1 = inlined_call_operand.vmem [shape: bf16[192,64], index: 1, kind: input, shape index: {}]
  %s2 = inlined_call_operand.vmem [shape: f32[1,64], index: 2, kind: input, shape index: {}]
  %s3 = inlined_call_operand.vmem [shape: f32[1,64], index: 3, kind: input, shape index: {}]
  %s4 = inlined_call_operand.vmem [shape: f32[32,64], index: 4, kind: input, shape index: {}]
  %s5 = inlined_call_operand.vmem [shape: f32[32,64], index: 5, kind: output, shape index: {}]
  %s6 = sld [smem:[#allocation0]]
  $region30: #{net_forward.84} parent=0
    _
  %s8 = ssub.s32 1, %s6
  %s9 = scalar_select 0, %s8, %s6
  // Predicated region
  $region2: #{net_forward.84} parent=0 // pred_check
    _
  $region3: #{net_forward.84} parent=0 // pred_check_branch
    %11 = sbr.rel (0) target = $region5
  $region4: #{net_forward.84} parent=0 // pred_region
    _
  $region5: #{net_forward.84} parent=0 // pred_fallthru
    _
  // Predicated region
  $region6: #{net_forward.84} parent=0 // pred_check
    _
  $region7: #{net_forward.84} parent=0 // pred_check_branch
    %13 = sbr.rel (0) target = $region9
  $region8: #{net_forward.84} parent=0 // pred_region
    _
  $region9: #{net_forward.84} parent=0 // pred_fallthru
    _
  // Predicated region
  $region10: #{net_forward.84} parent=0 // pred_check
    _
  $region11: #{net_forward.84} parent=0 // pred_check_branch
    %15 = sbr.rel (0) target = $region13
  $region12: #{net_forward.84} parent=0 // pred_region
    _
  $region13: #{net_forward.84} parent=0 // pred_fallthru
    _
  // Predicated region
  $region14: #{net_forward.84} parent=0 // pred_check
    _
  $region15: #{net_forward.84} parent=0 // pred_check_branch
    %17 = sbr.rel (0) target = $region17
  $region16: #{net_forward.84} parent=0 // pred_region
    _
  $region17: #{net_forward.84} parent=0 // pred_fallthru
    _
  // Predicated region
  $region18: #{net_forward.84} parent=0 // pred_check
    _
  $region19: #{net_forward.84} parent=0 // pred_check_branch
    %19 = sbr.rel (0) target = $region21
  $region20: #{net_forward.84} parent=0 // pred_region
    _
  $region21: #{net_forward.84} parent=0 // pred_fallthru
    _
  %v21 = vld [vmem:[%s0] sm:$0xff]
  %v22 = vld [vmem:[%s0 + $0x8] sm:$0xff]
  %v23 = vld [vmem:[%s0 + $0x10] sm:$0xff]
  %v24 = vld [vmem:[%s0 + $0x18] sm:$0xff]
  %v25 = vld [vmem:[%s1] sm:$0xf]
  %v26 = vld [vmem:[%s1 + $0x4] sm:$0xf]
  %v27 = vld [vmem:[%s1 + $0x8] sm:$0xf]
  %v28 = vld [vmem:[%s1 + $0xc] sm:$0xf]
  %v29 = vld [vmem:[%s1 + $0x10] sm:$0xf]
  %v30 = vld [vmem:[%s1 + $0x14] sm:$0xf]
  %v31 = vld [vmem:[%s1 + $0x18] sm:$0xf]
  %v32 = vld [vmem:[%s1 + $0x1c] sm:$0xf]
  %v33 = vld [vmem:[%s1 + $0x20] sm:$0xf]
  %v34 = vld [vmem:[%s1 + $0x24] sm:$0xf]
  %v35 = vld [vmem:[%s1 + $0x28] sm:$0xf]
  %v36 = vld [vmem:[%s1 + $0x2c] sm:$0xf]
  %v37 = vld [vmem:[%s1 + $0x30] sm:$0xf]
  %v38 = vld [vmem:[%s1 + $0x34] sm:$0xf]
  %v39 = vld [vmem:[%s1 + $0x38] sm:$0xf]
  %v40 = vld [vmem:[%s1 + $0x3c] sm:$0xf]
  %v41 = vld [vmem:[%s1 + $0x40] sm:$0xf]
  %v42 = vld [vmem:[%s1 + $0x44] sm:$0xf]
  %v43 = vld [vmem:[%s1 + $0x48] sm:$0xf]
  %v44 = vld [vmem:[%s1 + $0x4c] sm:$0xf]
  %v45 = vld [vmem:[%s1 + $0x50] sm:$0xf]
  %v46 = vld [vmem:[%s1 + $0x54] sm:$0xf]
  %v47 = vld [vmem:[%s1 + $0x58] sm:$0xf]
  %v48 = vld [vmem:[%s1 + $0x5c] sm:$0xf]
  %v53 = vunpack.c.l.b16 %v21
  %v54 = vunpack.c.h.b16 %v21
  %v55 = vunpack.c.l.b16 %v22
  %v56 = vunpack.c.h.b16 %v22
  %v57 = vunpack.c.l.b16 %v23
  %v58 = vunpack.c.h.b16 %v23
  %v59 = vunpack.c.l.b16 %v24
  %v60 = vunpack.c.h.b16 %v24
  %v61 = vpack.c.b16 %v55, %v53
  %v62 = vpack.c.b16 %v56, %v54
  %v63 = vpack.c.b16 %v59, %v57
  %v64 = vpack.c.b16 %v60, %v58
  %v91 = vunpack.c.l.b16 %v25
  %v92 = vunpack.c.l.b16 %v26
  %v93 = vunpack.c.l.b16 %v27
  %v94 = vunpack.c.l.b16 %v28
  %v95 = vunpack.c.l.b16 %v29
  %v96 = vunpack.c.l.b16 %v30
  %v97 = vunpack.c.l.b16 %v31
  %v98 = vunpack.c.l.b16 %v32
  %v99 = vunpack.c.l.b16 %v33
  %v100 = vunpack.c.l.b16 %v34
  %v101 = vunpack.c.l.b16 %v35
  %v102 = vunpack.c.l.b16 %v36
  %v103 = vunpack.c.l.b16 %v37
  %v104 = vunpack.c.l.b16 %v38
  %v105 = vunpack.c.l.b16 %v39
  %v106 = vunpack.c.l.b16 %v40
  %v107 = vunpack.c.l.b16 %v41
  %v108 = vunpack.c.l.b16 %v42
  %v109 = vunpack.c.l.b16 %v43
  %v110 = vunpack.c.l.b16 %v44
  %v111 = vunpack.c.l.b16 %v45
  %v112 = vunpack.c.l.b16 %v46
  %v113 = vunpack.c.l.b16 %v47
  %v114 = vunpack.c.l.b16 %v48
  %v115 = vpack.c.b16 %v92, %v91
  %v116 = vpack.c.b16 %v94, %v93
  %v117 = vpack.c.b16 %v96, %v95
  %v118 = vpack.c.b16 %v98, %v97
  %v119 = vpack.c.b16 %v100, %v99
  %v120 = vpack.c.b16 %v102, %v101
  %v121 = vpack.c.b16 %v104, %v103
  %v122 = vpack.c.b16 %v106, %v105
  %v123 = vpack.c.b16 %v108, %v107
  %v124 = vpack.c.b16 %v110, %v109
  %v125 = vpack.c.b16 %v112, %v111
  %v126 = vpack.c.b16 %v114, %v113
  %vm139 = vcmask 523264
  %v141 = vsel %vm139, %v62, 0
  %v144 = vsel %vm139, %v64, 0
  %146 = vmatprep.subr.bf16.mxu0 0
  %147 = vmatpush1.bf16.msra.mxu0 %v122
  %148 = vmatprep.subr.bf16.mxu0 0
  %149 = vmatpush1.bf16.msra.mxu0 %v121
  %150 = vmatprep.subr.bf16.mxu0 0
  %151 = vmatpush1.bf16.msra.mxu0 %v120
  %152 = vmatprep.subr.bf16.mxu0 0
  %153 = vmatpush1.bf16.msra.mxu0 %v119
  %154 = vmatprep.subr.bf16.mxu0 0
  %155 = vmatpush1.bf16.msra.mxu0 %v118
  %156 = vmatprep.subr.bf16.mxu0 0
  %157 = vmatpush1.bf16.msra.mxu0 %v117
  %158 = vmatprep.subr.bf16.mxu0 0
  %159 = vmatpush1.bf16.msra.mxu0 %v116
  %160 = vmatprep.subr.bf16.mxu0 0
  %161 = vmatpush1.bf16.msra.mxu0 %v115
  %162 = vmatprep.subr.bf16.mxu0 0
  %163 = vmatpush2.bf16.msra.mxu0 0
  %164 = vmatprep.subr.bf16.mxu0 0
  %165 = vmatpush2.bf16.msra.mxu0 0
  %166 = vmatprep.subr.bf16.mxu0 0
  %167 = vmatpush2.bf16.msra.mxu0 0
  %168 = vmatprep.subr.bf16.mxu0 0
  %169 = vmatpush2.bf16.msra.mxu0 0
  %170 = vmatprep.subr.bf16.mxu0 0
  %171 = vmatpush2.bf16.msra.mxu0 %v126
  %172 = vmatprep.subr.bf16.mxu0 0
  %173 = vmatpush2.bf16.msra.mxu0 %v125
  %174 = vmatprep.subr.bf16.mxu0 0
  %175 = vmatpush2.bf16.msra.mxu0 %v124
  %176 = vmatprep.subr.bf16.mxu0 0
  %177 = vmatpush2.bf16.msra.mxu0 %v123
  %178 = vmatprep.mubr.bf16.mxu0 %v141
  %179 = vmatmul.mubr.bf16.gmra.mxu0 %v61
  %v180 = vpop.f32.mrf.mxu0
  %v181 = vadd.f32 0.0, %v180
  %v182 = vpop.f32.mrf.mxu0
  %v183 = vpop.f32.mrf.mxu0
  %v184 = vadd.f32 0.0, %v183
  %v185 = vpop.f32.mrf.mxu0
  %186 = vmatprep.mubr.bf16.mxu0 %v144
  %187 = vmatmul.mubr.bf16.gmra.mxu0 %v63
  %v188 = vpop.f32.mrf.mxu0
  %v189 = vadd.f32 0.0, %v188
  %v190 = vpop.f32.mrf.mxu0
  %v191 = vpop.f32.mrf.mxu0
  %v192 = vadd.f32 0.0, %v191
  %v193 = vpop.f32.mrf.mxu0
  %194 = vdwg.mxu0
  %v195 = vld [vmem:[%s2] sm:$0x1]
  %v196 = vld [vmem:[%s3] sm:$0x1]
  %v197 = vsel %vm139, %v181, 0.0
  %v198 = vsel %vm139, %v184, 0.0
  %v199 = vadd.f32 %v197, %v198
  %v200 = vsel %vm139, %v189, 0.0
  %v201 = vadd.f32 %v199, %v200
  %v202 = vsel %vm139, %v192, 0.0
  %v203 = vadd.f32 %v201, %v202
  %v204 = vrot.slane %v203, 4
  %v205 = vadd.f32 %v203, %v204
  %v206 = vrot.slane %v205, 2
  %v207 = vadd.f32 %v205, %v206
  %v208 = vrot.slane %v207, 1
  %v209 = vadd.f32 %v207, %v208
  %v210 = vrcp.pop 32.0
  %v211 = vmul.f32 %v209, %v210
  %v212 = vmul.f32 %v181, %v181
  %v213 = vmul.f32 %v184, %v184
  %v214 = vmul.f32 %v189, %v189
  %v215 = vmul.f32 %v192, %v192
  %v216 = vsel %vm139, %v212, 0.0
  %v217 = vsel %vm139, %v213, 0.0
  %v218 = vadd.f32 %v216, %v217
  %v219 = vsel %vm139, %v214, 0.0
  %v220 = vadd.f32 %v218, %v219
  %v221 = vsel %vm139, %v215, 0.0
  %v222 = vadd.f32 %v220, %v221
  %v223 = vrot.slane %v222, 4
  %v224 = vadd.f32 %v222, %v223
  %v225 = vrot.slane %v224, 2
  %v226 = vadd.f32 %v224, %v225
  %v227 = vrot.slane %v226, 1
  %v228 = vadd.f32 %v226, %v227
  %v229 = vmul.f32 %v228, %v210
  %v230 = vmul.f32 %v211, %v211
  %v231 = vsub.f32 %v229, %v230
  %v232 = vmax.f32 %v231, 0.0
  %v233 = vadd.f32 %v232, 0.001
  %v234 = vrsqrt.pop %v233
  %v235 = vmul.f32 %v195, %v234
  %v237 = vlaneseq
  %v238 = vshrl.u32 %v237, 7
  %v239 = vsub.s32 0, %v238
  %v240 = vrot.slane %v235, %v239
  %v242 = vmul.f32 %v181, %v240
  %v243 = vmul.f32 %v184, %v240
  %v244 = vmul.f32 %v189, %v240
  %v245 = vmul.f32 %v192, %v240
  %v246 = vmul.f32 %v211, %v235
  %v247 = vsub.f32 %v196, %v246
  %v249 = vlaneseq
  %v250 = vshrl.u32 %v249, 7
  %v251 = vsub.s32 0, %v250
  %v252 = vrot.slane %v247, %v251
  %v254 = vadd.f32 %v242, %v252
  %v255 = vadd.f32 %v243, %v252
  %v256 = vadd.f32 %v244, %v252
  %v257 = vadd.f32 %v245, %v252
  %v258 = vld [vmem:[%s4] sm:$0xff]
  %v259 = vld [vmem:[%s4 + $0x8] sm:$0xff]
  %v260 = vld [vmem:[%s4 + $0x10] sm:$0xff]
  %v261 = vld [vmem:[%s4 + $0x18] sm:$0xff]
  %v262 = vadd.f32 %v254, %v258
  %v263 = vadd.f32 %v255, %v259
  %v264 = vadd.f32 %v256, %v260
  %v265 = vadd.f32 %v257, %v261
  %v266 = vmax.f32 %v262, 0.0
  %v267 = vmax.f32 %v263, 0.0
  %v268 = vmax.f32 %v264, 0.0
  %v269 = vmax.f32 %v265, 0.0
  %270 = vst.msk [vmem:[%s5] sm:$0xff] %vm139, %v266
  %271 = vst.msk [vmem:[%s5 + $0x8] sm:$0xff] %vm139, %v267
  %272 = vst.msk [vmem:[%s5 + $0x10] sm:$0xff] %vm139, %v268
  %273 = vst.msk [vmem:[%s5 + $0x18] sm:$0xff] %vm139, %v269
  // Predicated region
  $region22: #{net_forward.84} parent=0 // pred_check
    _
  $region23: #{net_forward.84} parent=0 // pred_check_branch
    %275 = sbr.rel (0) target = $region25
  $region24: #{net_forward.84} parent=0 // pred_region
    _
  $region25: #{net_forward.84} parent=0 // pred_fallthru
    _
  // Predicated region
  $region26: #{net_forward.84} parent=0 // pred_check
    _
  $region27: #{net_forward.84} parent=0 // pred_check_branch
    %277 = sbr.rel (0) target = $region29
  $region28: #{net_forward.84} parent=0 // pred_region
    _
  $region29: #{net_forward.84} parent=0 // pred_fallthru
    _

// kernel: net_forward.82
$region0: #{net_forward.82}
  #allocation0 [shape = 'u32[]', space=smem, size = 0x4, offset = 0x4, fixed_abs, tag = 'smem constant byte address 0x4 - core index']
  #allocation1 [shape = 'u32[144,128]{1,0:T(1,128)}', space=vmem, size = 0x12000, scoped, tag = 'internal scratch']
  %s0 = inlined_call_operand.vmem [shape: bf16[32,192], index: 0, kind: input, shape index: {}]
  %s1 = inlined_call_operand.vmem [shape: bf16[192,64], index: 1, kind: input, shape index: {}]
  %s2 = inlined_call_operand.vmem [shape: f32[1,64], index: 2, kind: input, shape index: {}]
  %s3 = inlined_call_operand.vmem [shape: f32[1,64], index: 3, kind: input, shape index: {}]
  %s4 = inlined_call_operand.vmem [shape: f32[32,64], index: 4, kind: output, shape index: {}]
  %s5 = sld [smem:[#allocation0]]
  $region26: #{net_forward.82} parent=0
    _
  %s7 = ssub.s32 1, %s5
  %s8 = scalar_select 0, %s7, %s5
  // Predicated region
  $region2: #{net_forward.82} parent=0 // pred_check
    _
  $region3: #{net_forward.82} parent=0 // pred_check_branch
    %10 = sbr.rel (0) target = $region5
  $region4: #{net_forward.82} parent=0 // pred_region
    _
  $region5: #{net_forward.82} parent=0 // pred_fallthru
    _
  // Predicated region
  $region6: #{net_forward.82} parent=0 // pred_check
    _
  $region7: #{net_forward.82} parent=0 // pred_check_branch
    %12 = sbr.rel (0) target = $region9
  $region8: #{net_forward.82} parent=0 // pred_region
    _
  $region9: #{net_forward.82} parent=0 // pred_fallthru
    _
  // Predicated region
  $region10: #{net_forward.82} parent=0 // pred_check
    _
  $region11: #{net_forward.82} parent=0 // pred_check_branch
    %14 = sbr.rel (0) target = $region13
  $region12: #{net_forward.82} parent=0 // pred_region
    _
  $region13: #{net_forward.82} parent=0 // pred_fallthru
    _
  // Predicated region
  $region14: #{net_forward.82} parent=0 // pred_check
    _
  $region15: #{net_forward.82} parent=0 // pred_check_branch
    %16 = sbr.rel (0) target = $region17
  $region16: #{net_forward.82} parent=0 // pred_region
    _
  $region17: #{net_forward.82} parent=0 // pred_fallthru
    _
  %v18 = vld [vmem:[%s0] sm:$0xff]
  %v19 = vld [vmem:[%s0 + $0x8] sm:$0xff]
  %v20 = vld [vmem:[%s0 + $0x10] sm:$0xff]
  %v21 = vld [vmem:[%s0 + $0x18] sm:$0xff]
  %v22 = vld [vmem:[%s1] sm:$0xf]
  %v23 = vld [vmem:[%s1 + $0x4] sm:$0xf]
  %v24 = vld [vmem:[%s1 + $0x8] sm:$0xf]
  %v25 = vld [vmem:[%s1 + $0xc] sm:$0xf]
  %v26 = vld [vmem:[%s1 + $0x10] sm:$0xf]
  %v27 = vld [vmem:[%s1 + $0x14] sm:$0xf]
  %v28 = vld [vmem:[%s1 + $0x18] sm:$0xf]
  %v29 = vld [vmem:[%s1 + $0x1c] sm:$0xf]
  %v30 = vld [vmem:[%s1 + $0x20] sm:$0xf]
  %v31 = vld [vmem:[%s1 + $0x24] sm:$0xf]
  %v32 = vld [vmem:[%s1 + $0x28] sm:$0xf]
  %v33 = vld [vmem:[%s1 + $0x2c] sm:$0xf]
  %v34 = vld [vmem:[%s1 + $0x30] sm:$0xf]
  %v35 = vld [vmem:[%s1 + $0x34] sm:$0xf]
  %v36 = vld [vmem:[%s1 + $0x38] sm:$0xf]
  %v37 = vld [vmem:[%s1 + $0x3c] sm:$0xf]
  %v38 = vld [vmem:[%s1 + $0x40] sm:$0xf]
  %v39 = vld [vmem:[%s1 + $0x44] sm:$0xf]
  %v40 = vld [vmem:[%s1 + $0x48] sm:$0xf]
  %v41 = vld [vmem:[%s1 + $0x4c] sm:$0xf]
  %v42 = vld [vmem:[%s1 + $0x50] sm:$0xf]
  %v43 = vld [vmem:[%s1 + $0x54] sm:$0xf]
  %v44 = vld [vmem:[%s1 + $0x58] sm:$0xf]
  %v45 = vld [vmem:[%s1 + $0x5c] sm:$0xf]
  %v50 = vunpack.c.l.b16 %v18
  %v51 = vunpack.c.h.b16 %v18
  %v52 = vunpack.c.l.b16 %v19
  %v53 = vunpack.c.h.b16 %v19
  %v54 = vunpack.c.l.b16 %v20
  %v55 = vunpack.c.h.b16 %v20
  %v56 = vunpack.c.l.b16 %v21
  %v57 = vunpack.c.h.b16 %v21
  %v58 = vpack.c.b16 %v52, %v50
  %v59 = vpack.c.b16 %v53, %v51
  %v60 = vpack.c.b16 %v56, %v54
  %v61 = vpack.c.b16 %v57, %v55
  %v88 = vunpack.c.l.b16 %v22
  %v89 = vunpack.c.l.b16 %v23
  %v90 = vunpack.c.l.b16 %v24
  %v91 = vunpack.c.l.b16 %v25
  %v92 = vunpack.c.l.b16 %v26
  %v93 = vunpack.c.l.b16 %v27
  %v94 = vunpack.c.l.b16 %v28
  %v95 = vunpack.c.l.b16 %v29
  %v96 = vunpack.c.l.b16 %v30
  %v97 = vunpack.c.l.b16 %v31
  %v98 = vunpack.c.l.b16 %v32
  %v99 = vunpack.c.l.b16 %v33
  %v100 = vunpack.c.l.b16 %v34
  %v101 = vunpack.c.l.b16 %v35
  %v102 = vunpack.c.l.b16 %v36
  %v103 = vunpack.c.l.b16 %v37
  %v104 = vunpack.c.l.b16 %v38
  %v105 = vunpack.c.l.b16 %v39
  %v106 = vunpack.c.l.b16 %v40
  %v107 = vunpack.c.l.b16 %v41
  %v108 = vunpack.c.l.b16 %v42
  %v109 = vunpack.c.l.b16 %v43
  %v110 = vunpack.c.l.b16 %v44
  %v111 = vunpack.c.l.b16 %v45
  %v112 = vpack.c.b16 %v89, %v88
  %v113 = vpack.c.b16 %v91, %v90
  %v114 = vpack.c.b16 %v93, %v92
  %v115 = vpack.c.b16 %v95, %v94
  %v116 = vpack.c.b16 %v97, %v96
  %v117 = vpack.c.b16 %v99, %v98
  %v118 = vpack.c.b16 %v101, %v100
  %v119 = vpack.c.b16 %v103, %v102
  %v120 = vpack.c.b16 %v105, %v104
  %v121 = vpack.c.b16 %v107, %v106
  %v122 = vpack.c.b16 %v109, %v108
  %v123 = vpack.c.b16 %v111, %v110
  %vm136 = vcmask 523264
  %v138 = vsel %vm136, %v59, 0
  %v141 = vsel %vm136, %v61, 0
  %143 = vmatprep.subr.bf16.mxu0 0
  %144 = vmatpush1.bf16.msra.mxu0 %v119
  %145 = vmatprep.subr.bf16.mxu0 0
  %146 = vmatpush1.bf16.msra.mxu0 %v118
  %147 = vmatprep.subr.bf16.mxu0 0
  %148 = vmatpush1.bf16.msra.mxu0 %v117
  %149 = vmatprep.subr.bf16.mxu0 0
  %150 = vmatpush1.bf16.msra.mxu0 %v116
  %151 = vmatprep.subr.bf16.mxu0 0
  %152 = vmatpush1.bf16.msra.mxu0 %v115
  %153 = vmatprep.subr.bf16.mxu0 0
  %154 = vmatpush1.bf16.msra.mxu0 %v114
  %155 = vmatprep.subr.bf16.mxu0 0
  %156 = vmatpush1.bf16.msra.mxu0 %v113
  %157 = vmatprep.subr.bf16.mxu0 0
  %158 = vmatpush1.bf16.msra.mxu0 %v112
  %159 = vmatprep.subr.bf16.mxu0 0
  %160 = vmatpush2.bf16.msra.mxu0 0
  %161 = vmatprep.subr.bf16.mxu0 0
  %162 = vmatpush2.bf16.msra.mxu0 0
  %163 = vmatprep.subr.bf16.mxu0 0
  %164 = vmatpush2.bf16.msra.mxu0 0
  %165 = vmatprep.subr.bf16.mxu0 0
  %166 = vmatpush2.bf16.msra.mxu0 0
  %167 = vmatprep.subr.bf16.mxu0 0
  %168 = vmatpush2.bf16.msra.mxu0 %v123
  %169 = vmatprep.subr.bf16.mxu0 0
  %170 = vmatpush2.bf16.msra.mxu0 %v122
  %171 = vmatprep.subr.bf16.mxu0 0
  %172 = vmatpush2.bf16.msra.mxu0 %v121
  %173 = vmatprep.subr.bf16.mxu0 0
  %174 = vmatpush2.bf16.msra.mxu0 %v120
  %175 = vmatprep.mubr.bf16.mxu0 %v138
  %176 = vmatmul.mubr.bf16.gmra.mxu0 %v58
  %v177 = vpop.f32.mrf.mxu0
  %v178 = vadd.f32 0.0, %v177
  %v179 = vpop.f32.mrf.mxu0
  %v180 = vpop.f32.mrf.mxu0
  %v181 = vadd.f32 0.0, %v180
  %v182 = vpop.f32.mrf.mxu0
  %183 = vmatprep.mubr.bf16.mxu0 %v141
  %184 = vmatmul.mubr.bf16.gmra.mxu0 %v60
  %v185 = vpop.f32.mrf.mxu0
  %v186 = vadd.f32 0.0, %v185
  %v187 = vpop.f32.mrf.mxu0
  %v188 = vpop.f32.mrf.mxu0
  %v189 = vadd.f32 0.0, %v188
  %v190 = vpop.f32.mrf.mxu0
  %191 = vdwg.mxu0
  %v192 = vld [vmem:[%s2] sm:$0x1]
  %v193 = vld [vmem:[%s3] sm:$0x1]
  %v194 = vsel %vm136, %v178, 0.0
  %v195 = vsel %vm136, %v181, 0.0
  %v196 = vadd.f32 %v194, %v195
  %v197 = vsel %vm136, %v186, 0.0
  %v198 = vadd.f32 %v196, %v197
  %v199 = vsel %vm136, %v189, 0.0
  %v200 = vadd.f32 %v198, %v199
  %v201 = vrot.slane %v200, 4
  %v202 = vadd.f32 %v200, %v201
  %v203 = vrot.slane %v202, 2
  %v204 = vadd.f32 %v202, %v203
  %v205 = vrot.slane %v204, 1
  %v206 = vadd.f32 %v204, %v205
  %v207 = vrcp.pop 32.0
  %v208 = vmul.f32 %v206, %v207
  %v209 = vmul.f32 %v178, %v178
  %v210 = vmul.f32 %v181, %v181
  %v211 = vmul.f32 %v186, %v186
  %v212 = vmul.f32 %v189, %v189
  %v213 = vsel %vm136, %v209, 0.0
  %v214 = vsel %vm136, %v210, 0.0
  %v215 = vadd.f32 %v213, %v214
  %v216 = vsel %vm136, %v211, 0.0
  %v217 = vadd.f32 %v215, %v216
  %v218 = vsel %vm136, %v212, 0.0
  %v219 = vadd.f32 %v217, %v218
  %v220 = vrot.slane %v219, 4
  %v221 = vadd.f32 %v219, %v220
  %v222 = vrot.slane %v221, 2
  %v223 = vadd.f32 %v221, %v222
  %v224 = vrot.slane %v223, 1
  %v225 = vadd.f32 %v223, %v224
  %v226 = vmul.f32 %v225, %v207
  %v227 = vmul.f32 %v208, %v208
  %v228 = vsub.f32 %v226, %v227
  %v229 = vmax.f32 %v228, 0.0
  %v230 = vadd.f32 %v229, 0.001
  %v231 = vrsqrt.pop %v230
  %v232 = vmul.f32 %v192, %v231
  %v234 = vlaneseq
  %v235 = vshrl.u32 %v234, 7
  %v236 = vsub.s32 0, %v235
  %v237 = vrot.slane %v232, %v236
  %v239 = vmul.f32 %v178, %v237
  %v240 = vmul.f32 %v181, %v237
  %v241 = vmul.f32 %v186, %v237
  %v242 = vmul.f32 %v189, %v237
  %v243 = vmul.f32 %v208, %v232
  %v244 = vsub.f32 %v193, %v243
  %v246 = vlaneseq
  %v247 = vshrl.u32 %v246, 7
  %v248 = vsub.s32 0, %v247
  %v249 = vrot.slane %v244, %v248
  %v251 = vadd.f32 %v239, %v249
  %v252 = vadd.f32 %v240, %v249
  %v253 = vadd.f32 %v241, %v249
  %v254 = vadd.f32 %v242, %v249
  %v255 = vmax.f32 %v251, 0.0
  %v256 = vmax.f32 %v252, 0.0
  %v257 = vmax.f32 %v253, 0.0
  %v258 = vmax.f32 %v254, 0.0
  %259 = vst.msk [vmem:[%s4] sm:$0xff] %vm136, %v255
  %260 = vst.msk [vmem:[%s4 + $0x8] sm:$0xff] %vm136, %v256
  %261 = vst.msk [vmem:[%s4 + $0x10] sm:$0xff] %vm136, %v257
  %262 = vst.msk [vmem:[%s4 + $0x18] sm:$0xff] %vm136, %v258
  // Predicated region
  $region18: #{net_forward.82} parent=0 // pred_check
    _
  $region19: #{net_forward.82} parent=0 // pred_check_branch
    %264 = sbr.rel (0) target = $region21
  $region20: #{net_forward.82} parent=0 // pred_region
    _
  $region21: #{net_forward.82} parent=0 // pred_fallthru
    _
  // Predicated region
  $region22: #{net_forward.82} parent=0 // pred_check
    _
  $region23: #{net_forward.82} parent=0 // pred_check_branch
    %266 = sbr.rel (0) target = $region25
  $region24: #{net_forward.82} parent=0 // pred_region
    _
  $region25: #{net_forward.82} parent=0 // pred_fallthru
    _

// kernel: net_forward.102
$region0: #{net_forward.102}
  #allocation0 [shape = 'u32[]', space=smem, size = 0x4, offset = 0x4, fixed_abs, tag = 'smem constant byte address 0x4 - core index']
  #allocation1 [shape = 'u32[144,128]{1,0:T(1,128)}', space=vmem, size = 0x12000, scoped, tag = 'internal scratch']
  %s0 = inlined_call_operand.vmem [shape: f32[8,128], index: 0, kind: input, shape index: {}]
  %s1 = inlined_call_operand.vmem [shape: f32[1,128], index: 1, kind: input, shape index: {}]
  %s2 = inlined_call_operand.vmem [shape: f32[1,128], index: 2, kind: input, shape index: {}]
  %s3 = inlined_call_operand.vmem [shape: f32[8,128], index: 3, kind: output, shape index: {}]
  %s4 = sld [smem:[#allocation0]]
  $region22: #{net_forward.102} parent=0
    _
  %s6 = ssub.s32 1, %s4
  %s7 = scalar_select 0, %s6, %s4
  // Predicated region
  $region2: #{net_forward.102} parent=0 // pred_check
    _
  $region3: #{net_forward.102} parent=0 // pred_check_branch
    %9 = sbr.rel (0) target = $region5
  $region4: #{net_forward.102} parent=0 // pred_region
    _
  $region5: #{net_forward.102} parent=0 // pred_fallthru
    _
  // Predicated region
  $region6: #{net_forward.102} parent=0 // pred_check
    _
  $region7: #{net_forward.102} parent=0 // pred_check_branch
    %11 = sbr.rel (0) target = $region9
  $region8: #{net_forward.102} parent=0 // pred_region
    _
  $region9: #{net_forward.102} parent=0 // pred_fallthru
    _
  // Predicated region
  $region10: #{net_forward.102} parent=0 // pred_check
    _
  $region11: #{net_forward.102} parent=0 // pred_check_branch
    %13 = sbr.rel (0) target = $region13
  $region12: #{net_forward.102} parent=0 // pred_region
    _
  $region13: #{net_forward.102} parent=0 // pred_fallthru
    _
  %v14 = vld [vmem:[%s0] sm:$0xff]
  %v15 = vrot.slane %v14, 4
  %v16 = vadd.f32 %v14, %v15
  %v17 = vrot.slane %v16, 2
  %v18 = vadd.f32 %v16, %v17
  %v19 = vrot.slane %v18, 1
  %v20 = vadd.f32 %v18, %v19
  %v21 = vrcp.pop 8.0
  %v22 = vmul.f32 %v20, %v21
  %v23 = vmul.f32 %v14, %v14
  %v24 = vrot.slane %v23, 4
  %v25 = vadd.f32 %v23, %v24
  %v26 = vrot.slane %v25, 2
  %v27 = vadd.f32 %v25, %v26
  %v28 = vrot.slane %v27, 1
  %v29 = vadd.f32 %v27, %v28
  %v30 = vmul.f32 %v29, %v21
  %v31 = vmul.f32 %v22, %v22
  %v32 = vsub.f32 %v30, %v31
  %v33 = vmax.f32 %v32, 0.0
  %v34 = vld [vmem:[%s1] sm:$0x1]
  %v35 = vadd.f32 %v33, 0.001
  %v36 = vrsqrt.pop %v35
  %v37 = vmul.f32 %v34, %v36
  %v39 = vlaneseq
  %v40 = vshrl.u32 %v39, 7
  %v41 = vsub.s32 0, %v40
  %v42 = vrot.slane %v37, %v41
  %v44 = vmul.f32 %v14, %v42
  %v45 = vld [vmem:[%s2] sm:$0x1]
  %v46 = vmul.f32 %v22, %v37
  %v47 = vsub.f32 %v45, %v46
  %v49 = vlaneseq
  %v50 = vshrl.u32 %v49, 7
  %v51 = vsub.s32 0, %v50
  %v52 = vrot.slane %v47, %v51
  %v54 = vadd.f32 %v44, %v52
  %v55 = vmax.f32 %v54, 0.0
  %56 = vst [vmem:[%s3] sm:$0xff] %v55
  // Predicated region
  $region14: #{net_forward.102} parent=0 // pred_check
    _
  $region15: #{net_forward.102} parent=0 // pred_check_branch
    %58 = sbr.rel (0) target = $region17
  $region16: #{net_forward.102} parent=0 // pred_region
    _
  $region17: #{net_forward.102} parent=0 // pred_fallthru
    _
  // Predicated region
  $region18: #{net_forward.102} parent=0 // pred_check
    _
  $region19: #{net_forward.102} parent=0 // pred_check_branch
    %60 = sbr.rel (0) target = $region21
  $region20: #{net_forward.102} parent=0 // pred_region
    _
  $region21: #{net_forward.102} parent=0 // pred_fallthru
    _

// kernel: net_forward.101
$region0: #{net_forward.101}
  #allocation0 [shape = 'u32[]', space=smem, size = 0x4, offset = 0x4, fixed_abs, tag = 'smem constant byte address 0x4 - core index']
  #allocation1 [shape = 'u32[144,128]{1,0:T(1,128)}', space=vmem, size = 0x12000, scoped, tag = 'internal scratch']
  %s0 = inlined_call_operand.vmem [shape: bf16[8,576], index: 0, kind: input, shape index: {}]
  %s1 = inlined_call_operand.vmem [shape: bf16[576,64], index: 1, kind: input, shape index: {}]
  %s2 = inlined_call_operand.vmem [shape: f32[8,64], index: 2, kind: output, shape index: {}]
  %s3 = sld [smem:[#allocation0]]
  $region18: #{net_forward.101} parent=0
    _
  %s5 = ssub.s32 1, %s3
  %s6 = scalar_select 0, %s5, %s3
  // Predicated region
  $region2: #{net_forward.101} parent=0 // pred_check
    _
  $region3: #{net_forward.101} parent=0 // pred_check_branch
    %8 = sbr.rel (0) target = $region5
  $region4: #{net_forward.101} parent=0 // pred_region
    _
  $region5: #{net_forward.101} parent=0 // pred_fallthru
    _
  // Predicated region
  $region6: #{net_forward.101} parent=0 // pred_check
    _
  $region7: #{net_forward.101} parent=0 // pred_check_branch
    %10 = sbr.rel (0) target = $region9
  $region8: #{net_forward.101} parent=0 // pred_region
    _
  $region9: #{net_forward.101} parent=0 // pred_fallthru
    _
  %v12 = vld [vmem:[%s0] sm:$0xff]
  %v13 = vld [vmem:[%s0 + $0x8] sm:$0xff]
  %v14 = vld [vmem:[%s0 + $0x10] sm:$0xf]
  %v15 = vld [vmem:[%s1] sm:$0xf]
  %v16 = vld [vmem:[%s1 + $0x4] sm:$0xf]
  %v17 = vld [vmem:[%s1 + $0x8] sm:$0xf]
  %v18 = vld [vmem:[%s1 + $0xc] sm:$0xf]
  %v19 = vld [vmem:[%s1 + $0x10] sm:$0xf]
  %v20 = vld [vmem:[%s1 + $0x14] sm:$0xf]
  %v21 = vld [vmem:[%s1 + $0x18] sm:$0xf]
  %v22 = vld [vmem:[%s1 + $0x1c] sm:$0xf]
  %v23 = vld [vmem:[%s1 + $0x20] sm:$0xf]
  %v24 = vld [vmem:[%s1 + $0x24] sm:$0xf]
  %v25 = vld [vmem:[%s1 + $0x28] sm:$0xf]
  %v26 = vld [vmem:[%s1 + $0x2c] sm:$0xf]
  %v27 = vld [vmem:[%s1 + $0x30] sm:$0xf]
  %v28 = vld [vmem:[%s1 + $0x34] sm:$0xf]
  %v29 = vld [vmem:[%s1 + $0x38] sm:$0xf]
  %v30 = vld [vmem:[%s1 + $0x3c] sm:$0xf]
  %v31 = vld [vmem:[%s1 + $0x40] sm:$0xf]
  %v32 = vld [vmem:[%s1 + $0x44] sm:$0xf]
  %v33 = vld [vmem:[%s1 + $0x48] sm:$0xf]
  %v34 = vld [vmem:[%s1 + $0x4c] sm:$0xf]
  %v35 = vld [vmem:[%s1 + $0x50] sm:$0xf]
  %v36 = vld [vmem:[%s1 + $0x54] sm:$0xf]
  %v37 = vld [vmem:[%s1 + $0x58] sm:$0xf]
  %v38 = vld [vmem:[%s1 + $0x5c] sm:$0xf]
  %v39 = vld [vmem:[%s1 + $0x60] sm:$0xf]
  %v40 = vld [vmem:[%s1 + $0x64] sm:$0xf]
  %v41 = vld [vmem:[%s1 + $0x68] sm:$0xf]
  %v42 = vld [vmem:[%s1 + $0x6c] sm:$0xf]
  %v43 = vld [vmem:[%s1 + $0x70] sm:$0xf]
  %v44 = vld [vmem:[%s1 + $0x74] sm:$0xf]
  %v45 = vld [vmem:[%s1 + $0x78] sm:$0xf]
  %v46 = vld [vmem:[%s1 + $0x7c] sm:$0xf]
  %v47 = vld [vmem:[%s1 + $0x80] sm:$0xf]
  %v48 = vld [vmem:[%s1 + $0x84] sm:$0xf]
  %v49 = vld [vmem:[%s1 + $0x88] sm:$0xf]
  %v50 = vld [vmem:[%s1 + $0x8c] sm:$0xf]
  %v51 = vld [vmem:[%s1 + $0x90] sm:$0xf]
  %v52 = vld [vmem:[%s1 + $0x94] sm:$0xf]
  %v53 = vld [vmem:[%s1 + $0x98] sm:$0xf]
  %v54 = vld [vmem:[%s1 + $0x9c] sm:$0xf]
  %v55 = vld [vmem:[%s1 + $0xa0] sm:$0xf]
  %v56 = vld [vmem:[%s1 + $0xa4] sm:$0xf]
  %v57 = vld [vmem:[%s1 + $0xa8] sm:$0xf]
  %v58 = vld [vmem:[%s1 + $0xac] sm:$0xf]
  %v59 = vld [vmem:[%s1 + $0xb0] sm:$0xf]
  %v60 = vld [vmem:[%s1 + $0xb4] sm:$0xf]
  %v61 = vld [vmem:[%s1 + $0xb8] sm:$0xf]
  %v62 = vld [vmem:[%s1 + $0xbc] sm:$0xf]
  %v63 = vld [vmem:[%s1 + $0xc0] sm:$0xf]
  %v64 = vld [vmem:[%s1 + $0xc4] sm:$0xf]
  %v65 = vld [vmem:[%s1 + $0xc8] sm:$0xf]
  %v66 = vld [vmem:[%s1 + $0xcc] sm:$0xf]
  %v67 = vld [vmem:[%s1 + $0xd0] sm:$0xf]
  %v68 = vld [vmem:[%s1 + $0xd4] sm:$0xf]
  %v69 = vld [vmem:[%s1 + $0xd8] sm:$0xf]
  %v70 = vld [vmem:[%s1 + $0xdc] sm:$0xf]
  %v71 = vld [vmem:[%s1 + $0xe0] sm:$0xf]
  %v72 = vld [vmem:[%s1 + $0xe4] sm:$0xf]
  %v73 = vld [vmem:[%s1 + $0xe8] sm:$0xf]
  %v74 = vld [vmem:[%s1 + $0xec] sm:$0xf]
  %v75 = vld [vmem:[%s1 + $0xf0] sm:$0xf]
  %v76 = vld [vmem:[%s1 + $0xf4] sm:$0xf]
  %v77 = vld [vmem:[%s1 + $0xf8] sm:$0xf]
  %v78 = vld [vmem:[%s1 + $0xfc] sm:$0xf]
  %v79 = vld [vmem:[%s1 + $0x100] sm:$0xf]
  %v80 = vld [vmem:[%s1 + $0x104] sm:$0xf]
  %v81 = vld [vmem:[%s1 + $0x108] sm:$0xf]
  %v82 = vld [vmem:[%s1 + $0x10c] sm:$0xf]
  %v83 = vld [vmem:[%s1 + $0x110] sm:$0xf]
  %v84 = vld [vmem:[%s1 + $0x114] sm:$0xf]
  %v85 = vld [vmem:[%s1 + $0x118] sm:$0xf]
  %v86 = vld [vmem:[%s1 + $0x11c] sm:$0xf]
  %v90 = vunpack.c.l.b16 %v12
  %v91 = vunpack.c.h.b16 %v12
  %v92 = vunpack.c.l.b16 %v13
  %v93 = vunpack.c.h.b16 %v13
  %v94 = vunpack.c.l.b16 %v14
  %v95 = vpack.c.b16 %v90, %v90
  %v96 = vpack.c.b16 %v91, %v91
  %v97 = vpack.c.b16 %v92, %v92
  %v98 = vpack.c.b16 %v93, %v93
  %v99 = vpack.c.b16 %v94, %v94
  %v176 = vunpack.c.l.b16 %v15
  %v177 = vunpack.c.l.b16 %v16
  %v178 = vunpack.c.l.b16 %v17
  %v179 = vunpack.c.l.b16 %v18
  %v180 = vunpack.c.l.b16 %v19
  %v181 = vunpack.c.l.b16 %v20
  %v182 = vunpack.c.l.b16 %v21
  %v183 = vunpack.c.l.b16 %v22
  %v184 = vunpack.c.l.b16 %v23
  %v185 = vunpack.c.l.b16 %v24
  %v186 = vunpack.c.l.b16 %v25
  %v187 = vunpack.c.l.b16 %v26
  %v188 = vunpack.c.l.b16 %v27
  %v189 = vunpack.c.l.b16 %v28
  %v190 = vunpack.c.l.b16 %v29
  %v191 = vunpack.c.l.b16 %v30
  %v192 = vunpack.c.l.b16 %v31
  %v193 = vunpack.c.l.b16 %v32
  %v194 = vunpack.c.l.b16 %v33
  %v195 = vunpack.c.l.b16 %v34
  %v196 = vunpack.c.l.b16 %v35
  %v197 = vunpack.c.l.b16 %v36
  %v198 = vunpack.c.l.b16 %v37
  %v199 = vunpack.c.l.b16 %v38
  %v200 = vunpack.c.l.b16 %v39
  %v201 = vunpack.c.l.b16 %v40
  %v202 = vunpack.c.l.b16 %v41
  %v203 = vunpack.c.l.b16 %v42
  %v204 = vunpack.c.l.b16 %v43
  %v205 = vunpack.c.l.b16 %v44
  %v206 = vunpack.c.l.b16 %v45
  %v207 = vunpack.c.l.b16 %v46
  %v208 = vunpack.c.l.b16 %v47
  %v209 = vunpack.c.l.b16 %v48
  %v210 = vunpack.c.l.b16 %v49
  %v211 = vunpack.c.l.b16 %v50
  %v212 = vunpack.c.l.b16 %v51
  %v213 = vunpack.c.l.b16 %v52
  %v214 = vunpack.c.l.b16 %v53
  %v215 = vunpack.c.l.b16 %v54
  %v216 = vunpack.c.l.b16 %v55
  %v217 = vunpack.c.l.b16 %v56
  %v218 = vunpack.c.l.b16 %v57
  %v219 = vunpack.c.l.b16 %v58
  %v220 = vunpack.c.l.b16 %v59
  %v221 = vunpack.c.l.b16 %v60
  %v222 = vunpack.c.l.b16 %v61
  %v223 = vunpack.c.l.b16 %v62
  %v224 = vunpack.c.l.b16 %v63
  %v225 = vunpack.c.l.b16 %v64
  %v226 = vunpack.c.l.b16 %v65
  %v227 = vunpack.c.l.b16 %v66
  %v228 = vunpack.c.l.b16 %v67
  %v229 = vunpack.c.l.b16 %v68
  %v230 = vunpack.c.l.b16 %v69
  %v231 = vunpack.c.l.b16 %v70
  %v232 = vunpack.c.l.b16 %v71
  %v233 = vunpack.c.l.b16 %v72
  %v234 = vunpack.c.l.b16 %v73
  %v235 = vunpack.c.l.b16 %v74
  %v236 = vunpack.c.l.b16 %v75
  %v237 = vunpack.c.l.b16 %v76
  %v238 = vunpack.c.l.b16 %v77
  %v239 = vunpack.c.l.b16 %v78
  %v240 = vunpack.c.l.b16 %v79
  %v241 = vunpack.c.l.b16 %v80
  %v242 = vunpack.c.l.b16 %v81
  %v243 = vunpack.c.l.b16 %v82
  %v244 = vunpack.c.l.b16 %v83
  %v245 = vunpack.c.l.b16 %v84
  %v246 = vunpack.c.l.b16 %v85
  %v247 = vunpack.c.l.b16 %v86
  %v248 = vpack.c.b16 %v177, %v176
  %v249 = vpack.c.b16 %v179, %v178
  %v250 = vpack.c.b16 %v181, %v180
  %v251 = vpack.c.b16 %v183, %v182
  %v252 = vpack.c.b16 %v185, %v184
  %v253 = vpack.c.b16 %v187, %v186
  %v254 = vpack.c.b16 %v189, %v188
  %v255 = vpack.c.b16 %v191, %v190
  %v256 = vpack.c.b16 %v193, %v192
  %v257 = vpack.c.b16 %v195, %v194
  %v258 = vpack.c.b16 %v197, %v196
  %v259 = vpack.c.b16 %v199, %v198
  %v260 = vpack.c.b16 %v201, %v200
  %v261 = vpack.c.b16 %v203, %v202
  %v262 = vpack.c.b16 %v205, %v204
  %v263 = vpack.c.b16 %v207, %v206
  %v264 = vpack.c.b16 %v209, %v208
  %v265 = vpack.c.b16 %v211, %v210
  %v266 = vpack.c.b16 %v213, %v212
  %v267 = vpack.c.b16 %v215, %v214
  %v268 = vpack.c.b16 %v217, %v216
  %v269 = vpack.c.b16 %v219, %v218
  %v270 = vpack.c.b16 %v221, %v220
  %v271 = vpack.c.b16 %v223, %v222
  %v272 = vpack.c.b16 %v225, %v224
  %v273 = vpack.c.b16 %v227, %v226
  %v274 = vpack.c.b16 %v229, %v228
  %v275 = vpack.c.b16 %v231, %v230
  %v276 = vpack.c.b16 %v233, %v232
  %v277 = vpack.c.b16 %v235, %v234
  %v278 = vpack.c.b16 %v237, %v236
  %v279 = vpack.c.b16 %v239, %v238
  %v280 = vpack.c.b16 %v241, %v240
  %v281 = vpack.c.b16 %v243, %v242
  %v282 = vpack.c.b16 %v245, %v244
  %v283 = vpack.c.b16 %v247, %v246
  %vm320 = vcmask 523264
  %v322 = vsel %vm320, %v99, 0
  %324 = vmatprep.subr.bf16.mxu0 0
  %325 = vmatpush1.bf16.msra.mxu0 %v255
  %326 = vmatprep.subr.bf16.mxu0 0
  %327 = vmatpush1.bf16.msra.mxu0 %v254
  %328 = vmatprep.subr.bf16.mxu0 0
  %329 = vmatpush1.bf16.msra.mxu0 %v253
  %330 = vmatprep.subr.bf16.mxu0 0
  %331 = vmatpush1.bf16.msra.mxu0 %v252
  %332 = vmatprep.subr.bf16.mxu0 0
  %333 = vmatpush1.bf16.msra.mxu0 %v251
  %334 = vmatprep.subr.bf16.mxu0 0
  %335 = vmatpush1.bf16.msra.mxu0 %v250
  %336 = vmatprep.subr.bf16.mxu0 0
  %337 = vmatpush1.bf16.msra.mxu0 %v249
  %338 = vmatprep.subr.bf16.mxu0 0
  %339 = vmatpush1.bf16.msra.mxu0 %v248
  %340 = vmatprep.subr.bf16.mxu0 0
  %341 = vmatpush2.bf16.msra.mxu0 %v263
  %342 = vmatprep.subr.bf16.mxu0 0
  %343 = vmatpush2.bf16.msra.mxu0 %v262
  %344 = vmatprep.subr.bf16.mxu0 0
  %345 = vmatpush2.bf16.msra.mxu0 %v261
  %346 = vmatprep.subr.bf16.mxu0 0
  %347 = vmatpush2.bf16.msra.mxu0 %v260
  %348 = vmatprep.subr.bf16.mxu0 0
  %349 = vmatpush2.bf16.msra.mxu0 %v259
  %350 = vmatprep.subr.bf16.mxu0 0
  %351 = vmatpush2.bf16.msra.mxu0 %v258
  %352 = vmatprep.subr.bf16.mxu0 0
  %353 = vmatpush2.bf16.msra.mxu0 %v257
  %354 = vmatprep.subr.bf16.mxu0 0
  %355 = vmatpush2.bf16.msra.mxu0 %v256
  %356 = vmatprep.mubr.bf16.mxu0 %v96
  %357 = vmatmul.mubr.bf16.gmra.mxu0 %v95
  %v358 = vpop.f32.mrf.mxu0
  %v359 = vadd.f32 0.0, %v358
  %v360 = vpop.f32.mrf.mxu0
  %v361 = vpop.f32.mrf.mxu0
  %v362 = vpop.f32.mrf.mxu0
  %363 = vdwg.mxu0
  %364 = vmatprep.subr.bf16.mxu0 0
  %365 = vmatpush1.bf16.msra.mxu0 %v271
  %366 = vmatprep.subr.bf16.mxu0 0
  %367 = vmatpush1.bf16.msra.mxu0 %v270
  %368 = vmatprep.subr.bf16.mxu0 0
  %369 = vmatpush1.bf16.msra.mxu0 %v269
  %370 = vmatprep.subr.bf16.mxu0 0
  %371 = vmatpush1.bf16.msra.mxu0 %v268
  %372 = vmatprep.subr.bf16.mxu0 0
  %373 = vmatpush1.bf16.msra.mxu0 %v267
  %374 = vmatprep.subr.bf16.mxu0 0
  %375 = vmatpush1.bf16.msra.mxu0 %v266
  %376 = vmatprep.subr.bf16.mxu0 0
  %377 = vmatpush1.bf16.msra.mxu0 %v265
  %378 = vmatprep.subr.bf16.mxu0 0
  %379 = vmatpush1.bf16.msra.mxu0 %v264
  %380 = vmatprep.subr.bf16.mxu0 0
  %381 = vmatpush2.bf16.msra.mxu0 %v279
  %382 = vmatprep.subr.bf16.mxu0 0
  %383 = vmatpush2.bf16.msra.mxu0 %v278
  %384 = vmatprep.subr.bf16.mxu0 0
  %385 = vmatpush2.bf16.msra.mxu0 %v277
  %386 = vmatprep.subr.bf16.mxu0 0
  %387 = vmatpush2.bf16.msra.mxu0 %v276
  %388 = vmatprep.subr.bf16.mxu0 0
  %389 = vmatpush2.bf16.msra.mxu0 %v275
  %390 = vmatprep.subr.bf16.mxu0 0
  %391 = vmatpush2.bf16.msra.mxu0 %v274
  %392 = vmatprep.subr.bf16.mxu0 0
  %393 = vmatpush2.bf16.msra.mxu0 %v273
  %394 = vmatprep.subr.bf16.mxu0 0
  %395 = vmatpush2.bf16.msra.mxu0 %v272
  %396 = vmatprep.mubr.bf16.mxu0 %v98
  %397 = vmatmul.mubr.bf16.gmra.mxu0 %v97
  %v398 = vpop.f32.mrf.mxu0
  %v399 = vadd.f32 %v359, %v398
  %v400 = vpop.f32.mrf.mxu0
  %v401 = vpop.f32.mrf.mxu0
  %v402 = vpop.f32.mrf.mxu0
  %403 = vdwg.mxu0
  %404 = vmatprep.subr.bf16.mxu0 0
  %405 = vmatpush1.bf16.msra.mxu0 0
  %406 = vmatprep.subr.bf16.mxu0 0
  %407 = vmatpush1.bf16.msra.mxu0 0
  %408 = vmatprep.subr.bf16.mxu0 0
  %409 = vmatpush1.bf16.msra.mxu0 0
  %410 = vmatprep.subr.bf16.mxu0 0
  %411 = vmatpush1.bf16.msra.mxu0 0
  %412 = vmatprep.subr.bf16.mxu0 0
  %413 = vmatpush1.bf16.msra.mxu0 %v283
  %414 = vmatprep.subr.bf16.mxu0 0
  %415 = vmatpush1.bf16.msra.mxu0 %v282
  %416 = vmatprep.subr.bf16.mxu0 0
  %417 = vmatpush1.bf16.msra.mxu0 %v281
  %418 = vmatprep.subr.bf16.mxu0 0
  %419 = vmatpush1.bf16.msra.mxu0 %v280
  %420 = vmatprep.subr.bf16.mxu0 0
  %421 = vmatpush2.bf16.msra.mxu0 0
  %422 = vmatprep.subr.bf16.mxu0 0
  %423 = vmatpush2.bf16.msra.mxu0 0
  %424 = vmatprep.subr.bf16.mxu0 0
  %425 = vmatpush2.bf16.msra.mxu0 0
  %426 = vmatprep.subr.bf16.mxu0 0
  %427 = vmatpush2.bf16.msra.mxu0 0
  %428 = vmatprep.subr.bf16.mxu0 0
  %429 = vmatpush2.bf16.msra.mxu0 0
  %430 = vmatprep.subr.bf16.mxu0 0
  %431 = vmatpush2.bf16.msra.mxu0 0
  %432 = vmatprep.subr.bf16.mxu0 0
  %433 = vmatpush2.bf16.msra.mxu0 0
  %434 = vmatprep.subr.bf16.mxu0 0
  %435 = vmatpush2.bf16.msra.mxu0 0
  %436 = vmatprep.mubr.bf16.mxu0 0
  %437 = vmatmul.mubr.bf16.gmra.mxu0 %v322
  %v438 = vpop.f32.mrf.mxu0
  %v439 = vadd.f32 %v399, %v438
  %v440 = vpop.f32.mrf.mxu0
  %v441 = vpop.f32.mrf.mxu0
  %v442 = vpop.f32.mrf.mxu0
  %443 = vdwg.mxu0
  %444 = vst.msk [vmem:[%s2] sm:$0xff] %vm320, %v439
  // Predicated region
  $region10: #{net_forward.101} parent=0 // pred_check
    _
  $region11: #{net_forward.101} parent=0 // pred_check_branch
    %446 = sbr.rel (0) target = $region13
  $region12: #{net_forward.101} parent=0 // pred_region
    _
  $region13: #{net_forward.101} parent=0 // pred_fallthru
    _
  // Predicated region
  $region14: #{net_forward.101} parent=0 // pred_check
    _
  $region15: #{net_forward.101} parent=0 // pred_check_branch
    %448 = sbr.rel (0) target = $region17
  $region16: #{net_forward.101} parent=0 // pred_region
    _
  $region17: #{net_forward.101} parent=0 // pred_fallthru
    _

// kernel: net_forward.103
$region0: #{net_forward.103}
  #allocation0 [shape = 'u32[]', space=smem, size = 0x4, offset = 0x4, fixed_abs, tag = 'smem constant byte address 0x4 - core index']
  #allocation1 [shape = 'u32[144,128]{1,0:T(1,128)}', space=vmem, size = 0x12000, scoped, tag = 'internal scratch']
  %s0 = inlined_call_operand.vmem [shape: bf16[8,384], index: 0, kind: input, shape index: {}]
  %s1 = inlined_call_operand.vmem [shape: bf16[384,128], index: 1, kind: input, shape index: {}]
  %s2 = inlined_call_operand.vmem [shape: f32[1,128], index: 2, kind: input, shape index: {}]
  %s3 = inlined_call_operand.vmem [shape: f32[8,128], index: 3, kind: output, shape index: {}]
  %s4 = sld [smem:[#allocation0]]
  $region22: #{net_forward.103} parent=0
    _
  %s6 = ssub.s32 1, %s4
  %s7 = scalar_select 0, %s6, %s4
  // Predicated region
  $region2: #{net_forward.103} parent=0 // pred_check
    _
  $region3: #{net_forward.103} parent=0 // pred_check_branch
    %9 = sbr.rel (0) target = $region5
  $region4: #{net_forward.103} parent=0 // pred_region
    _
  $region5: #{net_forward.103} parent=0 // pred_fallthru
    _
  // Predicated region
  $region6: #{net_forward.103} parent=0 // pred_check
    _
  $region7: #{net_forward.103} parent=0 // pred_check_branch
    %11 = sbr.rel (0) target = $region9
  $region8: #{net_forward.103} parent=0 // pred_region
    _
  $region9: #{net_forward.103} parent=0 // pred_fallthru
    _
  // Predicated region
  $region10: #{net_forward.103} parent=0 // pred_check
    _
  $region11: #{net_forward.103} parent=0 // pred_check_branch
    %13 = sbr.rel (0) target = $region13
  $region12: #{net_forward.103} parent=0 // pred_region
    _
  $region13: #{net_forward.103} parent=0 // pred_fallthru
    _
  %v15 = vld [vmem:[%s0] sm:$0xff]
  %v16 = vld [vmem:[%s0 + $0x8] sm:$0xf]
  %v17 = vld [vmem:[%s1] sm:$0xf]
  %v18 = vld [vmem:[%s1 + $0x4] sm:$0xf]
  %v19 = vld [vmem:[%s1 + $0x8] sm:$0xf]
  %v20 = vld [vmem:[%s1 + $0xc] sm:$0xf]
  %v21 = vld [vmem:[%s1 + $0x10] sm:$0xf]
  %v22 = vld [vmem:[%s1 + $0x14] sm:$0xf]
  %v23 = vld [vmem:[%s1 + $0x18] sm:$0xf]
  %v24 = vld [vmem:[%s1 + $0x1c] sm:$0xf]
  %v25 = vld [vmem:[%s1 + $0x20] sm:$0xf]
  %v26 = vld [vmem:[%s1 + $0x24] sm:$0xf]
  %v27 = vld [vmem:[%s1 + $0x28] sm:$0xf]
  %v28 = vld [vmem:[%s1 + $0x2c] sm:$0xf]
  %v29 = vld [vmem:[%s1 + $0x30] sm:$0xf]
  %v30 = vld [vmem:[%s1 + $0x34] sm:$0xf]
  %v31 = vld [vmem:[%s1 + $0x38] sm:$0xf]
  %v32 = vld [vmem:[%s1 + $0x3c] sm:$0xf]
  %v33 = vld [vmem:[%s1 + $0x40] sm:$0xf]
  %v34 = vld [vmem:[%s1 + $0x44] sm:$0xf]
  %v35 = vld [vmem:[%s1 + $0x48] sm:$0xf]
  %v36 = vld [vmem:[%s1 + $0x4c] sm:$0xf]
  %v37 = vld [vmem:[%s1 + $0x50] sm:$0xf]
  %v38 = vld [vmem:[%s1 + $0x54] sm:$0xf]
  %v39 = vld [vmem:[%s1 + $0x58] sm:$0xf]
  %v40 = vld [vmem:[%s1 + $0x5c] sm:$0xf]
  %v41 = vld [vmem:[%s1 + $0x60] sm:$0xf]
  %v42 = vld [vmem:[%s1 + $0x64] sm:$0xf]
  %v43 = vld [vmem:[%s1 + $0x68] sm:$0xf]
  %v44 = vld [vmem:[%s1 + $0x6c] sm:$0xf]
  %v45 = vld [vmem:[%s1 + $0x70] sm:$0xf]
  %v46 = vld [vmem:[%s1 + $0x74] sm:$0xf]
  %v47 = vld [vmem:[%s1 + $0x78] sm:$0xf]
  %v48 = vld [vmem:[%s1 + $0x7c] sm:$0xf]
  %v49 = vld [vmem:[%s1 + $0x80] sm:$0xf]
  %v50 = vld [vmem:[%s1 + $0x84] sm:$0xf]
  %v51 = vld [vmem:[%s1 + $0x88] sm:$0xf]
  %v52 = vld [vmem:[%s1 + $0x8c] sm:$0xf]
  %v53 = vld [vmem:[%s1 + $0x90] sm:$0xf]
  %v54 = vld [vmem:[%s1 + $0x94] sm:$0xf]
  %v55 = vld [vmem:[%s1 + $0x98] sm:$0xf]
  %v56 = vld [vmem:[%s1 + $0x9c] sm:$0xf]
  %v57 = vld [vmem:[%s1 + $0xa0] sm:$0xf]
  %v58 = vld [vmem:[%s1 + $0xa4] sm:$0xf]
  %v59 = vld [vmem:[%s1 + $0xa8] sm:$0xf]
  %v60 = vld [vmem:[%s1 + $0xac] sm:$0xf]
  %v61 = vld [vmem:[%s1 + $0xb0] sm:$0xf]
  %v62 = vld [vmem:[%s1 + $0xb4] sm:$0xf]
  %v63 = vld [vmem:[%s1 + $0xb8] sm:$0xf]
  %v64 = vld [vmem:[%s1 + $0xbc] sm:$0xf]
  %v65 = vld [vmem:[%s2] sm:$0x1]
  %v67 = vlaneseq
  %v68 = vshrl.u32 %v67, 7
  %v69 = vsub.s32 0, %v68
  %v70 = vrot.slane %v65, %v69
  %v74 = vunpack.c.l.b16 %v15
  %v75 = vunpack.c.h.b16 %v15
  %v76 = vunpack.c.l.b16 %v16
  %v77 = vpack.c.b16 %v74, %v74
  %v78 = vpack.c.b16 %v75, %v75
  %v79 = vpack.c.b16 %v76, %v76
  %v131 = vunpack.c.l.b16 %v17
  %v132 = vunpack.c.l.b16 %v18
  %v133 = vunpack.c.l.b16 %v19
  %v134 = vunpack.c.l.b16 %v20
  %v135 = vunpack.c.l.b16 %v21
  %v136 = vunpack.c.l.b16 %v22
  %v137 = vunpack.c.l.b16 %v23
  %v138 = vunpack.c.l.b16 %v24
  %v139 = vunpack.c.l.b16 %v25
  %v140 = vunpack.c.l.b16 %v26
  %v141 = vunpack.c.l.b16 %v27
  %v142 = vunpack.c.l.b16 %v28
  %v143 = vunpack.c.l.b16 %v29
  %v144 = vunpack.c.l.b16 %v30
  %v145 = vunpack.c.l.b16 %v31
  %v146 = vunpack.c.l.b16 %v32
  %v147 = vunpack.c.l.b16 %v33
  %v148 = vunpack.c.l.b16 %v34
  %v149 = vunpack.c.l.b16 %v35
  %v150 = vunpack.c.l.b16 %v36
  %v151 = vunpack.c.l.b16 %v37
  %v152 = vunpack.c.l.b16 %v38
  %v153 = vunpack.c.l.b16 %v39
  %v154 = vunpack.c.l.b16 %v40
  %v155 = vunpack.c.l.b16 %v41
  %v156 = vunpack.c.l.b16 %v42
  %v157 = vunpack.c.l.b16 %v43
  %v158 = vunpack.c.l.b16 %v44
  %v159 = vunpack.c.l.b16 %v45
  %v160 = vunpack.c.l.b16 %v46
  %v161 = vunpack.c.l.b16 %v47
  %v162 = vunpack.c.l.b16 %v48
  %v163 = vunpack.c.l.b16 %v49
  %v164 = vunpack.c.l.b16 %v50
  %v165 = vunpack.c.l.b16 %v51
  %v166 = vunpack.c.l.b16 %v52
  %v167 = vunpack.c.l.b16 %v53
  %v168 = vunpack.c.l.b16 %v54
  %v169 = vunpack.c.l.b16 %v55
  %v170 = vunpack.c.l.b16 %v56
  %v171 = vunpack.c.l.b16 %v57
  %v172 = vunpack.c.l.b16 %v58
  %v173 = vunpack.c.l.b16 %v59
  %v174 = vunpack.c.l.b16 %v60
  %v175 = vunpack.c.l.b16 %v61
  %v176 = vunpack.c.l.b16 %v62
  %v177 = vunpack.c.l.b16 %v63
  %v178 = vunpack.c.l.b16 %v64
  %v179 = vpack.c.b16 %v132, %v131
  %v180 = vpack.c.b16 %v134, %v133
  %v181 = vpack.c.b16 %v136, %v135
  %v182 = vpack.c.b16 %v138, %v137
  %v183 = vpack.c.b16 %v140, %v139
  %v184 = vpack.c.b16 %v142, %v141
  %v185 = vpack.c.b16 %v144, %v143
  %v186 = vpack.c.b16 %v146, %v145
  %v187 = vpack.c.b16 %v148, %v147
  %v188 = vpack.c.b16 %v150, %v149
  %v189 = vpack.c.b16 %v152, %v151
  %v190 = vpack.c.b16 %v154, %v153
  %v191 = vpack.c.b16 %v156, %v155
  %v192 = vpack.c.b16 %v158, %v157
  %v193 = vpack.c.b16 %v160, %v159
  %v194 = vpack.c.b16 %v162, %v161
  %v195 = vpack.c.b16 %v164, %v163
  %v196 = vpack.c.b16 %v166, %v165
  %v197 = vpack.c.b16 %v168, %v167
  %v198 = vpack.c.b16 %v170, %v169
  %v199 = vpack.c.b16 %v172, %v171
  %v200 = vpack.c.b16 %v174, %v173
  %v201 = vpack.c.b16 %v176, %v175
  %v202 = vpack.c.b16 %v178, %v177
  %227 = vmatprep.subr.bf16.mxu0 0
  %228 = vmatpush1.bf16.msra.mxu0 %v186
  %229 = vmatprep.subr.bf16.mxu0 0
  %230 = vmatpush1.bf16.msra.mxu0 %v185
  %231 = vmatprep.subr.bf16.mxu0 0
  %232 = vmatpush1.bf16.msra.mxu0 %v184
  %233 = vmatprep.subr.bf16.mxu0 0
  %234 = vmatpush1.bf16.msra.mxu0 %v183
  %235 = vmatprep.subr.bf16.mxu0 0
  %236 = vmatpush1.bf16.msra.mxu0 %v182
  %237 = vmatprep.subr.bf16.mxu0 0
  %238 = vmatpush1.bf16.msra.mxu0 %v181
  %239 = vmatprep.subr.bf16.mxu0 0
  %240 = vmatpush1.bf16.msra.mxu0 %v180
  %241 = vmatprep.subr.bf16.mxu0 0
  %242 = vmatpush1.bf16.msra.mxu0 %v179
  %243 = vmatprep.subr.bf16.mxu0 0
  %244 = vmatpush2.bf16.msra.mxu0 %v194
  %245 = vmatprep.subr.bf16.mxu0 0
  %246 = vmatpush2.bf16.msra.mxu0 %v193
  %247 = vmatprep.subr.bf16.mxu0 0
  %248 = vmatpush2.bf16.msra.mxu0 %v192
  %249 = vmatprep.subr.bf16.mxu0 0
  %250 = vmatpush2.bf16.msra.mxu0 %v191
  %251 = vmatprep.subr.bf16.mxu0 0
  %252 = vmatpush2.bf16.msra.mxu0 %v190
  %253 = vmatprep.subr.bf16.mxu0 0
  %254 = vmatpush2.bf16.msra.mxu0 %v189
  %255 = vmatprep.subr.bf16.mxu0 0
  %256 = vmatpush2.bf16.msra.mxu0 %v188
  %257 = vmatprep.subr.bf16.mxu0 0
  %258 = vmatpush2.bf16.msra.mxu0 %v187
  %259 = vmatprep.mubr.bf16.mxu0 %v78
  %260 = vmatmul.mubr.bf16.gmra.mxu0 %v77
  %v261 = vpop.f32.mrf.mxu0
  %v262 = vadd.f32 %v70, %v261
  %v263 = vpop.f32.mrf.mxu0
  %v264 = vpop.f32.mrf.mxu0
  %v265 = vpop.f32.mrf.mxu0
  %266 = vdwg.mxu0
  %267 = vmatprep.subr.bf16.mxu0 0
  %268 = vmatpush1.bf16.msra.mxu0 %v202
  %269 = vmatprep.subr.bf16.mxu0 0
  %270 = vmatpush1.bf16.msra.mxu0 %v201
  %271 = vmatprep.subr.bf16.mxu0 0
  %272 = vmatpush1.bf16.msra.mxu0 %v200
  %273 = vmatprep.subr.bf16.mxu0 0
  %274 = vmatpush1.bf16.msra.mxu0 %v199
  %275 = vmatprep.subr.bf16.mxu0 0
  %276 = vmatpush1.bf16.msra.mxu0 %v198
  %277 = vmatprep.subr.bf16.mxu0 0
  %278 = vmatpush1.bf16.msra.mxu0 %v197
  %279 = vmatprep.subr.bf16.mxu0 0
  %280 = vmatpush1.bf16.msra.mxu0 %v196
  %281 = vmatprep.subr.bf16.mxu0 0
  %282 = vmatpush1.bf16.msra.mxu0 %v195
  %283 = vmatprep.subr.bf16.mxu0 0
  %284 = vmatpush2.bf16.msra.mxu0 0
  %285 = vmatprep.subr.bf16.mxu0 0
  %286 = vmatpush2.bf16.msra.mxu0 0
  %287 = vmatprep.subr.bf16.mxu0 0
  %288 = vmatpush2.bf16.msra.mxu0 0
  %289 = vmatprep.subr.bf16.mxu0 0
  %290 = vmatpush2.bf16.msra.mxu0 0
  %291 = vmatprep.subr.bf16.mxu0 0
  %292 = vmatpush2.bf16.msra.mxu0 0
  %293 = vmatprep.subr.bf16.mxu0 0
  %294 = vmatpush2.bf16.msra.mxu0 0
  %295 = vmatprep.subr.bf16.mxu0 0
  %296 = vmatpush2.bf16.msra.mxu0 0
  %297 = vmatprep.subr.bf16.mxu0 0
  %298 = vmatpush2.bf16.msra.mxu0 0
  %299 = vmatprep.mubr.bf16.mxu0 0
  %300 = vmatmul.mubr.bf16.gmra.mxu0 %v79
  %v301 = vpop.f32.mrf.mxu0
  %v302 = vadd.f32 %v262, %v301
  %v303 = vpop.f32.mrf.mxu0
  %v304 = vpop.f32.mrf.mxu0
  %v305 = vpop.f32.mrf.mxu0
  %306 = vdwg.mxu0
  %v307 = vmax.f32 %v302, 0.0
  %308 = vst [vmem:[%s3] sm:$0xff] %v307
  // Predicated region
  $region14: #{net_forward.103} parent=0 // pred_check
    _
  $region15: #{net_forward.103} parent=0 // pred_check_branch
    %310 = sbr.rel (0) target = $region17
  $region16: #{net_forward.103} parent=0 // pred_region
    _
  $region17: #{net_forward.103} parent=0 // pred_fallthru
    _
  // Predicated region
  $region18: #{net_forward.103} parent=0 // pred_check
    _
  $region19: #{net_forward.103} parent=0 // pred_check_branch
    %312 = sbr.rel (0) target = $region21
  $region20: #{net_forward.103} parent=0 // pred_region
    _
  $region21: #{net_forward.103} parent=0 // pred_fallthru
    _

// kernel: net_forward.106
$region0: #{net_forward.106}
  #allocation0 [shape = 'u32[]', space=smem, size = 0x4, offset = 0x4, fixed_abs, tag = 'smem constant byte address 0x4 - core index']
  #allocation1 [shape = 'u32[144,128]{1,0:T(1,128)}', space=vmem, size = 0x12000, scoped, tag = 'internal scratch']
  %s0 = inlined_call_operand.vmem [shape: bf16[8,384], index: 0, kind: input, shape index: {}]
  %s1 = inlined_call_operand.vmem [shape: bf16[384,128], index: 1, kind: input, shape index: {}]
  %s2 = inlined_call_operand.vmem [shape: f32[1,128], index: 2, kind: input, shape index: {}]
  %s3 = inlined_call_operand.vmem [shape: f32[1,128], index: 3, kind: input, shape index: {}]
  %s4 = inlined_call_operand.vmem [shape: f32[8,128], index: 4, kind: input, shape index: {}]
  %s5 = inlined_call_operand.vmem [shape: f32[8,128], index: 5, kind: output, shape index: {}]
  %s6 = sld [smem:[#allocation0]]
  $region30: #{net_forward.106} parent=0
    _
  %s8 = ssub.s32 1, %s6
  %s9 = scalar_select 0, %s8, %s6
  // Predicated region
  $region2: #{net_forward.106} parent=0 // pred_check
    _
  $region3: #{net_forward.106} parent=0 // pred_check_branch
    %11 = sbr.rel (0) target = $region5
  $region4: #{net_forward.106} parent=0 // pred_region
    _
  $region5: #{net_forward.106} parent=0 // pred_fallthru
    _
  // Predicated region
  $region6: #{net_forward.106} parent=0 // pred_check
    _
  $region7: #{net_forward.106} parent=0 // pred_check_branch
    %13 = sbr.rel (0) target = $region9
  $region8: #{net_forward.106} parent=0 // pred_region
    _
  $region9: #{net_forward.106} parent=0 // pred_fallthru
    _
  // Predicated region
  $region10: #{net_forward.106} parent=0 // pred_check
    _
  $region11: #{net_forward.106} parent=0 // pred_check_branch
    %15 = sbr.rel (0) target = $region13
  $region12: #{net_forward.106} parent=0 // pred_region
    _
  $region13: #{net_forward.106} parent=0 // pred_fallthru
    _
  // Predicated region
  $region14: #{net_forward.106} parent=0 // pred_check
    _
  $region15: #{net_forward.106} parent=0 // pred_check_branch
    %17 = sbr.rel (0) target = $region17
  $region16: #{net_forward.106} parent=0 // pred_region
    _
  $region17: #{net_forward.106} parent=0 // pred_fallthru
    _
  // Predicated region
  $region18: #{net_forward.106} parent=0 // pred_check
    _
  $region19: #{net_forward.106} parent=0 // pred_check_branch
    %19 = sbr.rel (0) target = $region21
  $region20: #{net_forward.106} parent=0 // pred_region
    _
  $region21: #{net_forward.106} parent=0 // pred_fallthru
    _
  %v21 = vld [vmem:[%s0] sm:$0xff]
  %v22 = vld [vmem:[%s0 + $0x8] sm:$0xf]
  %v23 = vld [vmem:[%s1] sm:$0xf]
  %v24 = vld [vmem:[%s1 + $0x4] sm:$0xf]
  %v25 = vld [vmem:[%s1 + $0x8] sm:$0xf]
  %v26 = vld [vmem:[%s1 + $0xc] sm:$0xf]
  %v27 = vld [vmem:[%s1 + $0x10] sm:$0xf]
  %v28 = vld [vmem:[%s1 + $0x14] sm:$0xf]
  %v29 = vld [vmem:[%s1 + $0x18] sm:$0xf]
  %v30 = vld [vmem:[%s1 + $0x1c] sm:$0xf]
  %v31 = vld [vmem:[%s1 + $0x20] sm:$0xf]
  %v32 = vld [vmem:[%s1 + $0x24] sm:$0xf]
  %v33 = vld [vmem:[%s1 + $0x28] sm:$0xf]
  %v34 = vld [vmem:[%s1 + $0x2c] sm:$0xf]
  %v35 = vld [vmem:[%s1 + $0x30] sm:$0xf]
  %v36 = vld [vmem:[%s1 + $0x34] sm:$0xf]
  %v37 = vld [vmem:[%s1 + $0x38] sm:$0xf]
  %v38 = vld [vmem:[%s1 + $0x3c] sm:$0xf]
  %v39 = vld [vmem:[%s1 + $0x40] sm:$0xf]
  %v40 = vld [vmem:[%s1 + $0x44] sm:$0xf]
  %v41 = vld [vmem:[%s1 + $0x48] sm:$0xf]
  %v42 = vld [vmem:[%s1 + $0x4c] sm:$0xf]
  %v43 = vld [vmem:[%s1 + $0x50] sm:$0xf]
  %v44 = vld [vmem:[%s1 + $0x54] sm:$0xf]
  %v45 = vld [vmem:[%s1 + $0x58] sm:$0xf]
  %v46 = vld [vmem:[%s1 + $0x5c] sm:$0xf]
  %v47 = vld [vmem:[%s1 + $0x60] sm:$0xf]
  %v48 = vld [vmem:[%s1 + $0x64] sm:$0xf]
  %v49 = vld [vmem:[%s1 + $0x68] sm:$0xf]
  %v50 = vld [vmem:[%s1 + $0x6c] sm:$0xf]
  %v51 = vld [vmem:[%s1 + $0x70] sm:$0xf]
  %v52 = vld [vmem:[%s1 + $0x74] sm:$0xf]
  %v53 = vld [vmem:[%s1 + $0x78] sm:$0xf]
  %v54 = vld [vmem:[%s1 + $0x7c] sm:$0xf]
  %v55 = vld [vmem:[%s1 + $0x80] sm:$0xf]
  %v56 = vld [vmem:[%s1 + $0x84] sm:$0xf]
  %v57 = vld [vmem:[%s1 + $0x88] sm:$0xf]
  %v58 = vld [vmem:[%s1 + $0x8c] sm:$0xf]
  %v59 = vld [vmem:[%s1 + $0x90] sm:$0xf]
  %v60 = vld [vmem:[%s1 + $0x94] sm:$0xf]
  %v61 = vld [vmem:[%s1 + $0x98] sm:$0xf]
  %v62 = vld [vmem:[%s1 + $0x9c] sm:$0xf]
  %v63 = vld [vmem:[%s1 + $0xa0] sm:$0xf]
  %v64 = vld [vmem:[%s1 + $0xa4] sm:$0xf]
  %v65 = vld [vmem:[%s1 + $0xa8] sm:$0xf]
  %v66 = vld [vmem:[%s1 + $0xac] sm:$0xf]
  %v67 = vld [vmem:[%s1 + $0xb0] sm:$0xf]
  %v68 = vld [vmem:[%s1 + $0xb4] sm:$0xf]
  %v69 = vld [vmem:[%s1 + $0xb8] sm:$0xf]
  %v70 = vld [vmem:[%s1 + $0xbc] sm:$0xf]
  %v73 = vunpack.c.l.b16 %v21
  %v74 = vunpack.c.h.b16 %v21
  %v75 = vunpack.c.l.b16 %v22
  %v76 = vpack.c.b16 %v73, %v73
  %v77 = vpack.c.b16 %v74, %v74
  %v78 = vpack.c.b16 %v75, %v75
  %v130 = vunpack.c.l.b16 %v23
  %v131 = vunpack.c.l.b16 %v24
  %v132 = vunpack.c.l.b16 %v25
  %v133 = vunpack.c.l.b16 %v26
  %v134 = vunpack.c.l.b16 %v27
  %v135 = vunpack.c.l.b16 %v28
  %v136 = vunpack.c.l.b16 %v29
  %v137 = vunpack.c.l.b16 %v30
  %v138 = vunpack.c.l.b16 %v31
  %v139 = vunpack.c.l.b16 %v32
  %v140 = vunpack.c.l.b16 %v33
  %v141 = vunpack.c.l.b16 %v34
  %v142 = vunpack.c.l.b16 %v35
  %v143 = vunpack.c.l.b16 %v36
  %v144 = vunpack.c.l.b16 %v37
  %v145 = vunpack.c.l.b16 %v38
  %v146 = vunpack.c.l.b16 %v39
  %v147 = vunpack.c.l.b16 %v40
  %v148 = vunpack.c.l.b16 %v41
  %v149 = vunpack.c.l.b16 %v42
  %v150 = vunpack.c.l.b16 %v43
  %v151 = vunpack.c.l.b16 %v44
  %v152 = vunpack.c.l.b16 %v45
  %v153 = vunpack.c.l.b16 %v46
  %v154 = vunpack.c.l.b16 %v47
  %v155 = vunpack.c.l.b16 %v48
  %v156 = vunpack.c.l.b16 %v49
  %v157 = vunpack.c.l.b16 %v50
  %v158 = vunpack.c.l.b16 %v51
  %v159 = vunpack.c.l.b16 %v52
  %v160 = vunpack.c.l.b16 %v53
  %v161 = vunpack.c.l.b16 %v54
  %v162 = vunpack.c.l.b16 %v55
  %v163 = vunpack.c.l.b16 %v56
  %v164 = vunpack.c.l.b16 %v57
  %v165 = vunpack.c.l.b16 %v58
  %v166 = vunpack.c.l.b16 %v59
  %v167 = vunpack.c.l.b16 %v60
  %v168 = vunpack.c.l.b16 %v61
  %v169 = vunpack.c.l.b16 %v62
  %v170 = vunpack.c.l.b16 %v63
  %v171 = vunpack.c.l.b16 %v64
  %v172 = vunpack.c.l.b16 %v65
  %v173 = vunpack.c.l.b16 %v66
  %v174 = vunpack.c.l.b16 %v67
  %v175 = vunpack.c.l.b16 %v68
  %v176 = vunpack.c.l.b16 %v69
  %v177 = vunpack.c.l.b16 %v70
  %v178 = vpack.c.b16 %v131, %v130
  %v179 = vpack.c.b16 %v133, %v132
  %v180 = vpack.c.b16 %v135, %v134
  %v181 = vpack.c.b16 %v137, %v136
  %v182 = vpack.c.b16 %v139, %v138
  %v183 = vpack.c.b16 %v141, %v140
  %v184 = vpack.c.b16 %v143, %v142
  %v185 = vpack.c.b16 %v145, %v144
  %v186 = vpack.c.b16 %v147, %v146
  %v187 = vpack.c.b16 %v149, %v148
  %v188 = vpack.c.b16 %v151, %v150
  %v189 = vpack.c.b16 %v153, %v152
  %v190 = vpack.c.b16 %v155, %v154
  %v191 = vpack.c.b16 %v157, %v156
  %v192 = vpack.c.b16 %v159, %v158
  %v193 = vpack.c.b16 %v161, %v160
  %v194 = vpack.c.b16 %v163, %v162
  %v195 = vpack.c.b16 %v165, %v164
  %v196 = vpack.c.b16 %v167, %v166
  %v197 = vpack.c.b16 %v169, %v168
  %v198 = vpack.c.b16 %v171, %v170
  %v199 = vpack.c.b16 %v173, %v172
  %v200 = vpack.c.b16 %v175, %v174
  %v201 = vpack.c.b16 %v177, %v176
  %226 = vmatprep.subr.bf16.mxu0 0
  %227 = vmatpush1.bf16.msra.mxu0 %v185
  %228 = vmatprep.subr.bf16.mxu0 0
  %229 = vmatpush1.bf16.msra.mxu0 %v184
  %230 = vmatprep.subr.bf16.mxu0 0
  %231 = vmatpush1.bf16.msra.mxu0 %v183
  %232 = vmatprep.subr.bf16.mxu0 0
  %233 = vmatpush1.bf16.msra.mxu0 %v182
  %234 = vmatprep.subr.bf16.mxu0 0
  %235 = vmatpush1.bf16.msra.mxu0 %v181
  %236 = vmatprep.subr.bf16.mxu0 0
  %237 = vmatpush1.bf16.msra.mxu0 %v180
  %238 = vmatprep.subr.bf16.mxu0 0
  %239 = vmatpush1.bf16.msra.mxu0 %v179
  %240 = vmatprep.subr.bf16.mxu0 0
  %241 = vmatpush1.bf16.msra.mxu0 %v178
  %242 = vmatprep.subr.bf16.mxu0 0
  %243 = vmatpush2.bf16.msra.mxu0 %v193
  %244 = vmatprep.subr.bf16.mxu0 0
  %245 = vmatpush2.bf16.msra.mxu0 %v192
  %246 = vmatprep.subr.bf16.mxu0 0
  %247 = vmatpush2.bf16.msra.mxu0 %v191
  %248 = vmatprep.subr.bf16.mxu0 0
  %249 = vmatpush2.bf16.msra.mxu0 %v190
  %250 = vmatprep.subr.bf16.mxu0 0
  %251 = vmatpush2.bf16.msra.mxu0 %v189
  %252 = vmatprep.subr.bf16.mxu0 0
  %253 = vmatpush2.bf16.msra.mxu0 %v188
  %254 = vmatprep.subr.bf16.mxu0 0
  %255 = vmatpush2.bf16.msra.mxu0 %v187
  %256 = vmatprep.subr.bf16.mxu0 0
  %257 = vmatpush2.bf16.msra.mxu0 %v186
  %258 = vmatprep.mubr.bf16.mxu0 %v77
  %259 = vmatmul.mubr.bf16.gmra.mxu0 %v76
  %v260 = vpop.f32.mrf.mxu0
  %v261 = vadd.f32 0.0, %v260
  %v262 = vpop.f32.mrf.mxu0
  %v263 = vpop.f32.mrf.mxu0
  %v264 = vpop.f32.mrf.mxu0
  %265 = vdwg.mxu0
  %266 = vmatprep.subr.bf16.mxu0 0
  %267 = vmatpush1.bf16.msra.mxu0 %v201
  %268 = vmatprep.subr.bf16.mxu0 0
  %269 = vmatpush1.bf16.msra.mxu0 %v200
  %270 = vmatprep.subr.bf16.mxu0 0
  %271 = vmatpush1.bf16.msra.mxu0 %v199
  %272 = vmatprep.subr.bf16.mxu0 0
  %273 = vmatpush1.bf16.msra.mxu0 %v198
  %274 = vmatprep.subr.bf16.mxu0 0
  %275 = vmatpush1.bf16.msra.mxu0 %v197
  %276 = vmatprep.subr.bf16.mxu0 0
  %277 = vmatpush1.bf16.msra.mxu0 %v196
  %278 = vmatprep.subr.bf16.mxu0 0
  %279 = vmatpush1.bf16.msra.mxu0 %v195
  %280 = vmatprep.subr.bf16.mxu0 0
  %281 = vmatpush1.bf16.msra.mxu0 %v194
  %282 = vmatprep.subr.bf16.mxu0 0
  %283 = vmatpush2.bf16.msra.mxu0 0
  %284 = vmatprep.subr.bf16.mxu0 0
  %285 = vmatpush2.bf16.msra.mxu0 0
  %286 = vmatprep.subr.bf16.mxu0 0
  %287 = vmatpush2.bf16.msra.mxu0 0
  %288 = vmatprep.subr.bf16.mxu0 0
  %289 = vmatpush2.bf16.msra.mxu0 0
  %290 = vmatprep.subr.bf16.mxu0 0
  %291 = vmatpush2.bf16.msra.mxu0 0
  %292 = vmatprep.subr.bf16.mxu0 0
  %293 = vmatpush2.bf16.msra.mxu0 0
  %294 = vmatprep.subr.bf16.mxu0 0
  %295 = vmatpush2.bf16.msra.mxu0 0
  %296 = vmatprep.subr.bf16.mxu0 0
  %297 = vmatpush2.bf16.msra.mxu0 0
  %298 = vmatprep.mubr.bf16.mxu0 0
  %299 = vmatmul.mubr.bf16.gmra.mxu0 %v78
  %v300 = vpop.f32.mrf.mxu0
  %v301 = vadd.f32 %v261, %v300
  %v302 = vpop.f32.mrf.mxu0
  %v303 = vpop.f32.mrf.mxu0
  %v304 = vpop.f32.mrf.mxu0
  %305 = vdwg.mxu0
  %v306 = vld [vmem:[%s2] sm:$0x1]
  %v307 = vld [vmem:[%s3] sm:$0x1]
  %v308 = vrot.slane %v301, 4
  %v309 = vadd.f32 %v301, %v308
  %v310 = vrot.slane %v309, 2
  %v311 = vadd.f32 %v309, %v310
  %v312 = vrot.slane %v311, 1
  %v313 = vadd.f32 %v311, %v312
  %v314 = vrcp.pop 8.0
  %v315 = vmul.f32 %v313, %v314
  %v316 = vmul.f32 %v301, %v301
  %v317 = vrot.slane %v316, 4
  %v318 = vadd.f32 %v316, %v317
  %v319 = vrot.slane %v318, 2
  %v320 = vadd.f32 %v318, %v319
  %v321 = vrot.slane %v320, 1
  %v322 = vadd.f32 %v320, %v321
  %v323 = vmul.f32 %v322, %v314
  %v324 = vmul.f32 %v315, %v315
  %v325 = vsub.f32 %v323, %v324
  %v326 = vmax.f32 %v325, 0.0
  %v327 = vadd.f32 %v326, 0.001
  %v328 = vrsqrt.pop %v327
  %v329 = vmul.f32 %v306, %v328
  %v331 = vlaneseq
  %v332 = vshrl.u32 %v331, 7
  %v333 = vsub.s32 0, %v332
  %v334 = vrot.slane %v329, %v333
  %v336 = vmul.f32 %v301, %v334
  %v337 = vmul.f32 %v315, %v329
  %v338 = vsub.f32 %v307, %v337
  %v340 = vlaneseq
  %v341 = vshrl.u32 %v340, 7
  %v342 = vsub.s32 0, %v341
  %v343 = vrot.slane %v338, %v342
  %v345 = vadd.f32 %v336, %v343
  %v346 = vld [vmem:[%s4] sm:$0xff]
  %v347 = vadd.f32 %v345, %v346
  %v348 = vmax.f32 %v347, 0.0
  %349 = vst [vmem:[%s5] sm:$0xff] %v348
  // Predicated region
  $region22: #{net_forward.106} parent=0 // pred_check
    _
  $region23: #{net_forward.106} parent=0 // pred_check_branch
    %351 = sbr.rel (0) target = $region25
  $region24: #{net_forward.106} parent=0 // pred_region
    _
  $region25: #{net_forward.106} parent=0 // pred_fallthru
    _
  // Predicated region
  $region26: #{net_forward.106} parent=0 // pred_check
    _
  $region27: #{net_forward.106} parent=0 // pred_check_branch
    %353 = sbr.rel (0) target = $region29
  $region28: #{net_forward.106} parent=0 // pred_region
    _
  $region29: #{net_forward.106} parent=0 // pred_fallthru
    _

// kernel: net_forward.104
$region0: #{net_forward.104}
  #allocation0 [shape = 'u32[]', space=smem, size = 0x4, offset = 0x4, fixed_abs, tag = 'smem constant byte address 0x4 - core index']
  #allocation1 [shape = 'u32[144,128]{1,0:T(1,128)}', space=vmem, size = 0x12000, scoped, tag = 'internal scratch']
  %s0 = inlined_call_operand.vmem [shape: bf16[8,384], index: 0, kind: input, shape index: {}]
  %s1 = inlined_call_operand.vmem [shape: bf16[384,128], index: 1, kind: input, shape index: {}]
  %s2 = inlined_call_operand.vmem [shape: f32[1,128], index: 2, kind: input, shape index: {}]
  %s3 = inlined_call_operand.vmem [shape: f32[1,128], index: 3, kind: input, shape index: {}]
  %s4 = inlined_call_operand.vmem [shape: f32[8,128], index: 4, kind: output, shape index: {}]
  %s5 = sld [smem:[#allocation0]]
  $region26: #{net_forward.104} parent=0
    _
  %s7 = ssub.s32 1, %s5
  %s8 = scalar_select 0, %s7, %s5
  // Predicated region
  $region2: #{net_forward.104} parent=0 // pred_check
    _
  $region3: #{net_forward.104} parent=0 // pred_check_branch
    %10 = sbr.rel (0) target = $region5
  $region4: #{net_forward.104} parent=0 // pred_region
    _
  $region5: #{net_forward.104} parent=0 // pred_fallthru
    _
  // Predicated region
  $region6: #{net_forward.104} parent=0 // pred_check
    _
  $region7: #{net_forward.104} parent=0 // pred_check_branch
    %12 = sbr.rel (0) target = $region9
  $region8: #{net_forward.104} parent=0 // pred_region
    _
  $region9: #{net_forward.104} parent=0 // pred_fallthru
    _
  // Predicated region
  $region10: #{net_forward.104} parent=0 // pred_check
    _
  $region11: #{net_forward.104} parent=0 // pred_check_branch
    %14 = sbr.rel (0) target = $region13
  $region12: #{net_forward.104} parent=0 // pred_region
    _
  $region13: #{net_forward.104} parent=0 // pred_fallthru
    _
  // Predicated region
  $region14: #{net_forward.104} parent=0 // pred_check
    _
  $region15: #{net_forward.104} parent=0 // pred_check_branch
    %16 = sbr.rel (0) target = $region17
  $region16: #{net_forward.104} parent=0 // pred_region
    _
  $region17: #{net_forward.104} parent=0 // pred_fallthru
    _
  %v18 = vld [vmem:[%s0] sm:$0xff]
  %v19 = vld [vmem:[%s0 + $0x8] sm:$0xf]
  %v20 = vld [vmem:[%s1] sm:$0xf]
  %v21 = vld [vmem:[%s1 + $0x4] sm:$0xf]
  %v22 = vld [vmem:[%s1 + $0x8] sm:$0xf]
  %v23 = vld [vmem:[%s1 + $0xc] sm:$0xf]
  %v24 = vld [vmem:[%s1 + $0x10] sm:$0xf]
  %v25 = vld [vmem:[%s1 + $0x14] sm:$0xf]
  %v26 = vld [vmem:[%s1 + $0x18] sm:$0xf]
  %v27 = vld [vmem:[%s1 + $0x1c] sm:$0xf]
  %v28 = vld [vmem:[%s1 + $0x20] sm:$0xf]
  %v29 = vld [vmem:[%s1 + $0x24] sm:$0xf]
  %v30 = vld [vmem:[%s1 + $0x28] sm:$0xf]
  %v31 = vld [vmem:[%s1 + $0x2c] sm:$0xf]
  %v32 = vld [vmem:[%s1 + $0x30] sm:$0xf]
  %v33 = vld [vmem:[%s1 + $0x34] sm:$0xf]
  %v34 = vld [vmem:[%s1 + $0x38] sm:$0xf]
  %v35 = vld [vmem:[%s1 + $0x3c] sm:$0xf]
  %v36 = vld [vmem:[%s1 + $0x40] sm:$0xf]
  %v37 = vld [vmem:[%s1 + $0x44] sm:$0xf]
  %v38 = vld [vmem:[%s1 + $0x48] sm:$0xf]
  %v39 = vld [vmem:[%s1 + $0x4c] sm:$0xf]
  %v40 = vld [vmem:[%s1 + $0x50] sm:$0xf]
  %v41 = vld [vmem:[%s1 + $0x54] sm:$0xf]
  %v42 = vld [vmem:[%s1 + $0x58] sm:$0xf]
  %v43 = vld [vmem:[%s1 + $0x5c] sm:$0xf]
  %v44 = vld [vmem:[%s1 + $0x60] sm:$0xf]
  %v45 = vld [vmem:[%s1 + $0x64] sm:$0xf]
  %v46 = vld [vmem:[%s1 + $0x68] sm:$0xf]
  %v47 = vld [vmem:[%s1 + $0x6c] sm:$0xf]
  %v48 = vld [vmem:[%s1 + $0x70] sm:$0xf]
  %v49 = vld [vmem:[%s1 + $0x74] sm:$0xf]
  %v50 = vld [vmem:[%s1 + $0x78] sm:$0xf]
  %v51 = vld [vmem:[%s1 + $0x7c] sm:$0xf]
  %v52 = vld [vmem:[%s1 + $0x80] sm:$0xf]
  %v53 = vld [vmem:[%s1 + $0x84] sm:$0xf]
  %v54 = vld [vmem:[%s1 + $0x88] sm:$0xf]
  %v55 = vld [vmem:[%s1 + $0x8c] sm:$0xf]
  %v56 = vld [vmem:[%s1 + $0x90] sm:$0xf]
  %v57 = vld [vmem:[%s1 + $0x94] sm:$0xf]
  %v58 = vld [vmem:[%s1 + $0x98] sm:$0xf]
  %v59 = vld [vmem:[%s1 + $0x9c] sm:$0xf]
  %v60 = vld [vmem:[%s1 + $0xa0] sm:$0xf]
  %v61 = vld [vmem:[%s1 + $0xa4] sm:$0xf]
  %v62 = vld [vmem:[%s1 + $0xa8] sm:$0xf]
  %v63 = vld [vmem:[%s1 + $0xac] sm:$0xf]
  %v64 = vld [vmem:[%s1 + $0xb0] sm:$0xf]
  %v65 = vld [vmem:[%s1 + $0xb4] sm:$0xf]
  %v66 = vld [vmem:[%s1 + $0xb8] sm:$0xf]
  %v67 = vld [vmem:[%s1 + $0xbc] sm:$0xf]
  %v70 = vunpack.c.l.b16 %v18
  %v71 = vunpack.c.h.b16 %v18
  %v72 = vunpack.c.l.b16 %v19
  %v73 = vpack.c.b16 %v70, %v70
  %v74 = vpack.c.b16 %v71, %v71
  %v75 = vpack.c.b16 %v72, %v72
  %v127 = vunpack.c.l.b16 %v20
  %v128 = vunpack.c.l.b16 %v21
  %v129 = vunpack.c.l.b16 %v22
  %v130 = vunpack.c.l.b16 %v23
  %v131 = vunpack.c.l.b16 %v24
  %v132 = vunpack.c.l.b16 %v25
  %v133 = vunpack.c.l.b16 %v26
  %v134 = vunpack.c.l.b16 %v27
  %v135 = vunpack.c.l.b16 %v28
  %v136 = vunpack.c.l.b16 %v29
  %v137 = vunpack.c.l.b16 %v30
  %v138 = vunpack.c.l.b16 %v31
  %v139 = vunpack.c.l.b16 %v32
  %v140 = vunpack.c.l.b16 %v33
  %v141 = vunpack.c.l.b16 %v34
  %v142 = vunpack.c.l.b16 %v35
  %v143 = vunpack.c.l.b16 %v36
  %v144 = vunpack.c.l.b16 %v37
  %v145 = vunpack.c.l.b16 %v38
  %v146 = vunpack.c.l.b16 %v39
  %v147 = vunpack.c.l.b16 %v40
  %v148 = vunpack.c.l.b16 %v41
  %v149 = vunpack.c.l.b16 %v42
  %v150 = vunpack.c.l.b16 %v43
  %v151 = vunpack.c.l.b16 %v44
  %v152 = vunpack.c.l.b16 %v45
  %v153 = vunpack.c.l.b16 %v46
  %v154 = vunpack.c.l.b16 %v47
  %v155 = vunpack.c.l.b16 %v48
  %v156 = vunpack.c.l.b16 %v49
  %v157 = vunpack.c.l.b16 %v50
  %v158 = vunpack.c.l.b16 %v51
  %v159 = vunpack.c.l.b16 %v52
  %v160 = vunpack.c.l.b16 %v53
  %v161 = vunpack.c.l.b16 %v54
  %v162 = vunpack.c.l.b16 %v55
  %v163 = vunpack.c.l.b16 %v56
  %v164 = vunpack.c.l.b16 %v57
  %v165 = vunpack.c.l.b16 %v58
  %v166 = vunpack.c.l.b16 %v59
  %v167 = vunpack.c.l.b16 %v60
  %v168 = vunpack.c.l.b16 %v61
  %v169 = vunpack.c.l.b16 %v62
  %v170 = vunpack.c.l.b16 %v63
  %v171 = vunpack.c.l.b16 %v64
  %v172 = vunpack.c.l.b16 %v65
  %v173 = vunpack.c.l.b16 %v66
  %v174 = vunpack.c.l.b16 %v67
  %v175 = vpack.c.b16 %v128, %v127
  %v176 = vpack.c.b16 %v130, %v129
  %v177 = vpack.c.b16 %v132, %v131
  %v178 = vpack.c.b16 %v134, %v133
  %v179 = vpack.c.b16 %v136, %v135
  %v180 = vpack.c.b16 %v138, %v137
  %v181 = vpack.c.b16 %v140, %v139
  %v182 = vpack.c.b16 %v142, %v141
  %v183 = vpack.c.b16 %v144, %v143
  %v184 = vpack.c.b16 %v146, %v145
  %v185 = vpack.c.b16 %v148, %v147
  %v186 = vpack.c.b16 %v150, %v149
  %v187 = vpack.c.b16 %v152, %v151
  %v188 = vpack.c.b16 %v154, %v153
  %v189 = vpack.c.b16 %v156, %v155
  %v190 = vpack.c.b16 %v158, %v157
  %v191 = vpack.c.b16 %v160, %v159
  %v192 = vpack.c.b16 %v162, %v161
  %v193 = vpack.c.b16 %v164, %v163
  %v194 = vpack.c.b16 %v166, %v165
  %v195 = vpack.c.b16 %v168, %v167
  %v196 = vpack.c.b16 %v170, %v169
  %v197 = vpack.c.b16 %v172, %v171
  %v198 = vpack.c.b16 %v174, %v173
  %223 = vmatprep.subr.bf16.mxu0 0
  %224 = vmatpush1.bf16.msra.mxu0 %v182
  %225 = vmatprep.subr.bf16.mxu0 0
  %226 = vmatpush1.bf16.msra.mxu0 %v181
  %227 = vmatprep.subr.bf16.mxu0 0
  %228 = vmatpush1.bf16.msra.mxu0 %v180
  %229 = vmatprep.subr.bf16.mxu0 0
  %230 = vmatpush1.bf16.msra.mxu0 %v179
  %231 = vmatprep.subr.bf16.mxu0 0
  %232 = vmatpush1.bf16.msra.mxu0 %v178
  %233 = vmatprep.subr.bf16.mxu0 0
  %234 = vmatpush1.bf16.msra.mxu0 %v177
  %235 = vmatprep.subr.bf16.mxu0 0
  %236 = vmatpush1.bf16.msra.mxu0 %v176
  %237 = vmatprep.subr.bf16.mxu0 0
  %238 = vmatpush1.bf16.msra.mxu0 %v175
  %239 = vmatprep.subr.bf16.mxu0 0
  %240 = vmatpush2.bf16.msra.mxu0 %v190
  %241 = vmatprep.subr.bf16.mxu0 0
  %242 = vmatpush2.bf16.msra.mxu0 %v189
  %243 = vmatprep.subr.bf16.mxu0 0
  %244 = vmatpush2.bf16.msra.mxu0 %v188
  %245 = vmatprep.subr.bf16.mxu0 0
  %246 = vmatpush2.bf16.msra.mxu0 %v187
  %247 = vmatprep.subr.bf16.mxu0 0
  %248 = vmatpush2.bf16.msra.mxu0 %v186
  %249 = vmatprep.subr.bf16.mxu0 0
  %250 = vmatpush2.bf16.msra.mxu0 %v185
  %251 = vmatprep.subr.bf16.mxu0 0
  %252 = vmatpush2.bf16.msra.mxu0 %v184
  %253 = vmatprep.subr.bf16.mxu0 0
  %254 = vmatpush2.bf16.msra.mxu0 %v183
  %255 = vmatprep.mubr.bf16.mxu0 %v74
  %256 = vmatmul.mubr.bf16.gmra.mxu0 %v73
  %v257 = vpop.f32.mrf.mxu0
  %v258 = vadd.f32 0.0, %v257
  %v259 = vpop.f32.mrf.mxu0
  %v260 = vpop.f32.mrf.mxu0
  %v261 = vpop.f32.mrf.mxu0
  %262 = vdwg.mxu0
  %263 = vmatprep.subr.bf16.mxu0 0
  %264 = vmatpush1.bf16.msra.mxu0 %v198
  %265 = vmatprep.subr.bf16.mxu0 0
  %266 = vmatpush1.bf16.msra.mxu0 %v197
  %267 = vmatprep.subr.bf16.mxu0 0
  %268 = vmatpush1.bf16.msra.mxu0 %v196
  %269 = vmatprep.subr.bf16.mxu0 0
  %270 = vmatpush1.bf16.msra.mxu0 %v195
  %271 = vmatprep.subr.bf16.mxu0 0
  %272 = vmatpush1.bf16.msra.mxu0 %v194
  %273 = vmatprep.subr.bf16.mxu0 0
  %274 = vmatpush1.bf16.msra.mxu0 %v193
  %275 = vmatprep.subr.bf16.mxu0 0
  %276 = vmatpush1.bf16.msra.mxu0 %v192
  %277 = vmatprep.subr.bf16.mxu0 0
  %278 = vmatpush1.bf16.msra.mxu0 %v191
  %279 = vmatprep.subr.bf16.mxu0 0
  %280 = vmatpush2.bf16.msra.mxu0 0
  %281 = vmatprep.subr.bf16.mxu0 0
  %282 = vmatpush2.bf16.msra.mxu0 0
  %283 = vmatprep.subr.bf16.mxu0 0
  %284 = vmatpush2.bf16.msra.mxu0 0
  %285 = vmatprep.subr.bf16.mxu0 0
  %286 = vmatpush2.bf16.msra.mxu0 0
  %287 = vmatprep.subr.bf16.mxu0 0
  %288 = vmatpush2.bf16.msra.mxu0 0
  %289 = vmatprep.subr.bf16.mxu0 0
  %290 = vmatpush2.bf16.msra.mxu0 0
  %291 = vmatprep.subr.bf16.mxu0 0
  %292 = vmatpush2.bf16.msra.mxu0 0
  %293 = vmatprep.subr.bf16.mxu0 0
  %294 = vmatpush2.bf16.msra.mxu0 0
  %295 = vmatprep.mubr.bf16.mxu0 0
  %296 = vmatmul.mubr.bf16.gmra.mxu0 %v75
  %v297 = vpop.f32.mrf.mxu0
  %v298 = vadd.f32 %v258, %v297
  %v299 = vpop.f32.mrf.mxu0
  %v300 = vpop.f32.mrf.mxu0
  %v301 = vpop.f32.mrf.mxu0
  %302 = vdwg.mxu0
  %v303 = vld [vmem:[%s2] sm:$0x1]
  %v304 = vld [vmem:[%s3] sm:$0x1]
  %v305 = vrot.slane %v298, 4
  %v306 = vadd.f32 %v298, %v305
  %v307 = vrot.slane %v306, 2
  %v308 = vadd.f32 %v306, %v307
  %v309 = vrot.slane %v308, 1
  %v310 = vadd.f32 %v308, %v309
  %v311 = vrcp.pop 8.0
  %v312 = vmul.f32 %v310, %v311
  %v313 = vmul.f32 %v298, %v298
  %v314 = vrot.slane %v313, 4
  %v315 = vadd.f32 %v313, %v314
  %v316 = vrot.slane %v315, 2
  %v317 = vadd.f32 %v315, %v316
  %v318 = vrot.slane %v317, 1
  %v319 = vadd.f32 %v317, %v318
  %v320 = vmul.f32 %v319, %v311
  %v321 = vmul.f32 %v312, %v312
  %v322 = vsub.f32 %v320, %v321
  %v323 = vmax.f32 %v322, 0.0
  %v324 = vadd.f32 %v323, 0.001
  %v325 = vrsqrt.pop %v324
  %v326 = vmul.f32 %v303, %v325
  %v328 = vlaneseq
  %v329 = vshrl.u32 %v328, 7
  %v330 = vsub.s32 0, %v329
  %v331 = vrot.slane %v326, %v330
  %v333 = vmul.f32 %v298, %v331
  %v334 = vmul.f32 %v312, %v326
  %v335 = vsub.f32 %v304, %v334
  %v337 = vlaneseq
  %v338 = vshrl.u32 %v337, 7
  %v339 = vsub.s32 0, %v338
  %v340 = vrot.slane %v335, %v339
  %v342 = vadd.f32 %v333, %v340
  %v343 = vmax.f32 %v342, 0.0
  %344 = vst [vmem:[%s4] sm:$0xff] %v343
  // Predicated region
  $region18: #{net_forward.104} parent=0 // pred_check
    _
  $region19: #{net_forward.104} parent=0 // pred_check_branch
    %346 = sbr.rel (0) target = $region21
  $region20: #{net_forward.104} parent=0 // pred_region
    _
  $region21: #{net_forward.104} parent=0 // pred_fallthru
    _
  // Predicated region
  $region22: #{net_forward.104} parent=0 // pred_check
    _
  $region23: #{net_forward.104} parent=0 // pred_check_branch
    %348 = sbr.rel (0) target = $region25
  $region24: #{net_forward.104} parent=0 // pred_region
    _
  $region25: #{net_forward.104} parent=0 // pred_fallthru
    _

// kernel: net_forward.135
$region0: #{net_forward.135}
  #allocation0 [shape = 'u32[]', space=smem, size = 0x4, offset = 0x4, fixed_abs, tag = 'smem constant byte address 0x4 - core index']
  #allocation1 [shape = 'u32[144,128]{1,0:T(1,128)}', space=vmem, size = 0x12000, scoped, tag = 'internal scratch']
  %s0 = inlined_call_operand.vmem [shape: bf16[32,1152], index: 0, kind: input, shape index: {}]
  %s1 = inlined_call_operand.vmem [shape: bf16[1152,64], index: 1, kind: input, shape index: {}]
  %s2 = inlined_call_operand.vmem [shape: f32[1,64], index: 2, kind: input, shape index: {}]
  %s3 = inlined_call_operand.vmem [shape: f32[1,64], index: 3, kind: input, shape index: {}]
  %s4 = inlined_call_operand.vmem [shape: f32[32,64], index: 4, kind: output, shape index: {}]
  %s5 = sld [smem:[#allocation0]]
  $region26: #{net_forward.135} parent=0
    _
  %s7 = ssub.s32 1, %s5
  %s8 = scalar_select 0, %s7, %s5
  // Predicated region
  $region2: #{net_forward.135} parent=0 // pred_check
    _
  $region3: #{net_forward.135} parent=0 // pred_check_branch
    %10 = sbr.rel (0) target = $region5
  $region4: #{net_forward.135} parent=0 // pred_region
    _
  $region5: #{net_forward.135} parent=0 // pred_fallthru
    _
  // Predicated region
  $region6: #{net_forward.135} parent=0 // pred_check
    _
  $region7: #{net_forward.135} parent=0 // pred_check_branch
    %12 = sbr.rel (0) target = $region9
  $region8: #{net_forward.135} parent=0 // pred_region
    _
  $region9: #{net_forward.135} parent=0 // pred_fallthru
    _
  // Predicated region
  $region10: #{net_forward.135} parent=0 // pred_check
    _
  $region11: #{net_forward.135} parent=0 // pred_check_branch
    %14 = sbr.rel (0) target = $region13
  $region12: #{net_forward.135} parent=0 // pred_region
    _
  $region13: #{net_forward.135} parent=0 // pred_fallthru
    _
  // Predicated region
  $region14: #{net_forward.135} parent=0 // pred_check
    _
  $region15: #{net_forward.135} parent=0 // pred_check_branch
    %16 = sbr.rel (0) target = $region17
  $region16: #{net_forward.135} parent=0 // pred_region
    _
  $region17: #{net_forward.135} parent=0 // pred_fallthru
    _
  %v18 = vld [vmem:[%s0] sm:$0xff]
  %v19 = vld [vmem:[%s0 + $0x8] sm:$0xff]
  %v20 = vld [vmem:[%s0 + $0x10] sm:$0xff]
  %v21 = vld [vmem:[%s0 + $0x18] sm:$0xff]
  %v22 = vld [vmem:[%s0 + $0x20] sm:$0xf]
  %v23 = vld [vmem:[%s0 + $0x24] sm:$0xff]
  %v24 = vld [vmem:[%s0 + $0x2c] sm:$0xff]
  %v25 = vld [vmem:[%s0 + $0x34] sm:$0xff]
  %v26 = vld [vmem:[%s0 + $0x3c] sm:$0xff]
  %v27 = vld [vmem:[%s0 + $0x44] sm:$0xf]
  %v28 = vld [vmem:[%s0 + $0x48] sm:$0xff]
  %v29 = vld [vmem:[%s0 + $0x50] sm:$0xff]
  %v30 = vld [vmem:[%s0 + $0x58] sm:$0xff]
  %v31 = vld [vmem:[%s0 + $0x60] sm:$0xff]
  %v32 = vld [vmem:[%s0 + $0x68] sm:$0xf]
  %v33 = vld [vmem:[%s0 + $0x6c] sm:$0xff]
  %v34 = vld [vmem:[%s0 + $0x74] sm:$0xff]
  %v35 = vld [vmem:[%s0 + $0x7c] sm:$0xff]
  %v36 = vld [vmem:[%s0 + $0x84] sm:$0xff]
  %v37 = vld [vmem:[%s0 + $0x8c] sm:$0xf]
  %v38 = vld [vmem:[%s1] sm:$0xf]
  %v39 = vld [vmem:[%s1 + $0x4] sm:$0xf]
  %v40 = vld [vmem:[%s1 + $0x8] sm:$0xf]
  %v41 = vld [vmem:[%s1 + $0xc] sm:$0xf]
  %v42 = vld [vmem:[%s1 + $0x10] sm:$0xf]
  %v43 = vld [vmem:[%s1 + $0x14] sm:$0xf]
  %v44 = vld [vmem:[%s1 + $0x18] sm:$0xf]
  %v45 = vld [vmem:[%s1 + $0x1c] sm:$0xf]
  %v46 = vld [vmem:[%s1 + $0x20] sm:$0xf]
  %v47 = vld [vmem:[%s1 + $0x24] sm:$0xf]
  %v48 = vld [vmem:[%s1 + $0x28] sm:$0xf]
  %v49 = vld [vmem:[%s1 + $0x2c] sm:$0xf]
  %v50 = vld [vmem:[%s1 + $0x30] sm:$0xf]
  %v51 = vld [vmem:[%s1 + $0x34] sm:$0xf]
  %v52 = vld [vmem:[%s1 + $0x38] sm:$0xf]
  %v53 = vld [vmem:[%s1 + $0x3c] sm:$0xf]
  %v54 = vld [vmem:[%s1 + $0x40] sm:$0xf]
  %v55 = vld [vmem:[%s1 + $0x44] sm:$0xf]
  %v56 = vld [vmem:[%s1 + $0x48] sm:$0xf]
  %v57 = vld [vmem:[%s1 + $0x4c] sm:$0xf]
  %v58 = vld [vmem:[%s1 + $0x50] sm:$0xf]
  %v59 = vld [vmem:[%s1 + $0x54] sm:$0xf]
  %v60 = vld [vmem:[%s1 + $0x58] sm:$0xf]
  %v61 = vld [vmem:[%s1 + $0x5c] sm:$0xf]
  %v62 = vld [vmem:[%s1 + $0x60] sm:$0xf]
  %v63 = vld [vmem:[%s1 + $0x64] sm:$0xf]
  %v64 = vld [vmem:[%s1 + $0x68] sm:$0xf]
  %v65 = vld [vmem:[%s1 + $0x6c] sm:$0xf]
  %v66 = vld [vmem:[%s1 + $0x70] sm:$0xf]
  %v67 = vld [vmem:[%s1 + $0x74] sm:$0xf]
  %v68 = vld [vmem:[%s1 + $0x78] sm:$0xf]
  %v69 = vld [vmem:[%s1 + $0x7c] sm:$0xf]
  %v70 = vld [vmem:[%s1 + $0x80] sm:$0xf]
  %v71 = vld [vmem:[%s1 + $0x84] sm:$0xf]
  %v72 = vld [vmem:[%s1 + $0x88] sm:$0xf]
  %v73 = vld [vmem:[%s1 + $0x8c] sm:$0xf]
  %v74 = vld [vmem:[%s1 + $0x90] sm:$0xf]
  %v75 = vld [vmem:[%s1 + $0x94] sm:$0xf]
  %v76 = vld [vmem:[%s1 + $0x98] sm:$0xf]
  %v77 = vld [vmem:[%s1 + $0x9c] sm:$0xf]
  %v78 = vld [vmem:[%s1 + $0xa0] sm:$0xf]
  %v79 = vld [vmem:[%s1 + $0xa4] sm:$0xf]
  %v80 = vld [vmem:[%s1 + $0xa8] sm:$0xf]
  %v81 = vld [vmem:[%s1 + $0xac] sm:$0xf]
  %v82 = vld [vmem:[%s1 + $0xb0] sm:$0xf]
  %v83 = vld [vmem:[%s1 + $0xb4] sm:$0xf]
  %v84 = vld [vmem:[%s1 + $0xb8] sm:$0xf]
  %v85 = vld [vmem:[%s1 + $0xbc] sm:$0xf]
  %v86 = vld [vmem:[%s1 + $0xc0] sm:$0xf]
  %v87 = vld [vmem:[%s1 + $0xc4] sm:$0xf]
  %v88 = vld [vmem:[%s1 + $0xc8] sm:$0xf]
  %v89 = vld [vmem:[%s1 + $0xcc] sm:$0xf]
  %v90 = vld [vmem:[%s1 + $0xd0] sm:$0xf]
  %v91 = vld [vmem:[%s1 + $0xd4] sm:$0xf]
  %v92 = vld [vmem:[%s1 + $0xd8] sm:$0xf]
  %v93 = vld [vmem:[%s1 + $0xdc] sm:$0xf]
  %v94 = vld [vmem:[%s1 + $0xe0] sm:$0xf]
  %v95 = vld [vmem:[%s1 + $0xe4] sm:$0xf]
  %v96 = vld [vmem:[%s1 + $0xe8] sm:$0xf]
  %v97 = vld [vmem:[%s1 + $0xec] sm:$0xf]
  %v98 = vld [vmem:[%s1 + $0xf0] sm:$0xf]
  %v99 = vld [vmem:[%s1 + $0xf4] sm:$0xf]
  %v100 = vld [vmem:[%s1 + $0xf8] sm:$0xf]
  %v101 = vld [vmem:[%s1 + $0xfc] sm:$0xf]
  %v102 = vld [vmem:[%s1 + $0x100] sm:$0xf]
  %v103 = vld [vmem:[%s1 + $0x104] sm:$0xf]
  %v104 = vld [vmem:[%s1 + $0x108] sm:$0xf]
  %v105 = vld [vmem:[%s1 + $0x10c] sm:$0xf]
  %v106 = vld [vmem:[%s1 + $0x110] sm:$0xf]
  %v107 = vld [vmem:[%s1 + $0x114] sm:$0xf]
  %v108 = vld [vmem:[%s1 + $0x118] sm:$0xf]
  %v109 = vld [vmem:[%s1 + $0x11c] sm:$0xf]
  %v110 = vld [vmem:[%s1 + $0x120] sm:$0xf]
  %v111 = vld [vmem:[%s1 + $0x124] sm:$0xf]
  %v112 = vld [vmem:[%s1 + $0x128] sm:$0xf]
  %v113 = vld [vmem:[%s1 + $0x12c] sm:$0xf]
  %v114 = vld [vmem:[%s1 + $0x130] sm:$0xf]
  %v115 = vld [vmem:[%s1 + $0x134] sm:$0xf]
  %v116 = vld [vmem:[%s1 + $0x138] sm:$0xf]
  %v117 = vld [vmem:[%s1 + $0x13c] sm:$0xf]
  %v118 = vld [vmem:[%s1 + $0x140] sm:$0xf]
  %v119 = vld [vmem:[%s1 + $0x144] sm:$0xf]
  %v120 = vld [vmem:[%s1 + $0x148] sm:$0xf]
  %v121 = vld [vmem:[%s1 + $0x14c] sm:$0xf]
  %v122 = vld [vmem:[%s1 + $0x150] sm:$0xf]
  %v123 = vld [vmem:[%s1 + $0x154] sm:$0xf]
  %v124 = vld [vmem:[%s1 + $0x158] sm:$0xf]
  %v125 = vld [vmem:[%s1 + $0x15c] sm:$0xf]
  %v126 = vld [vmem:[%s1 + $0x160] sm:$0xf]
  %v127 = vld [vmem:[%s1 + $0x164] sm:$0xf]
  %v128 = vld [vmem:[%s1 + $0x168] sm:$0xf]
  %v129 = vld [vmem:[%s1 + $0x16c] sm:$0xf]
  %v130 = vld [vmem:[%s1 + $0x170] sm:$0xf]
  %v131 = vld [vmem:[%s1 + $0x174] sm:$0xf]
  %v132 = vld [vmem:[%s1 + $0x178] sm:$0xf]
  %v133 = vld [vmem:[%s1 + $0x17c] sm:$0xf]
  %v134 = vld [vmem:[%s1 + $0x180] sm:$0xf]
  %v135 = vld [vmem:[%s1 + $0x184] sm:$0xf]
  %v136 = vld [vmem:[%s1 + $0x188] sm:$0xf]
  %v137 = vld [vmem:[%s1 + $0x18c] sm:$0xf]
  %v138 = vld [vmem:[%s1 + $0x190] sm:$0xf]
  %v139 = vld [vmem:[%s1 + $0x194] sm:$0xf]
  %v140 = vld [vmem:[%s1 + $0x198] sm:$0xf]
  %v141 = vld [vmem:[%s1 + $0x19c] sm:$0xf]
  %v142 = vld [vmem:[%s1 + $0x1a0] sm:$0xf]
  %v143 = vld [vmem:[%s1 + $0x1a4] sm:$0xf]
  %v144 = vld [vmem:[%s1 + $0x1a8] sm:$0xf]
  %v145 = vld [vmem:[%s1 + $0x1ac] sm:$0xf]
  %v146 = vld [vmem:[%s1 + $0x1b0] sm:$0xf]
  %v147 = vld [vmem:[%s1 + $0x1b4] sm:$0xf]
  %v148 = vld [vmem:[%s1 + $0x1b8] sm:$0xf]
  %v149 = vld [vmem:[%s1 + $0x1bc] sm:$0xf]
  %v150 = vld [vmem:[%s1 + $0x1c0] sm:$0xf]
  %v151 = vld [vmem:[%s1 + $0x1c4] sm:$0xf]
  %v152 = vld [vmem:[%s1 + $0x1c8] sm:$0xf]
  %v153 = vld [vmem:[%s1 + $0x1cc] sm:$0xf]
  %v154 = vld [vmem:[%s1 + $0x1d0] sm:$0xf]
  %v155 = vld [vmem:[%s1 + $0x1d4] sm:$0xf]
  %v156 = vld [vmem:[%s1 + $0x1d8] sm:$0xf]
  %v157 = vld [vmem:[%s1 + $0x1dc] sm:$0xf]
  %v158 = vld [vmem:[%s1 + $0x1e0] sm:$0xf]
  %v159 = vld [vmem:[%s1 + $0x1e4] sm:$0xf]
  %v160 = vld [vmem:[%s1 + $0x1e8] sm:$0xf]
  %v161 = vld [vmem:[%s1 + $0x1ec] sm:$0xf]
  %v162 = vld [vmem:[%s1 + $0x1f0] sm:$0xf]
  %v163 = vld [vmem:[%s1 + $0x1f4] sm:$0xf]
  %v164 = vld [vmem:[%s1 + $0x1f8] sm:$0xf]
  %v165 = vld [vmem:[%s1 + $0x1fc] sm:$0xf]
  %v166 = vld [vmem:[%s1 + $0x200] sm:$0xf]
  %v167 = vld [vmem:[%s1 + $0x204] sm:$0xf]
  %v168 = vld [vmem:[%s1 + $0x208] sm:$0xf]
  %v169 = vld [vmem:[%s1 + $0x20c] sm:$0xf]
  %v170 = vld [vmem:[%s1 + $0x210] sm:$0xf]
  %v171 = vld [vmem:[%s1 + $0x214] sm:$0xf]
  %v172 = vld [vmem:[%s1 + $0x218] sm:$0xf]
  %v173 = vld [vmem:[%s1 + $0x21c] sm:$0xf]
  %v174 = vld [vmem:[%s1 + $0x220] sm:$0xf]
  %v175 = vld [vmem:[%s1 + $0x224] sm:$0xf]
  %v176 = vld [vmem:[%s1 + $0x228] sm:$0xf]
  %v177 = vld [vmem:[%s1 + $0x22c] sm:$0xf]
  %v178 = vld [vmem:[%s1 + $0x230] sm:$0xf]
  %v179 = vld [vmem:[%s1 + $0x234] sm:$0xf]
  %v180 = vld [vmem:[%s1 + $0x238] sm:$0xf]
  %v181 = vld [vmem:[%s1 + $0x23c] sm:$0xf]
  %v202 = vunpack.c.l.b16 %v18
  %v203 = vunpack.c.h.b16 %v18
  %v204 = vunpack.c.l.b16 %v19
  %v205 = vunpack.c.h.b16 %v19
  %v206 = vunpack.c.l.b16 %v20
  %v207 = vunpack.c.h.b16 %v20
  %v208 = vunpack.c.l.b16 %v21
  %v209 = vunpack.c.h.b16 %v21
  %v210 = vunpack.c.l.b16 %v22
  %v211 = vunpack.c.l.b16 %v23
  %v212 = vunpack.c.h.b16 %v23
  %v213 = vunpack.c.l.b16 %v24
  %v214 = vunpack.c.h.b16 %v24
  %v215 = vunpack.c.l.b16 %v25
  %v216 = vunpack.c.h.b16 %v25
  %v217 = vunpack.c.l.b16 %v26
  %v218 = vunpack.c.h.b16 %v26
  %v219 = vunpack.c.l.b16 %v27
  %v220 = vunpack.c.l.b16 %v28
  %v221 = vunpack.c.h.b16 %v28
  %v222 = vunpack.c.l.b16 %v29
  %v223 = vunpack.c.h.b16 %v29
  %v224 = vunpack.c.l.b16 %v30
  %v225 = vunpack.c.h.b16 %v30
  %v226 = vunpack.c.l.b16 %v31
  %v227 = vunpack.c.h.b16 %v31
  %v228 = vunpack.c.l.b16 %v32
  %v229 = vunpack.c.l.b16 %v33
  %v230 = vunpack.c.h.b16 %v33
  %v231 = vunpack.c.l.b16 %v34
  %v232 = vunpack.c.h.b16 %v34
  %v233 = vunpack.c.l.b16 %v35
  %v234 = vunpack.c.h.b16 %v35
  %v235 = vunpack.c.l.b16 %v36
  %v236 = vunpack.c.h.b16 %v36
  %v237 = vunpack.c.l.b16 %v37
  %v238 = vpack.c.b16 %v211, %v202
  %v239 = vpack.c.b16 %v212, %v203
  %v240 = vpack.c.b16 %v213, %v204
  %v241 = vpack.c.b16 %v214, %v205
  %v242 = vpack.c.b16 %v215, %v206
  %v243 = vpack.c.b16 %v216, %v207
  %v244 = vpack.c.b16 %v217, %v208
  %v245 = vpack.c.b16 %v218, %v209
  %v246 = vpack.c.b16 %v219, %v210
  %v247 = vpack.c.b16 %v229, %v220
  %v248 = vpack.c.b16 %v230, %v221
  %v249 = vpack.c.b16 %v231, %v222
  %v250 = vpack.c.b16 %v232, %v223
  %v251 = vpack.c.b16 %v233, %v224
  %v252 = vpack.c.b16 %v234, %v225
  %v253 = vpack.c.b16 %v235, %v226
  %v254 = vpack.c.b16 %v236, %v227
  %v255 = vpack.c.b16 %v237, %v228
  %v418 = vunpack.c.l.b16 %v38
  %v419 = vunpack.c.l.b16 %v39
  %v420 = vunpack.c.l.b16 %v40
  %v421 = vunpack.c.l.b16 %v41
  %v422 = vunpack.c.l.b16 %v42
  %v423 = vunpack.c.l.b16 %v43
  %v424 = vunpack.c.l.b16 %v44
  %v425 = vunpack.c.l.b16 %v45
  %v426 = vunpack.c.l.b16 %v46
  %v427 = vunpack.c.l.b16 %v47
  %v428 = vunpack.c.l.b16 %v48
  %v429 = vunpack.c.l.b16 %v49
  %v430 = vunpack.c.l.b16 %v50
  %v431 = vunpack.c.l.b16 %v51
  %v432 = vunpack.c.l.b16 %v52
  %v433 = vunpack.c.l.b16 %v53
  %v434 = vunpack.c.l.b16 %v54
  %v435 = vunpack.c.l.b16 %v55
  %v436 = vunpack.c.l.b16 %v56
  %v437 = vunpack.c.l.b16 %v57
  %v438 = vunpack.c.l.b16 %v58
  %v439 = vunpack.c.l.b16 %v59
  %v440 = vunpack.c.l.b16 %v60
  %v441 = vunpack.c.l.b16 %v61
  %v442 = vunpack.c.l.b16 %v62
  %v443 = vunpack.c.l.b16 %v63
  %v444 = vunpack.c.l.b16 %v64
  %v445 = vunpack.c.l.b16 %v65
  %v446 = vunpack.c.l.b16 %v66
  %v447 = vunpack.c.l.b16 %v67
  %v448 = vunpack.c.l.b16 %v68
  %v449 = vunpack.c.l.b16 %v69
  %v450 = vunpack.c.l.b16 %v70
  %v451 = vunpack.c.l.b16 %v71
  %v452 = vunpack.c.l.b16 %v72
  %v453 = vunpack.c.l.b16 %v73
  %v454 = vunpack.c.l.b16 %v74
  %v455 = vunpack.c.l.b16 %v75
  %v456 = vunpack.c.l.b16 %v76
  %v457 = vunpack.c.l.b16 %v77
  %v458 = vunpack.c.l.b16 %v78
  %v459 = vunpack.c.l.b16 %v79
  %v460 = vunpack.c.l.b16 %v80
  %v461 = vunpack.c.l.b16 %v81
  %v462 = vunpack.c.l.b16 %v82
  %v463 = vunpack.c.l.b16 %v83
  %v464 = vunpack.c.l.b16 %v84
  %v465 = vunpack.c.l.b16 %v85
  %v466 = vunpack.c.l.b16 %v86
  %v467 = vunpack.c.l.b16 %v87
  %v468 = vunpack.c.l.b16 %v88
  %v469 = vunpack.c.l.b16 %v89
  %v470 = vunpack.c.l.b16 %v90
  %v471 = vunpack.c.l.b16 %v91
  %v472 = vunpack.c.l.b16 %v92
  %v473 = vunpack.c.l.b16 %v93
  %v474 = vunpack.c.l.b16 %v94
  %v475 = vunpack.c.l.b16 %v95
  %v476 = vunpack.c.l.b16 %v96
  %v477 = vunpack.c.l.b16 %v97
  %v478 = vunpack.c.l.b16 %v98
  %v479 = vunpack.c.l.b16 %v99
  %v480 = vunpack.c.l.b16 %v100
  %v481 = vunpack.c.l.b16 %v101
  %v482 = vunpack.c.l.b16 %v102
  %v483 = vunpack.c.l.b16 %v103
  %v484 = vunpack.c.l.b16 %v104
  %v485 = vunpack.c.l.b16 %v105
  %v486 = vunpack.c.l.b16 %v106
  %v487 = vunpack.c.l.b16 %v107
  %v488 = vunpack.c.l.b16 %v108
  %v489 = vunpack.c.l.b16 %v109
  %v490 = vunpack.c.l.b16 %v110
  %v491 = vunpack.c.l.b16 %v111
  %v492 = vunpack.c.l.b16 %v112
  %v493 = vunpack.c.l.b16 %v113
  %v494 = vunpack.c.l.b16 %v114
  %v495 = vunpack.c.l.b16 %v115
  %v496 = vunpack.c.l.b16 %v116
  %v497 = vunpack.c.l.b16 %v117
  %v498 = vunpack.c.l.b16 %v118
  %v499 = vunpack.c.l.b16 %v119
  %v500 = vunpack.c.l.b16 %v120
  %v501 = vunpack.c.l.b16 %v121
  %v502 = vunpack.c.l.b16 %v122
  %v503 = vunpack.c.l.b16 %v123
  %v504 = vunpack.c.l.b16 %v124
  %v505 = vunpack.c.l.b16 %v125
  %v506 = vunpack.c.l.b16 %v126
  %v507 = vunpack.c.l.b16 %v127
  %v508 = vunpack.c.l.b16 %v128
  %v509 = vunpack.c.l.b16 %v129
  %v510 = vunpack.c.l.b16 %v130
  %v511 = vunpack.c.l.b16 %v131
  %v512 = vunpack.c.l.b16 %v132
  %v513 = vunpack.c.l.b16 %v133
  %v514 = vunpack.c.l.b16 %v134
  %v515 = vunpack.c.l.b16 %v135
  %v516 = vunpack.c.l.b16 %v136
  %v517 = vunpack.c.l.b16 %v137
  %v518 = vunpack.c.l.b16 %v138
  %v519 = vunpack.c.l.b16 %v139
  %v520 = vunpack.c.l.b16 %v140
  %v521 = vunpack.c.l.b16 %v141
  %v522 = vunpack.c.l.b16 %v142
  %v523 = vunpack.c.l.b16 %v143
  %v524 = vunpack.c.l.b16 %v144
  %v525 = vunpack.c.l.b16 %v145
  %v526 = vunpack.c.l.b16 %v146
  %v527 = vunpack.c.l.b16 %v147
  %v528 = vunpack.c.l.b16 %v148
  %v529 = vunpack.c.l.b16 %v149
  %v530 = vunpack.c.l.b16 %v150
  %v531 = vunpack.c.l.b16 %v151
  %v532 = vunpack.c.l.b16 %v152
  %v533 = vunpack.c.l.b16 %v153
  %v534 = vunpack.c.l.b16 %v154
  %v535 = vunpack.c.l.b16 %v155
  %v536 = vunpack.c.l.b16 %v156
  %v537 = vunpack.c.l.b16 %v157
  %v538 = vunpack.c.l.b16 %v158
  %v539 = vunpack.c.l.b16 %v159
  %v540 = vunpack.c.l.b16 %v160
  %v541 = vunpack.c.l.b16 %v161
  %v542 = vunpack.c.l.b16 %v162
  %v543 = vunpack.c.l.b16 %v163
  %v544 = vunpack.c.l.b16 %v164
  %v545 = vunpack.c.l.b16 %v165
  %v546 = vunpack.c.l.b16 %v166
  %v547 = vunpack.c.l.b16 %v167
  %v548 = vunpack.c.l.b16 %v168
  %v549 = vunpack.c.l.b16 %v169
  %v550 = vunpack.c.l.b16 %v170
  %v551 = vunpack.c.l.b16 %v171
  %v552 = vunpack.c.l.b16 %v172
  %v553 = vunpack.c.l.b16 %v173
  %v554 = vunpack.c.l.b16 %v174
  %v555 = vunpack.c.l.b16 %v175
  %v556 = vunpack.c.l.b16 %v176
  %v557 = vunpack.c.l.b16 %v177
  %v558 = vunpack.c.l.b16 %v178
  %v559 = vunpack.c.l.b16 %v179
  %v560 = vunpack.c.l.b16 %v180
  %v561 = vunpack.c.l.b16 %v181
  %v562 = vpack.c.b16 %v419, %v418
  %v563 = vpack.c.b16 %v421, %v420
  %v564 = vpack.c.b16 %v423, %v422
  %v565 = vpack.c.b16 %v425, %v424
  %v566 = vpack.c.b16 %v427, %v426
  %v567 = vpack.c.b16 %v429, %v428
  %v568 = vpack.c.b16 %v431, %v430
  %v569 = vpack.c.b16 %v433, %v432
  %v570 = vpack.c.b16 %v435, %v434
  %v571 = vpack.c.b16 %v437, %v436
  %v572 = vpack.c.b16 %v439, %v438
  %v573 = vpack.c.b16 %v441, %v440
  %v574 = vpack.c.b16 %v443, %v442
  %v575 = vpack.c.b16 %v445, %v444
  %v576 = vpack.c.b16 %v447, %v446
  %v577 = vpack.c.b16 %v449, %v448
  %v578 = vpack.c.b16 %v451, %v450
  %v579 = vpack.c.b16 %v453, %v452
  %v580 = vpack.c.b16 %v455, %v454
  %v581 = vpack.c.b16 %v457, %v456
  %v582 = vpack.c.b16 %v459, %v458
  %v583 = vpack.c.b16 %v461, %v460
  %v584 = vpack.c.b16 %v463, %v462
  %v585 = vpack.c.b16 %v465, %v464
  %v586 = vpack.c.b16 %v467, %v466
  %v587 = vpack.c.b16 %v469, %v468
  %v588 = vpack.c.b16 %v471, %v470
  %v589 = vpack.c.b16 %v473, %v472
  %v590 = vpack.c.b16 %v475, %v474
  %v591 = vpack.c.b16 %v477, %v476
  %v592 = vpack.c.b16 %v479, %v478
  %v593 = vpack.c.b16 %v481, %v480
  %v594 = vpack.c.b16 %v483, %v482
  %v595 = vpack.c.b16 %v485, %v484
  %v596 = vpack.c.b16 %v487, %v486
  %v597 = vpack.c.b16 %v489, %v488
  %v598 = vpack.c.b16 %v491, %v490
  %v599 = vpack.c.b16 %v493, %v492
  %v600 = vpack.c.b16 %v495, %v494
  %v601 = vpack.c.b16 %v497, %v496
  %v602 = vpack.c.b16 %v499, %v498
  %v603 = vpack.c.b16 %v501, %v500
  %v604 = vpack.c.b16 %v503, %v502
  %v605 = vpack.c.b16 %v505, %v504
  %v606 = vpack.c.b16 %v507, %v506
  %v607 = vpack.c.b16 %v509, %v508
  %v608 = vpack.c.b16 %v511, %v510
  %v609 = vpack.c.b16 %v513, %v512
  %v610 = vpack.c.b16 %v515, %v514
  %v611 = vpack.c.b16 %v517, %v516
  %v612 = vpack.c.b16 %v519, %v518
  %v613 = vpack.c.b16 %v521, %v520
  %v614 = vpack.c.b16 %v523, %v522
  %v615 = vpack.c.b16 %v525, %v524
  %v616 = vpack.c.b16 %v527, %v526
  %v617 = vpack.c.b16 %v529, %v528
  %v618 = vpack.c.b16 %v531, %v530
  %v619 = vpack.c.b16 %v533, %v532
  %v620 = vpack.c.b16 %v535, %v534
  %v621 = vpack.c.b16 %v537, %v536
  %v622 = vpack.c.b16 %v539, %v538
  %v623 = vpack.c.b16 %v541, %v540
  %v624 = vpack.c.b16 %v543, %v542
  %v625 = vpack.c.b16 %v545, %v544
  %v626 = vpack.c.b16 %v547, %v546
  %v627 = vpack.c.b16 %v549, %v548
  %v628 = vpack.c.b16 %v551, %v550
  %v629 = vpack.c.b16 %v553, %v552
  %v630 = vpack.c.b16 %v555, %v554
  %v631 = vpack.c.b16 %v557, %v556
  %v632 = vpack.c.b16 %v559, %v558
  %v633 = vpack.c.b16 %v561, %v560
  %706 = vmatprep.subr.bf16.mxu0 0
  %707 = vmatpush1.bf16.msra.mxu0 %v569
  %708 = vmatprep.subr.bf16.mxu0 0
  %709 = vmatpush1.bf16.msra.mxu0 %v568
  %710 = vmatprep.subr.bf16.mxu0 0
  %711 = vmatpush1.bf16.msra.mxu0 %v567
  %712 = vmatprep.subr.bf16.mxu0 0
  %713 = vmatpush1.bf16.msra.mxu0 %v566
  %714 = vmatprep.subr.bf16.mxu0 0
  %715 = vmatpush1.bf16.msra.mxu0 %v565
  %716 = vmatprep.subr.bf16.mxu0 0
  %717 = vmatpush1.bf16.msra.mxu0 %v564
  %718 = vmatprep.subr.bf16.mxu0 0
  %719 = vmatpush1.bf16.msra.mxu0 %v563
  %720 = vmatprep.subr.bf16.mxu0 0
  %721 = vmatpush1.bf16.msra.mxu0 %v562
  %722 = vmatprep.subr.bf16.mxu0 0
  %723 = vmatpush2.bf16.msra.mxu0 %v577
  %724 = vmatprep.subr.bf16.mxu0 0
  %725 = vmatpush2.bf16.msra.mxu0 %v576
  %726 = vmatprep.subr.bf16.mxu0 0
  %727 = vmatpush2.bf16.msra.mxu0 %v575
  %728 = vmatprep.subr.bf16.mxu0 0
  %729 = vmatpush2.bf16.msra.mxu0 %v574
  %730 = vmatprep.subr.bf16.mxu0 0
  %731 = vmatpush2.bf16.msra.mxu0 %v573
  %732 = vmatprep.subr.bf16.mxu0 0
  %733 = vmatpush2.bf16.msra.mxu0 %v572
  %734 = vmatprep.subr.bf16.mxu0 0
  %735 = vmatpush2.bf16.msra.mxu0 %v571
  %736 = vmatprep.subr.bf16.mxu0 0
  %737 = vmatpush2.bf16.msra.mxu0 %v570
  %738 = vmatprep.mubr.bf16.mxu0 %v239
  %739 = vmatmul.mubr.bf16.gmra.mxu0 %v238
  %v740 = vpop.f32.mrf.mxu0
  %v741 = vadd.f32 0.0, %v740
  %v742 = vpop.f32.mrf.mxu0
  %v743 = vpop.f32.mrf.mxu0
  %v744 = vadd.f32 0.0, %v743
  %v745 = vpop.f32.mrf.mxu0
  %746 = vmatprep.mubr.bf16.mxu0 %v248
  %747 = vmatmul.mubr.bf16.gmra.mxu0 %v247
  %v748 = vpop.f32.mrf.mxu0
  %v749 = vadd.f32 0.0, %v748
  %v750 = vpop.f32.mrf.mxu0
  %v751 = vpop.f32.mrf.mxu0
  %v752 = vadd.f32 0.0, %v751
  %v753 = vpop.f32.mrf.mxu0
  %754 = vdwg.mxu0
  %755 = vmatprep.subr.bf16.mxu0 0
  %756 = vmatpush1.bf16.msra.mxu0 %v585
  %757 = vmatprep.subr.bf16.mxu0 0
  %758 = vmatpush1.bf16.msra.mxu0 %v584
  %759 = vmatprep.subr.bf16.mxu0 0
  %760 = vmatpush1.bf16.msra.mxu0 %v583
  %761 = vmatprep.subr.bf16.mxu0 0
  %762 = vmatpush1.bf16.msra.mxu0 %v582
  %763 = vmatprep.subr.bf16.mxu0 0
  %764 = vmatpush1.bf16.msra.mxu0 %v581
  %765 = vmatprep.subr.bf16.mxu0 0
  %766 = vmatpush1.bf16.msra.mxu0 %v580
  %767 = vmatprep.subr.bf16.mxu0 0
  %768 = vmatpush1.bf16.msra.mxu0 %v579
  %769 = vmatprep.subr.bf16.mxu0 0
  %770 = vmatpush1.bf16.msra.mxu0 %v578
  %771 = vmatprep.subr.bf16.mxu0 0
  %772 = vmatpush2.bf16.msra.mxu0 %v593
  %773 = vmatprep.subr.bf16.mxu0 0
  %774 = vmatpush2.bf16.msra.mxu0 %v592
  %775 = vmatprep.subr.bf16.mxu0 0
  %776 = vmatpush2.bf16.msra.mxu0 %v591
  %777 = vmatprep.subr.bf16.mxu0 0
  %778 = vmatpush2.bf16.msra.mxu0 %v590
  %779 = vmatprep.subr.bf16.mxu0 0
  %780 = vmatpush2.bf16.msra.mxu0 %v589
  %781 = vmatprep.subr.bf16.mxu0 0
  %782 = vmatpush2.bf16.msra.mxu0 %v588
  %783 = vmatprep.subr.bf16.mxu0 0
  %784 = vmatpush2.bf16.msra.mxu0 %v587
  %785 = vmatprep.subr.bf16.mxu0 0
  %786 = vmatpush2.bf16.msra.mxu0 %v586
  %787 = vmatprep.mubr.bf16.mxu0 %v241
  %788 = vmatmul.mubr.bf16.gmra.mxu0 %v240
  %v789 = vpop.f32.mrf.mxu0
  %v790 = vadd.f32 %v741, %v789
  %v791 = vpop.f32.mrf.mxu0
  %v792 = vpop.f32.mrf.mxu0
  %v793 = vadd.f32 %v744, %v792
  %v794 = vpop.f32.mrf.mxu0
  %795 = vmatprep.mubr.bf16.mxu0 %v250
  %796 = vmatmul.mubr.bf16.gmra.mxu0 %v249
  %v797 = vpop.f32.mrf.mxu0
  %v798 = vadd.f32 %v749, %v797
  %v799 = vpop.f32.mrf.mxu0
  %v800 = vpop.f32.mrf.mxu0
  %v801 = vadd.f32 %v752, %v800
  %v802 = vpop.f32.mrf.mxu0
  %803 = vdwg.mxu0
  %804 = vmatprep.subr.bf16.mxu0 0
  %805 = vmatpush1.bf16.msra.mxu0 %v601
  %806 = vmatprep.subr.bf16.mxu0 0
  %807 = vmatpush1.bf16.msra.mxu0 %v600
  %808 = vmatprep.subr.bf16.mxu0 0
  %809 = vmatpush1.bf16.msra.mxu0 %v599
  %810 = vmatprep.subr.bf16.mxu0 0
  %811 = vmatpush1.bf16.msra.mxu0 %v598
  %812 = vmatprep.subr.bf16.mxu0 0
  %813 = vmatpush1.bf16.msra.mxu0 %v597
  %814 = vmatprep.subr.bf16.mxu0 0
  %815 = vmatpush1.bf16.msra.mxu0 %v596
  %816 = vmatprep.subr.bf16.mxu0 0
  %817 = vmatpush1.bf16.msra.mxu0 %v595
  %818 = vmatprep.subr.bf16.mxu0 0
  %819 = vmatpush1.bf16.msra.mxu0 %v594
  %820 = vmatprep.subr.bf16.mxu0 0
  %821 = vmatpush2.bf16.msra.mxu0 %v609
  %822 = vmatprep.subr.bf16.mxu0 0
  %823 = vmatpush2.bf16.msra.mxu0 %v608
  %824 = vmatprep.subr.bf16.mxu0 0
  %825 = vmatpush2.bf16.msra.mxu0 %v607
  %826 = vmatprep.subr.bf16.mxu0 0
  %827 = vmatpush2.bf16.msra.mxu0 %v606
  %828 = vmatprep.subr.bf16.mxu0 0
  %829 = vmatpush2.bf16.msra.mxu0 %v605
  %830 = vmatprep.subr.bf16.mxu0 0
  %831 = vmatpush2.bf16.msra.mxu0 %v604
  %832 = vmatprep.subr.bf16.mxu0 0
  %833 = vmatpush2.bf16.msra.mxu0 %v603
  %834 = vmatprep.subr.bf16.mxu0 0
  %835 = vmatpush2.bf16.msra.mxu0 %v602
  %836 = vmatprep.mubr.bf16.mxu0 %v243
  %837 = vmatmul.mubr.bf16.gmra.mxu0 %v242
  %v838 = vpop.f32.mrf.mxu0
  %v839 = vadd.f32 %v790, %v838
  %v840 = vpop.f32.mrf.mxu0
  %v841 = vpop.f32.mrf.mxu0
  %v842 = vadd.f32 %v793, %v841
  %v843 = vpop.f32.mrf.mxu0
  %844 = vmatprep.mubr.bf16.mxu0 %v252
  %845 = vmatmul.mubr.bf16.gmra.mxu0 %v251
  %v846 = vpop.f32.mrf.mxu0
  %v847 = vadd.f32 %v798, %v846
  %v848 = vpop.f32.mrf.mxu0
  %v849 = vpop.f32.mrf.mxu0
  %v850 = vadd.f32 %v801, %v849
  %v851 = vpop.f32.mrf.mxu0
  %852 = vdwg.mxu0
  %853 = vmatprep.subr.bf16.mxu0 0
  %854 = vmatpush1.bf16.msra.mxu0 %v617
  %855 = vmatprep.subr.bf16.mxu0 0
  %856 = vmatpush1.bf16.msra.mxu0 %v616
  %857 = vmatprep.subr.bf16.mxu0 0
  %858 = vmatpush1.bf16.msra.mxu0 %v615
  %859 = vmatprep.subr.bf16.mxu0 0
  %860 = vmatpush1.bf16.msra.mxu0 %v614
  %861 = vmatprep.subr.bf16.mxu0 0
  %862 = vmatpush1.bf16.msra.mxu0 %v613
  %863 = vmatprep.subr.bf16.mxu0 0
  %864 = vmatpush1.bf16.msra.mxu0 %v612
  %865 = vmatprep.subr.bf16.mxu0 0
  %866 = vmatpush1.bf16.msra.mxu0 %v611
  %867 = vmatprep.subr.bf16.mxu0 0
  %868 = vmatpush1.bf16.msra.mxu0 %v610
  %869 = vmatprep.subr.bf16.mxu0 0
  %870 = vmatpush2.bf16.msra.mxu0 %v625
  %871 = vmatprep.subr.bf16.mxu0 0
  %872 = vmatpush2.bf16.msra.mxu0 %v624
  %873 = vmatprep.subr.bf16.mxu0 0
  %874 = vmatpush2.bf16.msra.mxu0 %v623
  %875 = vmatprep.subr.bf16.mxu0 0
  %876 = vmatpush2.bf16.msra.mxu0 %v622
  %877 = vmatprep.subr.bf16.mxu0 0
  %878 = vmatpush2.bf16.msra.mxu0 %v621
  %879 = vmatprep.subr.bf16.mxu0 0
  %880 = vmatpush2.bf16.msra.mxu0 %v620
  %881 = vmatprep.subr.bf16.mxu0 0
  %882 = vmatpush2.bf16.msra.mxu0 %v619
  %883 = vmatprep.subr.bf16.mxu0 0
  %884 = vmatpush2.bf16.msra.mxu0 %v618
  %885 = vmatprep.mubr.bf16.mxu0 %v245
  %886 = vmatmul.mubr.bf16.gmra.mxu0 %v244
  %v887 = vpop.f32.mrf.mxu0
  %v888 = vadd.f32 %v839, %v887
  %v889 = vpop.f32.mrf.mxu0
  %v890 = vpop.f32.mrf.mxu0
  %v891 = vadd.f32 %v842, %v890
  %v892 = vpop.f32.mrf.mxu0
  %893 = vmatprep.mubr.bf16.mxu0 %v254
  %894 = vmatmul.mubr.bf16.gmra.mxu0 %v253
  %v895 = vpop.f32.mrf.mxu0
  %v896 = vadd.f32 %v847, %v895
  %v897 = vpop.f32.mrf.mxu0
  %v898 = vpop.f32.mrf.mxu0
  %v899 = vadd.f32 %v850, %v898
  %v900 = vpop.f32.mrf.mxu0
  %901 = vdwg.mxu0
  %902 = vmatprep.subr.bf16.mxu0 0
  %903 = vmatpush1.bf16.msra.mxu0 %v633
  %904 = vmatprep.subr.bf16.mxu0 0
  %905 = vmatpush1.bf16.msra.mxu0 %v632
  %906 = vmatprep.subr.bf16.mxu0 0
  %907 = vmatpush1.bf16.msra.mxu0 %v631
  %908 = vmatprep.subr.bf16.mxu0 0
  %909 = vmatpush1.bf16.msra.mxu0 %v630
  %910 = vmatprep.subr.bf16.mxu0 0
  %911 = vmatpush1.bf16.msra.mxu0 %v629
  %912 = vmatprep.subr.bf16.mxu0 0
  %913 = vmatpush1.bf16.msra.mxu0 %v628
  %914 = vmatprep.subr.bf16.mxu0 0
  %915 = vmatpush1.bf16.msra.mxu0 %v627
  %916 = vmatprep.subr.bf16.mxu0 0
  %917 = vmatpush1.bf16.msra.mxu0 %v626
  %918 = vmatprep.subr.bf16.mxu0 0
  %919 = vmatpush2.bf16.msra.mxu0 0
  %920 = vmatprep.subr.bf16.mxu0 0
  %921 = vmatpush2.bf16.msra.mxu0 0
  %922 = vmatprep.subr.bf16.mxu0 0
  %923 = vmatpush2.bf16.msra.mxu0 0
  %924 = vmatprep.subr.bf16.mxu0 0
  %925 = vmatpush2.bf16.msra.mxu0 0
  %926 = vmatprep.subr.bf16.mxu0 0
  %927 = vmatpush2.bf16.msra.mxu0 0
  %928 = vmatprep.subr.bf16.mxu0 0
  %929 = vmatpush2.bf16.msra.mxu0 0
  %930 = vmatprep.subr.bf16.mxu0 0
  %931 = vmatpush2.bf16.msra.mxu0 0
  %932 = vmatprep.subr.bf16.mxu0 0
  %933 = vmatpush2.bf16.msra.mxu0 0
  %934 = vmatprep.mubr.bf16.mxu0 0
  %935 = vmatmul.mubr.bf16.gmra.mxu0 %v246
  %v936 = vpop.f32.mrf.mxu0
  %v937 = vadd.f32 %v888, %v936
  %v938 = vpop.f32.mrf.mxu0
  %v939 = vpop.f32.mrf.mxu0
  %v940 = vadd.f32 %v891, %v939
  %v941 = vpop.f32.mrf.mxu0
  %942 = vmatprep.mubr.bf16.mxu0 0
  %943 = vmatmul.mubr.bf16.gmra.mxu0 %v255
  %v944 = vpop.f32.mrf.mxu0
  %v945 = vadd.f32 %v896, %v944
  %v946 = vpop.f32.mrf.mxu0
  %v947 = vpop.f32.mrf.mxu0
  %v948 = vadd.f32 %v899, %v947
  %v949 = vpop.f32.mrf.mxu0
  %950 = vdwg.mxu0
  %v951 = vld [vmem:[%s2] sm:$0x1]
  %v952 = vld [vmem:[%s3] sm:$0x1]
  %vm953 = vcmask 523264
  %v954 = vsel %vm953, %v937, 0.0
  %v955 = vsel %vm953, %v940, 0.0
  %v956 = vadd.f32 %v954, %v955
  %v957 = vsel %vm953, %v945, 0.0
  %v958 = vadd.f32 %v956, %v957
  %v959 = vsel %vm953, %v948, 0.0
  %v960 = vadd.f32 %v958, %v959
  %v961 = vrot.slane %v960, 4
  %v962 = vadd.f32 %v960, %v961
  %v963 = vrot.slane %v962, 2
  %v964 = vadd.f32 %v962, %v963
  %v965 = vrot.slane %v964, 1
  %v966 = vadd.f32 %v964, %v965
  %v967 = vrcp.pop 32.0
  %v968 = vmul.f32 %v966, %v967
  %v969 = vmul.f32 %v937, %v937
  %v970 = vmul.f32 %v940, %v940
  %v971 = vmul.f32 %v945, %v945
  %v972 = vmul.f32 %v948, %v948
  %v973 = vsel %vm953, %v969, 0.0
  %v974 = vsel %vm953, %v970, 0.0
  %v975 = vadd.f32 %v973, %v974
  %v976 = vsel %vm953, %v971, 0.0
  %v977 = vadd.f32 %v975, %v976
  %v978 = vsel %vm953, %v972, 0.0
  %v979 = vadd.f32 %v977, %v978
  %v980 = vrot.slane %v979, 4
  %v981 = vadd.f32 %v979, %v980
  %v982 = vrot.slane %v981, 2
  %v983 = vadd.f32 %v981, %v982
  %v984 = vrot.slane %v983, 1
  %v985 = vadd.f32 %v983, %v984
  %v986 = vmul.f32 %v985, %v967
  %v987 = vmul.f32 %v968, %v968
  %v988 = vsub.f32 %v986, %v987
  %v989 = vmax.f32 %v988, 0.0
  %v990 = vadd.f32 %v989, 0.001
  %v991 = vrsqrt.pop %v990
  %v992 = vmul.f32 %v951, %v991
  %v994 = vlaneseq
  %v995 = vshrl.u32 %v994, 7
  %v996 = vsub.s32 0, %v995
  %v997 = vrot.slane %v992, %v996
  %v999 = vmul.f32 %v937, %v997
  %v1000 = vmul.f32 %v940, %v997
  %v1001 = vmul.f32 %v945, %v997
  %v1002 = vmul.f32 %v948, %v997
  %v1003 = vmul.f32 %v968, %v992
  %v1004 = vsub.f32 %v952, %v1003
  %v1006 = vlaneseq
  %v1007 = vshrl.u32 %v1006, 7
  %v1008 = vsub.s32 0, %v1007
  %v1009 = vrot.slane %v1004, %v1008
  %v1011 = vadd.f32 %v999, %v1009
  %v1012 = vadd.f32 %v1000, %v1009
  %v1013 = vadd.f32 %v1001, %v1009
  %v1014 = vadd.f32 %v1002, %v1009
  %v1015 = vmax.f32 %v1011, 0.0
  %v1016 = vmax.f32 %v1012, 0.0
  %v1017 = vmax.f32 %v1013, 0.0
  %v1018 = vmax.f32 %v1014, 0.0
  %1019 = vst.msk [vmem:[%s4] sm:$0xff] %vm953, %v1015
  %1020 = vst.msk [vmem:[%s4 + $0x8] sm:$0xff] %vm953, %v1016
  %1021 = vst.msk [vmem:[%s4 + $0x10] sm:$0xff] %vm953, %v1017
  %1022 = vst.msk [vmem:[%s4 + $0x18] sm:$0xff] %vm953, %v1018
  // Predicated region
  $region18: #{net_forward.135} parent=0 // pred_check
    _
  $region19: #{net_forward.135} parent=0 // pred_check_branch
    %1024 = sbr.rel (0) target = $region21
  $region20: #{net_forward.135} parent=0 // pred_region
    _
  $region21: #{net_forward.135} parent=0 // pred_fallthru
    _
  // Predicated region
  $region22: #{net_forward.135} parent=0 // pred_check
    _
  $region23: #{net_forward.135} parent=0 // pred_check_branch
    %1026 = sbr.rel (0) target = $region25
  $region24: #{net_forward.135} parent=0 // pred_region
    _
  $region25: #{net_forward.135} parent=0 // pred_fallthru
    _

// kernel: net_forward.145
$region0: #{net_forward.145}
  #allocation0 [shape = 'u32[]', space=smem, size = 0x4, offset = 0x4, fixed_abs, tag = 'smem constant byte address 0x4 - core index']
  #allocation1 [shape = 'u32[144,128]{1,0:T(1,128)}', space=vmem, size = 0x12000, scoped, tag = 'internal scratch']
  %s0 = inlined_call_operand.vmem [shape: bf16[128,48], index: 0, kind: input, shape index: {}]
  %s1 = inlined_call_operand.vmem [shape: bf16[48,16], index: 1, kind: input, shape index: {}]
  %s2 = inlined_call_operand.vmem [shape: f32[1,16], index: 2, kind: input, shape index: {}]
  %s3 = inlined_call_operand.vmem [shape: f32[128,16], index: 3, kind: output, shape index: {}]
  %s4 = sld [smem:[#allocation0]]
  $region22: #{net_forward.145} parent=0
    _
  %s6 = ssub.s32 1, %s4
  %s7 = scalar_select 0, %s6, %s4
  // Predicated region
  $region2: #{net_forward.145} parent=0 // pred_check
    _
  $region3: #{net_forward.145} parent=0 // pred_check_branch
    %9 = sbr.rel (0) target = $region5
  $region4: #{net_forward.145} parent=0 // pred_region
    _
  $region5: #{net_forward.145} parent=0 // pred_fallthru
    _
  // Predicated region
  $region6: #{net_forward.145} parent=0 // pred_check
    _
  $region7: #{net_forward.145} parent=0 // pred_check_branch
    %11 = sbr.rel (0) target = $region9
  $region8: #{net_forward.145} parent=0 // pred_region
    _
  $region9: #{net_forward.145} parent=0 // pred_fallthru
    _
  // Predicated region
  $region10: #{net_forward.145} parent=0 // pred_check
    _
  $region11: #{net_forward.145} parent=0 // pred_check_branch
    %13 = sbr.rel (0) target = $region13
  $region12: #{net_forward.145} parent=0 // pred_region
    _
  $region13: #{net_forward.145} parent=0 // pred_fallthru
    _
  %v15 = vld [vmem:[%s0] sm:$0xf]
  %v16 = vld [vmem:[%s0 + $0x4] sm:$0xf]
  %v17 = vld [vmem:[%s0 + $0x8] sm:$0xf]
  %v18 = vld [vmem:[%s0 + $0xc] sm:$0xf]
  %v19 = vld [vmem:[%s0 + $0x10] sm:$0xf]
  %v20 = vld [vmem:[%s0 + $0x14] sm:$0xf]
  %v21 = vld [vmem:[%s0 + $0x18] sm:$0xf]
  %v22 = vld [vmem:[%s0 + $0x1c] sm:$0xf]
  %v23 = vld [vmem:[%s0 + $0x20] sm:$0xf]
  %v24 = vld [vmem:[%s0 + $0x24] sm:$0xf]
  %v25 = vld [vmem:[%s0 + $0x28] sm:$0xf]
  %v26 = vld [vmem:[%s0 + $0x2c] sm:$0xf]
  %v27 = vld [vmem:[%s0 + $0x30] sm:$0xf]
  %v28 = vld [vmem:[%s0 + $0x34] sm:$0xf]
  %v29 = vld [vmem:[%s0 + $0x38] sm:$0xf]
  %v30 = vld [vmem:[%s0 + $0x3c] sm:$0xf]
  %v31 = vld [vmem:[%s1] sm:$0xf]
  %v32 = vld [vmem:[%s1 + $0x4] sm:$0xf]
  %v33 = vld [vmem:[%s1 + $0x8] sm:$0xf]
  %v34 = vld [vmem:[%s1 + $0xc] sm:$0xf]
  %v35 = vld [vmem:[%s1 + $0x10] sm:$0xf]
  %v36 = vld [vmem:[%s1 + $0x14] sm:$0xf]
  %v37 = vld [vmem:[%s2] sm:$0x1]
  %v39 = vlaneseq
  %v40 = vshrl.u32 %v39, 7
  %v41 = vsub.s32 0, %v40
  %v42 = vrot.slane %v37, %v41
  %v60 = vunpack.c.l.b16 %v15
  %v61 = vunpack.c.l.b16 %v16
  %v62 = vunpack.c.l.b16 %v17
  %v63 = vunpack.c.l.b16 %v18
  %v64 = vunpack.c.l.b16 %v19
  %v65 = vunpack.c.l.b16 %v20
  %v66 = vunpack.c.l.b16 %v21
  %v67 = vunpack.c.l.b16 %v22
  %v68 = vunpack.c.l.b16 %v23
  %v69 = vunpack.c.l.b16 %v24
  %v70 = vunpack.c.l.b16 %v25
  %v71 = vunpack.c.l.b16 %v26
  %v72 = vunpack.c.l.b16 %v27
  %v73 = vunpack.c.l.b16 %v28
  %v74 = vunpack.c.l.b16 %v29
  %v75 = vunpack.c.l.b16 %v30
  %v76 = vpack.c.b16 %v61, %v60
  %v77 = vpack.c.b16 %v63, %v62
  %v78 = vpack.c.b16 %v65, %v64
  %v79 = vpack.c.b16 %v67, %v66
  %v80 = vpack.c.b16 %v69, %v68
  %v81 = vpack.c.b16 %v71, %v70
  %v82 = vpack.c.b16 %v73, %v72
  %v83 = vpack.c.b16 %v75, %v74
  %v90 = vunpack.c.l.b16 %v31
  %v91 = vunpack.c.l.b16 %v32
  %v92 = vunpack.c.l.b16 %v33
  %v93 = vunpack.c.l.b16 %v34
  %v94 = vunpack.c.l.b16 %v35
  %v95 = vunpack.c.l.b16 %v36
  %v96 = vpack.c.b16 %v91, %v90
  %v97 = vpack.c.b16 %v93, %v92
  %v98 = vpack.c.b16 %v95, %v94
  %vm102 = vcmask 392192
  %v104 = vsel %vm102, %v76, 0
  %v107 = vsel %vm102, %v77, 0
  %v110 = vsel %vm102, %v78, 0
  %v113 = vsel %vm102, %v79, 0
  %v116 = vsel %vm102, %v80, 0
  %v119 = vsel %vm102, %v81, 0
  %v122 = vsel %vm102, %v82, 0
  %v125 = vsel %vm102, %v83, 0
  %127 = vmatprep.subr.bf16.mxu0 0
  %128 = vmatpush1.bf16.msra.mxu0 0
  %129 = vmatprep.subr.bf16.mxu0 0
  %130 = vmatpush1.bf16.msra.mxu0 0
  %131 = vmatprep.subr.bf16.mxu0 0
  %132 = vmatpush1.bf16.msra.mxu0 0
  %133 = vmatprep.subr.bf16.mxu0 0
  %134 = vmatpush1.bf16.msra.mxu0 0
  %135 = vmatprep.subr.bf16.mxu0 0
  %136 = vmatpush1.bf16.msra.mxu0 0
  %137 = vmatprep.subr.bf16.mxu0 0
  %138 = vmatpush1.bf16.msra.mxu0 %v98
  %139 = vmatprep.subr.bf16.mxu0 0
  %140 = vmatpush1.bf16.msra.mxu0 %v97
  %141 = vmatprep.subr.bf16.mxu0 0
  %142 = vmatpush1.bf16.msra.mxu0 %v96
  %143 = vmatprep.subr.bf16.mxu0 0
  %144 = vmatpush2.bf16.msra.mxu0 0
  %145 = vmatprep.subr.bf16.mxu0 0
  %146 = vmatpush2.bf16.msra.mxu0 0
  %147 = vmatprep.subr.bf16.mxu0 0
  %148 = vmatpush2.bf16.msra.mxu0 0
  %149 = vmatprep.subr.bf16.mxu0 0
  %150 = vmatpush2.bf16.msra.mxu0 0
  %151 = vmatprep.subr.bf16.mxu0 0
  %152 = vmatpush2.bf16.msra.mxu0 0
  %153 = vmatprep.subr.bf16.mxu0 0
  %154 = vmatpush2.bf16.msra.mxu0 0
  %155 = vmatprep.subr.bf16.mxu0 0
  %156 = vmatpush2.bf16.msra.mxu0 0
  %157 = vmatprep.subr.bf16.mxu0 0
  %158 = vmatpush2.bf16.msra.mxu0 0
  %159 = vmatprep.mubr.bf16.mxu0 0
  %160 = vmatmul.mubr.bf16.gmra.mxu0 %v104
  %v161 = vpop.f32.mrf.mxu0
  %v162 = vadd.f32 %v42, %v161
  %v163 = vpop.f32.mrf.mxu0
  %v164 = vpop.f32.mrf.mxu0
  %v165 = vadd.f32 %v42, %v164
  %v166 = vpop.f32.mrf.mxu0
  %167 = vmatprep.mubr.bf16.mxu0 0
  %168 = vmatmul.mubr.bf16.gmra.mxu0 %v107
  %v169 = vpop.f32.mrf.mxu0
  %v170 = vadd.f32 %v42, %v169
  %v171 = vpop.f32.mrf.mxu0
  %v172 = vpop.f32.mrf.mxu0
  %v173 = vadd.f32 %v42, %v172
  %v174 = vpop.f32.mrf.mxu0
  %175 = vmatprep.mubr.bf16.mxu0 0
  %176 = vmatmul.mubr.bf16.gmra.mxu0 %v110
  %v177 = vpop.f32.mrf.mxu0
  %v178 = vadd.f32 %v42, %v177
  %v179 = vpop.f32.mrf.mxu0
  %v180 = vpop.f32.mrf.mxu0
  %v181 = vadd.f32 %v42, %v180
  %v182 = vpop.f32.mrf.mxu0
  %183 = vmatprep.mubr.bf16.mxu0 0
  %184 = vmatmul.mubr.bf16.gmra.mxu0 %v113
  %v185 = vpop.f32.mrf.mxu0
  %v186 = vadd.f32 %v42, %v185
  %v187 = vpop.f32.mrf.mxu0
  %v188 = vpop.f32.mrf.mxu0
  %v189 = vadd.f32 %v42, %v188
  %v190 = vpop.f32.mrf.mxu0
  %191 = vmatprep.mubr.bf16.mxu0 0
  %192 = vmatmul.mubr.bf16.gmra.mxu0 %v116
  %v193 = vpop.f32.mrf.mxu0
  %v194 = vadd.f32 %v42, %v193
  %v195 = vpop.f32.mrf.mxu0
  %v196 = vpop.f32.mrf.mxu0
  %v197 = vadd.f32 %v42, %v196
  %v198 = vpop.f32.mrf.mxu0
  %199 = vmatprep.mubr.bf16.mxu0 0
  %200 = vmatmul.mubr.bf16.gmra.mxu0 %v119
  %v201 = vpop.f32.mrf.mxu0
  %v202 = vadd.f32 %v42, %v201
  %v203 = vpop.f32.mrf.mxu0
  %v204 = vpop.f32.mrf.mxu0
  %v205 = vadd.f32 %v42, %v204
  %v206 = vpop.f32.mrf.mxu0
  %207 = vmatprep.mubr.bf16.mxu0 0
  %208 = vmatmul.mubr.bf16.gmra.mxu0 %v122
  %v209 = vpop.f32.mrf.mxu0
  %v210 = vadd.f32 %v42, %v209
  %v211 = vpop.f32.mrf.mxu0
  %v212 = vpop.f32.mrf.mxu0
  %v213 = vadd.f32 %v42, %v212
  %v214 = vpop.f32.mrf.mxu0
  %215 = vmatprep.mubr.bf16.mxu0 0
  %216 = vmatmul.mubr.bf16.gmra.mxu0 %v125
  %v217 = vpop.f32.mrf.mxu0
  %v218 = vadd.f32 %v42, %v217
  %v219 = vpop.f32.mrf.mxu0
  %v220 = vpop.f32.mrf.mxu0
  %v221 = vadd.f32 %v42, %v220
  %v222 = vpop.f32.mrf.mxu0
  %223 = vdwg.mxu0
  %v224 = vmax.f32 %v162, 0.0
  %v225 = vmax.f32 %v165, 0.0
  %v226 = vmax.f32 %v170, 0.0
  %v227 = vmax.f32 %v173, 0.0
  %v228 = vmax.f32 %v178, 0.0
  %v229 = vmax.f32 %v181, 0.0
  %v230 = vmax.f32 %v186, 0.0
  %v231 = vmax.f32 %v189, 0.0
  %v232 = vmax.f32 %v194, 0.0
  %v233 = vmax.f32 %v197, 0.0
  %v234 = vmax.f32 %v202, 0.0
  %v235 = vmax.f32 %v205, 0.0
  %v236 = vmax.f32 %v210, 0.0
  %v237 = vmax.f32 %v213, 0.0
  %v238 = vmax.f32 %v218, 0.0
  %v239 = vmax.f32 %v221, 0.0
  %vm240 = vcmask 130048
  %241 = vst.msk [vmem:[%s3] sm:$0xff] %vm240, %v224
  %242 = vst.msk [vmem:[%s3 + $0x8] sm:$0xff] %vm240, %v225
  %243 = vst.msk [vmem:[%s3 + $0x10] sm:$0xff] %vm240, %v226
  %244 = vst.msk [vmem:[%s3 + $0x18] sm:$0xff] %vm240, %v227
  %245 = vst.msk [vmem:[%s3 + $0x20] sm:$0xff] %vm240, %v228
  %246 = vst.msk [vmem:[%s3 + $0x28] sm:$0xff] %vm240, %v229
  %247 = vst.msk [vmem:[%s3 + $0x30] sm:$0xff] %vm240, %v230
  %248 = vst.msk [vmem:[%s3 + $0x38] sm:$0xff] %vm240, %v231
  %249 = vst.msk [vmem:[%s3 + $0x40] sm:$0xff] %vm240, %v232
  %250 = vst.msk [vmem:[%s3 + $0x48] sm:$0xff] %vm240, %v233
  %251 = vst.msk [vmem:[%s3 + $0x50] sm:$0xff] %vm240, %v234
  %252 = vst.msk [vmem:[%s3 + $0x58] sm:$0xff] %vm240, %v235
  %253 = vst.msk [vmem:[%s3 + $0x60] sm:$0xff] %vm240, %v236
  %254 = vst.msk [vmem:[%s3 + $0x68] sm:$0xff] %vm240, %v237
  %255 = vst.msk [vmem:[%s3 + $0x70] sm:$0xff] %vm240, %v238
  %256 = vst.msk [vmem:[%s3 + $0x78] sm:$0xff] %vm240, %v239
  // Predicated region
  $region14: #{net_forward.145} parent=0 // pred_check
    _
  $region15: #{net_forward.145} parent=0 // pred_check_branch
    %258 = sbr.rel (0) target = $region17
  $region16: #{net_forward.145} parent=0 // pred_region
    _
  $region17: #{net_forward.145} parent=0 // pred_fallthru
    _
  // Predicated region
  $region18: #{net_forward.145} parent=0 // pred_check
    _
  $region19: #{net_forward.145} parent=0 // pred_check_branch
    %260 = sbr.rel (0) target = $region21
  $region20: #{net_forward.145} parent=0 // pred_region
    _
  $region21: #{net_forward.145} parent=0 // pred_fallthru
    _

// kernel: net_forward.144
$region0: #{net_forward.144}
  #allocation0 [shape = 'u32[]', space=smem, size = 0x4, offset = 0x4, fixed_abs, tag = 'smem constant byte address 0x4 - core index']
  #allocation1 [shape = 'u32[144,128]{1,0:T(1,128)}', space=vmem, size = 0x12000, scoped, tag = 'internal scratch']
  %s0 = inlined_call_operand.vmem [shape: bf16[128,576], index: 0, kind: input, shape index: {}]
  %s1 = inlined_call_operand.vmem [shape: bf16[576,16], index: 1, kind: input, shape index: {}]
  %s2 = inlined_call_operand.vmem [shape: f32[1,16], index: 2, kind: input, shape index: {}]
  %s3 = inlined_call_operand.vmem [shape: f32[1,16], index: 3, kind: input, shape index: {}]
  %s4 = inlined_call_operand.vmem [shape: f32[128,16], index: 4, kind: output, shape index: {}]
  %s5 = sld [smem:[#allocation0]]
  $region26: #{net_forward.144} parent=0
    _
  %s7 = ssub.s32 1, %s5
  %s8 = scalar_select 0, %s7, %s5
  // Predicated region
  $region2: #{net_forward.144} parent=0 // pred_check
    _
  $region3: #{net_forward.144} parent=0 // pred_check_branch
    %10 = sbr.rel (0) target = $region5
  $region4: #{net_forward.144} parent=0 // pred_region
    _
  $region5: #{net_forward.144} parent=0 // pred_fallthru
    _
  // Predicated region
  $region6: #{net_forward.144} parent=0 // pred_check
    _
  $region7: #{net_forward.144} parent=0 // pred_check_branch
    %12 = sbr.rel (0) target = $region9
  $region8: #{net_forward.144} parent=0 // pred_region
    _
  $region9: #{net_forward.144} parent=0 // pred_fallthru
    _
  // Predicated region
  $region10: #{net_forward.144} parent=0 // pred_check
    _
  $region11: #{net_forward.144} parent=0 // pred_check_branch
    %14 = sbr.rel (0) target = $region13
  $region12: #{net_forward.144} parent=0 // pred_region
    _
  $region13: #{net_forward.144} parent=0 // pred_fallthru
    _
  // Predicated region
  $region14: #{net_forward.144} parent=0 // pred_check
    _
  $region15: #{net_forward.144} parent=0 // pred_check_branch
    %16 = sbr.rel (0) target = $region17
  $region16: #{net_forward.144} parent=0 // pred_region
    _
  $region17: #{net_forward.144} parent=0 // pred_fallthru
    _
  %v18 = vld [vmem:[%s0] sm:$0xff]
  %v19 = vld [vmem:[%s0 + $0x8] sm:$0xff]
  %v20 = vld [vmem:[%s0 + $0x10] sm:$0xf]
  %v21 = vld [vmem:[%s0 + $0x14] sm:$0xff]
  %v22 = vld [vmem:[%s0 + $0x1c] sm:$0xff]
  %v23 = vld [vmem:[%s0 + $0x24] sm:$0xf]
  %v24 = vld [vmem:[%s0 + $0x28] sm:$0xff]
  %v25 = vld [vmem:[%s0 + $0x30] sm:$0xff]
  %v26 = vld [vmem:[%s0 + $0x38] sm:$0xf]
  %v27 = vld [vmem:[%s0 + $0x3c] sm:$0xff]
  %v28 = vld [vmem:[%s0 + $0x44] sm:$0xff]
  %v29 = vld [vmem:[%s0 + $0x4c] sm:$0xf]
  %v30 = vld [vmem:[%s0 + $0x50] sm:$0xff]
  %v31 = vld [vmem:[%s0 + $0x58] sm:$0xff]
  %v32 = vld [vmem:[%s0 + $0x60] sm:$0xf]
  %v33 = vld [vmem:[%s0 + $0x64] sm:$0xff]
  %v34 = vld [vmem:[%s0 + $0x6c] sm:$0xff]
  %v35 = vld [vmem:[%s0 + $0x74] sm:$0xf]
  %v36 = vld [vmem:[%s0 + $0x78] sm:$0xff]
  %v37 = vld [vmem:[%s0 + $0x80] sm:$0xff]
  %v38 = vld [vmem:[%s0 + $0x88] sm:$0xf]
  %v39 = vld [vmem:[%s0 + $0x8c] sm:$0xff]
  %v40 = vld [vmem:[%s0 + $0x94] sm:$0xff]
  %v41 = vld [vmem:[%s0 + $0x9c] sm:$0xf]
  %v42 = vld [vmem:[%s0 + $0xa0] sm:$0xff]
  %v43 = vld [vmem:[%s0 + $0xa8] sm:$0xff]
  %v44 = vld [vmem:[%s0 + $0xb0] sm:$0xf]
  %v45 = vld [vmem:[%s0 + $0xb4] sm:$0xff]
  %v46 = vld [vmem:[%s0 + $0xbc] sm:$0xff]
  %v47 = vld [vmem:[%s0 + $0xc4] sm:$0xf]
  %v48 = vld [vmem:[%s0 + $0xc8] sm:$0xff]
  %v49 = vld [vmem:[%s0 + $0xd0] sm:$0xff]
  %v50 = vld [vmem:[%s0 + $0xd8] sm:$0xf]
  %v51 = vld [vmem:[%s0 + $0xdc] sm:$0xff]
  %v52 = vld [vmem:[%s0 + $0xe4] sm:$0xff]
  %v53 = vld [vmem:[%s0 + $0xec] sm:$0xf]
  %v54 = vld [vmem:[%s0 + $0xf0] sm:$0xff]
  %v55 = vld [vmem:[%s0 + $0xf8] sm:$0xff]
  %v56 = vld [vmem:[%s0 + $0x100] sm:$0xf]
  %v57 = vld [vmem:[%s0 + $0x104] sm:$0xff]
  %v58 = vld [vmem:[%s0 + $0x10c] sm:$0xff]
  %v59 = vld [vmem:[%s0 + $0x114] sm:$0xf]
  %v60 = vld [vmem:[%s0 + $0x118] sm:$0xff]
  %v61 = vld [vmem:[%s0 + $0x120] sm:$0xff]
  %v62 = vld [vmem:[%s0 + $0x128] sm:$0xf]
  %v63 = vld [vmem:[%s0 + $0x12c] sm:$0xff]
  %v64 = vld [vmem:[%s0 + $0x134] sm:$0xff]
  %v65 = vld [vmem:[%s0 + $0x13c] sm:$0xf]
  %v66 = vld [vmem:[%s1] sm:$0xf]
  %v67 = vld [vmem:[%s1 + $0x4] sm:$0xf]
  %v68 = vld [vmem:[%s1 + $0x8] sm:$0xf]
  %v69 = vld [vmem:[%s1 + $0xc] sm:$0xf]
  %v70 = vld [vmem:[%s1 + $0x10] sm:$0xf]
  %v71 = vld [vmem:[%s1 + $0x14] sm:$0xf]
  %v72 = vld [vmem:[%s1 + $0x18] sm:$0xf]
  %v73 = vld [vmem:[%s1 + $0x1c] sm:$0xf]
  %v74 = vld [vmem:[%s1 + $0x20] sm:$0xf]
  %v75 = vld [vmem:[%s1 + $0x24] sm:$0xf]
  %v76 = vld [vmem:[%s1 + $0x28] sm:$0xf]
  %v77 = vld [vmem:[%s1 + $0x2c] sm:$0xf]
  %v78 = vld [vmem:[%s1 + $0x30] sm:$0xf]
  %v79 = vld [vmem:[%s1 + $0x34] sm:$0xf]
  %v80 = vld [vmem:[%s1 + $0x38] sm:$0xf]
  %v81 = vld [vmem:[%s1 + $0x3c] sm:$0xf]
  %v82 = vld [vmem:[%s1 + $0x40] sm:$0xf]
  %v83 = vld [vmem:[%s1 + $0x44] sm:$0xf]
  %v84 = vld [vmem:[%s1 + $0x48] sm:$0xf]
  %v85 = vld [vmem:[%s1 + $0x4c] sm:$0xf]
  %v86 = vld [vmem:[%s1 + $0x50] sm:$0xf]
  %v87 = vld [vmem:[%s1 + $0x54] sm:$0xf]
  %v88 = vld [vmem:[%s1 + $0x58] sm:$0xf]
  %v89 = vld [vmem:[%s1 + $0x5c] sm:$0xf]
  %v90 = vld [vmem:[%s1 + $0x60] sm:$0xf]
  %v91 = vld [vmem:[%s1 + $0x64] sm:$0xf]
  %v92 = vld [vmem:[%s1 + $0x68] sm:$0xf]
  %v93 = vld [vmem:[%s1 + $0x6c] sm:$0xf]
  %v94 = vld [vmem:[%s1 + $0x70] sm:$0xf]
  %v95 = vld [vmem:[%s1 + $0x74] sm:$0xf]
  %v96 = vld [vmem:[%s1 + $0x78] sm:$0xf]
  %v97 = vld [vmem:[%s1 + $0x7c] sm:$0xf]
  %v98 = vld [vmem:[%s1 + $0x80] sm:$0xf]
  %v99 = vld [vmem:[%s1 + $0x84] sm:$0xf]
  %v100 = vld [vmem:[%s1 + $0x88] sm:$0xf]
  %v101 = vld [vmem:[%s1 + $0x8c] sm:$0xf]
  %v102 = vld [vmem:[%s1 + $0x90] sm:$0xf]
  %v103 = vld [vmem:[%s1 + $0x94] sm:$0xf]
  %v104 = vld [vmem:[%s1 + $0x98] sm:$0xf]
  %v105 = vld [vmem:[%s1 + $0x9c] sm:$0xf]
  %v106 = vld [vmem:[%s1 + $0xa0] sm:$0xf]
  %v107 = vld [vmem:[%s1 + $0xa4] sm:$0xf]
  %v108 = vld [vmem:[%s1 + $0xa8] sm:$0xf]
  %v109 = vld [vmem:[%s1 + $0xac] sm:$0xf]
  %v110 = vld [vmem:[%s1 + $0xb0] sm:$0xf]
  %v111 = vld [vmem:[%s1 + $0xb4] sm:$0xf]
  %v112 = vld [vmem:[%s1 + $0xb8] sm:$0xf]
  %v113 = vld [vmem:[%s1 + $0xbc] sm:$0xf]
  %v114 = vld [vmem:[%s1 + $0xc0] sm:$0xf]
  %v115 = vld [vmem:[%s1 + $0xc4] sm:$0xf]
  %v116 = vld [vmem:[%s1 + $0xc8] sm:$0xf]
  %v117 = vld [vmem:[%s1 + $0xcc] sm:$0xf]
  %v118 = vld [vmem:[%s1 + $0xd0] sm:$0xf]
  %v119 = vld [vmem:[%s1 + $0xd4] sm:$0xf]
  %v120 = vld [vmem:[%s1 + $0xd8] sm:$0xf]
  %v121 = vld [vmem:[%s1 + $0xdc] sm:$0xf]
  %v122 = vld [vmem:[%s1 + $0xe0] sm:$0xf]
  %v123 = vld [vmem:[%s1 + $0xe4] sm:$0xf]
  %v124 = vld [vmem:[%s1 + $0xe8] sm:$0xf]
  %v125 = vld [vmem:[%s1 + $0xec] sm:$0xf]
  %v126 = vld [vmem:[%s1 + $0xf0] sm:$0xf]
  %v127 = vld [vmem:[%s1 + $0xf4] sm:$0xf]
  %v128 = vld [vmem:[%s1 + $0xf8] sm:$0xf]
  %v129 = vld [vmem:[%s1 + $0xfc] sm:$0xf]
  %v130 = vld [vmem:[%s1 + $0x100] sm:$0xf]
  %v131 = vld [vmem:[%s1 + $0x104] sm:$0xf]
  %v132 = vld [vmem:[%s1 + $0x108] sm:$0xf]
  %v133 = vld [vmem:[%s1 + $0x10c] sm:$0xf]
  %v134 = vld [vmem:[%s1 + $0x110] sm:$0xf]
  %v135 = vld [vmem:[%s1 + $0x114] sm:$0xf]
  %v136 = vld [vmem:[%s1 + $0x118] sm:$0xf]
  %v137 = vld [vmem:[%s1 + $0x11c] sm:$0xf]
  %v186 = vunpack.c.l.b16 %v18
  %v187 = vunpack.c.h.b16 %v18
  %v188 = vunpack.c.l.b16 %v19
  %v189 = vunpack.c.h.b16 %v19
  %v190 = vunpack.c.l.b16 %v20
  %v191 = vunpack.c.l.b16 %v21
  %v192 = vunpack.c.h.b16 %v21
  %v193 = vunpack.c.l.b16 %v22
  %v194 = vunpack.c.h.b16 %v22
  %v195 = vunpack.c.l.b16 %v23
  %v196 = vunpack.c.l.b16 %v24
  %v197 = vunpack.c.h.b16 %v24
  %v198 = vunpack.c.l.b16 %v25
  %v199 = vunpack.c.h.b16 %v25
  %v200 = vunpack.c.l.b16 %v26
  %v201 = vunpack.c.l.b16 %v27
  %v202 = vunpack.c.h.b16 %v27
  %v203 = vunpack.c.l.b16 %v28
  %v204 = vunpack.c.h.b16 %v28
  %v205 = vunpack.c.l.b16 %v29
  %v206 = vunpack.c.l.b16 %v30
  %v207 = vunpack.c.h.b16 %v30
  %v208 = vunpack.c.l.b16 %v31
  %v209 = vunpack.c.h.b16 %v31
  %v210 = vunpack.c.l.b16 %v32
  %v211 = vunpack.c.l.b16 %v33
  %v212 = vunpack.c.h.b16 %v33
  %v213 = vunpack.c.l.b16 %v34
  %v214 = vunpack.c.h.b16 %v34
  %v215 = vunpack.c.l.b16 %v35
  %v216 = vunpack.c.l.b16 %v36
  %v217 = vunpack.c.h.b16 %v36
  %v218 = vunpack.c.l.b16 %v37
  %v219 = vunpack.c.h.b16 %v37
  %v220 = vunpack.c.l.b16 %v38
  %v221 = vunpack.c.l.b16 %v39
  %v222 = vunpack.c.h.b16 %v39
  %v223 = vunpack.c.l.b16 %v40
  %v224 = vunpack.c.h.b16 %v40
  %v225 = vunpack.c.l.b16 %v41
  %v226 = vunpack.c.l.b16 %v42
  %v227 = vunpack.c.h.b16 %v42
  %v228 = vunpack.c.l.b16 %v43
  %v229 = vunpack.c.h.b16 %v43
  %v230 = vunpack.c.l.b16 %v44
  %v231 = vunpack.c.l.b16 %v45
  %v232 = vunpack.c.h.b16 %v45
  %v233 = vunpack.c.l.b16 %v46
  %v234 = vunpack.c.h.b16 %v46
  %v235 = vunpack.c.l.b16 %v47
  %v236 = vunpack.c.l.b16 %v48
  %v237 = vunpack.c.h.b16 %v48
  %v238 = vunpack.c.l.b16 %v49
  %v239 = vunpack.c.h.b16 %v49
  %v240 = vunpack.c.l.b16 %v50
  %v241 = vunpack.c.l.b16 %v51
  %v242 = vunpack.c.h.b16 %v51
  %v243 = vunpack.c.l.b16 %v52
  %v244 = vunpack.c.h.b16 %v52
  %v245 = vunpack.c.l.b16 %v53
  %v246 = vunpack.c.l.b16 %v54
  %v247 = vunpack.c.h.b16 %v54
  %v248 = vunpack.c.l.b16 %v55
  %v249 = vunpack.c.h.b16 %v55
  %v250 = vunpack.c.l.b16 %v56
  %v251 = vunpack.c.l.b16 %v57
  %v252 = vunpack.c.h.b16 %v57
  %v253 = vunpack.c.l.b16 %v58
  %v254 = vunpack.c.h.b16 %v58
  %v255 = vunpack.c.l.b16 %v59
  %v256 = vunpack.c.l.b16 %v60
  %v257 = vunpack.c.h.b16 %v60
  %v258 = vunpack.c.l.b16 %v61
  %v259 = vunpack.c.h.b16 %v61
  %v260 = vunpack.c.l.b16 %v62
  %v261 = vunpack.c.l.b16 %v63
  %v262 = vunpack.c.h.b16 %v63
  %v263 = vunpack.c.l.b16 %v64
  %v264 = vunpack.c.h.b16 %v64
  %v265 = vunpack.c.l.b16 %v65
  %v266 = vpack.c.b16 %v191, %v186
  %v267 = vpack.c.b16 %v192, %v187
  %v268 = vpack.c.b16 %v193, %v188
  %v269 = vpack.c.b16 %v194, %v189
  %v270 = vpack.c.b16 %v195, %v190
  %v271 = vpack.c.b16 %v201, %v196
  %v272 = vpack.c.b16 %v202, %v197
  %v273 = vpack.c.b16 %v203, %v198
  %v274 = vpack.c.b16 %v204, %v199
  %v275 = vpack.c.b16 %v205, %v200
  %v276 = vpack.c.b16 %v211, %v206
  %v277 = vpack.c.b16 %v212, %v207
  %v278 = vpack.c.b16 %v213, %v208
  %v279 = vpack.c.b16 %v214, %v209
  %v280 = vpack.c.b16 %v215, %v210
  %v281 = vpack.c.b16 %v221, %v216
  %v282 = vpack.c.b16 %v222, %v217
  %v283 = vpack.c.b16 %v223, %v218
  %v284 = vpack.c.b16 %v224, %v219
  %v285 = vpack.c.b16 %v225, %v220
  %v286 = vpack.c.b16 %v231, %v226
  %v287 = vpack.c.b16 %v232, %v227
  %v288 = vpack.c.b16 %v233, %v228
  %v289 = vpack.c.b16 %v234, %v229
  %v290 = vpack.c.b16 %v235, %v230
  %v291 = vpack.c.b16 %v241, %v236
  %v292 = vpack.c.b16 %v242, %v237
  %v293 = vpack.c.b16 %v243, %v238
  %v294 = vpack.c.b16 %v244, %v239
  %v295 = vpack.c.b16 %v245, %v240
  %v296 = vpack.c.b16 %v251, %v246
  %v297 = vpack.c.b16 %v252, %v247
  %v298 = vpack.c.b16 %v253, %v248
  %v299 = vpack.c.b16 %v254, %v249
  %v300 = vpack.c.b16 %v255, %v250
  %v301 = vpack.c.b16 %v261, %v256
  %v302 = vpack.c.b16 %v262, %v257
  %v303 = vpack.c.b16 %v263, %v258
  %v304 = vpack.c.b16 %v264, %v259
  %v305 = vpack.c.b16 %v265, %v260
  %v410 = vunpack.c.l.b16 %v66
  %v411 = vunpack.c.l.b16 %v67
  %v412 = vunpack.c.l.b16 %v68
  %v413 = vunpack.c.l.b16 %v69
  %v414 = vunpack.c.l.b16 %v70
  %v415 = vunpack.c.l.b16 %v71
  %v416 = vunpack.c.l.b16 %v72
  %v417 = vunpack.c.l.b16 %v73
  %v418 = vunpack.c.l.b16 %v74
  %v419 = vunpack.c.l.b16 %v75
  %v420 = vunpack.c.l.b16 %v76
  %v421 = vunpack.c.l.b16 %v77
  %v422 = vunpack.c.l.b16 %v78
  %v423 = vunpack.c.l.b16 %v79
  %v424 = vunpack.c.l.b16 %v80
  %v425 = vunpack.c.l.b16 %v81
  %v426 = vunpack.c.l.b16 %v82
  %v427 = vunpack.c.l.b16 %v83
  %v428 = vunpack.c.l.b16 %v84
  %v429 = vunpack.c.l.b16 %v85
  %v430 = vunpack.c.l.b16 %v86
  %v431 = vunpack.c.l.b16 %v87
  %v432 = vunpack.c.l.b16 %v88
  %v433 = vunpack.c.l.b16 %v89
  %v434 = vunpack.c.l.b16 %v90
  %v435 = vunpack.c.l.b16 %v91
  %v436 = vunpack.c.l.b16 %v92
  %v437 = vunpack.c.l.b16 %v93
  %v438 = vunpack.c.l.b16 %v94
  %v439 = vunpack.c.l.b16 %v95
  %v440 = vunpack.c.l.b16 %v96
  %v441 = vunpack.c.l.b16 %v97
  %v442 = vunpack.c.l.b16 %v98
  %v443 = vunpack.c.l.b16 %v99
  %v444 = vunpack.c.l.b16 %v100
  %v445 = vunpack.c.l.b16 %v101
  %v446 = vunpack.c.l.b16 %v102
  %v447 = vunpack.c.l.b16 %v103
  %v448 = vunpack.c.l.b16 %v104
  %v449 = vunpack.c.l.b16 %v105
  %v450 = vunpack.c.l.b16 %v106
  %v451 = vunpack.c.l.b16 %v107
  %v452 = vunpack.c.l.b16 %v108
  %v453 = vunpack.c.l.b16 %v109
  %v454 = vunpack.c.l.b16 %v110
  %v455 = vunpack.c.l.b16 %v111
  %v456 = vunpack.c.l.b16 %v112
  %v457 = vunpack.c.l.b16 %v113
  %v458 = vunpack.c.l.b16 %v114
  %v459 = vunpack.c.l.b16 %v115
  %v460 = vunpack.c.l.b16 %v116
  %v461 = vunpack.c.l.b16 %v117
  %v462 = vunpack.c.l.b16 %v118
  %v463 = vunpack.c.l.b16 %v119
  %v464 = vunpack.c.l.b16 %v120
  %v465 = vunpack.c.l.b16 %v121
  %v466 = vunpack.c.l.b16 %v122
  %v467 = vunpack.c.l.b16 %v123
  %v468 = vunpack.c.l.b16 %v124
  %v469 = vunpack.c.l.b16 %v125
  %v470 = vunpack.c.l.b16 %v126
  %v471 = vunpack.c.l.b16 %v127
  %v472 = vunpack.c.l.b16 %v128
  %v473 = vunpack.c.l.b16 %v129
  %v474 = vunpack.c.l.b16 %v130
  %v475 = vunpack.c.l.b16 %v131
  %v476 = vunpack.c.l.b16 %v132
  %v477 = vunpack.c.l.b16 %v133
  %v478 = vunpack.c.l.b16 %v134
  %v479 = vunpack.c.l.b16 %v135
  %v480 = vunpack.c.l.b16 %v136
  %v481 = vunpack.c.l.b16 %v137
  %v482 = vpack.c.b16 %v411, %v410
  %v483 = vpack.c.b16 %v413, %v412
  %v484 = vpack.c.b16 %v415, %v414
  %v485 = vpack.c.b16 %v417, %v416
  %v486 = vpack.c.b16 %v419, %v418
  %v487 = vpack.c.b16 %v421, %v420
  %v488 = vpack.c.b16 %v423, %v422
  %v489 = vpack.c.b16 %v425, %v424
  %v490 = vpack.c.b16 %v427, %v426
  %v491 = vpack.c.b16 %v429, %v428
  %v492 = vpack.c.b16 %v431, %v430
  %v493 = vpack.c.b16 %v433, %v432
  %v494 = vpack.c.b16 %v435, %v434
  %v495 = vpack.c.b16 %v437, %v436
  %v496 = vpack.c.b16 %v439, %v438
  %v497 = vpack.c.b16 %v441, %v440
  %v498 = vpack.c.b16 %v443, %v442
  %v499 = vpack.c.b16 %v445, %v444
  %v500 = vpack.c.b16 %v447, %v446
  %v501 = vpack.c.b16 %v449, %v448
  %v502 = vpack.c.b16 %v451, %v450
  %v503 = vpack.c.b16 %v453, %v452
  %v504 = vpack.c.b16 %v455, %v454
  %v505 = vpack.c.b16 %v457, %v456
  %v506 = vpack.c.b16 %v459, %v458
  %v507 = vpack.c.b16 %v461, %v460
  %v508 = vpack.c.b16 %v463, %v462
  %v509 = vpack.c.b16 %v465, %v464
  %v510 = vpack.c.b16 %v467, %v466
  %v511 = vpack.c.b16 %v469, %v468
  %v512 = vpack.c.b16 %v471, %v470
  %v513 = vpack.c.b16 %v473, %v472
  %v514 = vpack.c.b16 %v475, %v474
  %v515 = vpack.c.b16 %v477, %v476
  %v516 = vpack.c.b16 %v479, %v478
  %v517 = vpack.c.b16 %v481, %v480
  %vm554 = vcmask 523264
  %v556 = vsel %vm554, %v270, 0
  %v559 = vsel %vm554, %v275, 0
  %v562 = vsel %vm554, %v280, 0
  %v565 = vsel %vm554, %v285, 0
  %v568 = vsel %vm554, %v290, 0
  %v571 = vsel %vm554, %v295, 0
  %v574 = vsel %vm554, %v300, 0
  %v577 = vsel %vm554, %v305, 0
  %579 = vmatprep.subr.bf16.mxu0 0
  %580 = vmatpush1.bf16.msra.mxu0 %v489
  %581 = vmatprep.subr.bf16.mxu0 0
  %582 = vmatpush1.bf16.msra.mxu0 %v488
  %583 = vmatprep.subr.bf16.mxu0 0
  %584 = vmatpush1.bf16.msra.mxu0 %v487
  %585 = vmatprep.subr.bf16.mxu0 0
  %586 = vmatpush1.bf16.msra.mxu0 %v486
  %587 = vmatprep.subr.bf16.mxu0 0
  %588 = vmatpush1.bf16.msra.mxu0 %v485
  %589 = vmatprep.subr.bf16.mxu0 0
  %590 = vmatpush1.bf16.msra.mxu0 %v484
  %591 = vmatprep.subr.bf16.mxu0 0
  %592 = vmatpush1.bf16.msra.mxu0 %v483
  %593 = vmatprep.subr.bf16.mxu0 0
  %594 = vmatpush1.bf16.msra.mxu0 %v482
  %595 = vmatprep.subr.bf16.mxu0 0
  %596 = vmatpush2.bf16.msra.mxu0 %v497
  %597 = vmatprep.subr.bf16.mxu0 0
  %598 = vmatpush2.bf16.msra.mxu0 %v496
  %599 = vmatprep.subr.bf16.mxu0 0
  %600 = vmatpush2.bf16.msra.mxu0 %v495
  %601 = vmatprep.subr.bf16.mxu0 0
  %602 = vmatpush2.bf16.msra.mxu0 %v494
  %603 = vmatprep.subr.bf16.mxu0 0
  %604 = vmatpush2.bf16.msra.mxu0 %v493
  %605 = vmatprep.subr.bf16.mxu0 0
  %606 = vmatpush2.bf16.msra.mxu0 %v492
  %607 = vmatprep.subr.bf16.mxu0 0
  %608 = vmatpush2.bf16.msra.mxu0 %v491
  %609 = vmatprep.subr.bf16.mxu0 0
  %610 = vmatpush2.bf16.msra.mxu0 %v490
  %611 = vmatprep.mubr.bf16.mxu0 %v267
  %612 = vmatmul.mubr.bf16.gmra.mxu0 %v266
  %v613 = vpop.f32.mrf.mxu0
  %v614 = vadd.f32 0.0, %v613
  %v615 = vpop.f32.mrf.mxu0
  %v616 = vpop.f32.mrf.mxu0
  %v617 = vadd.f32 0.0, %v616
  %v618 = vpop.f32.mrf.mxu0
  %619 = vmatprep.mubr.bf16.mxu0 %v272
  %620 = vmatmul.mubr.bf16.gmra.mxu0 %v271
  %v621 = vpop.f32.mrf.mxu0
  %v622 = vadd.f32 0.0, %v621
  %v623 = vpop.f32.mrf.mxu0
  %v624 = vpop.f32.mrf.mxu0
  %v625 = vadd.f32 0.0, %v624
  %v626 = vpop.f32.mrf.mxu0
  %627 = vmatprep.mubr.bf16.mxu0 %v277
  %628 = vmatmul.mubr.bf16.gmra.mxu0 %v276
  %v629 = vpop.f32.mrf.mxu0
  %v630 = vadd.f32 0.0, %v629
  %v631 = vpop.f32.mrf.mxu0
  %v632 = vpop.f32.mrf.mxu0
  %v633 = vadd.f32 0.0, %v632
  %v634 = vpop.f32.mrf.mxu0
  %635 = vmatprep.mubr.bf16.mxu0 %v282
  %636 = vmatmul.mubr.bf16.gmra.mxu0 %v281
  %v637 = vpop.f32.mrf.mxu0
  %v638 = vadd.f32 0.0, %v637
  %v639 = vpop.f32.mrf.mxu0
  %v640 = vpop.f32.mrf.mxu0
  %v641 = vadd.f32 0.0, %v640
  %v642 = vpop.f32.mrf.mxu0
  %643 = vmatprep.mubr.bf16.mxu0 %v287
  %644 = vmatmul.mubr.bf16.gmra.mxu0 %v286
  %v645 = vpop.f32.mrf.mxu0
  %v646 = vadd.f32 0.0, %v645
  %v647 = vpop.f32.mrf.mxu0
  %v648 = vpop.f32.mrf.mxu0
  %v649 = vadd.f32 0.0, %v648
  %v650 = vpop.f32.mrf.mxu0
  %651 = vmatprep.mubr.bf16.mxu0 %v292
  %652 = vmatmul.mubr.bf16.gmra.mxu0 %v291
  %v653 = vpop.f32.mrf.mxu0
  %v654 = vadd.f32 0.0, %v653
  %v655 = vpop.f32.mrf.mxu0
  %v656 = vpop.f32.mrf.mxu0
  %v657 = vadd.f32 0.0, %v656
  %v658 = vpop.f32.mrf.mxu0
  %659 = vmatprep.mubr.bf16.mxu0 %v297
  %660 = vmatmul.mubr.bf16.gmra.mxu0 %v296
  %v661 = vpop.f32.mrf.mxu0
  %v662 = vadd.f32 0.0, %v661
  %v663 = vpop.f32.mrf.mxu0
  %v664 = vpop.f32.mrf.mxu0
  %v665 = vadd.f32 0.0, %v664
  %v666 = vpop.f32.mrf.mxu0
  %667 = vmatprep.mubr.bf16.mxu0 %v302
  %668 = vmatmul.mubr.bf16.gmra.mxu0 %v301
  %v669 = vpop.f32.mrf.mxu0
  %v670 = vadd.f32 0.0, %v669
  %v671 = vpop.f32.mrf.mxu0
  %v672 = vpop.f32.mrf.mxu0
  %v673 = vadd.f32 0.0, %v672
  %v674 = vpop.f32.mrf.mxu0
  %675 = vdwg.mxu0
  %676 = vmatprep.subr.bf16.mxu0 0
  %677 = vmatpush1.bf16.msra.mxu0 %v505
  %678 = vmatprep.subr.bf16.mxu0 0
  %679 = vmatpush1.bf16.msra.mxu0 %v504
  %680 = vmatprep.subr.bf16.mxu0 0
  %681 = vmatpush1.bf16.msra.mxu0 %v503
  %682 = vmatprep.subr.bf16.mxu0 0
  %683 = vmatpush1.bf16.msra.mxu0 %v502
  %684 = vmatprep.subr.bf16.mxu0 0
  %685 = vmatpush1.bf16.msra.mxu0 %v501
  %686 = vmatprep.subr.bf16.mxu0 0
  %687 = vmatpush1.bf16.msra.mxu0 %v500
  %688 = vmatprep.subr.bf16.mxu0 0
  %689 = vmatpush1.bf16.msra.mxu0 %v499
  %690 = vmatprep.subr.bf16.mxu0 0
  %691 = vmatpush1.bf16.msra.mxu0 %v498
  %692 = vmatprep.subr.bf16.mxu0 0
  %693 = vmatpush2.bf16.msra.mxu0 %v513
  %694 = vmatprep.subr.bf16.mxu0 0
  %695 = vmatpush2.bf16.msra.mxu0 %v512
  %696 = vmatprep.subr.bf16.mxu0 0
  %697 = vmatpush2.bf16.msra.mxu0 %v511
  %698 = vmatprep.subr.bf16.mxu0 0
  %699 = vmatpush2.bf16.msra.mxu0 %v510
  %700 = vmatprep.subr.bf16.mxu0 0
  %701 = vmatpush2.bf16.msra.mxu0 %v509
  %702 = vmatprep.subr.bf16.mxu0 0
  %703 = vmatpush2.bf16.msra.mxu0 %v508
  %704 = vmatprep.subr.bf16.mxu0 0
  %705 = vmatpush2.bf16.msra.mxu0 %v507
  %706 = vmatprep.subr.bf16.mxu0 0
  %707 = vmatpush2.bf16.msra.mxu0 %v506
  %708 = vmatprep.mubr.bf16.mxu0 %v269
  %709 = vmatmul.mubr.bf16.gmra.mxu0 %v268
  %v710 = vpop.f32.mrf.mxu0
  %v711 = vadd.f32 %v614, %v710
  %v712 = vpop.f32.mrf.mxu0
  %v713 = vpop.f32.mrf.mxu0
  %v714 = vadd.f32 %v617, %v713
  %v715 = vpop.f32.mrf.mxu0
  %716 = vmatprep.mubr.bf16.mxu0 %v274
  %717 = vmatmul.mubr.bf16.gmra.mxu0 %v273
  %v718 = vpop.f32.mrf.mxu0
  %v719 = vadd.f32 %v622, %v718
  %v720 = vpop.f32.mrf.mxu0
  %v721 = vpop.f32.mrf.mxu0
  %v722 = vadd.f32 %v625, %v721
  %v723 = vpop.f32.mrf.mxu0
  %724 = vmatprep.mubr.bf16.mxu0 %v279
  %725 = vmatmul.mubr.bf16.gmra.mxu0 %v278
  %v726 = vpop.f32.mrf.mxu0
  %v727 = vadd.f32 %v630, %v726
  %v728 = vpop.f32.mrf.mxu0
  %v729 = vpop.f32.mrf.mxu0
  %v730 = vadd.f32 %v633, %v729
  %v731 = vpop.f32.mrf.mxu0
  %732 = vmatprep.mubr.bf16.mxu0 %v284
  %733 = vmatmul.mubr.bf16.gmra.mxu0 %v283
  %v734 = vpop.f32.mrf.mxu0
  %v735 = vadd.f32 %v638, %v734
  %v736 = vpop.f32.mrf.mxu0
  %v737 = vpop.f32.mrf.mxu0
  %v738 = vadd.f32 %v641, %v737
  %v739 = vpop.f32.mrf.mxu0
  %740 = vmatprep.mubr.bf16.mxu0 %v289
  %741 = vmatmul.mubr.bf16.gmra.mxu0 %v288
  %v742 = vpop.f32.mrf.mxu0
  %v743 = vadd.f32 %v646, %v742
  %v744 = vpop.f32.mrf.mxu0
  %v745 = vpop.f32.mrf.mxu0
  %v746 = vadd.f32 %v649, %v745
  %v747 = vpop.f32.mrf.mxu0
  %748 = vmatprep.mubr.bf16.mxu0 %v294
  %749 = vmatmul.mubr.bf16.gmra.mxu0 %v293
  %v750 = vpop.f32.mrf.mxu0
  %v751 = vadd.f32 %v654, %v750
  %v752 = vpop.f32.mrf.mxu0
  %v753 = vpop.f32.mrf.mxu0
  %v754 = vadd.f32 %v657, %v753
  %v755 = vpop.f32.mrf.mxu0
  %756 = vmatprep.mubr.bf16.mxu0 %v299
  %757 = vmatmul.mubr.bf16.gmra.mxu0 %v298
  %v758 = vpop.f32.mrf.mxu0
  %v759 = vadd.f32 %v662, %v758
  %v760 = vpop.f32.mrf.mxu0
  %v761 = vpop.f32.mrf.mxu0
  %v762 = vadd.f32 %v665, %v761
  %v763 = vpop.f32.mrf.mxu0
  %764 = vmatprep.mubr.bf16.mxu0 %v304
  %765 = vmatmul.mubr.bf16.gmra.mxu0 %v303
  %v766 = vpop.f32.mrf.mxu0
  %v767 = vadd.f32 %v670, %v766
  %v768 = vpop.f32.mrf.mxu0
  %v769 = vpop.f32.mrf.mxu0
  %v770 = vadd.f32 %v673, %v769
  %v771 = vpop.f32.mrf.mxu0
  %772 = vdwg.mxu0
  %773 = vmatprep.subr.bf16.mxu0 0
  %774 = vmatpush1.bf16.msra.mxu0 0
  %775 = vmatprep.subr.bf16.mxu0 0
  %776 = vmatpush1.bf16.msra.mxu0 0
  %777 = vmatprep.subr.bf16.mxu0 0
  %778 = vmatpush1.bf16.msra.mxu0 0
  %779 = vmatprep.subr.bf16.mxu0 0
  %780 = vmatpush1.bf16.msra.mxu0 0
  %781 = vmatprep.subr.bf16.mxu0 0
  %782 = vmatpush1.bf16.msra.mxu0 %v517
  %783 = vmatprep.subr.bf16.mxu0 0
  %784 = vmatpush1.bf16.msra.mxu0 %v516
  %785 = vmatprep.subr.bf16.mxu0 0
  %786 = vmatpush1.bf16.msra.mxu0 %v515
  %787 = vmatprep.subr.bf16.mxu0 0
  %788 = vmatpush1.bf16.msra.mxu0 %v514
  %789 = vmatprep.subr.bf16.mxu0 0
  %790 = vmatpush2.bf16.msra.mxu0 0
  %791 = vmatprep.subr.bf16.mxu0 0
  %792 = vmatpush2.bf16.msra.mxu0 0
  %793 = vmatprep.subr.bf16.mxu0 0
  %794 = vmatpush2.bf16.msra.mxu0 0
  %795 = vmatprep.subr.bf16.mxu0 0
  %796 = vmatpush2.bf16.msra.mxu0 0
  %797 = vmatprep.subr.bf16.mxu0 0
  %798 = vmatpush2.bf16.msra.mxu0 0
  %799 = vmatprep.subr.bf16.mxu0 0
  %800 = vmatpush2.bf16.msra.mxu0 0
  %801 = vmatprep.subr.bf16.mxu0 0
  %802 = vmatpush2.bf16.msra.mxu0 0
  %803 = vmatprep.subr.bf16.mxu0 0
  %804 = vmatpush2.bf16.msra.mxu0 0
  %805 = vmatprep.mubr.bf16.mxu0 0
  %806 = vmatmul.mubr.bf16.gmra.mxu0 %v556
  %v807 = vpop.f32.mrf.mxu0
  %v808 = vadd.f32 %v711, %v807
  %v809 = vpop.f32.mrf.mxu0
  %v810 = vpop.f32.mrf.mxu0
  %v811 = vadd.f32 %v714, %v810
  %v812 = vpop.f32.mrf.mxu0
  %813 = vmatprep.mubr.bf16.mxu0 0
  %814 = vmatmul.mubr.bf16.gmra.mxu0 %v559
  %v815 = vpop.f32.mrf.mxu0
  %v816 = vadd.f32 %v719, %v815
  %v817 = vpop.f32.mrf.mxu0
  %v818 = vpop.f32.mrf.mxu0
  %v819 = vadd.f32 %v722, %v818
  %v820 = vpop.f32.mrf.mxu0
  %821 = vmatprep.mubr.bf16.mxu0 0
  %822 = vmatmul.mubr.bf16.gmra.mxu0 %v562
  %v823 = vpop.f32.mrf.mxu0
  %v824 = vadd.f32 %v727, %v823
  %v825 = vpop.f32.mrf.mxu0
  %v826 = vpop.f32.mrf.mxu0
  %v827 = vadd.f32 %v730, %v826
  %v828 = vpop.f32.mrf.mxu0
  %829 = vmatprep.mubr.bf16.mxu0 0
  %830 = vmatmul.mubr.bf16.gmra.mxu0 %v565
  %v831 = vpop.f32.mrf.mxu0
  %v832 = vadd.f32 %v735, %v831
  %v833 = vpop.f32.mrf.mxu0
  %v834 = vpop.f32.mrf.mxu0
  %v835 = vadd.f32 %v738, %v834
  %v836 = vpop.f32.mrf.mxu0
  %837 = vmatprep.mubr.bf16.mxu0 0
  %838 = vmatmul.mubr.bf16.gmra.mxu0 %v568
  %v839 = vpop.f32.mrf.mxu0
  %v840 = vadd.f32 %v743, %v839
  %v841 = vpop.f32.mrf.mxu0
  %v842 = vpop.f32.mrf.mxu0
  %v843 = vadd.f32 %v746, %v842
  %v844 = vpop.f32.mrf.mxu0
  %845 = vmatprep.mubr.bf16.mxu0 0
  %846 = vmatmul.mubr.bf16.gmra.mxu0 %v571
  %v847 = vpop.f32.mrf.mxu0
  %v848 = vadd.f32 %v751, %v847
  %v849 = vpop.f32.mrf.mxu0
  %v850 = vpop.f32.mrf.mxu0
  %v851 = vadd.f32 %v754, %v850
  %v852 = vpop.f32.mrf.mxu0
  %853 = vmatprep.mubr.bf16.mxu0 0
  %854 = vmatmul.mubr.bf16.gmra.mxu0 %v574
  %v855 = vpop.f32.mrf.mxu0
  %v856 = vadd.f32 %v759, %v855
  %v857 = vpop.f32.mrf.mxu0
  %v858 = vpop.f32.mrf.mxu0
  %v859 = vadd.f32 %v762, %v858
  %v860 = vpop.f32.mrf.mxu0
  %861 = vmatprep.mubr.bf16.mxu0 0
  %862 = vmatmul.mubr.bf16.gmra.mxu0 %v577
  %v863 = vpop.f32.mrf.mxu0
  %v864 = vadd.f32 %v767, %v863
  %v865 = vpop.f32.mrf.mxu0
  %v866 = vpop.f32.mrf.mxu0
  %v867 = vadd.f32 %v770, %v866
  %v868 = vpop.f32.mrf.mxu0
  %869 = vdwg.mxu0
  %v870 = vld [vmem:[%s2] sm:$0x1]
  %v871 = vld [vmem:[%s3] sm:$0x1]
  %vm872 = vcmask 130048
  %v873 = vsel %vm872, %v808, 0.0
  %v874 = vsel %vm872, %v811, 0.0
  %v875 = vadd.f32 %v873, %v874
  %v876 = vsel %vm872, %v816, 0.0
  %v877 = vadd.f32 %v875, %v876
  %v878 = vsel %vm872, %v819, 0.0
  %v879 = vadd.f32 %v877, %v878
  %v880 = vsel %vm872, %v824, 0.0
  %v881 = vadd.f32 %v879, %v880
  %v882 = vsel %vm872, %v827, 0.0
  %v883 = vadd.f32 %v881, %v882
  %v884 = vsel %vm872, %v832, 0.0
  %v885 = vadd.f32 %v883, %v884
  %v886 = vsel %vm872, %v835, 0.0
  %v887 = vadd.f32 %v885, %v886
  %v888 = vsel %vm872, %v840, 0.0
  %v889 = vadd.f32 %v887, %v888
  %v890 = vsel %vm872, %v843, 0.0
  %v891 = vadd.f32 %v889, %v890
  %v892 = vsel %vm872, %v848, 0.0
  %v893 = vadd.f32 %v891, %v892
  %v894 = vsel %vm872, %v851, 0.0
  %v895 = vadd.f32 %v893, %v894
  %v896 = vsel %vm872, %v856, 0.0
  %v897 = vadd.f32 %v895, %v896
  %v898 = vsel %vm872, %v859, 0.0
  %v899 = vadd.f32 %v897, %v898
  %v900 = vsel %vm872, %v864, 0.0
  %v901 = vadd.f32 %v899, %v900
  %v902 = vsel %vm872, %v867, 0.0
  %v903 = vadd.f32 %v901, %v902
  %v904 = vrot.slane %v903, 4
  %v905 = vadd.f32 %v903, %v904
  %v906 = vrot.slane %v905, 2
  %v907 = vadd.f32 %v905, %v906
  %v908 = vrot.slane %v907, 1
  %v909 = vadd.f32 %v907, %v908
  %v910 = vrcp.pop 128.0
  %v911 = vmul.f32 %v909, %v910
  %v912 = vmul.f32 %v808, %v808
  %v913 = vmul.f32 %v811, %v811
  %v914 = vmul.f32 %v816, %v816
  %v915 = vmul.f32 %v819, %v819
  %v916 = vmul.f32 %v824, %v824
  %v917 = vmul.f32 %v827, %v827
  %v918 = vmul.f32 %v832, %v832
  %v919 = vmul.f32 %v835, %v835
  %v920 = vmul.f32 %v840, %v840
  %v921 = vmul.f32 %v843, %v843
  %v922 = vmul.f32 %v848, %v848
  %v923 = vmul.f32 %v851, %v851
  %v924 = vmul.f32 %v856, %v856
  %v925 = vmul.f32 %v859, %v859
  %v926 = vmul.f32 %v864, %v864
  %v927 = vmul.f32 %v867, %v867
  %v928 = vsel %vm872, %v912, 0.0
  %v929 = vsel %vm872, %v913, 0.0
  %v930 = vadd.f32 %v928, %v929
  %v931 = vsel %vm872, %v914, 0.0
  %v932 = vadd.f32 %v930, %v931
  %v933 = vsel %vm872, %v915, 0.0
  %v934 = vadd.f32 %v932, %v933
  %v935 = vsel %vm872, %v916, 0.0
  %v936 = vadd.f32 %v934, %v935
  %v937 = vsel %vm872, %v917, 0.0
  %v938 = vadd.f32 %v936, %v937
  %v939 = vsel %vm872, %v918, 0.0
  %v940 = vadd.f32 %v938, %v939
  %v941 = vsel %vm872, %v919, 0.0
  %v942 = vadd.f32 %v940, %v941
  %v943 = vsel %vm872, %v920, 0.0
  %v944 = vadd.f32 %v942, %v943
  %v945 = vsel %vm872, %v921, 0.0
  %v946 = vadd.f32 %v944, %v945
  %v947 = vsel %vm872, %v922, 0.0
  %v948 = vadd.f32 %v946, %v947
  %v949 = vsel %vm872, %v923, 0.0
  %v950 = vadd.f32 %v948, %v949
  %v951 = vsel %vm872, %v924, 0.0
  %v952 = vadd.f32 %v950, %v951
  %v953 = vsel %vm872, %v925, 0.0
  %v954 = vadd.f32 %v952, %v953
  %v955 = vsel %vm872, %v926, 0.0
  %v956 = vadd.f32 %v954, %v955
  %v957 = vsel %vm872, %v927, 0.0
  %v958 = vadd.f32 %v956, %v957
  %v959 = vrot.slane %v958, 4
  %v960 = vadd.f32 %v958, %v959
  %v961 = vrot.slane %v960, 2
  %v962 = vadd.f32 %v960, %v961
  %v963 = vrot.slane %v962, 1
  %v964 = vadd.f32 %v962, %v963
  %v965 = vmul.f32 %v964, %v910
  %v966 = vmul.f32 %v911, %v911
  %v967 = vsub.f32 %v965, %v966
  %v968 = vmax.f32 %v967, 0.0
  %v969 = vadd.f32 %v968, 0.001
  %v970 = vrsqrt.pop %v969
  %v971 = vmul.f32 %v870, %v970
  %v973 = vlaneseq
  %v974 = vshrl.u32 %v973, 7
  %v975 = vsub.s32 0, %v974
  %v976 = vrot.slane %v971, %v975
  %v978 = vmul.f32 %v808, %v976
  %v979 = vmul.f32 %v811, %v976
  %v980 = vmul.f32 %v816, %v976
  %v981 = vmul.f32 %v819, %v976
  %v982 = vmul.f32 %v824, %v976
  %v983 = vmul.f32 %v827, %v976
  %v984 = vmul.f32 %v832, %v976
  %v985 = vmul.f32 %v835, %v976
  %v986 = vmul.f32 %v840, %v976
  %v987 = vmul.f32 %v843, %v976
  %v988 = vmul.f32 %v848, %v976
  %v989 = vmul.f32 %v851, %v976
  %v990 = vmul.f32 %v856, %v976
  %v991 = vmul.f32 %v859, %v976
  %v992 = vmul.f32 %v864, %v976
  %v993 = vmul.f32 %v867, %v976
  %v994 = vmul.f32 %v911, %v971
  %v995 = vsub.f32 %v871, %v994
  %v997 = vlaneseq
  %v998 = vshrl.u32 %v997, 7
  %v999 = vsub.s32 0, %v998
  %v1000 = vrot.slane %v995, %v999
  %v1002 = vadd.f32 %v978, %v1000
  %v1003 = vadd.f32 %v979, %v1000
  %v1004 = vadd.f32 %v980, %v1000
  %v1005 = vadd.f32 %v981, %v1000
  %v1006 = vadd.f32 %v982, %v1000
  %v1007 = vadd.f32 %v983, %v1000
  %v1008 = vadd.f32 %v984, %v1000
  %v1009 = vadd.f32 %v985, %v1000
  %v1010 = vadd.f32 %v986, %v1000
  %v1011 = vadd.f32 %v987, %v1000
  %v1012 = vadd.f32 %v988, %v1000
  %v1013 = vadd.f32 %v989, %v1000
  %v1014 = vadd.f32 %v990, %v1000
  %v1015 = vadd.f32 %v991, %v1000
  %v1016 = vadd.f32 %v992, %v1000
  %v1017 = vadd.f32 %v993, %v1000
  %v1018 = vmax.f32 %v1002, 0.0
  %v1019 = vmax.f32 %v1003, 0.0
  %v1020 = vmax.f32 %v1004, 0.0
  %v1021 = vmax.f32 %v1005, 0.0
  %v1022 = vmax.f32 %v1006, 0.0
  %v1023 = vmax.f32 %v1007, 0.0
  %v1024 = vmax.f32 %v1008, 0.0
  %v1025 = vmax.f32 %v1009, 0.0
  %v1026 = vmax.f32 %v1010, 0.0
  %v1027 = vmax.f32 %v1011, 0.0
  %v1028 = vmax.f32 %v1012, 0.0
  %v1029 = vmax.f32 %v1013, 0.0
  %v1030 = vmax.f32 %v1014, 0.0
  %v1031 = vmax.f32 %v1015, 0.0
  %v1032 = vmax.f32 %v1016, 0.0
  %v1033 = vmax.f32 %v1017, 0.0
  %1034 = vst.msk [vmem:[%s4] sm:$0xff] %vm872, %v1018
  %1035 = vst.msk [vmem:[%s4 + $0x8] sm:$0xff] %vm872, %v1019
  %1036 = vst.msk [vmem:[%s4 + $0x10] sm:$0xff] %vm872, %v1020
  %1037 = vst.msk [vmem:[%s4 + $0x18] sm:$0xff] %vm872, %v1021
  %1038 = vst.msk [vmem:[%s4 + $0x20] sm:$0xff] %vm872, %v1022
  %1039 = vst.msk [vmem:[%s4 + $0x28] sm:$0xff] %vm872, %v1023
  %1040 = vst.msk [vmem:[%s4 + $0x30] sm:$0xff] %vm872, %v1024
  %1041 = vst.msk [vmem:[%s4 + $0x38] sm:$0xff] %vm872, %v1025
  %1042 = vst.msk [vmem:[%s4 + $0x40] sm:$0xff] %vm872, %v1026
  %1043 = vst.msk [vmem:[%s4 + $0x48] sm:$0xff] %vm872, %v1027
  %1044 = vst.msk [vmem:[%s4 + $0x50] sm:$0xff] %vm872, %v1028
  %1045 = vst.msk [vmem:[%s4 + $0x58] sm:$0xff] %vm872, %v1029
  %1046 = vst.msk [vmem:[%s4 + $0x60] sm:$0xff] %vm872, %v1030
  %1047 = vst.msk [vmem:[%s4 + $0x68] sm:$0xff] %vm872, %v1031
  %1048 = vst.msk [vmem:[%s4 + $0x70] sm:$0xff] %vm872, %v1032
  %1049 = vst.msk [vmem:[%s4 + $0x78] sm:$0xff] %vm872, %v1033
  // Predicated region
  $region18: #{net_forward.144} parent=0 // pred_check
    _
  $region19: #{net_forward.144} parent=0 // pred_check_branch
    %1051 = sbr.rel (0) target = $region21
  $region20: #{net_forward.144} parent=0 // pred_region
    _
  $region21: #{net_forward.144} parent=0 // pred_fallthru
    _
  // Predicated region
  $region22: #{net_forward.144} parent=0 // pred_check
    _
  $region23: #{net_forward.144} parent=0 // pred_check_branch
    %1053 = sbr.rel (0) target = $region25
  $region24: #{net_forward.144} parent=0 // pred_region
    _
  $region25: #{net_forward.144} parent=0 // pred_fallthru
    _

// kernel: net_forward.146
$region0: #{net_forward.146}
  #allocation0 [shape = 'u32[]', space=smem, size = 0x4, offset = 0x4, fixed_abs, tag = 'smem constant byte address 0x4 - core index']
  #allocation1 [shape = 'u32[144,128]{1,0:T(1,128)}', space=vmem, size = 0x12000, scoped, tag = 'internal scratch']
  %s0 = inlined_call_operand.vmem [shape: bf16[128,48], index: 0, kind: input, shape index: {}]
  %s1 = inlined_call_operand.vmem [shape: bf16[48,16], index: 1, kind: input, shape index: {}]
  %s2 = inlined_call_operand.vmem [shape: f32[1,16], index: 2, kind: input, shape index: {}]
  %s3 = inlined_call_operand.vmem [shape: f32[1,16], index: 3, kind: input, shape index: {}]
  %s4 = inlined_call_operand.vmem [shape: f32[128,16], index: 4, kind: output, shape index: {}]
  %s5 = sld [smem:[#allocation0]]
  $region26: #{net_forward.146} parent=0
    _
  %s7 = ssub.s32 1, %s5
  %s8 = scalar_select 0, %s7, %s5
  // Predicated region
  $region2: #{net_forward.146} parent=0 // pred_check
    _
  $region3: #{net_forward.146} parent=0 // pred_check_branch
    %10 = sbr.rel (0) target = $region5
  $region4: #{net_forward.146} parent=0 // pred_region
    _
  $region5: #{net_forward.146} parent=0 // pred_fallthru
    _
  // Predicated region
  $region6: #{net_forward.146} parent=0 // pred_check
    _
  $region7: #{net_forward.146} parent=0 // pred_check_branch
    %12 = sbr.rel (0) target = $region9
  $region8: #{net_forward.146} parent=0 // pred_region
    _
  $region9: #{net_forward.146} parent=0 // pred_fallthru
    _
  // Predicated region
  $region10: #{net_forward.146} parent=0 // pred_check
    _
  $region11: #{net_forward.146} parent=0 // pred_check_branch
    %14 = sbr.rel (0) target = $region13
  $region12: #{net_forward.146} parent=0 // pred_region
    _
  $region13: #{net_forward.146} parent=0 // pred_fallthru
    _
  // Predicated region
  $region14: #{net_forward.146} parent=0 // pred_check
    _
  $region15: #{net_forward.146} parent=0 // pred_check_branch
    %16 = sbr.rel (0) target = $region17
  $region16: #{net_forward.146} parent=0 // pred_region
    _
  $region17: #{net_forward.146} parent=0 // pred_fallthru
    _
  %v18 = vld [vmem:[%s0] sm:$0xf]
  %v19 = vld [vmem:[%s0 + $0x4] sm:$0xf]
  %v20 = vld [vmem:[%s0 + $0x8] sm:$0xf]
  %v21 = vld [vmem:[%s0 + $0xc] sm:$0xf]
  %v22 = vld [vmem:[%s0 + $0x10] sm:$0xf]
  %v23 = vld [vmem:[%s0 + $0x14] sm:$0xf]
  %v24 = vld [vmem:[%s0 + $0x18] sm:$0xf]
  %v25 = vld [vmem:[%s0 + $0x1c] sm:$0xf]
  %v26 = vld [vmem:[%s0 + $0x20] sm:$0xf]
  %v27 = vld [vmem:[%s0 + $0x24] sm:$0xf]
  %v28 = vld [vmem:[%s0 + $0x28] sm:$0xf]
  %v29 = vld [vmem:[%s0 + $0x2c] sm:$0xf]
  %v30 = vld [vmem:[%s0 + $0x30] sm:$0xf]
  %v31 = vld [vmem:[%s0 + $0x34] sm:$0xf]
  %v32 = vld [vmem:[%s0 + $0x38] sm:$0xf]
  %v33 = vld [vmem:[%s0 + $0x3c] sm:$0xf]
  %v34 = vld [vmem:[%s1] sm:$0xf]
  %v35 = vld [vmem:[%s1 + $0x4] sm:$0xf]
  %v36 = vld [vmem:[%s1 + $0x8] sm:$0xf]
  %v37 = vld [vmem:[%s1 + $0xc] sm:$0xf]
  %v38 = vld [vmem:[%s1 + $0x10] sm:$0xf]
  %v39 = vld [vmem:[%s1 + $0x14] sm:$0xf]
  %v56 = vunpack.c.l.b16 %v18
  %v57 = vunpack.c.l.b16 %v19
  %v58 = vunpack.c.l.b16 %v20
  %v59 = vunpack.c.l.b16 %v21
  %v60 = vunpack.c.l.b16 %v22
  %v61 = vunpack.c.l.b16 %v23
  %v62 = vunpack.c.l.b16 %v24
  %v63 = vunpack.c.l.b16 %v25
  %v64 = vunpack.c.l.b16 %v26
  %v65 = vunpack.c.l.b16 %v27
  %v66 = vunpack.c.l.b16 %v28
  %v67 = vunpack.c.l.b16 %v29
  %v68 = vunpack.c.l.b16 %v30
  %v69 = vunpack.c.l.b16 %v31
  %v70 = vunpack.c.l.b16 %v32
  %v71 = vunpack.c.l.b16 %v33
  %v72 = vpack.c.b16 %v57, %v56
  %v73 = vpack.c.b16 %v59, %v58
  %v74 = vpack.c.b16 %v61, %v60
  %v75 = vpack.c.b16 %v63, %v62
  %v76 = vpack.c.b16 %v65, %v64
  %v77 = vpack.c.b16 %v67, %v66
  %v78 = vpack.c.b16 %v69, %v68
  %v79 = vpack.c.b16 %v71, %v70
  %v86 = vunpack.c.l.b16 %v34
  %v87 = vunpack.c.l.b16 %v35
  %v88 = vunpack.c.l.b16 %v36
  %v89 = vunpack.c.l.b16 %v37
  %v90 = vunpack.c.l.b16 %v38
  %v91 = vunpack.c.l.b16 %v39
  %v92 = vpack.c.b16 %v87, %v86
  %v93 = vpack.c.b16 %v89, %v88
  %v94 = vpack.c.b16 %v91, %v90
  %vm98 = vcmask 392192
  %v100 = vsel %vm98, %v72, 0
  %v103 = vsel %vm98, %v73, 0
  %v106 = vsel %vm98, %v74, 0
  %v109 = vsel %vm98, %v75, 0
  %v112 = vsel %vm98, %v76, 0
  %v115 = vsel %vm98, %v77, 0
  %v118 = vsel %vm98, %v78, 0
  %v121 = vsel %vm98, %v79, 0
  %123 = vmatprep.subr.bf16.mxu0 0
  %124 = vmatpush1.bf16.msra.mxu0 0
  %125 = vmatprep.subr.bf16.mxu0 0
  %126 = vmatpush1.bf16.msra.mxu0 0
  %127 = vmatprep.subr.bf16.mxu0 0
  %128 = vmatpush1.bf16.msra.mxu0 0
  %129 = vmatprep.subr.bf16.mxu0 0
  %130 = vmatpush1.bf16.msra.mxu0 0
  %131 = vmatprep.subr.bf16.mxu0 0
  %132 = vmatpush1.bf16.msra.mxu0 0
  %133 = vmatprep.subr.bf16.mxu0 0
  %134 = vmatpush1.bf16.msra.mxu0 %v94
  %135 = vmatprep.subr.bf16.mxu0 0
  %136 = vmatpush1.bf16.msra.mxu0 %v93
  %137 = vmatprep.subr.bf16.mxu0 0
  %138 = vmatpush1.bf16.msra.mxu0 %v92
  %139 = vmatprep.subr.bf16.mxu0 0
  %140 = vmatpush2.bf16.msra.mxu0 0
  %141 = vmatprep.subr.bf16.mxu0 0
  %142 = vmatpush2.bf16.msra.mxu0 0
  %143 = vmatprep.subr.bf16.mxu0 0
  %144 = vmatpush2.bf16.msra.mxu0 0
  %145 = vmatprep.subr.bf16.mxu0 0
  %146 = vmatpush2.bf16.msra.mxu0 0
  %147 = vmatprep.subr.bf16.mxu0 0
  %148 = vmatpush2.bf16.msra.mxu0 0
  %149 = vmatprep.subr.bf16.mxu0 0
  %150 = vmatpush2.bf16.msra.mxu0 0
  %151 = vmatprep.subr.bf16.mxu0 0
  %152 = vmatpush2.bf16.msra.mxu0 0
  %153 = vmatprep.subr.bf16.mxu0 0
  %154 = vmatpush2.bf16.msra.mxu0 0
  %155 = vmatprep.mubr.bf16.mxu0 0
  %156 = vmatmul.mubr.bf16.gmra.mxu0 %v100
  %v157 = vpop.f32.mrf.mxu0
  %v158 = vadd.f32 0.0, %v157
  %v159 = vpop.f32.mrf.mxu0
  %v160 = vpop.f32.mrf.mxu0
  %v161 = vadd.f32 0.0, %v160
  %v162 = vpop.f32.mrf.mxu0
  %163 = vmatprep.mubr.bf16.mxu0 0
  %164 = vmatmul.mubr.bf16.gmra.mxu0 %v103
  %v165 = vpop.f32.mrf.mxu0
  %v166 = vadd.f32 0.0, %v165
  %v167 = vpop.f32.mrf.mxu0
  %v168 = vpop.f32.mrf.mxu0
  %v169 = vadd.f32 0.0, %v168
  %v170 = vpop.f32.mrf.mxu0
  %171 = vmatprep.mubr.bf16.mxu0 0
  %172 = vmatmul.mubr.bf16.gmra.mxu0 %v106
  %v173 = vpop.f32.mrf.mxu0
  %v174 = vadd.f32 0.0, %v173
  %v175 = vpop.f32.mrf.mxu0
  %v176 = vpop.f32.mrf.mxu0
  %v177 = vadd.f32 0.0, %v176
  %v178 = vpop.f32.mrf.mxu0
  %179 = vmatprep.mubr.bf16.mxu0 0
  %180 = vmatmul.mubr.bf16.gmra.mxu0 %v109
  %v181 = vpop.f32.mrf.mxu0
  %v182 = vadd.f32 0.0, %v181
  %v183 = vpop.f32.mrf.mxu0
  %v184 = vpop.f32.mrf.mxu0
  %v185 = vadd.f32 0.0, %v184
  %v186 = vpop.f32.mrf.mxu0
  %187 = vmatprep.mubr.bf16.mxu0 0
  %188 = vmatmul.mubr.bf16.gmra.mxu0 %v112
  %v189 = vpop.f32.mrf.mxu0
  %v190 = vadd.f32 0.0, %v189
  %v191 = vpop.f32.mrf.mxu0
  %v192 = vpop.f32.mrf.mxu0
  %v193 = vadd.f32 0.0, %v192
  %v194 = vpop.f32.mrf.mxu0
  %195 = vmatprep.mubr.bf16.mxu0 0
  %196 = vmatmul.mubr.bf16.gmra.mxu0 %v115
  %v197 = vpop.f32.mrf.mxu0
  %v198 = vadd.f32 0.0, %v197
  %v199 = vpop.f32.mrf.mxu0
  %v200 = vpop.f32.mrf.mxu0
  %v201 = vadd.f32 0.0, %v200
  %v202 = vpop.f32.mrf.mxu0
  %203 = vmatprep.mubr.bf16.mxu0 0
  %204 = vmatmul.mubr.bf16.gmra.mxu0 %v118
  %v205 = vpop.f32.mrf.mxu0
  %v206 = vadd.f32 0.0, %v205
  %v207 = vpop.f32.mrf.mxu0
  %v208 = vpop.f32.mrf.mxu0
  %v209 = vadd.f32 0.0, %v208
  %v210 = vpop.f32.mrf.mxu0
  %211 = vmatprep.mubr.bf16.mxu0 0
  %212 = vmatmul.mubr.bf16.gmra.mxu0 %v121
  %v213 = vpop.f32.mrf.mxu0
  %v214 = vadd.f32 0.0, %v213
  %v215 = vpop.f32.mrf.mxu0
  %v216 = vpop.f32.mrf.mxu0
  %v217 = vadd.f32 0.0, %v216
  %v218 = vpop.f32.mrf.mxu0
  %219 = vdwg.mxu0
  %v220 = vld [vmem:[%s2] sm:$0x1]
  %v221 = vld [vmem:[%s3] sm:$0x1]
  %vm222 = vcmask 130048
  %v223 = vsel %vm222, %v158, 0.0
  %v224 = vsel %vm222, %v161, 0.0
  %v225 = vadd.f32 %v223, %v224
  %v226 = vsel %vm222, %v166, 0.0
  %v227 = vadd.f32 %v225, %v226
  %v228 = vsel %vm222, %v169, 0.0
  %v229 = vadd.f32 %v227, %v228
  %v230 = vsel %vm222, %v174, 0.0
  %v231 = vadd.f32 %v229, %v230
  %v232 = vsel %vm222, %v177, 0.0
  %v233 = vadd.f32 %v231, %v232
  %v234 = vsel %vm222, %v182, 0.0
  %v235 = vadd.f32 %v233, %v234
  %v236 = vsel %vm222, %v185, 0.0
  %v237 = vadd.f32 %v235, %v236
  %v238 = vsel %vm222, %v190, 0.0
  %v239 = vadd.f32 %v237, %v238
  %v240 = vsel %vm222, %v193, 0.0
  %v241 = vadd.f32 %v239, %v240
  %v242 = vsel %vm222, %v198, 0.0
  %v243 = vadd.f32 %v241, %v242
  %v244 = vsel %vm222, %v201, 0.0
  %v245 = vadd.f32 %v243, %v244
  %v246 = vsel %vm222, %v206, 0.0
  %v247 = vadd.f32 %v245, %v246
  %v248 = vsel %vm222, %v209, 0.0
  %v249 = vadd.f32 %v247, %v248
  %v250 = vsel %vm222, %v214, 0.0
  %v251 = vadd.f32 %v249, %v250
  %v252 = vsel %vm222, %v217, 0.0
  %v253 = vadd.f32 %v251, %v252
  %v254 = vrot.slane %v253, 4
  %v255 = vadd.f32 %v253, %v254
  %v256 = vrot.slane %v255, 2
  %v257 = vadd.f32 %v255, %v256
  %v258 = vrot.slane %v257, 1
  %v259 = vadd.f32 %v257, %v258
  %v260 = vrcp.pop 128.0
  %v261 = vmul.f32 %v259, %v260
  %v262 = vmul.f32 %v158, %v158
  %v263 = vmul.f32 %v161, %v161
  %v264 = vmul.f32 %v166, %v166
  %v265 = vmul.f32 %v169, %v169
  %v266 = vmul.f32 %v174, %v174
  %v267 = vmul.f32 %v177, %v177
  %v268 = vmul.f32 %v182, %v182
  %v269 = vmul.f32 %v185, %v185
  %v270 = vmul.f32 %v190, %v190
  %v271 = vmul.f32 %v193, %v193
  %v272 = vmul.f32 %v198, %v198
  %v273 = vmul.f32 %v201, %v201
  %v274 = vmul.f32 %v206, %v206
  %v275 = vmul.f32 %v209, %v209
  %v276 = vmul.f32 %v214, %v214
  %v277 = vmul.f32 %v217, %v217
  %v278 = vsel %vm222, %v262, 0.0
  %v279 = vsel %vm222, %v263, 0.0
  %v280 = vadd.f32 %v278, %v279
  %v281 = vsel %vm222, %v264, 0.0
  %v282 = vadd.f32 %v280, %v281
  %v283 = vsel %vm222, %v265, 0.0
  %v284 = vadd.f32 %v282, %v283
  %v285 = vsel %vm222, %v266, 0.0
  %v286 = vadd.f32 %v284, %v285
  %v287 = vsel %vm222, %v267, 0.0
  %v288 = vadd.f32 %v286, %v287
  %v289 = vsel %vm222, %v268, 0.0
  %v290 = vadd.f32 %v288, %v289
  %v291 = vsel %vm222, %v269, 0.0
  %v292 = vadd.f32 %v290, %v291
  %v293 = vsel %vm222, %v270, 0.0
  %v294 = vadd.f32 %v292, %v293
  %v295 = vsel %vm222, %v271, 0.0
  %v296 = vadd.f32 %v294, %v295
  %v297 = vsel %vm222, %v272, 0.0
  %v298 = vadd.f32 %v296, %v297
  %v299 = vsel %vm222, %v273, 0.0
  %v300 = vadd.f32 %v298, %v299
  %v301 = vsel %vm222, %v274, 0.0
  %v302 = vadd.f32 %v300, %v301
  %v303 = vsel %vm222, %v275, 0.0
  %v304 = vadd.f32 %v302, %v303
  %v305 = vsel %vm222, %v276, 0.0
  %v306 = vadd.f32 %v304, %v305
  %v307 = vsel %vm222, %v277, 0.0
  %v308 = vadd.f32 %v306, %v307
  %v309 = vrot.slane %v308, 4
  %v310 = vadd.f32 %v308, %v309
  %v311 = vrot.slane %v310, 2
  %v312 = vadd.f32 %v310, %v311
  %v313 = vrot.slane %v312, 1
  %v314 = vadd.f32 %v312, %v313
  %v315 = vmul.f32 %v314, %v260
  %v316 = vmul.f32 %v261, %v261
  %v317 = vsub.f32 %v315, %v316
  %v318 = vmax.f32 %v317, 0.0
  %v319 = vadd.f32 %v318, 0.001
  %v320 = vrsqrt.pop %v319
  %v321 = vmul.f32 %v220, %v320
  %v323 = vlaneseq
  %v324 = vshrl.u32 %v323, 7
  %v325 = vsub.s32 0, %v324
  %v326 = vrot.slane %v321, %v325
  %v328 = vmul.f32 %v158, %v326
  %v329 = vmul.f32 %v161, %v326
  %v330 = vmul.f32 %v166, %v326
  %v331 = vmul.f32 %v169, %v326
  %v332 = vmul.f32 %v174, %v326
  %v333 = vmul.f32 %v177, %v326
  %v334 = vmul.f32 %v182, %v326
  %v335 = vmul.f32 %v185, %v326
  %v336 = vmul.f32 %v190, %v326
  %v337 = vmul.f32 %v193, %v326
  %v338 = vmul.f32 %v198, %v326
  %v339 = vmul.f32 %v201, %v326
  %v340 = vmul.f32 %v206, %v326
  %v341 = vmul.f32 %v209, %v326
  %v342 = vmul.f32 %v214, %v326
  %v343 = vmul.f32 %v217, %v326
  %v344 = vmul.f32 %v261, %v321
  %v345 = vsub.f32 %v221, %v344
  %v347 = vlaneseq
  %v348 = vshrl.u32 %v347, 7
  %v349 = vsub.s32 0, %v348
  %v350 = vrot.slane %v345, %v349
  %v352 = vadd.f32 %v328, %v350
  %v353 = vadd.f32 %v329, %v350
  %v354 = vadd.f32 %v330, %v350
  %v355 = vadd.f32 %v331, %v350
  %v356 = vadd.f32 %v332, %v350
  %v357 = vadd.f32 %v333, %v350
  %v358 = vadd.f32 %v334, %v350
  %v359 = vadd.f32 %v335, %v350
  %v360 = vadd.f32 %v336, %v350
  %v361 = vadd.f32 %v337, %v350
  %v362 = vadd.f32 %v338, %v350
  %v363 = vadd.f32 %v339, %v350
  %v364 = vadd.f32 %v340, %v350
  %v365 = vadd.f32 %v341, %v350
  %v366 = vadd.f32 %v342, %v350
  %v367 = vadd.f32 %v343, %v350
  %v368 = vmax.f32 %v352, 0.0
  %v369 = vmax.f32 %v353, 0.0
  %v370 = vmax.f32 %v354, 0.0
  %v371 = vmax.f32 %v355, 0.0
  %v372 = vmax.f32 %v356, 0.0
  %v373 = vmax.f32 %v357, 0.0
  %v374 = vmax.f32 %v358, 0.0
  %v375 = vmax.f32 %v359, 0.0
  %v376 = vmax.f32 %v360, 0.0
  %v377 = vmax.f32 %v361, 0.0
  %v378 = vmax.f32 %v362, 0.0
  %v379 = vmax.f32 %v363, 0.0
  %v380 = vmax.f32 %v364, 0.0
  %v381 = vmax.f32 %v365, 0.0
  %v382 = vmax.f32 %v366, 0.0
  %v383 = vmax.f32 %v367, 0.0
  %384 = vst.msk [vmem:[%s4] sm:$0xff] %vm222, %v368
  %385 = vst.msk [vmem:[%s4 + $0x8] sm:$0xff] %vm222, %v369
  %386 = vst.msk [vmem:[%s4 + $0x10] sm:$0xff] %vm222, %v370
  %387 = vst.msk [vmem:[%s4 + $0x18] sm:$0xff] %vm222, %v371
  %388 = vst.msk [vmem:[%s4 + $0x20] sm:$0xff] %vm222, %v372
  %389 = vst.msk [vmem:[%s4 + $0x28] sm:$0xff] %vm222, %v373
  %390 = vst.msk [vmem:[%s4 + $0x30] sm:$0xff] %vm222, %v374
  %391 = vst.msk [vmem:[%s4 + $0x38] sm:$0xff] %vm222, %v375
  %392 = vst.msk [vmem:[%s4 + $0x40] sm:$0xff] %vm222, %v376
  %393 = vst.msk [vmem:[%s4 + $0x48] sm:$0xff] %vm222, %v377
  %394 = vst.msk [vmem:[%s4 + $0x50] sm:$0xff] %vm222, %v378
  %395 = vst.msk [vmem:[%s4 + $0x58] sm:$0xff] %vm222, %v379
  %396 = vst.msk [vmem:[%s4 + $0x60] sm:$0xff] %vm222, %v380
  %397 = vst.msk [vmem:[%s4 + $0x68] sm:$0xff] %vm222, %v381
  %398 = vst.msk [vmem:[%s4 + $0x70] sm:$0xff] %vm222, %v382
  %399 = vst.msk [vmem:[%s4 + $0x78] sm:$0xff] %vm222, %v383
  // Predicated region
  $region18: #{net_forward.146} parent=0 // pred_check
    _
  $region19: #{net_forward.146} parent=0 // pred_check_branch
    %401 = sbr.rel (0) target = $region21
  $region20: #{net_forward.146} parent=0 // pred_region
    _
  $region21: #{net_forward.146} parent=0 // pred_fallthru
    _
  // Predicated region
  $region22: #{net_forward.146} parent=0 // pred_check
    _
  $region23: #{net_forward.146} parent=0 // pred_check_branch
    %403 = sbr.rel (0) target = $region25
  $region24: #{net_forward.146} parent=0 // pred_region
    _
  $region25: #{net_forward.146} parent=0 // pred_fallthru
    _

// kernel: net_forward.148
$region0: #{net_forward.148}
  #allocation0 [shape = 'u32[]', space=smem, size = 0x4, offset = 0x4, fixed_abs, tag = 'smem constant byte address 0x4 - core index']
  #allocation1 [shape = 'u32[144,128]{1,0:T(1,128)}', space=vmem, size = 0x12000, scoped, tag = 'internal scratch']
  %s0 = inlined_call_operand.vmem [shape: bf16[128,48], index: 0, kind: input, shape index: {}]
  %s1 = inlined_call_operand.vmem [shape: bf16[48,16], index: 1, kind: input, shape index: {}]
  %s2 = inlined_call_operand.vmem [shape: f32[1,16], index: 2, kind: input, shape index: {}]
  %s3 = inlined_call_operand.vmem [shape: f32[1,16], index: 3, kind: input, shape index: {}]
  %s4 = inlined_call_operand.vmem [shape: f32[128,16], index: 4, kind: input, shape index: {}]
  %s5 = inlined_call_operand.vmem [shape: f32[128,16], index: 5, kind: output, shape index: {}]
  %s6 = sld [smem:[#allocation0]]
  $region30: #{net_forward.148} parent=0
    _
  %s8 = ssub.s32 1, %s6
  %s9 = scalar_select 0, %s8, %s6
  // Predicated region
  $region2: #{net_forward.148} parent=0 // pred_check
    _
  $region3: #{net_forward.148} parent=0 // pred_check_branch
    %11 = sbr.rel (0) target = $region5
  $region4: #{net_forward.148} parent=0 // pred_region
    _
  $region5: #{net_forward.148} parent=0 // pred_fallthru
    _
  // Predicated region
  $region6: #{net_forward.148} parent=0 // pred_check
    _
  $region7: #{net_forward.148} parent=0 // pred_check_branch
    %13 = sbr.rel (0) target = $region9
  $region8: #{net_forward.148} parent=0 // pred_region
    _
  $region9: #{net_forward.148} parent=0 // pred_fallthru
    _
  // Predicated region
  $region10: #{net_forward.148} parent=0 // pred_check
    _
  $region11: #{net_forward.148} parent=0 // pred_check_branch
    %15 = sbr.rel (0) target = $region13
  $region12: #{net_forward.148} parent=0 // pred_region
    _
  $region13: #{net_forward.148} parent=0 // pred_fallthru
    _
  // Predicated region
  $region14: #{net_forward.148} parent=0 // pred_check
    _
  $region15: #{net_forward.148} parent=0 // pred_check_branch
    %17 = sbr.rel (0) target = $region17
  $region16: #{net_forward.148} parent=0 // pred_region
    _
  $region17: #{net_forward.148} parent=0 // pred_fallthru
    _
  // Predicated region
  $region18: #{net_forward.148} parent=0 // pred_check
    _
  $region19: #{net_forward.148} parent=0 // pred_check_branch
    %19 = sbr.rel (0) target = $region21
  $region20: #{net_forward.148} parent=0 // pred_region
    _
  $region21: #{net_forward.148} parent=0 // pred_fallthru
    _
  %v21 = vld [vmem:[%s0] sm:$0xf]
  %v22 = vld [vmem:[%s0 + $0x4] sm:$0xf]
  %v23 = vld [vmem:[%s0 + $0x8] sm:$0xf]
  %v24 = vld [vmem:[%s0 + $0xc] sm:$0xf]
  %v25 = vld [vmem:[%s0 + $0x10] sm:$0xf]
  %v26 = vld [vmem:[%s0 + $0x14] sm:$0xf]
  %v27 = vld [vmem:[%s0 + $0x18] sm:$0xf]
  %v28 = vld [vmem:[%s0 + $0x1c] sm:$0xf]
  %v29 = vld [vmem:[%s0 + $0x20] sm:$0xf]
  %v30 = vld [vmem:[%s0 + $0x24] sm:$0xf]
  %v31 = vld [vmem:[%s0 + $0x28] sm:$0xf]
  %v32 = vld [vmem:[%s0 + $0x2c] sm:$0xf]
  %v33 = vld [vmem:[%s0 + $0x30] sm:$0xf]
  %v34 = vld [vmem:[%s0 + $0x34] sm:$0xf]
  %v35 = vld [vmem:[%s0 + $0x38] sm:$0xf]
  %v36 = vld [vmem:[%s0 + $0x3c] sm:$0xf]
  %v37 = vld [vmem:[%s1] sm:$0xf]
  %v38 = vld [vmem:[%s1 + $0x4] sm:$0xf]
  %v39 = vld [vmem:[%s1 + $0x8] sm:$0xf]
  %v40 = vld [vmem:[%s1 + $0xc] sm:$0xf]
  %v41 = vld [vmem:[%s1 + $0x10] sm:$0xf]
  %v42 = vld [vmem:[%s1 + $0x14] sm:$0xf]
  %v59 = vunpack.c.l.b16 %v21
  %v60 = vunpack.c.l.b16 %v22
  %v61 = vunpack.c.l.b16 %v23
  %v62 = vunpack.c.l.b16 %v24
  %v63 = vunpack.c.l.b16 %v25
  %v64 = vunpack.c.l.b16 %v26
  %v65 = vunpack.c.l.b16 %v27
  %v66 = vunpack.c.l.b16 %v28
  %v67 = vunpack.c.l.b16 %v29
  %v68 = vunpack.c.l.b16 %v30
  %v69 = vunpack.c.l.b16 %v31
  %v70 = vunpack.c.l.b16 %v32
  %v71 = vunpack.c.l.b16 %v33
  %v72 = vunpack.c.l.b16 %v34
  %v73 = vunpack.c.l.b16 %v35
  %v74 = vunpack.c.l.b16 %v36
  %v75 = vpack.c.b16 %v60, %v59
  %v76 = vpack.c.b16 %v62, %v61
  %v77 = vpack.c.b16 %v64, %v63
  %v78 = vpack.c.b16 %v66, %v65
  %v79 = vpack.c.b16 %v68, %v67
  %v80 = vpack.c.b16 %v70, %v69
  %v81 = vpack.c.b16 %v72, %v71
  %v82 = vpack.c.b16 %v74, %v73
  %v89 = vunpack.c.l.b16 %v37
  %v90 = vunpack.c.l.b16 %v38
  %v91 = vunpack.c.l.b16 %v39
  %v92 = vunpack.c.l.b16 %v40
  %v93 = vunpack.c.l.b16 %v41
  %v94 = vunpack.c.l.b16 %v42
  %v95 = vpack.c.b16 %v90, %v89
  %v96 = vpack.c.b16 %v92, %v91
  %v97 = vpack.c.b16 %v94, %v93
  %vm101 = vcmask 392192
  %v103 = vsel %vm101, %v75, 0
  %v106 = vsel %vm101, %v76, 0
  %v109 = vsel %vm101, %v77, 0
  %v112 = vsel %vm101, %v78, 0
  %v115 = vsel %vm101, %v79, 0
  %v118 = vsel %vm101, %v80, 0
  %v121 = vsel %vm101, %v81, 0
  %v124 = vsel %vm101, %v82, 0
  %126 = vmatprep.subr.bf16.mxu0 0
  %127 = vmatpush1.bf16.msra.mxu0 0
  %128 = vmatprep.subr.bf16.mxu0 0
  %129 = vmatpush1.bf16.msra.mxu0 0
  %130 = vmatprep.subr.bf16.mxu0 0
  %131 = vmatpush1.bf16.msra.mxu0 0
  %132 = vmatprep.subr.bf16.mxu0 0
  %133 = vmatpush1.bf16.msra.mxu0 0
  %134 = vmatprep.subr.bf16.mxu0 0
  %135 = vmatpush1.bf16.msra.mxu0 0
  %136 = vmatprep.subr.bf16.mxu0 0
  %137 = vmatpush1.bf16.msra.mxu0 %v97
  %138 = vmatprep.subr.bf16.mxu0 0
  %139 = vmatpush1.bf16.msra.mxu0 %v96
  %140 = vmatprep.subr.bf16.mxu0 0
  %141 = vmatpush1.bf16.msra.mxu0 %v95
  %142 = vmatprep.subr.bf16.mxu0 0
  %143 = vmatpush2.bf16.msra.mxu0 0
  %144 = vmatprep.subr.bf16.mxu0 0
  %145 = vmatpush2.bf16.msra.mxu0 0
  %146 = vmatprep.subr.bf16.mxu0 0
  %147 = vmatpush2.bf16.msra.mxu0 0
  %148 = vmatprep.subr.bf16.mxu0 0
  %149 = vmatpush2.bf16.msra.mxu0 0
  %150 = vmatprep.subr.bf16.mxu0 0
  %151 = vmatpush2.bf16.msra.mxu0 0
  %152 = vmatprep.subr.bf16.mxu0 0
  %153 = vmatpush2.bf16.msra.mxu0 0
  %154 = vmatprep.subr.bf16.mxu0 0
  %155 = vmatpush2.bf16.msra.mxu0 0
  %156 = vmatprep.subr.bf16.mxu0 0
  %157 = vmatpush2.bf16.msra.mxu0 0
  %158 = vmatprep.mubr.bf16.mxu0 0
  %159 = vmatmul.mubr.bf16.gmra.mxu0 %v103
  %v160 = vpop.f32.mrf.mxu0
  %v161 = vadd.f32 0.0, %v160
  %v162 = vpop.f32.mrf.mxu0
  %v163 = vpop.f32.mrf.mxu0
  %v164 = vadd.f32 0.0, %v163
  %v165 = vpop.f32.mrf.mxu0
  %166 = vmatprep.mubr.bf16.mxu0 0
  %167 = vmatmul.mubr.bf16.gmra.mxu0 %v106
  %v168 = vpop.f32.mrf.mxu0
  %v169 = vadd.f32 0.0, %v168
  %v170 = vpop.f32.mrf.mxu0
  %v171 = vpop.f32.mrf.mxu0
  %v172 = vadd.f32 0.0, %v171
  %v173 = vpop.f32.mrf.mxu0
  %174 = vmatprep.mubr.bf16.mxu0 0
  %175 = vmatmul.mubr.bf16.gmra.mxu0 %v109
  %v176 = vpop.f32.mrf.mxu0
  %v177 = vadd.f32 0.0, %v176
  %v178 = vpop.f32.mrf.mxu0
  %v179 = vpop.f32.mrf.mxu0
  %v180 = vadd.f32 0.0, %v179
  %v181 = vpop.f32.mrf.mxu0
  %182 = vmatprep.mubr.bf16.mxu0 0
  %183 = vmatmul.mubr.bf16.gmra.mxu0 %v112
  %v184 = vpop.f32.mrf.mxu0
  %v185 = vadd.f32 0.0, %v184
  %v186 = vpop.f32.mrf.mxu0
  %v187 = vpop.f32.mrf.mxu0
  %v188 = vadd.f32 0.0, %v187
  %v189 = vpop.f32.mrf.mxu0
  %190 = vmatprep.mubr.bf16.mxu0 0
  %191 = vmatmul.mubr.bf16.gmra.mxu0 %v115
  %v192 = vpop.f32.mrf.mxu0
  %v193 = vadd.f32 0.0, %v192
  %v194 = vpop.f32.mrf.mxu0
  %v195 = vpop.f32.mrf.mxu0
  %v196 = vadd.f32 0.0, %v195
  %v197 = vpop.f32.mrf.mxu0
  %198 = vmatprep.mubr.bf16.mxu0 0
  %199 = vmatmul.mubr.bf16.gmra.mxu0 %v118
  %v200 = vpop.f32.mrf.mxu0
  %v201 = vadd.f32 0.0, %v200
  %v202 = vpop.f32.mrf.mxu0
  %v203 = vpop.f32.mrf.mxu0
  %v204 = vadd.f32 0.0, %v203
  %v205 = vpop.f32.mrf.mxu0
  %206 = vmatprep.mubr.bf16.mxu0 0
  %207 = vmatmul.mubr.bf16.gmra.mxu0 %v121
  %v208 = vpop.f32.mrf.mxu0
  %v209 = vadd.f32 0.0, %v208
  %v210 = vpop.f32.mrf.mxu0
  %v211 = vpop.f32.mrf.mxu0
  %v212 = vadd.f32 0.0, %v211
  %v213 = vpop.f32.mrf.mxu0
  %214 = vmatprep.mubr.bf16.mxu0 0
  %215 = vmatmul.mubr.bf16.gmra.mxu0 %v124
  %v216 = vpop.f32.mrf.mxu0
  %v217 = vadd.f32 0.0, %v216
  %v218 = vpop.f32.mrf.mxu0
  %v219 = vpop.f32.mrf.mxu0
  %v220 = vadd.f32 0.0, %v219
  %v221 = vpop.f32.mrf.mxu0
  %222 = vdwg.mxu0
  %v223 = vld [vmem:[%s2] sm:$0x1]
  %v224 = vld [vmem:[%s3] sm:$0x1]
  %vm225 = vcmask 130048
  %v226 = vsel %vm225, %v161, 0.0
  %v227 = vsel %vm225, %v164, 0.0
  %v228 = vadd.f32 %v226, %v227
  %v229 = vsel %vm225, %v169, 0.0
  %v230 = vadd.f32 %v228, %v229
  %v231 = vsel %vm225, %v172, 0.0
  %v232 = vadd.f32 %v230, %v231
  %v233 = vsel %vm225, %v177, 0.0
  %v234 = vadd.f32 %v232, %v233
  %v235 = vsel %vm225, %v180, 0.0
  %v236 = vadd.f32 %v234, %v235
  %v237 = vsel %vm225, %v185, 0.0
  %v238 = vadd.f32 %v236, %v237
  %v239 = vsel %vm225, %v188, 0.0
  %v240 = vadd.f32 %v238, %v239
  %v241 = vsel %vm225, %v193, 0.0
  %v242 = vadd.f32 %v240, %v241
  %v243 = vsel %vm225, %v196, 0.0
  %v244 = vadd.f32 %v242, %v243
  %v245 = vsel %vm225, %v201, 0.0
  %v246 = vadd.f32 %v244, %v245
  %v247 = vsel %vm225, %v204, 0.0
  %v248 = vadd.f32 %v246, %v247
  %v249 = vsel %vm225, %v209, 0.0
  %v250 = vadd.f32 %v248, %v249
  %v251 = vsel %vm225, %v212, 0.0
  %v252 = vadd.f32 %v250, %v251
  %v253 = vsel %vm225, %v217, 0.0
  %v254 = vadd.f32 %v252, %v253
  %v255 = vsel %vm225, %v220, 0.0
  %v256 = vadd.f32 %v254, %v255
  %v257 = vrot.slane %v256, 4
  %v258 = vadd.f32 %v256, %v257
  %v259 = vrot.slane %v258, 2
  %v260 = vadd.f32 %v258, %v259
  %v261 = vrot.slane %v260, 1
  %v262 = vadd.f32 %v260, %v261
  %v263 = vrcp.pop 128.0
  %v264 = vmul.f32 %v262, %v263
  %v265 = vmul.f32 %v161, %v161
  %v266 = vmul.f32 %v164, %v164
  %v267 = vmul.f32 %v169, %v169
  %v268 = vmul.f32 %v172, %v172
  %v269 = vmul.f32 %v177, %v177
  %v270 = vmul.f32 %v180, %v180
  %v271 = vmul.f32 %v185, %v185
  %v272 = vmul.f32 %v188, %v188
  %v273 = vmul.f32 %v193, %v193
  %v274 = vmul.f32 %v196, %v196
  %v275 = vmul.f32 %v201, %v201
  %v276 = vmul.f32 %v204, %v204
  %v277 = vmul.f32 %v209, %v209
  %v278 = vmul.f32 %v212, %v212
  %v279 = vmul.f32 %v217, %v217
  %v280 = vmul.f32 %v220, %v220
  %v281 = vsel %vm225, %v265, 0.0
  %v282 = vsel %vm225, %v266, 0.0
  %v283 = vadd.f32 %v281, %v282
  %v284 = vsel %vm225, %v267, 0.0
  %v285 = vadd.f32 %v283, %v284
  %v286 = vsel %vm225, %v268, 0.0
  %v287 = vadd.f32 %v285, %v286
  %v288 = vsel %vm225, %v269, 0.0
  %v289 = vadd.f32 %v287, %v288
  %v290 = vsel %vm225, %v270, 0.0
  %v291 = vadd.f32 %v289, %v290
  %v292 = vsel %vm225, %v271, 0.0
  %v293 = vadd.f32 %v291, %v292
  %v294 = vsel %vm225, %v272, 0.0
  %v295 = vadd.f32 %v293, %v294
  %v296 = vsel %vm225, %v273, 0.0
  %v297 = vadd.f32 %v295, %v296
  %v298 = vsel %vm225, %v274, 0.0
  %v299 = vadd.f32 %v297, %v298
  %v300 = vsel %vm225, %v275, 0.0
  %v301 = vadd.f32 %v299, %v300
  %v302 = vsel %vm225, %v276, 0.0
  %v303 = vadd.f32 %v301, %v302
  %v304 = vsel %vm225, %v277, 0.0
  %v305 = vadd.f32 %v303, %v304
  %v306 = vsel %vm225, %v278, 0.0
  %v307 = vadd.f32 %v305, %v306
  %v308 = vsel %vm225, %v279, 0.0
  %v309 = vadd.f32 %v307, %v308
  %v310 = vsel %vm225, %v280, 0.0
  %v311 = vadd.f32 %v309, %v310
  %v312 = vrot.slane %v311, 4
  %v313 = vadd.f32 %v311, %v312
  %v314 = vrot.slane %v313, 2
  %v315 = vadd.f32 %v313, %v314
  %v316 = vrot.slane %v315, 1
  %v317 = vadd.f32 %v315, %v316
  %v318 = vmul.f32 %v317, %v263
  %v319 = vmul.f32 %v264, %v264
  %v320 = vsub.f32 %v318, %v319
  %v321 = vmax.f32 %v320, 0.0
  %v322 = vadd.f32 %v321, 0.001
  %v323 = vrsqrt.pop %v322
  %v324 = vmul.f32 %v223, %v323
  %v326 = vlaneseq
  %v327 = vshrl.u32 %v326, 7
  %v328 = vsub.s32 0, %v327
  %v329 = vrot.slane %v324, %v328
  %v331 = vmul.f32 %v161, %v329
  %v332 = vmul.f32 %v164, %v329
  %v333 = vmul.f32 %v169, %v329
  %v334 = vmul.f32 %v172, %v329
  %v335 = vmul.f32 %v177, %v329
  %v336 = vmul.f32 %v180, %v329
  %v337 = vmul.f32 %v185, %v329
  %v338 = vmul.f32 %v188, %v329
  %v339 = vmul.f32 %v193, %v329
  %v340 = vmul.f32 %v196, %v329
  %v341 = vmul.f32 %v201, %v329
  %v342 = vmul.f32 %v204, %v329
  %v343 = vmul.f32 %v209, %v329
  %v344 = vmul.f32 %v212, %v329
  %v345 = vmul.f32 %v217, %v329
  %v346 = vmul.f32 %v220, %v329
  %v347 = vmul.f32 %v264, %v324
  %v348 = vsub.f32 %v224, %v347
  %v350 = vlaneseq
  %v351 = vshrl.u32 %v350, 7
  %v352 = vsub.s32 0, %v351
  %v353 = vrot.slane %v348, %v352
  %v355 = vadd.f32 %v331, %v353
  %v356 = vadd.f32 %v332, %v353
  %v357 = vadd.f32 %v333, %v353
  %v358 = vadd.f32 %v334, %v353
  %v359 = vadd.f32 %v335, %v353
  %v360 = vadd.f32 %v336, %v353
  %v361 = vadd.f32 %v337, %v353
  %v362 = vadd.f32 %v338, %v353
  %v363 = vadd.f32 %v339, %v353
  %v364 = vadd.f32 %v340, %v353
  %v365 = vadd.f32 %v341, %v353
  %v366 = vadd.f32 %v342, %v353
  %v367 = vadd.f32 %v343, %v353
  %v368 = vadd.f32 %v344, %v353
  %v369 = vadd.f32 %v345, %v353
  %v370 = vadd.f32 %v346, %v353
  %v371 = vld [vmem:[%s4] sm:$0xff]
  %v372 = vld [vmem:[%s4 + $0x8] sm:$0xff]
  %v373 = vld [vmem:[%s4 + $0x10] sm:$0xff]
  %v374 = vld [vmem:[%s4 + $0x18] sm:$0xff]
  %v375 = vld [vmem:[%s4 + $0x20] sm:$0xff]
  %v376 = vld [vmem:[%s4 + $0x28] sm:$0xff]
  %v377 = vld [vmem:[%s4 + $0x30] sm:$0xff]
  %v378 = vld [vmem:[%s4 + $0x38] sm:$0xff]
  %v379 = vld [vmem:[%s4 + $0x40] sm:$0xff]
  %v380 = vld [vmem:[%s4 + $0x48] sm:$0xff]
  %v381 = vld [vmem:[%s4 + $0x50] sm:$0xff]
  %v382 = vld [vmem:[%s4 + $0x58] sm:$0xff]
  %v383 = vld [vmem:[%s4 + $0x60] sm:$0xff]
  %v384 = vld [vmem:[%s4 + $0x68] sm:$0xff]
  %v385 = vld [vmem:[%s4 + $0x70] sm:$0xff]
  %v386 = vld [vmem:[%s4 + $0x78] sm:$0xff]
  %v387 = vadd.f32 %v355, %v371
  %v388 = vadd.f32 %v356, %v372
  %v389 = vadd.f32 %v357, %v373
  %v390 = vadd.f32 %v358, %v374
  %v391 = vadd.f32 %v359, %v375
  %v392 = vadd.f32 %v360, %v376
  %v393 = vadd.f32 %v361, %v377
  %v394 = vadd.f32 %v362, %v378
  %v395 = vadd.f32 %v363, %v379
  %v396 = vadd.f32 %v364, %v380
  %v397 = vadd.f32 %v365, %v381
  %v398 = vadd.f32 %v366, %v382
  %v399 = vadd.f32 %v367, %v383
  %v400 = vadd.f32 %v368, %v384
  %v401 = vadd.f32 %v369, %v385
  %v402 = vadd.f32 %v370, %v386
  %v403 = vmax.f32 %v387, 0.0
  %v404 = vmax.f32 %v388, 0.0
  %v405 = vmax.f32 %v389, 0.0
  %v406 = vmax.f32 %v390, 0.0
  %v407 = vmax.f32 %v391, 0.0
  %v408 = vmax.f32 %v392, 0.0
  %v409 = vmax.f32 %v393, 0.0
  %v410 = vmax.f32 %v394, 0.0
  %v411 = vmax.f32 %v395, 0.0
  %v412 = vmax.f32 %v396, 0.0
  %v413 = vmax.f32 %v397, 0.0
  %v414 = vmax.f32 %v398, 0.0
  %v415 = vmax.f32 %v399, 0.0
  %v416 = vmax.f32 %v400, 0.0
  %v417 = vmax.f32 %v401, 0.0
  %v418 = vmax.f32 %v402, 0.0
  %419 = vst.msk [vmem:[%s5] sm:$0xff] %vm225, %v403
  %420 = vst.msk [vmem:[%s5 + $0x8] sm:$0xff] %vm225, %v404
  %421 = vst.msk [vmem:[%s5 + $0x10] sm:$0xff] %vm225, %v405
  %422 = vst.msk [vmem:[%s5 + $0x18] sm:$0xff] %vm225, %v406
  %423 = vst.msk [vmem:[%s5 + $0x20] sm:$0xff] %vm225, %v407
  %424 = vst.msk [vmem:[%s5 + $0x28] sm:$0xff] %vm225, %v408
  %425 = vst.msk [vmem:[%s5 + $0x30] sm:$0xff] %vm225, %v409
  %426 = vst.msk [vmem:[%s5 + $0x38] sm:$0xff] %vm225, %v410
  %427 = vst.msk [vmem:[%s5 + $0x40] sm:$0xff] %vm225, %v411
  %428 = vst.msk [vmem:[%s5 + $0x48] sm:$0xff] %vm225, %v412
  %429 = vst.msk [vmem:[%s5 + $0x50] sm:$0xff] %vm225, %v413
  %430 = vst.msk [vmem:[%s5 + $0x58] sm:$0xff] %vm225, %v414
  %431 = vst.msk [vmem:[%s5 + $0x60] sm:$0xff] %vm225, %v415
  %432 = vst.msk [vmem:[%s5 + $0x68] sm:$0xff] %vm225, %v416
  %433 = vst.msk [vmem:[%s5 + $0x70] sm:$0xff] %vm225, %v417
  %434 = vst.msk [vmem:[%s5 + $0x78] sm:$0xff] %vm225, %v418
  // Predicated region
  $region22: #{net_forward.148} parent=0 // pred_check
    _
  $region23: #{net_forward.148} parent=0 // pred_check_branch
    %436 = sbr.rel (0) target = $region25
  $region24: #{net_forward.148} parent=0 // pred_region
    _
  $region25: #{net_forward.148} parent=0 // pred_fallthru
    _
  // Predicated region
  $region26: #{net_forward.148} parent=0 // pred_check
    _
  $region27: #{net_forward.148} parent=0 // pred_check_branch
    %438 = sbr.rel (0) target = $region29
  $region28: #{net_forward.148} parent=0 // pred_region
    _
  $region29: #{net_forward.148} parent=0 // pred_fallthru
    _

// kernel: net_forward.153
$region0: #{net_forward.153}
  #allocation0 [shape = 'u32[]', space=smem, size = 0x4, offset = 0x4, fixed_abs, tag = 'smem constant byte address 0x4 - core index']
  #allocation1 [shape = 'u32[144,128]{1,0:T(1,128)}', space=vmem, size = 0x12000, scoped, tag = 'internal scratch']
  %s0 = inlined_call_operand.vmem [shape: bf16[512,64], index: 0, kind: input, shape index: {}]
  %s1 = inlined_call_operand.vmem [shape: bf16[64,5], index: 1, kind: input, shape index: {}]
  %s2 = inlined_call_operand.vmem [shape: f32[1,5], index: 2, kind: input, shape index: {}]
  %s3 = inlined_call_operand.vmem [shape: f32[512,5], index: 3, kind: output, shape index: {}]
  %s4 = sld [smem:[#allocation0]]
  $region22: #{net_forward.153} parent=0
    _
  %s6 = ssub.s32 1, %s4
  %s7 = scalar_select 0, %s6, %s4
  // Predicated region
  $region2: #{net_forward.153} parent=0 // pred_check
    _
  $region3: #{net_forward.153} parent=0 // pred_check_branch
    %9 = sbr.rel (0) target = $region5
  $region4: #{net_forward.153} parent=0 // pred_region
    _
  $region5: #{net_forward.153} parent=0 // pred_fallthru
    _
  // Predicated region
  $region6: #{net_forward.153} parent=0 // pred_check
    _
  $region7: #{net_forward.153} parent=0 // pred_check_branch
    %11 = sbr.rel (0) target = $region9
  $region8: #{net_forward.153} parent=0 // pred_region
    _
  $region9: #{net_forward.153} parent=0 // pred_fallthru
    _
  // Predicated region
  $region10: #{net_forward.153} parent=0 // pred_check
    _
  $region11: #{net_forward.153} parent=0 // pred_check_branch
    %13 = sbr.rel (0) target = $region13
  $region12: #{net_forward.153} parent=0 // pred_region
    _
  $region13: #{net_forward.153} parent=0 // pred_fallthru
    _
  %v15 = vld [vmem:[%s0] sm:$0xf]
  %v16 = vld [vmem:[%s0 + $0x4] sm:$0xf]
  %v17 = vld [vmem:[%s0 + $0x8] sm:$0xf]
  %v18 = vld [vmem:[%s0 + $0xc] sm:$0xf]
  %v19 = vld [vmem:[%s0 + $0x10] sm:$0xf]
  %v20 = vld [vmem:[%s0 + $0x14] sm:$0xf]
  %v21 = vld [vmem:[%s0 + $0x18] sm:$0xf]
  %v22 = vld [vmem:[%s0 + $0x1c] sm:$0xf]
  %v23 = vld [vmem:[%s0 + $0x20] sm:$0xf]
  %v24 = vld [vmem:[%s0 + $0x24] sm:$0xf]
  %v25 = vld [vmem:[%s0 + $0x28] sm:$0xf]
  %v26 = vld [vmem:[%s0 + $0x2c] sm:$0xf]
  %v27 = vld [vmem:[%s0 + $0x30] sm:$0xf]
  %v28 = vld [vmem:[%s0 + $0x34] sm:$0xf]
  %v29 = vld [vmem:[%s0 + $0x38] sm:$0xf]
  %v30 = vld [vmem:[%s0 + $0x3c] sm:$0xf]
  %v31 = vld [vmem:[%s0 + $0x40] sm:$0xf]
  %v32 = vld [vmem:[%s0 + $0x44] sm:$0xf]
  %v33 = vld [vmem:[%s0 + $0x48] sm:$0xf]
  %v34 = vld [vmem:[%s0 + $0x4c] sm:$0xf]
  %v35 = vld [vmem:[%s0 + $0x50] sm:$0xf]
  %v36 = vld [vmem:[%s0 + $0x54] sm:$0xf]
  %v37 = vld [vmem:[%s0 + $0x58] sm:$0xf]
  %v38 = vld [vmem:[%s0 + $0x5c] sm:$0xf]
  %v39 = vld [vmem:[%s0 + $0x60] sm:$0xf]
  %v40 = vld [vmem:[%s0 + $0x64] sm:$0xf]
  %v41 = vld [vmem:[%s0 + $0x68] sm:$0xf]
  %v42 = vld [vmem:[%s0 + $0x6c] sm:$0xf]
  %v43 = vld [vmem:[%s0 + $0x70] sm:$0xf]
  %v44 = vld [vmem:[%s0 + $0x74] sm:$0xf]
  %v45 = vld [vmem:[%s0 + $0x78] sm:$0xf]
  %v46 = vld [vmem:[%s0 + $0x7c] sm:$0xf]
  %v47 = vld [vmem:[%s0 + $0x80] sm:$0xf]
  %v48 = vld [vmem:[%s0 + $0x84] sm:$0xf]
  %v49 = vld [vmem:[%s0 + $0x88] sm:$0xf]
  %v50 = vld [vmem:[%s0 + $0x8c] sm:$0xf]
  %v51 = vld [vmem:[%s0 + $0x90] sm:$0xf]
  %v52 = vld [vmem:[%s0 + $0x94] sm:$0xf]
  %v53 = vld [vmem:[%s0 + $0x98] sm:$0xf]
  %v54 = vld [vmem:[%s0 + $0x9c] sm:$0xf]
  %v55 = vld [vmem:[%s0 + $0xa0] sm:$0xf]
  %v56 = vld [vmem:[%s0 + $0xa4] sm:$0xf]
  %v57 = vld [vmem:[%s0 + $0xa8] sm:$0xf]
  %v58 = vld [vmem:[%s0 + $0xac] sm:$0xf]
  %v59 = vld [vmem:[%s0 + $0xb0] sm:$0xf]
  %v60 = vld [vmem:[%s0 + $0xb4] sm:$0xf]
  %v61 = vld [vmem:[%s0 + $0xb8] sm:$0xf]
  %v62 = vld [vmem:[%s0 + $0xbc] sm:$0xf]
  %v63 = vld [vmem:[%s0 + $0xc0] sm:$0xf]
  %v64 = vld [vmem:[%s0 + $0xc4] sm:$0xf]
  %v65 = vld [vmem:[%s0 + $0xc8] sm:$0xf]
  %v66 = vld [vmem:[%s0 + $0xcc] sm:$0xf]
  %v67 = vld [vmem:[%s0 + $0xd0] sm:$0xf]
  %v68 = vld [vmem:[%s0 + $0xd4] sm:$0xf]
  %v69 = vld [vmem:[%s0 + $0xd8] sm:$0xf]
  %v70 = vld [vmem:[%s0 + $0xdc] sm:$0xf]
  %v71 = vld [vmem:[%s0 + $0xe0] sm:$0xf]
  %v72 = vld [vmem:[%s0 + $0xe4] sm:$0xf]
  %v73 = vld [vmem:[%s0 + $0xe8] sm:$0xf]
  %v74 = vld [vmem:[%s0 + $0xec] sm:$0xf]
  %v75 = vld [vmem:[%s0 + $0xf0] sm:$0xf]
  %v76 = vld [vmem:[%s0 + $0xf4] sm:$0xf]
  %v77 = vld [vmem:[%s0 + $0xf8] sm:$0xf]
  %v78 = vld [vmem:[%s0 + $0xfc] sm:$0xf]
  %v79 = vld [vmem:[%s1] sm:$0xf]
  %v80 = vld [vmem:[%s1 + $0x4] sm:$0xf]
  %v81 = vld [vmem:[%s1 + $0x8] sm:$0xf]
  %v82 = vld [vmem:[%s1 + $0xc] sm:$0xf]
  %v83 = vld [vmem:[%s1 + $0x10] sm:$0xf]
  %v84 = vld [vmem:[%s1 + $0x14] sm:$0xf]
  %v85 = vld [vmem:[%s1 + $0x18] sm:$0xf]
  %v86 = vld [vmem:[%s1 + $0x1c] sm:$0xf]
  %v87 = vld [vmem:[%s2] sm:$0x1]
  %v89 = vlaneseq
  %v90 = vshrl.u32 %v89, 7
  %v91 = vsub.s32 0, %v90
  %v92 = vrot.slane %v87, %v91
  %v158 = vunpack.c.l.b16 %v15
  %v159 = vunpack.c.l.b16 %v16
  %v160 = vunpack.c.l.b16 %v17
  %v161 = vunpack.c.l.b16 %v18
  %v162 = vunpack.c.l.b16 %v19
  %v163 = vunpack.c.l.b16 %v20
  %v164 = vunpack.c.l.b16 %v21
  %v165 = vunpack.c.l.b16 %v22
  %v166 = vunpack.c.l.b16 %v23
  %v167 = vunpack.c.l.b16 %v24
  %v168 = vunpack.c.l.b16 %v25
  %v169 = vunpack.c.l.b16 %v26
  %v170 = vunpack.c.l.b16 %v27
  %v171 = vunpack.c.l.b16 %v28
  %v172 = vunpack.c.l.b16 %v29
  %v173 = vunpack.c.l.b16 %v30
  %v174 = vunpack.c.l.b16 %v31
  %v175 = vunpack.c.l.b16 %v32
  %v176 = vunpack.c.l.b16 %v33
  %v177 = vunpack.c.l.b16 %v34
  %v178 = vunpack.c.l.b16 %v35
  %v179 = vunpack.c.l.b16 %v36
  %v180 = vunpack.c.l.b16 %v37
  %v181 = vunpack.c.l.b16 %v38
  %v182 = vunpack.c.l.b16 %v39
  %v183 = vunpack.c.l.b16 %v40
  %v184 = vunpack.c.l.b16 %v41
  %v185 = vunpack.c.l.b16 %v42
  %v186 = vunpack.c.l.b16 %v43
  %v187 = vunpack.c.l.b16 %v44
  %v188 = vunpack.c.l.b16 %v45
  %v189 = vunpack.c.l.b16 %v46
  %v190 = vunpack.c.l.b16 %v47
  %v191 = vunpack.c.l.b16 %v48
  %v192 = vunpack.c.l.b16 %v49
  %v193 = vunpack.c.l.b16 %v50
  %v194 = vunpack.c.l.b16 %v51
  %v195 = vunpack.c.l.b16 %v52
  %v196 = vunpack.c.l.b16 %v53
  %v197 = vunpack.c.l.b16 %v54
  %v198 = vunpack.c.l.b16 %v55
  %v199 = vunpack.c.l.b16 %v56
  %v200 = vunpack.c.l.b16 %v57
  %v201 = vunpack.c.l.b16 %v58
  %v202 = vunpack.c.l.b16 %v59
  %v203 = vunpack.c.l.b16 %v60
  %v204 = vunpack.c.l.b16 %v61
  %v205 = vunpack.c.l.b16 %v62
  %v206 = vunpack.c.l.b16 %v63
  %v207 = vunpack.c.l.b16 %v64
  %v208 = vunpack.c.l.b16 %v65
  %v209 = vunpack.c.l.b16 %v66
  %v210 = vunpack.c.l.b16 %v67
  %v211 = vunpack.c.l.b16 %v68
  %v212 = vunpack.c.l.b16 %v69
  %v213 = vunpack.c.l.b16 %v70
  %v214 = vunpack.c.l.b16 %v71
  %v215 = vunpack.c.l.b16 %v72
  %v216 = vunpack.c.l.b16 %v73
  %v217 = vunpack.c.l.b16 %v74
  %v218 = vunpack.c.l.b16 %v75
  %v219 = vunpack.c.l.b16 %v76
  %v220 = vunpack.c.l.b16 %v77
  %v221 = vunpack.c.l.b16 %v78
  %v222 = vpack.c.b16 %v159, %v158
  %v223 = vpack.c.b16 %v161, %v160
  %v224 = vpack.c.b16 %v163, %v162
  %v225 = vpack.c.b16 %v165, %v164
  %v226 = vpack.c.b16 %v167, %v166
  %v227 = vpack.c.b16 %v169, %v168
  %v228 = vpack.c.b16 %v171, %v170
  %v229 = vpack.c.b16 %v173, %v172
  %v230 = vpack.c.b16 %v175, %v174
  %v231 = vpack.c.b16 %v177, %v176
  %v232 = vpack.c.b16 %v179, %v178
  %v233 = vpack.c.b16 %v181, %v180
  %v234 = vpack.c.b16 %v183, %v182
  %v235 = vpack.c.b16 %v185, %v184
  %v236 = vpack.c.b16 %v187, %v186
  %v237 = vpack.c.b16 %v189, %v188
  %v238 = vpack.c.b16 %v191, %v190
  %v239 = vpack.c.b16 %v193, %v192
  %v240 = vpack.c.b16 %v195, %v194
  %v241 = vpack.c.b16 %v197, %v196
  %v242 = vpack.c.b16 %v199, %v198
  %v243 = vpack.c.b16 %v201, %v200
  %v244 = vpack.c.b16 %v203, %v202
  %v245 = vpack.c.b16 %v205, %v204
  %v246 = vpack.c.b16 %v207, %v206
  %v247 = vpack.c.b16 %v209, %v208
  %v248 = vpack.c.b16 %v211, %v210
  %v249 = vpack.c.b16 %v213, %v212
  %v250 = vpack.c.b16 %v215, %v214
  %v251 = vpack.c.b16 %v217, %v216
  %v252 = vpack.c.b16 %v219, %v218
  %v253 = vpack.c.b16 %v221, %v220
  %v262 = vunpack.c.l.b16 %v79
  %v263 = vunpack.c.l.b16 %v80
  %v264 = vunpack.c.l.b16 %v81
  %v265 = vunpack.c.l.b16 %v82
  %v266 = vunpack.c.l.b16 %v83
  %v267 = vunpack.c.l.b16 %v84
  %v268 = vunpack.c.l.b16 %v85
  %v269 = vunpack.c.l.b16 %v86
  %v270 = vpack.c.b16 %v263, %v262
  %v271 = vpack.c.b16 %v265, %v264
  %v272 = vpack.c.b16 %v267, %v266
  %v273 = vpack.c.b16 %v269, %v268
  %vm278 = vcmask 523264
  %v280 = vsel %vm278, %v222, 0
  %v283 = vsel %vm278, %v223, 0
  %v286 = vsel %vm278, %v224, 0
  %v289 = vsel %vm278, %v225, 0
  %v292 = vsel %vm278, %v226, 0
  %v295 = vsel %vm278, %v227, 0
  %v298 = vsel %vm278, %v228, 0
  %v301 = vsel %vm278, %v229, 0
  %v304 = vsel %vm278, %v230, 0
  %v307 = vsel %vm278, %v231, 0
  %v310 = vsel %vm278, %v232, 0
  %v313 = vsel %vm278, %v233, 0
  %v316 = vsel %vm278, %v234, 0
  %v319 = vsel %vm278, %v235, 0
  %v322 = vsel %vm278, %v236, 0
  %v325 = vsel %vm278, %v237, 0
  %v328 = vsel %vm278, %v238, 0
  %v331 = vsel %vm278, %v239, 0
  %v334 = vsel %vm278, %v240, 0
  %v337 = vsel %vm278, %v241, 0
  %v340 = vsel %vm278, %v242, 0
  %v343 = vsel %vm278, %v243, 0
  %v346 = vsel %vm278, %v244, 0
  %v349 = vsel %vm278, %v245, 0
  %v352 = vsel %vm278, %v246, 0
  %v355 = vsel %vm278, %v247, 0
  %v358 = vsel %vm278, %v248, 0
  %v361 = vsel %vm278, %v249, 0
  %v364 = vsel %vm278, %v250, 0
  %v367 = vsel %vm278, %v251, 0
  %v370 = vsel %vm278, %v252, 0
  %v373 = vsel %vm278, %v253, 0
  %375 = vmatprep.subr.bf16.mxu0 0
  %376 = vmatpush1.bf16.msra.mxu0 0
  %377 = vmatprep.subr.bf16.mxu0 0
  %378 = vmatpush1.bf16.msra.mxu0 0
  %379 = vmatprep.subr.bf16.mxu0 0
  %380 = vmatpush1.bf16.msra.mxu0 0
  %381 = vmatprep.subr.bf16.mxu0 0
  %382 = vmatpush1.bf16.msra.mxu0 0
  %383 = vmatprep.subr.bf16.mxu0 0
  %384 = vmatpush1.bf16.msra.mxu0 %v273
  %385 = vmatprep.subr.bf16.mxu0 0
  %386 = vmatpush1.bf16.msra.mxu0 %v272
  %387 = vmatprep.subr.bf16.mxu0 0
  %388 = vmatpush1.bf16.msra.mxu0 %v271
  %389 = vmatprep.subr.bf16.mxu0 0
  %390 = vmatpush1.bf16.msra.mxu0 %v270
  %391 = vmatprep.subr.bf16.mxu0 0
  %392 = vmatpush2.bf16.msra.mxu0 0
  %393 = vmatprep.subr.bf16.mxu0 0
  %394 = vmatpush2.bf16.msra.mxu0 0
  %395 = vmatprep.subr.bf16.mxu0 0
  %396 = vmatpush2.bf16.msra.mxu0 0
  %397 = vmatprep.subr.bf16.mxu0 0
  %398 = vmatpush2.bf16.msra.mxu0 0
  %399 = vmatprep.subr.bf16.mxu0 0
  %400 = vmatpush2.bf16.msra.mxu0 0
  %401 = vmatprep.subr.bf16.mxu0 0
  %402 = vmatpush2.bf16.msra.mxu0 0
  %403 = vmatprep.subr.bf16.mxu0 0
  %404 = vmatpush2.bf16.msra.mxu0 0
  %405 = vmatprep.subr.bf16.mxu0 0
  %406 = vmatpush2.bf16.msra.mxu0 0
  %407 = vmatprep.mubr.bf16.mxu0 0
  %408 = vmatmul.mubr.bf16.gmra.mxu0 %v280
  %v409 = vpop.f32.mrf.mxu0
  %v410 = vadd.f32 %v92, %v409
  %v411 = vpop.f32.mrf.mxu0
  %v412 = vpop.f32.mrf.mxu0
  %v413 = vadd.f32 %v92, %v412
  %v414 = vpop.f32.mrf.mxu0
  %415 = vmatprep.mubr.bf16.mxu0 0
  %416 = vmatmul.mubr.bf16.gmra.mxu0 %v283
  %v417 = vpop.f32.mrf.mxu0
  %v418 = vadd.f32 %v92, %v417
  %v419 = vpop.f32.mrf.mxu0
  %v420 = vpop.f32.mrf.mxu0
  %v421 = vadd.f32 %v92, %v420
  %v422 = vpop.f32.mrf.mxu0
  %423 = vmatprep.mubr.bf16.mxu0 0
  %424 = vmatmul.mubr.bf16.gmra.mxu0 %v286
  %v425 = vpop.f32.mrf.mxu0
  %v426 = vadd.f32 %v92, %v425
  %v427 = vpop.f32.mrf.mxu0
  %v428 = vpop.f32.mrf.mxu0
  %v429 = vadd.f32 %v92, %v428
  %v430 = vpop.f32.mrf.mxu0
  %431 = vmatprep.mubr.bf16.mxu0 0
  %432 = vmatmul.mubr.bf16.gmra.mxu0 %v289
  %v433 = vpop.f32.mrf.mxu0
  %v434 = vadd.f32 %v92, %v433
  %v435 = vpop.f32.mrf.mxu0
  %v436 = vpop.f32.mrf.mxu0
  %v437 = vadd.f32 %v92, %v436
  %v438 = vpop.f32.mrf.mxu0
  %439 = vmatprep.mubr.bf16.mxu0 0
  %440 = vmatmul.mubr.bf16.gmra.mxu0 %v292
  %v441 = vpop.f32.mrf.mxu0
  %v442 = vadd.f32 %v92, %v441
  %v443 = vpop.f32.mrf.mxu0
  %v444 = vpop.f32.mrf.mxu0
  %v445 = vadd.f32 %v92, %v444
  %v446 = vpop.f32.mrf.mxu0
  %447 = vmatprep.mubr.bf16.mxu0 0
  %448 = vmatmul.mubr.bf16.gmra.mxu0 %v295
  %v449 = vpop.f32.mrf.mxu0
  %v450 = vadd.f32 %v92, %v449
  %v451 = vpop.f32.mrf.mxu0
  %v452 = vpop.f32.mrf.mxu0
  %v453 = vadd.f32 %v92, %v452
  %v454 = vpop.f32.mrf.mxu0
  %455 = vmatprep.mubr.bf16.mxu0 0
  %456 = vmatmul.mubr.bf16.gmra.mxu0 %v298
  %v457 = vpop.f32.mrf.mxu0
  %v458 = vadd.f32 %v92, %v457
  %v459 = vpop.f32.mrf.mxu0
  %v460 = vpop.f32.mrf.mxu0
  %v461 = vadd.f32 %v92, %v460
  %v462 = vpop.f32.mrf.mxu0
  %463 = vmatprep.mubr.bf16.mxu0 0
  %464 = vmatmul.mubr.bf16.gmra.mxu0 %v301
  %v465 = vpop.f32.mrf.mxu0
  %v466 = vadd.f32 %v92, %v465
  %v467 = vpop.f32.mrf.mxu0
  %v468 = vpop.f32.mrf.mxu0
  %v469 = vadd.f32 %v92, %v468
  %v470 = vpop.f32.mrf.mxu0
  %471 = vmatprep.mubr.bf16.mxu0 0
  %472 = vmatmul.mubr.bf16.gmra.mxu0 %v304
  %v473 = vpop.f32.mrf.mxu0
  %v474 = vadd.f32 %v92, %v473
  %v475 = vpop.f32.mrf.mxu0
  %v476 = vpop.f32.mrf.mxu0
  %v477 = vadd.f32 %v92, %v476
  %v478 = vpop.f32.mrf.mxu0
  %479 = vmatprep.mubr.bf16.mxu0 0
  %480 = vmatmul.mubr.bf16.gmra.mxu0 %v307
  %v481 = vpop.f32.mrf.mxu0
  %v482 = vadd.f32 %v92, %v481
  %v483 = vpop.f32.mrf.mxu0
  %v484 = vpop.f32.mrf.mxu0
  %v485 = vadd.f32 %v92, %v484
  %v486 = vpop.f32.mrf.mxu0
  %487 = vmatprep.mubr.bf16.mxu0 0
  %488 = vmatmul.mubr.bf16.gmra.mxu0 %v310
  %v489 = vpop.f32.mrf.mxu0
  %v490 = vadd.f32 %v92, %v489
  %v491 = vpop.f32.mrf.mxu0
  %v492 = vpop.f32.mrf.mxu0
  %v493 = vadd.f32 %v92, %v492
  %v494 = vpop.f32.mrf.mxu0
  %495 = vmatprep.mubr.bf16.mxu0 0
  %496 = vmatmul.mubr.bf16.gmra.mxu0 %v313
  %v497 = vpop.f32.mrf.mxu0
  %v498 = vadd.f32 %v92, %v497
  %v499 = vpop.f32.mrf.mxu0
  %v500 = vpop.f32.mrf.mxu0
  %v501 = vadd.f32 %v92, %v500
  %v502 = vpop.f32.mrf.mxu0
  %503 = vmatprep.mubr.bf16.mxu0 0
  %504 = vmatmul.mubr.bf16.gmra.mxu0 %v316
  %v505 = vpop.f32.mrf.mxu0
  %v506 = vadd.f32 %v92, %v505
  %v507 = vpop.f32.mrf.mxu0
  %v508 = vpop.f32.mrf.mxu0
  %v509 = vadd.f32 %v92, %v508
  %v510 = vpop.f32.mrf.mxu0
  %511 = vmatprep.mubr.bf16.mxu0 0
  %512 = vmatmul.mubr.bf16.gmra.mxu0 %v319
  %v513 = vpop.f32.mrf.mxu0
  %v514 = vadd.f32 %v92, %v513
  %v515 = vpop.f32.mrf.mxu0
  %v516 = vpop.f32.mrf.mxu0
  %v517 = vadd.f32 %v92, %v516
  %v518 = vpop.f32.mrf.mxu0
  %519 = vmatprep.mubr.bf16.mxu0 0
  %520 = vmatmul.mubr.bf16.gmra.mxu0 %v322
  %v521 = vpop.f32.mrf.mxu0
  %v522 = vadd.f32 %v92, %v521
  %v523 = vpop.f32.mrf.mxu0
  %v524 = vpop.f32.mrf.mxu0
  %v525 = vadd.f32 %v92, %v524
  %v526 = vpop.f32.mrf.mxu0
  %527 = vmatprep.mubr.bf16.mxu0 0
  %528 = vmatmul.mubr.bf16.gmra.mxu0 %v325
  %v529 = vpop.f32.mrf.mxu0
  %v530 = vadd.f32 %v92, %v529
  %v531 = vpop.f32.mrf.mxu0
  %v532 = vpop.f32.mrf.mxu0
  %v533 = vadd.f32 %v92, %v532
  %v534 = vpop.f32.mrf.mxu0
  %535 = vmatprep.mubr.bf16.mxu0 0
  %536 = vmatmul.mubr.bf16.gmra.mxu0 %v328
  %v537 = vpop.f32.mrf.mxu0
  %v538 = vadd.f32 %v92, %v537
  %v539 = vpop.f32.mrf.mxu0
  %v540 = vpop.f32.mrf.mxu0
  %v541 = vadd.f32 %v92, %v540
  %v542 = vpop.f32.mrf.mxu0
  %543 = vmatprep.mubr.bf16.mxu0 0
  %544 = vmatmul.mubr.bf16.gmra.mxu0 %v331
  %v545 = vpop.f32.mrf.mxu0
  %v546 = vadd.f32 %v92, %v545
  %v547 = vpop.f32.mrf.mxu0
  %v548 = vpop.f32.mrf.mxu0
  %v549 = vadd.f32 %v92, %v548
  %v550 = vpop.f32.mrf.mxu0
  %551 = vmatprep.mubr.bf16.mxu0 0
  %552 = vmatmul.mubr.bf16.gmra.mxu0 %v334
  %v553 = vpop.f32.mrf.mxu0
  %v554 = vadd.f32 %v92, %v553
  %v555 = vpop.f32.mrf.mxu0
  %v556 = vpop.f32.mrf.mxu0
  %v557 = vadd.f32 %v92, %v556
  %v558 = vpop.f32.mrf.mxu0
  %559 = vmatprep.mubr.bf16.mxu0 0
  %560 = vmatmul.mubr.bf16.gmra.mxu0 %v337
  %v561 = vpop.f32.mrf.mxu0
  %v562 = vadd.f32 %v92, %v561
  %v563 = vpop.f32.mrf.mxu0
  %v564 = vpop.f32.mrf.mxu0
  %v565 = vadd.f32 %v92, %v564
  %v566 = vpop.f32.mrf.mxu0
  %567 = vmatprep.mubr.bf16.mxu0 0
  %568 = vmatmul.mubr.bf16.gmra.mxu0 %v340
  %v569 = vpop.f32.mrf.mxu0
  %v570 = vadd.f32 %v92, %v569
  %v571 = vpop.f32.mrf.mxu0
  %v572 = vpop.f32.mrf.mxu0
  %v573 = vadd.f32 %v92, %v572
  %v574 = vpop.f32.mrf.mxu0
  %575 = vmatprep.mubr.bf16.mxu0 0
  %576 = vmatmul.mubr.bf16.gmra.mxu0 %v343
  %v577 = vpop.f32.mrf.mxu0
  %v578 = vadd.f32 %v92, %v577
  %v579 = vpop.f32.mrf.mxu0
  %v580 = vpop.f32.mrf.mxu0
  %v581 = vadd.f32 %v92, %v580
  %v582 = vpop.f32.mrf.mxu0
  %583 = vmatprep.mubr.bf16.mxu0 0
  %584 = vmatmul.mubr.bf16.gmra.mxu0 %v346
  %v585 = vpop.f32.mrf.mxu0
  %v586 = vadd.f32 %v92, %v585
  %v587 = vpop.f32.mrf.mxu0
  %v588 = vpop.f32.mrf.mxu0
  %v589 = vadd.f32 %v92, %v588
  %v590 = vpop.f32.mrf.mxu0
  %591 = vmatprep.mubr.bf16.mxu0 0
  %592 = vmatmul.mubr.bf16.gmra.mxu0 %v349
  %v593 = vpop.f32.mrf.mxu0
  %v594 = vadd.f32 %v92, %v593
  %v595 = vpop.f32.mrf.mxu0
  %v596 = vpop.f32.mrf.mxu0
  %v597 = vadd.f32 %v92, %v596
  %v598 = vpop.f32.mrf.mxu0
  %599 = vmatprep.mubr.bf16.mxu0 0
  %600 = vmatmul.mubr.bf16.gmra.mxu0 %v352
  %v601 = vpop.f32.mrf.mxu0
  %v602 = vadd.f32 %v92, %v601
  %v603 = vpop.f32.mrf.mxu0
  %v604 = vpop.f32.mrf.mxu0
  %v605 = vadd.f32 %v92, %v604
  %v606 = vpop.f32.mrf.mxu0
  %607 = vmatprep.mubr.bf16.mxu0 0
  %608 = vmatmul.mubr.bf16.gmra.mxu0 %v355
  %v609 = vpop.f32.mrf.mxu0
  %v610 = vadd.f32 %v92, %v609
  %v611 = vpop.f32.mrf.mxu0
  %v612 = vpop.f32.mrf.mxu0
  %v613 = vadd.f32 %v92, %v612
  %v614 = vpop.f32.mrf.mxu0
  %615 = vmatprep.mubr.bf16.mxu0 0
  %616 = vmatmul.mubr.bf16.gmra.mxu0 %v358
  %v617 = vpop.f32.mrf.mxu0
  %v618 = vadd.f32 %v92, %v617
  %v619 = vpop.f32.mrf.mxu0
  %v620 = vpop.f32.mrf.mxu0
  %v621 = vadd.f32 %v92, %v620
  %v622 = vpop.f32.mrf.mxu0
  %623 = vmatprep.mubr.bf16.mxu0 0
  %624 = vmatmul.mubr.bf16.gmra.mxu0 %v361
  %v625 = vpop.f32.mrf.mxu0
  %v626 = vadd.f32 %v92, %v625
  %v627 = vpop.f32.mrf.mxu0
  %v628 = vpop.f32.mrf.mxu0
  %v629 = vadd.f32 %v92, %v628
  %v630 = vpop.f32.mrf.mxu0
  %631 = vmatprep.mubr.bf16.mxu0 0
  %632 = vmatmul.mubr.bf16.gmra.mxu0 %v364
  %v633 = vpop.f32.mrf.mxu0
  %v634 = vadd.f32 %v92, %v633
  %v635 = vpop.f32.mrf.mxu0
  %v636 = vpop.f32.mrf.mxu0
  %v637 = vadd.f32 %v92, %v636
  %v638 = vpop.f32.mrf.mxu0
  %639 = vmatprep.mubr.bf16.mxu0 0
  %640 = vmatmul.mubr.bf16.gmra.mxu0 %v367
  %v641 = vpop.f32.mrf.mxu0
  %v642 = vadd.f32 %v92, %v641
  %v643 = vpop.f32.mrf.mxu0
  %v644 = vpop.f32.mrf.mxu0
  %v645 = vadd.f32 %v92, %v644
  %v646 = vpop.f32.mrf.mxu0
  %647 = vmatprep.mubr.bf16.mxu0 0
  %648 = vmatmul.mubr.bf16.gmra.mxu0 %v370
  %v649 = vpop.f32.mrf.mxu0
  %v650 = vadd.f32 %v92, %v649
  %v651 = vpop.f32.mrf.mxu0
  %v652 = vpop.f32.mrf.mxu0
  %v653 = vadd.f32 %v92, %v652
  %v654 = vpop.f32.mrf.mxu0
  %655 = vmatprep.mubr.bf16.mxu0 0
  %656 = vmatmul.mubr.bf16.gmra.mxu0 %v373
  %v657 = vpop.f32.mrf.mxu0
  %v658 = vadd.f32 %v92, %v657
  %v659 = vpop.f32.mrf.mxu0
  %v660 = vpop.f32.mrf.mxu0
  %v661 = vadd.f32 %v92, %v660
  %v662 = vpop.f32.mrf.mxu0
  %663 = vdwg.mxu0
  %vm664 = vcmask 39936
  %665 = vst.msk [vmem:[%s3] sm:$0xff] %vm664, %v410
  %666 = vst.msk [vmem:[%s3 + $0x8] sm:$0xff] %vm664, %v413
  %667 = vst.msk [vmem:[%s3 + $0x10] sm:$0xff] %vm664, %v418
  %668 = vst.msk [vmem:[%s3 + $0x18] sm:$0xff] %vm664, %v421
  %669 = vst.msk [vmem:[%s3 + $0x20] sm:$0xff] %vm664, %v426
  %670 = vst.msk [vmem:[%s3 + $0x28] sm:$0xff] %vm664, %v429
  %671 = vst.msk [vmem:[%s3 + $0x30] sm:$0xff] %vm664, %v434
  %672 = vst.msk [vmem:[%s3 + $0x38] sm:$0xff] %vm664, %v437
  %673 = vst.msk [vmem:[%s3 + $0x40] sm:$0xff] %vm664, %v442
  %674 = vst.msk [vmem:[%s3 + $0x48] sm:$0xff] %vm664, %v445
  %675 = vst.msk [vmem:[%s3 + $0x50] sm:$0xff] %vm664, %v450
  %676 = vst.msk [vmem:[%s3 + $0x58] sm:$0xff] %vm664, %v453
  %677 = vst.msk [vmem:[%s3 + $0x60] sm:$0xff] %vm664, %v458
  %678 = vst.msk [vmem:[%s3 + $0x68] sm:$0xff] %vm664, %v461
  %679 = vst.msk [vmem:[%s3 + $0x70] sm:$0xff] %vm664, %v466
  %680 = vst.msk [vmem:[%s3 + $0x78] sm:$0xff] %vm664, %v469
  %681 = vst.msk [vmem:[%s3 + $0x80] sm:$0xff] %vm664, %v474
  %682 = vst.msk [vmem:[%s3 + $0x88] sm:$0xff] %vm664, %v477
  %683 = vst.msk [vmem:[%s3 + $0x90] sm:$0xff] %vm664, %v482
  %684 = vst.msk [vmem:[%s3 + $0x98] sm:$0xff] %vm664, %v485
  %685 = vst.msk [vmem:[%s3 + $0xa0] sm:$0xff] %vm664, %v490
  %686 = vst.msk [vmem:[%s3 + $0xa8] sm:$0xff] %vm664, %v493
  %687 = vst.msk [vmem:[%s3 + $0xb0] sm:$0xff] %vm664, %v498
  %688 = vst.msk [vmem:[%s3 + $0xb8] sm:$0xff] %vm664, %v501
  %689 = vst.msk [vmem:[%s3 + $0xc0] sm:$0xff] %vm664, %v506
  %690 = vst.msk [vmem:[%s3 + $0xc8] sm:$0xff] %vm664, %v509
  %691 = vst.msk [vmem:[%s3 + $0xd0] sm:$0xff] %vm664, %v514
  %692 = vst.msk [vmem:[%s3 + $0xd8] sm:$0xff] %vm664, %v517
  %693 = vst.msk [vmem:[%s3 + $0xe0] sm:$0xff] %vm664, %v522
  %694 = vst.msk [vmem:[%s3 + $0xe8] sm:$0xff] %vm664, %v525
  %695 = vst.msk [vmem:[%s3 + $0xf0] sm:$0xff] %vm664, %v530
  %696 = vst.msk [vmem:[%s3 + $0xf8] sm:$0xff] %vm664, %v533
  %697 = vst.msk [vmem:[%s3 + $0x100] sm:$0xff] %vm664, %v538
  %698 = vst.msk [vmem:[%s3 + $0x108] sm:$0xff] %vm664, %v541
  %699 = vst.msk [vmem:[%s3 + $0x110] sm:$0xff] %vm664, %v546
  %700 = vst.msk [vmem:[%s3 + $0x118] sm:$0xff] %vm664, %v549
  %701 = vst.msk [vmem:[%s3 + $0x120] sm:$0xff] %vm664, %v554
  %702 = vst.msk [vmem:[%s3 + $0x128] sm:$0xff] %vm664, %v557
  %703 = vst.msk [vmem:[%s3 + $0x130] sm:$0xff] %vm664, %v562
  %704 = vst.msk [vmem:[%s3 + $0x138] sm:$0xff] %vm664, %v565
  %705 = vst.msk [vmem:[%s3 + $0x140] sm:$0xff] %vm664, %v570
  %706 = vst.msk [vmem:[%s3 + $0x148] sm:$0xff] %vm664, %v573
  %707 = vst.msk [vmem:[%s3 + $0x150] sm:$0xff] %vm664, %v578
  %708 = vst.msk [vmem:[%s3 + $0x158] sm:$0xff] %vm664, %v581
  %709 = vst.msk [vmem:[%s3 + $0x160] sm:$0xff] %vm664, %v586
  %710 = vst.msk [vmem:[%s3 + $0x168] sm:$0xff] %vm664, %v589
  %711 = vst.msk [vmem:[%s3 + $0x170] sm:$0xff] %vm664, %v594
  %712 = vst.msk [vmem:[%s3 + $0x178] sm:$0xff] %vm664, %v597
  %713 = vst.msk [vmem:[%s3 + $0x180] sm:$0xff] %vm664, %v602
  %714 = vst.msk [vmem:[%s3 + $0x188] sm:$0xff] %vm664, %v605
  %715 = vst.msk [vmem:[%s3 + $0x190] sm:$0xff] %vm664, %v610
  %716 = vst.msk [vmem:[%s3 + $0x198] sm:$0xff] %vm664, %v613
  %717 = vst.msk [vmem:[%s3 + $0x1a0] sm:$0xff] %vm664, %v618
  %718 = vst.msk [vmem:[%s3 + $0x1a8] sm:$0xff] %vm664, %v621
  %719 = vst.msk [vmem:[%s3 + $0x1b0] sm:$0xff] %vm664, %v626
  %720 = vst.msk [vmem:[%s3 + $0x1b8] sm:$0xff] %vm664, %v629
  %721 = vst.msk [vmem:[%s3 + $0x1c0] sm:$0xff] %vm664, %v634
  %722 = vst.msk [vmem:[%s3 + $0x1c8] sm:$0xff] %vm664, %v637
  %723 = vst.msk [vmem:[%s3 + $0x1d0] sm:$0xff] %vm664, %v642
  %724 = vst.msk [vmem:[%s3 + $0x1d8] sm:$0xff] %vm664, %v645
  %725 = vst.msk [vmem:[%s3 + $0x1e0] sm:$0xff] %vm664, %v650
  %726 = vst.msk [vmem:[%s3 + $0x1e8] sm:$0xff] %vm664, %v653
  %727 = vst.msk [vmem:[%s3 + $0x1f0] sm:$0xff] %vm664, %v658
  %728 = vst.msk [vmem:[%s3 + $0x1f8] sm:$0xff] %vm664, %v661
  // Predicated region
  $region14: #{net_forward.153} parent=0 // pred_check
    _
  $region15: #{net_forward.153} parent=0 // pred_check_branch
    %730 = sbr.rel (0) target = $region17
  $region16: #{net_forward.153} parent=0 // pred_region
    _
  $region17: #{net_forward.153} parent=0 // pred_fallthru
    _
  // Predicated region
  $region18: #{net_forward.153} parent=0 // pred_check
    _
  $region19: #{net_forward.153} parent=0 // pred_check_branch
    %732 = sbr.rel (0) target = $region21
  $region20: #{net_forward.153} parent=0 // pred_region
    _
  $region21: #{net_forward.153} parent=0 // pred_fallthru
    _

</llo_original>
